<compile_context>
chip_gen: v7x
topology: tpu7x:2x2x1
jax: 0.10.0
libtpu: 0.0.40
codegen_flags: <defaults>
</compile_context>

<pallas_src>
import math

import jax
import jax.numpy as jnp
from jax.experimental import pallas as pl
from jax.experimental.pallas import tpu as pltpu

IMG_SIDE = 32
N_TILES = 2       # one w4 tile per v7x TensorCore; only 2 serial steps on v5e/v6e
SUBLANE = 8       # f32 sublane count -> batch padding granularity


def _generator_kernel(x_ref,
                      w1_ref, b1_ref,
                      w2_ref, b2_ref,
                      w3_ref, b3_ref,
                      w4_ref, b4_ref,
                      o_ref):
    # Layers 1-3: tiny weights kept resident in VMEM across grid steps;
    # recomputing them per output tile is negligible vs. the w4 tile DMA.
    x = x_ref[...].astype(jnp.bfloat16)
    h = jnp.dot(x, w1_ref[...], preferred_element_type=jnp.float32)
    h = jnp.maximum(h + b1_ref[...], 0.0).astype(jnp.bfloat16)

    h = jnp.dot(h, w2_ref[...], preferred_element_type=jnp.float32)
    h = jnp.maximum(h + b2_ref[...], 0.0).astype(jnp.bfloat16)

    h = jnp.dot(h, w3_ref[...], preferred_element_type=jnp.float32)
    h = jnp.maximum(h + b3_ref[...], 0.0).astype(jnp.bfloat16)

    # Layer 4: only the current contiguous (1024, TILE_N) tile of w4 is in VMEM
    # (leading tile axis squeezed away by the BlockSpec).
    h = jnp.dot(h, w4_ref[...], preferred_element_type=jnp.float32)
    o_ref[...] = jnp.tanh(h + b4_ref[...]).astype(o_ref.dtype)


def generator_forward(x, params):
    """x: (B, noise_dim) float32.  Returns (B, img_channels, 32, 32) float32."""
    B, noise_dim = x.shape
    n_tiles, hidden, tile_n = params["w4"].shape     # tile-major layout
    out_dim = n_tiles * tile_n
    img_channels = out_dim // (IMG_SIDE * IMG_SIDE)

    # Pad batch up to a sublane multiple; padded rows are discarded afterwards.
    b_pad = max(SUBLANE, ((B + SUBLANE - 1) // SUBLANE) * SUBLANE)
    x_p = jnp.zeros((b_pad, noise_dim), x.dtype).at[:B].set(x)

    def _const2(j):          # whole-array 2-D block, resident across the grid
        return (0, 0)

    def _w4_tile(j):         # contiguous tile j of the tile-major w4
        return (j, 0, 0)

    def _col_tile(j):        # slide over b4 / output columns
        return (0, j)

    in_specs = [
        pl.BlockSpec((b_pad, noise_dim), _const2),                 # x
        pl.BlockSpec(params["w1"].shape, _const2),                 # w1
        pl.BlockSpec(params["b1"].shape, _const2),                 # b1
        pl.BlockSpec(params["w2"].shape, _const2),                 # w2
        pl.BlockSpec(params["b2"].shape, _const2),                 # b2
        pl.BlockSpec(params["w3"].shape, _const2),                 # w3
        pl.BlockSpec(params["b3"].shape, _const2),                 # b3
        pl.BlockSpec((None, hidden, tile_n), _w4_tile),            # w4 tile (squeezed)
        pl.BlockSpec((1, tile_n), _col_tile),                      # b4 tile
    ]
    out_specs = pl.BlockSpec((b_pad, tile_n), _col_tile)

    out = pl.pallas_call(
        _generator_kernel,
        out_shape=jax.ShapeDtypeStruct((b_pad, out_dim), jnp.float32),
        grid=(n_tiles,),
        in_specs=in_specs,
        out_specs=out_specs,
        compiler_params=pltpu.CompilerParams(
            dimension_semantics=("parallel",),      # one w4 tile per TC on v7x
            vmem_limit_bytes=32 * 1024 * 1024,      # actual footprint ~10 MB
        ),
    )(x_p,
      params["w1"], params["b1"],
      params["w2"], params["b2"],
      params["w3"], params["b3"],
      params["w4"], params["b4"])

    # Matches torch's x.view(B, C, 32, 32) on the row-major (B, C*32*32) result.
    return out[:B].reshape(B, img_channels, IMG_SIDE, IMG_SIDE)


def init_generator_params(key, noise_dim, img_channels, n_tiles=N_TILES):
    """nn.Linear-default init U(-1/sqrt(fan_in), 1/sqrt(fan_in)).

    Weights stored bf16 (kernel is memory-bound), biases f32.  w4 is stored
    tile-major as (n_tiles, 1024, out_dim // n_tiles) so each grid step's DMA
    is fully contiguous (one-time relayout at init, not per call).
    """
    out_dim = img_channels * IMG_SIDE * IMG_SIDE
    assert out_dim % (n_tiles * 128) == 0, (out_dim, n_tiles)
    dims = [(noise_dim, 256), (256, 512), (512, 1024), (1024, out_dim)]
    params = {}
    for i, (fan_in, fan_out) in enumerate(dims, start=1):
        key, kw, kb = jax.random.split(key, 3)
        bound = 1.0 / math.sqrt(fan_in)
        w = jax.random.uniform(kw, (fan_in, fan_out), jnp.float32,
                               minval=-bound, maxval=bound).astype(jnp.bfloat16)
        b = jax.random.uniform(kb, (1, fan_out), jnp.float32,
                               minval=-bound, maxval=bound)
        if i == 4:
            tile_n = fan_out // n_tiles
            # (fan_in, out_dim) -> (n_tiles, fan_in, tile_n), column-tile j
            # of the original matrix is params["w4"][j].
            w = w.reshape(fan_in, n_tiles, tile_n).transpose(1, 0, 2)
        params[f"w{i}"] = w
        params[f"b{i}"] = b
    return params


def _reference_forward(x, params):
    """Pure-JAX reference using the same bf16 weights / f32 accumulation."""
    n_tiles, hidden, tile_n = params["w4"].shape
    out_dim = n_tiles * tile_n
    img_channels = out_dim // (IMG_SIDE * IMG_SIDE)
    w4_full = params["w4"].transpose(1, 0, 2).reshape(hidden, out_dim)

    def lin(h, w, b):
        return jnp.dot(h.astype(jnp.bfloat16), w,
                       preferred_element_type=jnp.float32) + b

    h = jnp.maximum(lin(x, params["w1"], params["b1"]), 0.0)
    h = jnp.maximum(lin(h, params["w2"], params["b2"]), 0.0)
    h = jnp.maximum(lin(h, params["w3"], params["b3"]), 0.0)
    h = jnp.tanh(lin(h, w4_full, params["b4"]))
    return h.reshape(x.shape[0], img_channels, IMG_SIDE, IMG_SIDE)


if __name__ == "__main__":
    noise_dim = 64
    img_channels = 3          # forward() hardcodes view(B, 3, 32, 32)
    batch = 2

    key = jax.random.PRNGKey(0)
    key, xkey = jax.random.split(key)
    params = init_generator_params(key, noise_dim, img_channels)
    x = jax.random.normal(xkey, (batch, noise_dim), dtype=jnp.float32)

    out = generator_forward(x, params)
    out = jax.block_until_ready(out)

    assert out.shape == (batch, img_channels, IMG_SIDE, IMG_SIDE), out.shape
    ref = _reference_forward(x, params)
    # bf16 weights on both paths -> only f32 accumulation-order noise remains.
    assert jnp.allclose(out, ref, atol=1e-2, rtol=1e-2), "mismatch vs reference"

    print("KERNEL_OK")
</pallas_src>

<mosaic_0001>
module attributes {stable_mosaic.version = 11 : i64} {
  func.func @_generator_kernel(%arg0: i32, %arg1: memref<8x64xf32, #tpu.memory_space<vmem>>, %arg2: memref<64x256xbf16, #tpu.memory_space<vmem>>, %arg3: memref<1x256xf32, #tpu.memory_space<vmem>>, %arg4: memref<256x512xbf16, #tpu.memory_space<vmem>>, %arg5: memref<1x512xf32, #tpu.memory_space<vmem>>, %arg6: memref<512x1024xbf16, #tpu.memory_space<vmem>>, %arg7: memref<1x1024xf32, #tpu.memory_space<vmem>>, %arg8: memref<1x1024x1536xbf16, #tpu.memory_space<vmem>>, %arg9: memref<1x1536xf32, #tpu.memory_space<vmem>>, %arg10: memref<8x1536xf32, #tpu.memory_space<vmem>>) attributes {dimension_semantics = [#tpu.dimension_semantics<parallel>], iteration_bounds = array<i64: 2>, scalar_prefetch = 0 : i64, scratch_operands = 0 : i64, tpu.core_type = #tpu.core_type<tc>, window_params = [{pipeline_mode = #tpu.pipeline_mode<synchronous>, transform_indices = @transform_0, window_bounds = array<i64: 8, 64>}, {pipeline_mode = #tpu.pipeline_mode<synchronous>, transform_indices = @transform_1, window_bounds = array<i64: 64, 256>}, {pipeline_mode = #tpu.pipeline_mode<synchronous>, transform_indices = @transform_2, window_bounds = array<i64: 1, 256>}, {pipeline_mode = #tpu.pipeline_mode<synchronous>, transform_indices = @transform_3, window_bounds = array<i64: 256, 512>}, {pipeline_mode = #tpu.pipeline_mode<synchronous>, transform_indices = @transform_4, window_bounds = array<i64: 1, 512>}, {pipeline_mode = #tpu.pipeline_mode<synchronous>, transform_indices = @transform_5, window_bounds = array<i64: 512, 1024>}, {pipeline_mode = #tpu.pipeline_mode<synchronous>, transform_indices = @transform_6, window_bounds = array<i64: 1, 1024>}, {transform_indices = @transform_7, window_bounds = array<i64: 1, 1024, 1536>}, {transform_indices = @transform_8, window_bounds = array<i64: 1, 1536>}, {transform_indices = @transform_9, window_bounds = array<i64: 8, 1536>}]} {
    %c0 = arith.constant 0 : index
    %c0_0 = arith.constant 0 : index
    %0 = vector.load %arg1[%c0, %c0_0] : memref<8x64xf32, #tpu.memory_space<vmem>>, vector<8x64xf32>
    %1 = arith.truncf %0 : vector<8x64xf32> to vector<8x64xbf16>
    %c0_1 = arith.constant 0 : index
    %c0_2 = arith.constant 0 : index
    %2 = vector.load %arg2[%c0_1, %c0_2] : memref<64x256xbf16, #tpu.memory_space<vmem>>, vector<64x256xbf16>
    %cst = arith.constant dense<0.000000e+00> : vector<8x256xf32>
    %3 = tpu.matmul %1, %2, %cst {dimension_numbers = #tpu.dot_dimension_numbers<[1], [0], [0], [1], [0, 0, 1, 1], [], []>} : vector<8x64xbf16>, vector<64x256xbf16>, vector<8x256xf32> -> vector<8x256xf32>
    %c0_3 = arith.constant 0 : index
    %c0_4 = arith.constant 0 : index
    %4 = vector.load %arg3[%c0_3, %c0_4] : memref<1x256xf32, #tpu.memory_space<vmem>>, vector<1x256xf32>
    %5 = vector.broadcast %4 : vector<1x256xf32> to vector<8x256xf32>
    %6 = arith.addf %3, %5 : vector<8x256xf32>
    %cst_5 = arith.constant 0.000000e+00 : f32
    %7 = vector.broadcast %cst_5 : f32 to vector<8x256xf32>
    %8 = arith.maximumf %6, %7 : vector<8x256xf32>
    %9 = arith.truncf %8 : vector<8x256xf32> to vector<8x256xbf16>
    %c0_6 = arith.constant 0 : index
    %c0_7 = arith.constant 0 : index
    %10 = vector.load %arg4[%c0_6, %c0_7] : memref<256x512xbf16, #tpu.memory_space<vmem>>, vector<256x512xbf16>
    %cst_8 = arith.constant dense<0.000000e+00> : vector<8x512xf32>
    %11 = tpu.matmul %9, %10, %cst_8 {dimension_numbers = #tpu.dot_dimension_numbers<[1], [0], [0], [1], [0, 0, 1, 1], [], []>} : vector<8x256xbf16>, vector<256x512xbf16>, vector<8x512xf32> -> vector<8x512xf32>
    %c0_9 = arith.constant 0 : index
    %c0_10 = arith.constant 0 : index
    %12 = vector.load %arg5[%c0_9, %c0_10] : memref<1x512xf32, #tpu.memory_space<vmem>>, vector<1x512xf32>
    %13 = vector.broadcast %12 : vector<1x512xf32> to vector<8x512xf32>
    %14 = arith.addf %11, %13 : vector<8x512xf32>
    %cst_11 = arith.constant 0.000000e+00 : f32
    %15 = vector.broadcast %cst_11 : f32 to vector<8x512xf32>
    %16 = arith.maximumf %14, %15 : vector<8x512xf32>
    %17 = arith.truncf %16 : vector<8x512xf32> to vector<8x512xbf16>
    %c0_12 = arith.constant 0 : index
    %c0_13 = arith.constant 0 : index
    %18 = vector.load %arg6[%c0_12, %c0_13] : memref<512x1024xbf16, #tpu.memory_space<vmem>>, vector<512x1024xbf16>
    %cst_14 = arith.constant dense<0.000000e+00> : vector<8x1024xf32>
    %19 = tpu.matmul %17, %18, %cst_14 {dimension_numbers = #tpu.dot_dimension_numbers<[1], [0], [0], [1], [0, 0, 1, 1], [], []>} : vector<8x512xbf16>, vector<512x1024xbf16>, vector<8x1024xf32> -> vector<8x1024xf32>
    %c0_15 = arith.constant 0 : index
    %c0_16 = arith.constant 0 : index
    %20 = vector.load %arg7[%c0_15, %c0_16] : memref<1x1024xf32, #tpu.memory_space<vmem>>, vector<1x1024xf32>
    %21 = vector.broadcast %20 : vector<1x1024xf32> to vector<8x1024xf32>
    %22 = arith.addf %19, %21 : vector<8x1024xf32>
    %cst_17 = arith.constant 0.000000e+00 : f32
    %23 = vector.broadcast %cst_17 : f32 to vector<8x1024xf32>
    %24 = arith.maximumf %22, %23 : vector<8x1024xf32>
    %25 = arith.truncf %24 : vector<8x1024xf32> to vector<8x1024xbf16>
    %c0_18 = arith.constant 0 : index
    %c0_19 = arith.constant 0 : index
    %c0_20 = arith.constant 0 : index
    %26 = vector.load %arg8[%c0_18, %c0_19, %c0_20] : memref<1x1024x1536xbf16, #tpu.memory_space<vmem>>, vector<1x1024x1536xbf16>
    %27 = vector.shape_cast %26 : vector<1x1024x1536xbf16> to vector<1024x1536xbf16>
    %cst_21 = arith.constant dense<0.000000e+00> : vector<8x1536xf32>
    %28 = tpu.matmul %25, %27, %cst_21 {dimension_numbers = #tpu.dot_dimension_numbers<[1], [0], [0], [1], [0, 0, 1, 1], [], []>} : vector<8x1024xbf16>, vector<1024x1536xbf16>, vector<8x1536xf32> -> vector<8x1536xf32>
    %c0_22 = arith.constant 0 : index
    %c0_23 = arith.constant 0 : index
    %29 = vector.load %arg9[%c0_22, %c0_23] : memref<1x1536xf32, #tpu.memory_space<vmem>>, vector<1x1536xf32>
    %30 = vector.broadcast %29 : vector<1x1536xf32> to vector<8x1536xf32>
    %31 = arith.addf %28, %30 : vector<8x1536xf32>
    %32 = math.tanh %31 : vector<8x1536xf32>
    %c0_24 = arith.constant 0 : index
    %c0_25 = arith.constant 0 : index
    %33 = vector.load %arg10[%c0_24, %c0_25] : memref<8x1536xf32, #tpu.memory_space<vmem>>, vector<8x1536xf32>
    tpu.vector_store %arg10[%c0_24, %c0_25], %32 {strides = array<i32>} : memref<8x1536xf32, #tpu.memory_space<vmem>>, vector<8x1536xf32>,
    return
  }
  func.func @transform_0(%arg0: i32) -> (i32, i32) {
    %c0_i32 = arith.constant 0 : i32
    %c0_i32_0 = arith.constant 0 : i32
    %c0_i32_1 = arith.constant 0 : i32
    return %c0_i32, %c0_i32_0 : i32, i32
  }
  func.func @transform_1(%arg0: i32) -> (i32, i32) {
    %c0_i32 = arith.constant 0 : i32
    %c0_i32_0 = arith.constant 0 : i32
    %c0_i32_1 = arith.constant 0 : i32
    return %c0_i32, %c0_i32_0 : i32, i32
  }
  func.func @transform_2(%arg0: i32) -> (i32, i32) {
    %c0_i32 = arith.constant 0 : i32
    %c0_i32_0 = arith.constant 0 : i32
    %c0_i32_1 = arith.constant 0 : i32
    return %c0_i32, %c0_i32_0 : i32, i32
  }
  func.func @transform_3(%arg0: i32) -> (i32, i32) {
    %c0_i32 = arith.constant 0 : i32
    %c0_i32_0 = arith.constant 0 : i32
    %c0_i32_1 = arith.constant 0 : i32
    return %c0_i32, %c0_i32_0 : i32, i32
  }
  func.func @transform_4(%arg0: i32) -> (i32, i32) {
    %c0_i32 = arith.constant 0 : i32
    %c0_i32_0 = arith.constant 0 : i32
    %c0_i32_1 = arith.constant 0 : i32
    return %c0_i32, %c0_i32_0 : i32, i32
  }
  func.func @transform_5(%arg0: i32) -> (i32, i32) {
    %c0_i32 = arith.constant 0 : i32
    %c0_i32_0 = arith.constant 0 : i32
    %c0_i32_1 = arith.constant 0 : i32
    return %c0_i32, %c0_i32_0 : i32, i32
  }
  func.func @transform_6(%arg0: i32) -> (i32, i32) {
    %c0_i32 = arith.constant 0 : i32
    %c0_i32_0 = arith.constant 0 : i32
    %c0_i32_1 = arith.constant 0 : i32
    return %c0_i32, %c0_i32_0 : i32, i32
  }
  func.func @transform_7(%arg0: i32) -> (i32, i32, i32) {
    %c0_i32 = arith.constant 0 : i32
    %c0_i32_0 = arith.constant 0 : i32
    %c0_i32_1 = arith.constant 0 : i32
    return %arg0, %c0_i32, %c0_i32_0 : i32, i32, i32
  }
  func.func @transform_8(%arg0: i32) -> (i32, i32) {
    %c0_i32 = arith.constant 0 : i32
    %c0_i32_0 = arith.constant 0 : i32
    return %c0_i32, %arg0 : i32, i32
  }
  func.func @transform_9(%arg0: i32) -> (i32, i32) {
    %c0_i32 = arith.constant 0 : i32
    %c0_i32_0 = arith.constant 0 : i32
    return %c0_i32, %arg0 : i32, i32
  }
}

</mosaic_0001>

<llo_original>
// kernel: tpu_custom_call.1
$region0: #{tpu_custom_call.1}
  #allocation0 [shape = 'u32[]', space=smem, size = 0x4, offset = 0x4, fixed_abs, tag = 'smem constant byte address 0x4 - core index']
  #allocation1 [shape = 'u32[144,128]{1,0:T(1,128)}', space=vmem, size = 0x12000, scoped, tag = 'internal scratch']
  %s0 = inlined_call_operand.hbm [shape: f32[8,64], index: 0, kind: input, shape index: {}]
  %s1 = inlined_call_operand.hbm [shape: bf16[64,256], index: 1, kind: input, shape index: {}]
  %s2 = inlined_call_operand.hbm [shape: f32[1,256], index: 2, kind: input, shape index: {}]
  %s3 = inlined_call_operand.hbm [shape: bf16[256,512], index: 3, kind: input, shape index: {}]
  %s4 = inlined_call_operand.hbm [shape: f32[1,512], index: 4, kind: input, shape index: {}]
  %s5 = inlined_call_operand.hbm [shape: bf16[512,1024], index: 5, kind: input, shape index: {}]
  %s6 = inlined_call_operand.hbm [shape: f32[1,1024], index: 6, kind: input, shape index: {}]
  %s7 = inlined_call_operand.hbm [shape: bf16[2,1024,1536], index: 7, kind: input, shape index: {}]
  %s8 = inlined_call_operand.hbm [shape: f32[1,3072], index: 8, kind: input, shape index: {}]
  %s9 = inlined_call_operand.hbm [shape: f32[8,3072], index: 9, kind: output, shape index: {}]
  %s10 = sld [smem:[#allocation0]]
  $region105: #{tpu_custom_call.1} parent=0
    _
  %s12 = ssub.s32 1, %s10
  %s13 = scalar_select 0, %s12, %s10
  $region1: #{tpu_custom_call.1} parent=0
    #allocation2 [shape = 'u8[4096]{0}', space=vmem, size = 0x1000, scoped, tag = 'input window, operand 0, single buffered']
    #allocation3 [shape = 's32[2]{0}', space=sflag, size = 0x8, scoped, tag = 'scoped memory for tpu_custom_call.1']
    #allocation4 [shape = 's32[2]{0}', space=sflag, size = 0x8, scoped, tag = 'scoped memory for tpu_custom_call.1']
    #allocation5 [shape = 'u8[32768]{0}', space=vmem, size = 0x8000, scoped, tag = 'input window, operand 1, single buffered']
    #allocation6 [shape = 's32[1]{0}', space=sflag, size = 0x4, scoped, tag = 'scoped memory for tpu_custom_call.1']
    #allocation7 [shape = 'u8[1024]{0}', space=vmem, size = 0x400, scoped, tag = 'input window, operand 2, single buffered']
    #allocation8 [shape = 'u8[262144]{0}', space=vmem, size = 0x40000, scoped, tag = 'input window, operand 3, single buffered']
    #allocation9 [shape = 's32[1]{0}', space=sflag, size = 0x4, scoped, tag = 'scoped memory for tpu_custom_call.1']
    #allocation10 [shape = 'u8[2048]{0}', space=vmem, size = 0x800, scoped, tag = 'input window, operand 4, single buffered']
    #allocation11 [shape = 'u8[1048576]{0}', space=vmem, size = 0x100000, scoped, tag = 'input window, operand 5, single buffered']
    #allocation12 [shape = 's32[1]{0}', space=sflag, size = 0x4, scoped, tag = 'scoped memory for tpu_custom_call.1']
    #allocation13 [shape = 'u8[4096]{0}', space=vmem, size = 0x1000, scoped, tag = 'input window, operand 6, single buffered']
    #allocation14 [shape = 'u8[6291456]{0}', space=vmem, size = 0x600000, scoped, tag = 'input window, operand 7']
    #allocation15 [shape = 's32[2]{0}', space=sflag, size = 0x8, scoped, tag = 'scoped memory for tpu_custom_call.1']
    #allocation16 [shape = 'u8[12288]{0}', space=vmem, size = 0x3000, scoped, tag = 'input window, operand 8']
    #allocation17 [shape = 'u8[98304]{0}', space=vmem, size = 0x18000, scoped, tag = 'output window, operand 0']
    %14 = vsyncpa [#allocation3], 0
    %15 = vsyncpa [#allocation6], 0
    %16 = vsyncpa [#allocation9], 0
    %17 = vsyncpa [#allocation12], 0
    %18 = vsyncpa [#allocation15], 0
    %s19 = scalar_lea.sflag [#allocation15], 1
    %20 = vsyncpa %s19, 0
    %21 = vsyncpa [#allocation4], 0
    %s22 = scalar_lea.sflag [#allocation4], 1
    %23 = vsyncpa %s22, 0
    loop: start=0, step=1, limit=4
    $region2: #{tpu_custom_call.1} parent=1 // loop_pre_header
      _
    $region3: #{tpu_custom_call.1} parent=1 // loop_header
      %s25 = sphi 0, %s29
      %p26 = scmp.ge.s32.totalorder %s25, 4
      %s33 = sphi 0, %s33
      %s35 = sphi 0, %s33
      %s36 = sphi 0, %s35
      %s50 = sphi 0, %s36
      %s54 = sphi 0, %s54
      %s56 = sphi 0, %s54
      %s57 = sphi 0, %s56
      %s71 = sphi 0, %s57
      %s75 = sphi 0, %s75
      %s77 = sphi 0, %s75
      %s78 = sphi 0, %s77
      %s92 = sphi 0, %s78
      %s96 = sphi 0, %s96
      %s98 = sphi 0, %s96
      %s99 = sphi 0, %s98
      %s113 = sphi 0, %s99
      %s117 = sphi 0, %s117
      %s119 = sphi 0, %s117
      %s120 = sphi 0, %s119
      %s134 = sphi 0, %s120
      %s138 = sphi 0, %s138
      %s140 = sphi 0, %s138
      %s141 = sphi 0, %s140
      %s155 = sphi 0, %s141
      %s159 = sphi 0, %s159
      %s161 = sphi 0, %s159
      %s162 = sphi 0, %s161
      %s176 = sphi 0, %s162
      %s182 = sphi 0, %s184
      %s185 = sphi 0, %s182
      %s186 = sphi 0, %s185
      %s202 = sphi 0, %s186
      %s208 = sphi 0, %s210
      %s211 = sphi 0, %s208
      %s212 = sphi 0, %s211
      %s228 = sphi 0, %s212
      %s234 = sphi 0, %s236
      %s237 = sphi 0, %s234
      %s238 = sphi 0, %s237
      %s254 = sphi 0, %s238
    $region4: #{tpu_custom_call.1} parent=1 // loop_header_branch
      %28 = sbr.rel (%p26) target = $region8
    $region5: #{tpu_custom_call.1} parent=1 // loop_body
      %s30 = ssub.s32 %s25, 1
      %s31 = ssub.s32 %s25, 2
      %s32 = sadd.s32 %s25, 1
      %s34 = sadd.s32 %s33, 1
      %p37 = scmp.eq.s32.totalorder %s25, 1
      %p38 = scmp.ne.s32.totalorder %s33, %s35
      %p39 = scmp.eq.s32.totalorder %s25, 0
      %p40 = por %p38, %p39
      %p41 = scmp.ne.s32.totalorder %s33, %s35
      %p42 = scmp.eq.s32.totalorder %s30, 1
      %p43 = por %p41, %p42
      %p44 = scmp.ne.s32.totalorder %s35, %s36
      %p45 = scmp.eq.s32.totalorder %s30, 0
      %p46 = por %p44, %p45
      %p47 = scmp.ne.s32.totalorder %s35, %s36
      %p48 = scmp.eq.s32.totalorder %s31, 1
      %p49 = por %p47, %p48
      %p51 = scmp.ne.s32.totalorder %s36, %s50
      %p52 = scmp.eq.s32.totalorder %s31, 0
      %p53 = por %p51, %p52
      %s55 = sadd.s32 %s54, 1
      %p58 = scmp.eq.s32.totalorder %s25, 1
      %p59 = scmp.ne.s32.totalorder %s54, %s56
      %p60 = scmp.eq.s32.totalorder %s25, 0
      %p61 = por %p59, %p60
      %p62 = scmp.ne.s32.totalorder %s54, %s56
      %p63 = scmp.eq.s32.totalorder %s30, 1
      %p64 = por %p62, %p63
      %p65 = scmp.ne.s32.totalorder %s56, %s57
      %p66 = scmp.eq.s32.totalorder %s30, 0
      %p67 = por %p65, %p66
      %p68 = scmp.ne.s32.totalorder %s56, %s57
      %p69 = scmp.eq.s32.totalorder %s31, 1
      %p70 = por %p68, %p69
      %p72 = scmp.ne.s32.totalorder %s57, %s71
      %p73 = scmp.eq.s32.totalorder %s31, 0
      %p74 = por %p72, %p73
      %s76 = sadd.s32 %s75, 1
      %p79 = scmp.eq.s32.totalorder %s25, 1
      %p80 = scmp.ne.s32.totalorder %s75, %s77
      %p81 = scmp.eq.s32.totalorder %s25, 0
      %p82 = por %p80, %p81
      %p83 = scmp.ne.s32.totalorder %s75, %s77
      %p84 = scmp.eq.s32.totalorder %s30, 1
      %p85 = por %p83, %p84
      %p86 = scmp.ne.s32.totalorder %s77, %s78
      %p87 = scmp.eq.s32.totalorder %s30, 0
      %p88 = por %p86, %p87
      %p89 = scmp.ne.s32.totalorder %s77, %s78
      %p90 = scmp.eq.s32.totalorder %s31, 1
      %p91 = por %p89, %p90
      %p93 = scmp.ne.s32.totalorder %s78, %s92
      %p94 = scmp.eq.s32.totalorder %s31, 0
      %p95 = por %p93, %p94
      %s97 = sadd.s32 %s96, 1
      %p100 = scmp.eq.s32.totalorder %s25, 1
      %p101 = scmp.ne.s32.totalorder %s96, %s98
      %p102 = scmp.eq.s32.totalorder %s25, 0
      %p103 = por %p101, %p102
      %p104 = scmp.ne.s32.totalorder %s96, %s98
      %p105 = scmp.eq.s32.totalorder %s30, 1
      %p106 = por %p104, %p105
      %p107 = scmp.ne.s32.totalorder %s98, %s99
      %p108 = scmp.eq.s32.totalorder %s30, 0
      %p109 = por %p107, %p108
      %p110 = scmp.ne.s32.totalorder %s98, %s99
      %p111 = scmp.eq.s32.totalorder %s31, 1
      %p112 = por %p110, %p111
      %p114 = scmp.ne.s32.totalorder %s99, %s113
      %p115 = scmp.eq.s32.totalorder %s31, 0
      %p116 = por %p114, %p115
      %s118 = sadd.s32 %s117, 1
      %p121 = scmp.eq.s32.totalorder %s25, 1
      %p122 = scmp.ne.s32.totalorder %s117, %s119
      %p123 = scmp.eq.s32.totalorder %s25, 0
      %p124 = por %p122, %p123
      %p125 = scmp.ne.s32.totalorder %s117, %s119
      %p126 = scmp.eq.s32.totalorder %s30, 1
      %p127 = por %p125, %p126
      %p128 = scmp.ne.s32.totalorder %s119, %s120
      %p129 = scmp.eq.s32.totalorder %s30, 0
      %p130 = por %p128, %p129
      %p131 = scmp.ne.s32.totalorder %s119, %s120
      %p132 = scmp.eq.s32.totalorder %s31, 1
      %p133 = por %p131, %p132
      %p135 = scmp.ne.s32.totalorder %s120, %s134
      %p136 = scmp.eq.s32.totalorder %s31, 0
      %p137 = por %p135, %p136
      %s139 = sadd.s32 %s138, 1
      %p142 = scmp.eq.s32.totalorder %s25, 1
      %p143 = scmp.ne.s32.totalorder %s138, %s140
      %p144 = scmp.eq.s32.totalorder %s25, 0
      %p145 = por %p143, %p144
      %p146 = scmp.ne.s32.totalorder %s138, %s140
      %p147 = scmp.eq.s32.totalorder %s30, 1
      %p148 = por %p146, %p147
      %p149 = scmp.ne.s32.totalorder %s140, %s141
      %p150 = scmp.eq.s32.totalorder %s30, 0
      %p151 = por %p149, %p150
      %p152 = scmp.ne.s32.totalorder %s140, %s141
      %p153 = scmp.eq.s32.totalorder %s31, 1
      %p154 = por %p152, %p153
      %p156 = scmp.ne.s32.totalorder %s141, %s155
      %p157 = scmp.eq.s32.totalorder %s31, 0
      %p158 = por %p156, %p157
      %s160 = sadd.s32 %s159, 1
      %p163 = scmp.eq.s32.totalorder %s25, 1
      %p164 = scmp.ne.s32.totalorder %s159, %s161
      %p165 = scmp.eq.s32.totalorder %s25, 0
      %p166 = por %p164, %p165
      %p167 = scmp.ne.s32.totalorder %s159, %s161
      %p168 = scmp.eq.s32.totalorder %s30, 1
      %p169 = por %p167, %p168
      %p170 = scmp.ne.s32.totalorder %s161, %s162
      %p171 = scmp.eq.s32.totalorder %s30, 0
      %p172 = por %p170, %p171
      %p173 = scmp.ne.s32.totalorder %s161, %s162
      %p174 = scmp.eq.s32.totalorder %s31, 1
      %p175 = por %p173, %p174
      %p177 = scmp.ne.s32.totalorder %s162, %s176
      %p178 = scmp.eq.s32.totalorder %s31, 0
      %p179 = por %p177, %p178
      %s180 = ssub.s32 %s25, %s32
      %p181 = scmp.eq.s32.totalorder %s180, 0
      %s183 = sadd.s32 %s182, 1
      %s184 = scalar_select %p181, %s182, %s183
      %p187 = pneg %p181
      %p188 = scmp.eq.s32.totalorder %s25, 1
      %p189 = por %p187, %p188
      %p190 = scmp.ne.s32.totalorder %s182, %s185
      %p191 = scmp.eq.s32.totalorder %s25, 0
      %p192 = por %p190, %p191
      %p193 = scmp.ne.s32.totalorder %s182, %s185
      %p194 = scmp.eq.s32.totalorder %s30, 1
      %p195 = por %p193, %p194
      %p196 = scmp.ne.s32.totalorder %s185, %s186
      %p197 = scmp.eq.s32.totalorder %s30, 0
      %p198 = por %p196, %p197
      %p199 = scmp.ne.s32.totalorder %s185, %s186
      %p200 = scmp.eq.s32.totalorder %s31, 1
      %p201 = por %p199, %p200
      %p203 = scmp.ne.s32.totalorder %s186, %s202
      %p204 = scmp.eq.s32.totalorder %s31, 0
      %p205 = por %p203, %p204
      %s206 = ssub.s32 %s25, %s32
      %p207 = scmp.eq.s32.totalorder %s206, 0
      %s209 = sadd.s32 %s208, 1
      %s210 = scalar_select %p207, %s208, %s209
      %p213 = pneg %p207
      %p214 = scmp.eq.s32.totalorder %s25, 1
      %p215 = por %p213, %p214
      %p216 = scmp.ne.s32.totalorder %s208, %s211
      %p217 = scmp.eq.s32.totalorder %s25, 0
      %p218 = por %p216, %p217
      %p219 = scmp.ne.s32.totalorder %s208, %s211
      %p220 = scmp.eq.s32.totalorder %s30, 1
      %p221 = por %p219, %p220
      %p222 = scmp.ne.s32.totalorder %s211, %s212
      %p223 = scmp.eq.s32.totalorder %s30, 0
      %p224 = por %p222, %p223
      %p225 = scmp.ne.s32.totalorder %s211, %s212
      %p226 = scmp.eq.s32.totalorder %s31, 1
      %p227 = por %p225, %p226
      %p229 = scmp.ne.s32.totalorder %s212, %s228
      %p230 = scmp.eq.s32.totalorder %s31, 0
      %p231 = por %p229, %p230
      %s232 = ssub.s32 %s25, %s32
      %p233 = scmp.eq.s32.totalorder %s232, 0
      %s235 = sadd.s32 %s234, 1
      %s236 = scalar_select %p233, %s234, %s235
      %p239 = pneg %p233
      %p240 = scmp.eq.s32.totalorder %s25, 1
      %p241 = por %p239, %p240
      %p242 = scmp.ne.s32.totalorder %s234, %s237
      %p243 = scmp.eq.s32.totalorder %s25, 0
      %p244 = por %p242, %p243
      %p245 = scmp.ne.s32.totalorder %s234, %s237
      %p246 = scmp.eq.s32.totalorder %s30, 1
      %p247 = por %p245, %p246
      %p248 = scmp.ne.s32.totalorder %s237, %s238
      %p249 = scmp.eq.s32.totalorder %s30, 0
      %p250 = por %p248, %p249
      %p251 = scmp.ne.s32.totalorder %s237, %s238
      %p252 = scmp.eq.s32.totalorder %s31, 1
      %p253 = por %p251, %p252
      %p255 = scmp.ne.s32.totalorder %s238, %s254
      %p256 = scmp.eq.s32.totalorder %s31, 0
      %p257 = por %p255, %p256
      %p258 = scmp.le.s32.totalorder 1, %s25
      %p259 = scmp.lt.s32.totalorder %s25, 3
      %p260 = pnand %p258, %p259
      %p261 = pneg %p260
      // Predicated region
      $region9: #{tpu_custom_call.1} parent=5 // pred_check
        _
      $region10: #{tpu_custom_call.1} parent=5 // pred_check_branch
        %263 = sbr.rel (%p260) target = $region12
      $region11: #{tpu_custom_call.1} parent=5 // pred_region
        %s264 = ssub.s32 %s25, 1
        // Predicated region
        $region13: #{tpu_custom_call.1} parent=11 // pred_check
          %p265 = pneg %p46
        $region14: #{tpu_custom_call.1} parent=11 // pred_check_branch
          %267 = sbr.rel (%p265) target = $region16
        $region15: #{tpu_custom_call.1} parent=11 // pred_region
          %s269 = ssub.s32 128, 128
          %270 = vsyncadd [#allocation3], %s269
          %s272 = sshll.u32 [#allocation2], 4
          %s273 = int_to_ptr.vmem [resolvable:$true] %s272
          %275 = dma.hbm_to_vmem [thread:$0]  %s0, 128, %s273, [#allocation3]
        $region16: #{tpu_custom_call.1} parent=11 // pred_fallthru
          _
        // Predicated region
        $region17: #{tpu_custom_call.1} parent=11 // pred_check
          %p276 = pneg %p67
        $region18: #{tpu_custom_call.1} parent=11 // pred_check_branch
          %278 = sbr.rel (%p276) target = $region20
        $region19: #{tpu_custom_call.1} parent=11 // pred_region
          %s280 = ssub.s32 1024, 1024
          %281 = vsyncadd [#allocation6], %s280
          %s282 = sshll.u32 [#allocation5], 4
          %s283 = int_to_ptr.vmem [resolvable:$true] %s282
          %288 = dma.hbm_to_vmem [thread:$0]  %s1, 1024, %s283, [#allocation6], 128, 128, 8
        $region20: #{tpu_custom_call.1} parent=11 // pred_fallthru
          _
        // Predicated region
        $region21: #{tpu_custom_call.1} parent=11 // pred_check
          %p289 = pneg %p88
        $region22: #{tpu_custom_call.1} parent=11 // pred_check_branch
          %291 = sbr.rel (%p289) target = $region24
        $region23: #{tpu_custom_call.1} parent=11 // pred_region
          %s293 = ssub.s32 32, 32
          %294 = vsyncadd [#allocation6], %s293
          %s296 = sshll.u32 [#allocation7], 4
          %s297 = int_to_ptr.vmem [resolvable:$true] %s296
          %299 = dma.hbm_to_vmem [thread:$0]  %s2, 32, %s297, [#allocation6]
        $region24: #{tpu_custom_call.1} parent=11 // pred_fallthru
          _
        // Predicated region
        $region25: #{tpu_custom_call.1} parent=11 // pred_check
          %p300 = pneg %p109
        $region26: #{tpu_custom_call.1} parent=11 // pred_check_branch
          %302 = sbr.rel (%p300) target = $region28
        $region27: #{tpu_custom_call.1} parent=11 // pred_region
          %s304 = ssub.s32 8192, 8192
          %305 = vsyncadd [#allocation9], %s304
          %s306 = sshll.u32 [#allocation8], 4
          %s307 = int_to_ptr.vmem [resolvable:$true] %s306
          %312 = dma.hbm_to_vmem [thread:$0]  %s3, 8192, %s307, [#allocation9], 256, 256, 16
        $region28: #{tpu_custom_call.1} parent=11 // pred_fallthru
          _
        // Predicated region
        $region29: #{tpu_custom_call.1} parent=11 // pred_check
          %p313 = pneg %p130
        $region30: #{tpu_custom_call.1} parent=11 // pred_check_branch
          %315 = sbr.rel (%p313) target = $region32
        $region31: #{tpu_custom_call.1} parent=11 // pred_region
          %s317 = ssub.s32 64, 64
          %318 = vsyncadd [#allocation9], %s317
          %s320 = sshll.u32 [#allocation10], 4
          %s321 = int_to_ptr.vmem [resolvable:$true] %s320
          %323 = dma.hbm_to_vmem [thread:$0]  %s4, 64, %s321, [#allocation9]
        $region32: #{tpu_custom_call.1} parent=11 // pred_fallthru
          _
        // Predicated region
        $region33: #{tpu_custom_call.1} parent=11 // pred_check
          %p324 = pneg %p151
        $region34: #{tpu_custom_call.1} parent=11 // pred_check_branch
          %326 = sbr.rel (%p324) target = $region36
        $region35: #{tpu_custom_call.1} parent=11 // pred_region
          %s328 = ssub.s32 32768, 32768
          %329 = vsyncadd [#allocation12], %s328
          %s330 = sshll.u32 [#allocation11], 4
          %s331 = int_to_ptr.vmem [resolvable:$true] %s330
          %336 = dma.hbm_to_vmem [thread:$0]  %s5, 32768, %s331, [#allocation12], 512, 512, 32
        $region36: #{tpu_custom_call.1} parent=11 // pred_fallthru
          _
        // Predicated region
        $region37: #{tpu_custom_call.1} parent=11 // pred_check
          %p337 = pneg %p172
        $region38: #{tpu_custom_call.1} parent=11 // pred_check_branch
          %339 = sbr.rel (%p337) target = $region40
        $region39: #{tpu_custom_call.1} parent=11 // pred_region
          %s341 = ssub.s32 128, 128
          %342 = vsyncadd [#allocation12], %s341
          %s344 = sshll.u32 [#allocation13], 4
          %s345 = int_to_ptr.vmem [resolvable:$true] %s344
          %347 = dma.hbm_to_vmem [thread:$0]  %s6, 128, %s345, [#allocation12]
        $region40: #{tpu_custom_call.1} parent=11 // pred_fallthru
          _
      $region12: #{tpu_custom_call.1} parent=5 // pred_fallthru
        _
      %p348 = scmp.lt.s32.totalorder %s25, 2
      // Predicated region
      $region41: #{tpu_custom_call.1} parent=5 // pred_check
        %p349 = pneg %p348
      $region42: #{tpu_custom_call.1} parent=5 // pred_check_branch
        %351 = sbr.rel (%p349) target = $region44
      $region43: #{tpu_custom_call.1} parent=5 // pred_region
        // Predicated region
        $region45: #{tpu_custom_call.1} parent=43 // pred_check
          %p352 = pneg %p192
        $region46: #{tpu_custom_call.1} parent=43 // pred_check_branch
          %354 = sbr.rel (%p352) target = $region48
        $region47: #{tpu_custom_call.1} parent=43 // pred_region
          %s355 = sand.u32 %s25, 1
          %s356 = scalar_lea.sflag [#allocation15], %s355
          %s357 = sand.u32 %s182, 1
          %s358 = smul.addr %s357, 6144
          %s359 = scalar_lea.vmem [#allocation14], %s358
          %s361 = ssub.s32 98304, 98304
          %362 = vsyncadd %s356, %s361
          %s363 = smul.addr %s25, 1536
          %s364 = smul.addr %s363, 64
          %s365 = scalar_lea.hbm %s7, %s364
          %s366 = sshll.u32 %s359, 4
          %s367 = int_to_ptr.vmem [resolvable:$true] %s366
          %372 = dma.hbm_to_vmem [thread:$0]  %s365, 98304, %s367, %s356, 768, 768, 48
        $region48: #{tpu_custom_call.1} parent=43 // pred_fallthru
          _
        // Predicated region
        $region49: #{tpu_custom_call.1} parent=43 // pred_check
          %p373 = pneg %p218
        $region50: #{tpu_custom_call.1} parent=43 // pred_check_branch
          %375 = sbr.rel (%p373) target = $region52
        $region51: #{tpu_custom_call.1} parent=43 // pred_region
          %s376 = sand.u32 %s25, 1
          %s377 = scalar_lea.sflag [#allocation15], %s376
          %s378 = sand.u32 %s208, 1
          %s379 = smul.addr %s378, 12
          %s380 = scalar_lea.vmem [#allocation16], %s379
          %s381 = smul.u32 12, %s25
          %s383 = ssub.s32 192, 192
          %384 = vsyncadd %s377, %s383
          %s385 = smul.addr %s381, 16
          %s386 = scalar_lea.hbm %s8, %s385
          %s388 = sshll.u32 %s380, 4
          %s389 = int_to_ptr.vmem [resolvable:$true] %s388
          %391 = dma.hbm_to_vmem [thread:$0]  %s386, 192, %s389, %s377
        $region52: #{tpu_custom_call.1} parent=43 // pred_fallthru
          _
      $region44: #{tpu_custom_call.1} parent=5 // pred_fallthru
        _
      %p392 = scmp.le.s32.totalorder 1, %s25
      %p393 = scmp.lt.s32.totalorder %s25, 3
      %p394 = pnand %p392, %p393
      %p395 = pneg %p394
      // Predicated region
      $region53: #{tpu_custom_call.1} parent=5 // pred_check
        _
      $region54: #{tpu_custom_call.1} parent=5 // pred_check_branch
        %397 = sbr.rel (%p394) target = $region56
      $region55: #{tpu_custom_call.1} parent=5 // pred_region
        %s398 = ssub.s32 %s25, 1
        // Predicated region
        $region57: #{tpu_custom_call.1} parent=55 // pred_check
          %p399 = pneg %p46
        $region58: #{tpu_custom_call.1} parent=55 // pred_check_branch
          %401 = sbr.rel (%p399) target = $region60
        $region59: #{tpu_custom_call.1} parent=55 // pred_region
          %402 = dma.done [#allocation3], 128
        $region60: #{tpu_custom_call.1} parent=55 // pred_fallthru
          _
        // Predicated region
        $region61: #{tpu_custom_call.1} parent=55 // pred_check
          %p403 = pneg %p67
        $region62: #{tpu_custom_call.1} parent=55 // pred_check_branch
          %405 = sbr.rel (%p403) target = $region64
        $region63: #{tpu_custom_call.1} parent=55 // pred_region
          %406 = dma.done [#allocation6], 1024
        $region64: #{tpu_custom_call.1} parent=55 // pred_fallthru
          _
        // Predicated region
        $region65: #{tpu_custom_call.1} parent=55 // pred_check
          %p407 = pneg %p88
        $region66: #{tpu_custom_call.1} parent=55 // pred_check_branch
          %409 = sbr.rel (%p407) target = $region68
        $region67: #{tpu_custom_call.1} parent=55 // pred_region
          %410 = dma.done [#allocation6], 32
        $region68: #{tpu_custom_call.1} parent=55 // pred_fallthru
          _
        // Predicated region
        $region69: #{tpu_custom_call.1} parent=55 // pred_check
          %p411 = pneg %p109
        $region70: #{tpu_custom_call.1} parent=55 // pred_check_branch
          %413 = sbr.rel (%p411) target = $region72
        $region71: #{tpu_custom_call.1} parent=55 // pred_region
          %414 = dma.done [#allocation9], 8192
        $region72: #{tpu_custom_call.1} parent=55 // pred_fallthru
          _
        // Predicated region
        $region73: #{tpu_custom_call.1} parent=55 // pred_check
          %p415 = pneg %p130
        $region74: #{tpu_custom_call.1} parent=55 // pred_check_branch
          %417 = sbr.rel (%p415) target = $region76
        $region75: #{tpu_custom_call.1} parent=55 // pred_region
          %418 = dma.done [#allocation9], 64
        $region76: #{tpu_custom_call.1} parent=55 // pred_fallthru
          _
        // Predicated region
        $region77: #{tpu_custom_call.1} parent=55 // pred_check
          %p419 = pneg %p151
        $region78: #{tpu_custom_call.1} parent=55 // pred_check_branch
          %421 = sbr.rel (%p419) target = $region80
        $region79: #{tpu_custom_call.1} parent=55 // pred_region
          %422 = dma.done [#allocation12], 32768
        $region80: #{tpu_custom_call.1} parent=55 // pred_fallthru
          _
        // Predicated region
        $region81: #{tpu_custom_call.1} parent=55 // pred_check
          %p423 = pneg %p172
        $region82: #{tpu_custom_call.1} parent=55 // pred_check_branch
          %425 = sbr.rel (%p423) target = $region84
        $region83: #{tpu_custom_call.1} parent=55 // pred_region
          %426 = dma.done [#allocation12], 128
        $region84: #{tpu_custom_call.1} parent=55 // pred_fallthru
          _
        %s427 = sand.u32 %s30, 1
        %s428 = scalar_lea.sflag [#allocation15], %s427
        %s429 = sand.u32 %s185, 1
        %s430 = smul.addr %s429, 6144
        %s431 = scalar_lea.vmem [#allocation14], %s430
        // Predicated region
        $region85: #{tpu_custom_call.1} parent=55 // pred_check
          %p432 = pneg %p198
        $region86: #{tpu_custom_call.1} parent=55 // pred_check_branch
          %434 = sbr.rel (%p432) target = $region88
        $region87: #{tpu_custom_call.1} parent=55 // pred_region
          %435 = dma.done %s428, 98304
        $region88: #{tpu_custom_call.1} parent=55 // pred_fallthru
          _
        %s436 = sand.u32 %s30, 1
        %s437 = scalar_lea.sflag [#allocation15], %s436
        %s438 = sand.u32 %s211, 1
        %s439 = smul.addr %s438, 12
        %s440 = scalar_lea.vmem [#allocation16], %s439
        // Predicated region
        $region89: #{tpu_custom_call.1} parent=55 // pred_check
          %p441 = pneg %p224
        $region90: #{tpu_custom_call.1} parent=55 // pred_check_branch
          %443 = sbr.rel (%p441) target = $region92
        $region91: #{tpu_custom_call.1} parent=55 // pred_region
          %444 = dma.done %s437, 192
        $region92: #{tpu_custom_call.1} parent=55 // pred_fallthru
          _
        %p445 = pneg %p46
        %p446 = pneg %p43
        %p447 = pneg %p67
        %p448 = pneg %p64
        %p449 = pneg %p88
        %p450 = pneg %p85
        %p451 = pneg %p109
        %p452 = pneg %p106
        %p453 = pneg %p130
        %p454 = pneg %p127
        %p455 = pneg %p151
        %p456 = pneg %p148
        %p457 = pneg %p172
        %p458 = pneg %p169
        %s459 = sand.u32 %s30, 1
        %s460 = scalar_lea.sflag [#allocation15], %s459
        %s461 = sand.u32 %s185, 1
        %s462 = smul.addr %s461, 6144
        %s463 = scalar_lea.vmem [#allocation14], %s462
        %p464 = pneg %p198
        %p465 = pneg %p195
        %s466 = sand.u32 %s30, 1
        %s467 = scalar_lea.sflag [#allocation15], %s466
        %s468 = sand.u32 %s211, 1
        %s469 = smul.addr %s468, 12
        %s470 = scalar_lea.vmem [#allocation16], %s469
        %p471 = pneg %p224
        %p472 = pneg %p221
        %p473 = pneg %p250
        %p474 = pneg %p247
        %s475 = sand.u32 %s237, 1
        %s476 = scalar_lea.sflag [#allocation4], %s475
        %s477 = sand.u32 %s237, 1
        %s478 = smul.addr %s477, 96
        %s479 = scalar_lea.vmem [#allocation17], %s478
        %s480 = smul.u32 12, %s30
        %s481 = smul.u32 12, %s30
        %v483 = vld [vmem:[#allocation2] sm:$0xff]
        %v484 = vpack.c.bf16 %v483, %v483
        %v485 = vld [vmem:[#allocation5] sm:$0xff]
        %v486 = vld [vmem:[#allocation5 + $0x8] sm:$0xff]
        %v487 = vld [vmem:[#allocation5 + $0x10] sm:$0xff]
        %v488 = vld [vmem:[#allocation5 + $0x18] sm:$0xff]
        %v489 = vld [vmem:[#allocation5 + $0x20] sm:$0xff]
        %v490 = vld [vmem:[#allocation5 + $0x28] sm:$0xff]
        %v491 = vld [vmem:[#allocation5 + $0x30] sm:$0xff]
        %v492 = vld [vmem:[#allocation5 + $0x38] sm:$0xff]
        %v493 = vld [vmem:[#allocation7] sm:$0x3]
        %v495 = vlaneseq
        %v496 = vshrl.u32 %v495, 7
        %v497 = vsub.s32 0, %v496
        %v498 = vrot.slane %v493, %v497
        %v499 = vlaneseq
        %v500 = vshrl.u32 %v499, 7
        %v501 = vsub.s32 1, %v500
        %v502 = vrot.slane %v493, %v501
        %v513 = vunpack.c.l.b16 %v485
        %v514 = vunpack.c.h.b16 %v485
        %v515 = vunpack.c.l.b16 %v486
        %v516 = vunpack.c.h.b16 %v486
        %v517 = vunpack.c.l.b16 %v487
        %v518 = vunpack.c.h.b16 %v487
        %v519 = vunpack.c.l.b16 %v488
        %v520 = vunpack.c.h.b16 %v488
        %v521 = vunpack.c.l.b16 %v489
        %v522 = vunpack.c.h.b16 %v489
        %v523 = vunpack.c.l.b16 %v490
        %v524 = vunpack.c.h.b16 %v490
        %v525 = vunpack.c.l.b16 %v491
        %v526 = vunpack.c.h.b16 %v491
        %v527 = vunpack.c.l.b16 %v492
        %v528 = vunpack.c.h.b16 %v492
        %v529 = vpack.c.b16 %v515, %v513
        %v530 = vpack.c.b16 %v516, %v514
        %v531 = vpack.c.b16 %v519, %v517
        %v532 = vpack.c.b16 %v520, %v518
        %v533 = vpack.c.b16 %v523, %v521
        %v534 = vpack.c.b16 %v524, %v522
        %v535 = vpack.c.b16 %v527, %v525
        %v536 = vpack.c.b16 %v528, %v526
        %vm545 = vcmask 523264
        %v547 = vsel %vm545, %v484, 0
        %549 = vmatprep.subr.bf16.mxu0 %v530
        %550 = vmatpush1.bf16.msra.mxu0 %v529
        %551 = vmatprep.subr.bf16.mxu0 %v532
        %552 = vmatpush1.bf16.msra.mxu0 %v531
        %553 = vmatprep.subr.bf16.mxu0 %v534
        %554 = vmatpush1.bf16.msra.mxu0 %v533
        %555 = vmatprep.subr.bf16.mxu0 %v536
        %556 = vmatpush1.bf16.msra.mxu0 %v535
        %557 = vmatprep.subr.bf16.mxu0 0
        %558 = vmatpush1.bf16.msra.mxu0 0
        %559 = vmatprep.subr.bf16.mxu0 0
        %560 = vmatpush1.bf16.msra.mxu0 0
        %561 = vmatprep.subr.bf16.mxu0 0
        %562 = vmatpush1.bf16.msra.mxu0 0
        %563 = vmatprep.subr.bf16.mxu0 0
        %564 = vmatpush1.bf16.msra.mxu0 0
        %565 = vmatprep.subr.bf16.mxu0 0
        %566 = vmatpush1.bf16.msra.mxu0 0
        %567 = vmatprep.subr.bf16.mxu0 0
        %568 = vmatpush1.bf16.msra.mxu0 0
        %569 = vmatprep.subr.bf16.mxu0 0
        %570 = vmatpush1.bf16.msra.mxu0 0
        %571 = vmatprep.subr.bf16.mxu0 0
        %572 = vmatpush1.bf16.msra.mxu0 0
        %573 = vmatprep.subr.bf16.mxu0 0
        %574 = vmatpush1.bf16.msra.mxu0 0
        %575 = vmatprep.subr.bf16.mxu0 0
        %576 = vmatpush1.bf16.msra.mxu0 0
        %577 = vmatprep.subr.bf16.mxu0 0
        %578 = vmatpush1.bf16.msra.mxu0 0
        %579 = vmatprep.subr.bf16.mxu0 0
        %580 = vmatpush1.bf16.msra.mxu0 0
        %581 = vmatprep.mubr.bf16.mxu0 0
        %582 = vmatmul.mubr.bf16.gmra.mrb[0].mxu0 %v547
        %v583 = vpop.f32.mrb[0].mxu0
        %v584 = vadd.f32 %v498, %v583
        %v585 = vpop.f32.mrb[0].mxu0
        %v586 = vadd.f32 %v502, %v585
        %v587 = vpop.f32.mrb[0].mxu0
        %v588 = vpop.f32.mrb[0].mxu0
        %589 = vdwg.mxu0
        %v590 = vmax.f32 %v584, 0.0
        %v591 = vmax.f32 %v586, 0.0
        %v592 = vpack.c.bf16 %v590, %v590
        %v593 = vpack.c.bf16 %v591, %v591
        %v594 = vld [vmem:[#allocation8] sm:$0xff]
        %v595 = vld [vmem:[#allocation8 + $0x8] sm:$0xff]
        %v596 = vld [vmem:[#allocation8 + $0x10] sm:$0xff]
        %v597 = vld [vmem:[#allocation8 + $0x18] sm:$0xff]
        %v598 = vld [vmem:[#allocation8 + $0x20] sm:$0xff]
        %v599 = vld [vmem:[#allocation8 + $0x28] sm:$0xff]
        %v600 = vld [vmem:[#allocation8 + $0x30] sm:$0xff]
        %v601 = vld [vmem:[#allocation8 + $0x38] sm:$0xff]
        %v602 = vld [vmem:[#allocation8 + $0x40] sm:$0xff]
        %v603 = vld [vmem:[#allocation8 + $0x48] sm:$0xff]
        %v604 = vld [vmem:[#allocation8 + $0x50] sm:$0xff]
        %v605 = vld [vmem:[#allocation8 + $0x58] sm:$0xff]
        %v606 = vld [vmem:[#allocation8 + $0x60] sm:$0xff]
        %v607 = vld [vmem:[#allocation8 + $0x68] sm:$0xff]
        %v608 = vld [vmem:[#allocation8 + $0x70] sm:$0xff]
        %v609 = vld [vmem:[#allocation8 + $0x78] sm:$0xff]
        %v610 = vld [vmem:[#allocation8 + $0x80] sm:$0xff]
        %v611 = vld [vmem:[#allocation8 + $0x88] sm:$0xff]
        %v612 = vld [vmem:[#allocation8 + $0x90] sm:$0xff]
        %v613 = vld [vmem:[#allocation8 + $0x98] sm:$0xff]
        %v614 = vld [vmem:[#allocation8 + $0xa0] sm:$0xff]
        %v615 = vld [vmem:[#allocation8 + $0xa8] sm:$0xff]
        %v616 = vld [vmem:[#allocation8 + $0xb0] sm:$0xff]
        %v617 = vld [vmem:[#allocation8 + $0xb8] sm:$0xff]
        %v618 = vld [vmem:[#allocation8 + $0xc0] sm:$0xff]
        %v619 = vld [vmem:[#allocation8 + $0xc8] sm:$0xff]
        %v620 = vld [vmem:[#allocation8 + $0xd0] sm:$0xff]
        %v621 = vld [vmem:[#allocation8 + $0xd8] sm:$0xff]
        %v622 = vld [vmem:[#allocation8 + $0xe0] sm:$0xff]
        %v623 = vld [vmem:[#allocation8 + $0xe8] sm:$0xff]
        %v624 = vld [vmem:[#allocation8 + $0xf0] sm:$0xff]
        %v625 = vld [vmem:[#allocation8 + $0xf8] sm:$0xff]
        %v626 = vld [vmem:[#allocation8 + $0x100] sm:$0xff]
        %v627 = vld [vmem:[#allocation8 + $0x108] sm:$0xff]
        %v628 = vld [vmem:[#allocation8 + $0x110] sm:$0xff]
        %v629 = vld [vmem:[#allocation8 + $0x118] sm:$0xff]
        %v630 = vld [vmem:[#allocation8 + $0x120] sm:$0xff]
        %v631 = vld [vmem:[#allocation8 + $0x128] sm:$0xff]
        %v632 = vld [vmem:[#allocation8 + $0x130] sm:$0xff]
        %v633 = vld [vmem:[#allocation8 + $0x138] sm:$0xff]
        %v634 = vld [vmem:[#allocation8 + $0x140] sm:$0xff]
        %v635 = vld [vmem:[#allocation8 + $0x148] sm:$0xff]
        %v636 = vld [vmem:[#allocation8 + $0x150] sm:$0xff]
        %v637 = vld [vmem:[#allocation8 + $0x158] sm:$0xff]
        %v638 = vld [vmem:[#allocation8 + $0x160] sm:$0xff]
        %v639 = vld [vmem:[#allocation8 + $0x168] sm:$0xff]
        %v640 = vld [vmem:[#allocation8 + $0x170] sm:$0xff]
        %v641 = vld [vmem:[#allocation8 + $0x178] sm:$0xff]
        %v642 = vld [vmem:[#allocation8 + $0x180] sm:$0xff]
        %v643 = vld [vmem:[#allocation8 + $0x188] sm:$0xff]
        %v644 = vld [vmem:[#allocation8 + $0x190] sm:$0xff]
        %v645 = vld [vmem:[#allocation8 + $0x198] sm:$0xff]
        %v646 = vld [vmem:[#allocation8 + $0x1a0] sm:$0xff]
        %v647 = vld [vmem:[#allocation8 + $0x1a8] sm:$0xff]
        %v648 = vld [vmem:[#allocation8 + $0x1b0] sm:$0xff]
        %v649 = vld [vmem:[#allocation8 + $0x1b8] sm:$0xff]
        %v650 = vld [vmem:[#allocation8 + $0x1c0] sm:$0xff]
        %v651 = vld [vmem:[#allocation8 + $0x1c8] sm:$0xff]
        %v652 = vld [vmem:[#allocation8 + $0x1d0] sm:$0xff]
        %v653 = vld [vmem:[#allocation8 + $0x1d8] sm:$0xff]
        %v654 = vld [vmem:[#allocation8 + $0x1e0] sm:$0xff]
        %v655 = vld [vmem:[#allocation8 + $0x1e8] sm:$0xff]
        %v656 = vld [vmem:[#allocation8 + $0x1f0] sm:$0xff]
        %v657 = vld [vmem:[#allocation8 + $0x1f8] sm:$0xff]
        %v658 = vld [vmem:[#allocation10] sm:$0xf]
        %v660 = vlaneseq
        %v661 = vshrl.u32 %v660, 7
        %v662 = vsub.s32 0, %v661
        %v663 = vrot.slane %v658, %v662
        %v664 = vlaneseq
        %v665 = vshrl.u32 %v664, 7
        %v666 = vsub.s32 1, %v665
        %v667 = vrot.slane %v658, %v666
        %v668 = vlaneseq
        %v669 = vshrl.u32 %v668, 7
        %v670 = vsub.s32 2, %v669
        %v671 = vrot.slane %v658, %v670
        %v672 = vlaneseq
        %v673 = vshrl.u32 %v672, 7
        %v674 = vsub.s32 3, %v673
        %v675 = vrot.slane %v658, %v674
        %v744 = vunpack.c.l.b16 %v594
        %v745 = vunpack.c.h.b16 %v594
        %v746 = vunpack.c.l.b16 %v595
        %v747 = vunpack.c.h.b16 %v595
        %v748 = vunpack.c.l.b16 %v596
        %v749 = vunpack.c.h.b16 %v596
        %v750 = vunpack.c.l.b16 %v597
        %v751 = vunpack.c.h.b16 %v597
        %v752 = vunpack.c.l.b16 %v598
        %v753 = vunpack.c.h.b16 %v598
        %v754 = vunpack.c.l.b16 %v599
        %v755 = vunpack.c.h.b16 %v599
        %v756 = vunpack.c.l.b16 %v600
        %v757 = vunpack.c.h.b16 %v600
        %v758 = vunpack.c.l.b16 %v601
        %v759 = vunpack.c.h.b16 %v601
        %v760 = vunpack.c.l.b16 %v602
        %v761 = vunpack.c.h.b16 %v602
        %v762 = vunpack.c.l.b16 %v603
        %v763 = vunpack.c.h.b16 %v603
        %v764 = vunpack.c.l.b16 %v604
        %v765 = vunpack.c.h.b16 %v604
        %v766 = vunpack.c.l.b16 %v605
        %v767 = vunpack.c.h.b16 %v605
        %v768 = vunpack.c.l.b16 %v606
        %v769 = vunpack.c.h.b16 %v606
        %v770 = vunpack.c.l.b16 %v607
        %v771 = vunpack.c.h.b16 %v607
        %v772 = vunpack.c.l.b16 %v608
        %v773 = vunpack.c.h.b16 %v608
        %v774 = vunpack.c.l.b16 %v609
        %v775 = vunpack.c.h.b16 %v609
        %v776 = vunpack.c.l.b16 %v610
        %v777 = vunpack.c.h.b16 %v610
        %v778 = vunpack.c.l.b16 %v611
        %v779 = vunpack.c.h.b16 %v611
        %v780 = vunpack.c.l.b16 %v612
        %v781 = vunpack.c.h.b16 %v612
        %v782 = vunpack.c.l.b16 %v613
        %v783 = vunpack.c.h.b16 %v613
        %v784 = vunpack.c.l.b16 %v614
        %v785 = vunpack.c.h.b16 %v614
        %v786 = vunpack.c.l.b16 %v615
        %v787 = vunpack.c.h.b16 %v615
        %v788 = vunpack.c.l.b16 %v616
        %v789 = vunpack.c.h.b16 %v616
        %v790 = vunpack.c.l.b16 %v617
        %v791 = vunpack.c.h.b16 %v617
        %v792 = vunpack.c.l.b16 %v618
        %v793 = vunpack.c.h.b16 %v618
        %v794 = vunpack.c.l.b16 %v619
        %v795 = vunpack.c.h.b16 %v619
        %v796 = vunpack.c.l.b16 %v620
        %v797 = vunpack.c.h.b16 %v620
        %v798 = vunpack.c.l.b16 %v621
        %v799 = vunpack.c.h.b16 %v621
        %v800 = vunpack.c.l.b16 %v622
        %v801 = vunpack.c.h.b16 %v622
        %v802 = vunpack.c.l.b16 %v623
        %v803 = vunpack.c.h.b16 %v623
        %v804 = vunpack.c.l.b16 %v624
        %v805 = vunpack.c.h.b16 %v624
        %v806 = vunpack.c.l.b16 %v625
        %v807 = vunpack.c.h.b16 %v625
        %v808 = vunpack.c.l.b16 %v626
        %v809 = vunpack.c.h.b16 %v626
        %v810 = vunpack.c.l.b16 %v627
        %v811 = vunpack.c.h.b16 %v627
        %v812 = vunpack.c.l.b16 %v628
        %v813 = vunpack.c.h.b16 %v628
        %v814 = vunpack.c.l.b16 %v629
        %v815 = vunpack.c.h.b16 %v629
        %v816 = vunpack.c.l.b16 %v630
        %v817 = vunpack.c.h.b16 %v630
        %v818 = vunpack.c.l.b16 %v631
        %v819 = vunpack.c.h.b16 %v631
        %v820 = vunpack.c.l.b16 %v632
        %v821 = vunpack.c.h.b16 %v632
        %v822 = vunpack.c.l.b16 %v633
        %v823 = vunpack.c.h.b16 %v633
        %v824 = vunpack.c.l.b16 %v634
        %v825 = vunpack.c.h.b16 %v634
        %v826 = vunpack.c.l.b16 %v635
        %v827 = vunpack.c.h.b16 %v635
        %v828 = vunpack.c.l.b16 %v636
        %v829 = vunpack.c.h.b16 %v636
        %v830 = vunpack.c.l.b16 %v637
        %v831 = vunpack.c.h.b16 %v637
        %v832 = vunpack.c.l.b16 %v638
        %v833 = vunpack.c.h.b16 %v638
        %v834 = vunpack.c.l.b16 %v639
        %v835 = vunpack.c.h.b16 %v639
        %v836 = vunpack.c.l.b16 %v640
        %v837 = vunpack.c.h.b16 %v640
        %v838 = vunpack.c.l.b16 %v641
        %v839 = vunpack.c.h.b16 %v641
        %v840 = vunpack.c.l.b16 %v642
        %v841 = vunpack.c.h.b16 %v642
        %v842 = vunpack.c.l.b16 %v643
        %v843 = vunpack.c.h.b16 %v643
        %v844 = vunpack.c.l.b16 %v644
        %v845 = vunpack.c.h.b16 %v644
        %v846 = vunpack.c.l.b16 %v645
        %v847 = vunpack.c.h.b16 %v645
        %v848 = vunpack.c.l.b16 %v646
        %v849 = vunpack.c.h.b16 %v646
        %v850 = vunpack.c.l.b16 %v647
        %v851 = vunpack.c.h.b16 %v647
        %v852 = vunpack.c.l.b16 %v648
        %v853 = vunpack.c.h.b16 %v648
        %v854 = vunpack.c.l.b16 %v649
        %v855 = vunpack.c.h.b16 %v649
        %v856 = vunpack.c.l.b16 %v650
        %v857 = vunpack.c.h.b16 %v650
        %v858 = vunpack.c.l.b16 %v651
        %v859 = vunpack.c.h.b16 %v651
        %v860 = vunpack.c.l.b16 %v652
        %v861 = vunpack.c.h.b16 %v652
        %v862 = vunpack.c.l.b16 %v653
        %v863 = vunpack.c.h.b16 %v653
        %v864 = vunpack.c.l.b16 %v654
        %v865 = vunpack.c.h.b16 %v654
        %v866 = vunpack.c.l.b16 %v655
        %v867 = vunpack.c.h.b16 %v655
        %v868 = vunpack.c.l.b16 %v656
        %v869 = vunpack.c.h.b16 %v656
        %v870 = vunpack.c.l.b16 %v657
        %v871 = vunpack.c.h.b16 %v657
        %v872 = vpack.c.b16 %v748, %v744
        %v873 = vpack.c.b16 %v749, %v745
        %v874 = vpack.c.b16 %v750, %v746
        %v875 = vpack.c.b16 %v751, %v747
        %v876 = vpack.c.b16 %v756, %v752
        %v877 = vpack.c.b16 %v757, %v753
        %v878 = vpack.c.b16 %v758, %v754
        %v879 = vpack.c.b16 %v759, %v755
        %v880 = vpack.c.b16 %v764, %v760
        %v881 = vpack.c.b16 %v765, %v761
        %v882 = vpack.c.b16 %v766, %v762
        %v883 = vpack.c.b16 %v767, %v763
        %v884 = vpack.c.b16 %v772, %v768
        %v885 = vpack.c.b16 %v773, %v769
        %v886 = vpack.c.b16 %v774, %v770
        %v887 = vpack.c.b16 %v775, %v771
        %v888 = vpack.c.b16 %v780, %v776
        %v889 = vpack.c.b16 %v781, %v777
        %v890 = vpack.c.b16 %v782, %v778
        %v891 = vpack.c.b16 %v783, %v779
        %v892 = vpack.c.b16 %v788, %v784
        %v893 = vpack.c.b16 %v789, %v785
        %v894 = vpack.c.b16 %v790, %v786
        %v895 = vpack.c.b16 %v791, %v787
        %v896 = vpack.c.b16 %v796, %v792
        %v897 = vpack.c.b16 %v797, %v793
        %v898 = vpack.c.b16 %v798, %v794
        %v899 = vpack.c.b16 %v799, %v795
        %v900 = vpack.c.b16 %v804, %v800
        %v901 = vpack.c.b16 %v805, %v801
        %v902 = vpack.c.b16 %v806, %v802
        %v903 = vpack.c.b16 %v807, %v803
        %v904 = vpack.c.b16 %v812, %v808
        %v905 = vpack.c.b16 %v813, %v809
        %v906 = vpack.c.b16 %v814, %v810
        %v907 = vpack.c.b16 %v815, %v811
        %v908 = vpack.c.b16 %v820, %v816
        %v909 = vpack.c.b16 %v821, %v817
        %v910 = vpack.c.b16 %v822, %v818
        %v911 = vpack.c.b16 %v823, %v819
        %v912 = vpack.c.b16 %v828, %v824
        %v913 = vpack.c.b16 %v829, %v825
        %v914 = vpack.c.b16 %v830, %v826
        %v915 = vpack.c.b16 %v831, %v827
        %v916 = vpack.c.b16 %v836, %v832
        %v917 = vpack.c.b16 %v837, %v833
        %v918 = vpack.c.b16 %v838, %v834
        %v919 = vpack.c.b16 %v839, %v835
        %v920 = vpack.c.b16 %v844, %v840
        %v921 = vpack.c.b16 %v845, %v841
        %v922 = vpack.c.b16 %v846, %v842
        %v923 = vpack.c.b16 %v847, %v843
        %v924 = vpack.c.b16 %v852, %v848
        %v925 = vpack.c.b16 %v853, %v849
        %v926 = vpack.c.b16 %v854, %v850
        %v927 = vpack.c.b16 %v855, %v851
        %v928 = vpack.c.b16 %v860, %v856
        %v929 = vpack.c.b16 %v861, %v857
        %v930 = vpack.c.b16 %v862, %v858
        %v931 = vpack.c.b16 %v863, %v859
        %v932 = vpack.c.b16 %v868, %v864
        %v933 = vpack.c.b16 %v869, %v865
        %v934 = vpack.c.b16 %v870, %v866
        %v935 = vpack.c.b16 %v871, %v867
        %1000 = vmatprep.subr.bf16.mxu0 %v873
        %1001 = vmatpush1.bf16.msra.mxu0 %v872
        %1002 = vmatprep.subr.bf16.mxu0 %v877
        %1003 = vmatpush1.bf16.msra.mxu0 %v876
        %1004 = vmatprep.subr.bf16.mxu0 %v881
        %1005 = vmatpush1.bf16.msra.mxu0 %v880
        %1006 = vmatprep.subr.bf16.mxu0 %v885
        %1007 = vmatpush1.bf16.msra.mxu0 %v884
        %1008 = vmatprep.subr.bf16.mxu0 %v889
        %1009 = vmatpush1.bf16.msra.mxu0 %v888
        %1010 = vmatprep.subr.bf16.mxu0 %v893
        %1011 = vmatpush1.bf16.msra.mxu0 %v892
        %1012 = vmatprep.subr.bf16.mxu0 %v897
        %1013 = vmatpush1.bf16.msra.mxu0 %v896
        %1014 = vmatprep.subr.bf16.mxu0 %v901
        %1015 = vmatpush1.bf16.msra.mxu0 %v900
        %1016 = vmatprep.subr.bf16.mxu0 %v905
        %1017 = vmatpush1.bf16.msra.mxu0 %v904
        %1018 = vmatprep.subr.bf16.mxu0 %v909
        %1019 = vmatpush1.bf16.msra.mxu0 %v908
        %1020 = vmatprep.subr.bf16.mxu0 %v913
        %1021 = vmatpush1.bf16.msra.mxu0 %v912
        %1022 = vmatprep.subr.bf16.mxu0 %v917
        %1023 = vmatpush1.bf16.msra.mxu0 %v916
        %1024 = vmatprep.subr.bf16.mxu0 %v921
        %1025 = vmatpush1.bf16.msra.mxu0 %v920
        %1026 = vmatprep.subr.bf16.mxu0 %v925
        %1027 = vmatpush1.bf16.msra.mxu0 %v924
        %1028 = vmatprep.subr.bf16.mxu0 %v929
        %1029 = vmatpush1.bf16.msra.mxu0 %v928
        %1030 = vmatprep.subr.bf16.mxu0 %v933
        %1031 = vmatpush1.bf16.msra.mxu0 %v932
        %1032 = vmatprep.mubr.bf16.mxu0 %v593
        %1033 = vmatmul.mubr.bf16.gmra.mrb[0].mxu0 %v592
        %v1034 = vpop.f32.mrb[0].mxu0
        %v1035 = vadd.f32 %v663, %v1034
        %v1036 = vpop.f32.mrb[0].mxu0
        %v1037 = vadd.f32 %v667, %v1036
        %v1038 = vpop.f32.mrb[0].mxu0
        %v1039 = vpop.f32.mrb[0].mxu0
        %1040 = vdwg.mxu0
        %1041 = vmatprep.subr.bf16.mxu0 %v875
        %1042 = vmatpush1.bf16.msra.mxu0 %v874
        %1043 = vmatprep.subr.bf16.mxu0 %v879
        %1044 = vmatpush1.bf16.msra.mxu0 %v878
        %1045 = vmatprep.subr.bf16.mxu0 %v883
        %1046 = vmatpush1.bf16.msra.mxu0 %v882
        %1047 = vmatprep.subr.bf16.mxu0 %v887
        %1048 = vmatpush1.bf16.msra.mxu0 %v886
        %1049 = vmatprep.subr.bf16.mxu0 %v891
        %1050 = vmatpush1.bf16.msra.mxu0 %v890
        %1051 = vmatprep.subr.bf16.mxu0 %v895
        %1052 = vmatpush1.bf16.msra.mxu0 %v894
        %1053 = vmatprep.subr.bf16.mxu0 %v899
        %1054 = vmatpush1.bf16.msra.mxu0 %v898
        %1055 = vmatprep.subr.bf16.mxu0 %v903
        %1056 = vmatpush1.bf16.msra.mxu0 %v902
        %1057 = vmatprep.subr.bf16.mxu0 %v907
        %1058 = vmatpush1.bf16.msra.mxu0 %v906
        %1059 = vmatprep.subr.bf16.mxu0 %v911
        %1060 = vmatpush1.bf16.msra.mxu0 %v910
        %1061 = vmatprep.subr.bf16.mxu0 %v915
        %1062 = vmatpush1.bf16.msra.mxu0 %v914
        %1063 = vmatprep.subr.bf16.mxu0 %v919
        %1064 = vmatpush1.bf16.msra.mxu0 %v918
        %1065 = vmatprep.subr.bf16.mxu0 %v923
        %1066 = vmatpush1.bf16.msra.mxu0 %v922
        %1067 = vmatprep.subr.bf16.mxu0 %v927
        %1068 = vmatpush1.bf16.msra.mxu0 %v926
        %1069 = vmatprep.subr.bf16.mxu0 %v931
        %1070 = vmatpush1.bf16.msra.mxu0 %v930
        %1071 = vmatprep.subr.bf16.mxu0 %v935
        %1072 = vmatpush1.bf16.msra.mxu0 %v934
        %1073 = vmatprep.mubr.bf16.mxu0 %v593
        %1074 = vmatmul.mubr.bf16.gmra.mrb[0].mxu0 %v592
        %v1075 = vpop.f32.mrb[0].mxu0
        %v1076 = vadd.f32 %v671, %v1075
        %v1077 = vpop.f32.mrb[0].mxu0
        %v1078 = vadd.f32 %v675, %v1077
        %v1079 = vpop.f32.mrb[0].mxu0
        %v1080 = vpop.f32.mrb[0].mxu0
        %1081 = vdwg.mxu0
        %v1082 = vmax.f32 %v1035, 0.0
        %v1083 = vmax.f32 %v1037, 0.0
        %v1084 = vmax.f32 %v1076, 0.0
        %v1085 = vmax.f32 %v1078, 0.0
        %v1086 = vpack.c.bf16 %v1082, %v1082
        %v1087 = vpack.c.bf16 %v1083, %v1083
        %v1088 = vpack.c.bf16 %v1084, %v1084
        %v1089 = vpack.c.bf16 %v1085, %v1085
        %v1090 = vld [vmem:[#allocation11] sm:$0xff]
        %v1091 = vld [vmem:[#allocation11 + $0x8] sm:$0xff]
        %v1092 = vld [vmem:[#allocation11 + $0x10] sm:$0xff]
        %v1093 = vld [vmem:[#allocation11 + $0x18] sm:$0xff]
        %v1094 = vld [vmem:[#allocation11 + $0x20] sm:$0xff]
        %v1095 = vld [vmem:[#allocation11 + $0x28] sm:$0xff]
        %v1096 = vld [vmem:[#allocation11 + $0x30] sm:$0xff]
        %v1097 = vld [vmem:[#allocation11 + $0x38] sm:$0xff]
        %v1098 = vld [vmem:[#allocation11 + $0x40] sm:$0xff]
        %v1099 = vld [vmem:[#allocation11 + $0x48] sm:$0xff]
        %v1100 = vld [vmem:[#allocation11 + $0x50] sm:$0xff]
        %v1101 = vld [vmem:[#allocation11 + $0x58] sm:$0xff]
        %v1102 = vld [vmem:[#allocation11 + $0x60] sm:$0xff]
        %v1103 = vld [vmem:[#allocation11 + $0x68] sm:$0xff]
        %v1104 = vld [vmem:[#allocation11 + $0x70] sm:$0xff]
        %v1105 = vld [vmem:[#allocation11 + $0x78] sm:$0xff]
        %v1106 = vld [vmem:[#allocation11 + $0x80] sm:$0xff]
        %v1107 = vld [vmem:[#allocation11 + $0x88] sm:$0xff]
        %v1108 = vld [vmem:[#allocation11 + $0x90] sm:$0xff]
        %v1109 = vld [vmem:[#allocation11 + $0x98] sm:$0xff]
        %v1110 = vld [vmem:[#allocation11 + $0xa0] sm:$0xff]
        %v1111 = vld [vmem:[#allocation11 + $0xa8] sm:$0xff]
        %v1112 = vld [vmem:[#allocation11 + $0xb0] sm:$0xff]
        %v1113 = vld [vmem:[#allocation11 + $0xb8] sm:$0xff]
        %v1114 = vld [vmem:[#allocation11 + $0xc0] sm:$0xff]
        %v1115 = vld [vmem:[#allocation11 + $0xc8] sm:$0xff]
        %v1116 = vld [vmem:[#allocation11 + $0xd0] sm:$0xff]
        %v1117 = vld [vmem:[#allocation11 + $0xd8] sm:$0xff]
        %v1118 = vld [vmem:[#allocation11 + $0xe0] sm:$0xff]
        %v1119 = vld [vmem:[#allocation11 + $0xe8] sm:$0xff]
        %v1120 = vld [vmem:[#allocation11 + $0xf0] sm:$0xff]
        %v1121 = vld [vmem:[#allocation11 + $0xf8] sm:$0xff]
        %v1122 = vld [vmem:[#allocation11 + $0x100] sm:$0xff]
        %v1123 = vld [vmem:[#allocation11 + $0x108] sm:$0xff]
        %v1124 = vld [vmem:[#allocation11 + $0x110] sm:$0xff]
        %v1125 = vld [vmem:[#allocation11 + $0x118] sm:$0xff]
        %v1126 = vld [vmem:[#allocation11 + $0x120] sm:$0xff]
        %v1127 = vld [vmem:[#allocation11 + $0x128] sm:$0xff]
        %v1128 = vld [vmem:[#allocation11 + $0x130] sm:$0xff]
        %v1129 = vld [vmem:[#allocation11 + $0x138] sm:$0xff]
        %v1130 = vld [vmem:[#allocation11 + $0x140] sm:$0xff]
        %v1131 = vld [vmem:[#allocation11 + $0x148] sm:$0xff]
        %v1132 = vld [vmem:[#allocation11 + $0x150] sm:$0xff]
        %v1133 = vld [vmem:[#allocation11 + $0x158] sm:$0xff]
        %v1134 = vld [vmem:[#allocation11 + $0x160] sm:$0xff]
        %v1135 = vld [vmem:[#allocation11 + $0x168] sm:$0xff]
        %v1136 = vld [vmem:[#allocation11 + $0x170] sm:$0xff]
        %v1137 = vld [vmem:[#allocation11 + $0x178] sm:$0xff]
        %v1138 = vld [vmem:[#allocation11 + $0x180] sm:$0xff]
        %v1139 = vld [vmem:[#allocation11 + $0x188] sm:$0xff]
        %v1140 = vld [vmem:[#allocation11 + $0x190] sm:$0xff]
        %v1141 = vld [vmem:[#allocation11 + $0x198] sm:$0xff]
        %v1142 = vld [vmem:[#allocation11 + $0x1a0] sm:$0xff]
        %v1143 = vld [vmem:[#allocation11 + $0x1a8] sm:$0xff]
        %v1144 = vld [vmem:[#allocation11 + $0x1b0] sm:$0xff]
        %v1145 = vld [vmem:[#allocation11 + $0x1b8] sm:$0xff]
        %v1146 = vld [vmem:[#allocation11 + $0x1c0] sm:$0xff]
        %v1147 = vld [vmem:[#allocation11 + $0x1c8] sm:$0xff]
        %v1148 = vld [vmem:[#allocation11 + $0x1d0] sm:$0xff]
        %v1149 = vld [vmem:[#allocation11 + $0x1d8] sm:$0xff]
        %v1150 = vld [vmem:[#allocation11 + $0x1e0] sm:$0xff]
        %v1151 = vld [vmem:[#allocation11 + $0x1e8] sm:$0xff]
        %v1152 = vld [vmem:[#allocation11 + $0x1f0] sm:$0xff]
        %v1153 = vld [vmem:[#allocation11 + $0x1f8] sm:$0xff]
        %v1154 = vld [vmem:[#allocation11 + $0x200] sm:$0xff]
        %v1155 = vld [vmem:[#allocation11 + $0x208] sm:$0xff]
        %v1156 = vld [vmem:[#allocation11 + $0x210] sm:$0xff]
        %v1157 = vld [vmem:[#allocation11 + $0x218] sm:$0xff]
        %v1158 = vld [vmem:[#allocation11 + $0x220] sm:$0xff]
        %v1159 = vld [vmem:[#allocation11 + $0x228] sm:$0xff]
        %v1160 = vld [vmem:[#allocation11 + $0x230] sm:$0xff]
        %v1161 = vld [vmem:[#allocation11 + $0x238] sm:$0xff]
        %v1162 = vld [vmem:[#allocation11 + $0x240] sm:$0xff]
        %v1163 = vld [vmem:[#allocation11 + $0x248] sm:$0xff]
        %v1164 = vld [vmem:[#allocation11 + $0x250] sm:$0xff]
        %v1165 = vld [vmem:[#allocation11 + $0x258] sm:$0xff]
        %v1166 = vld [vmem:[#allocation11 + $0x260] sm:$0xff]
        %v1167 = vld [vmem:[#allocation11 + $0x268] sm:$0xff]
        %v1168 = vld [vmem:[#allocation11 + $0x270] sm:$0xff]
        %v1169 = vld [vmem:[#allocation11 + $0x278] sm:$0xff]
        %v1170 = vld [vmem:[#allocation11 + $0x280] sm:$0xff]
        %v1171 = vld [vmem:[#allocation11 + $0x288] sm:$0xff]
        %v1172 = vld [vmem:[#allocation11 + $0x290] sm:$0xff]
        %v1173 = vld [vmem:[#allocation11 + $0x298] sm:$0xff]
        %v1174 = vld [vmem:[#allocation11 + $0x2a0] sm:$0xff]
        %v1175 = vld [vmem:[#allocation11 + $0x2a8] sm:$0xff]
        %v1176 = vld [vmem:[#allocation11 + $0x2b0] sm:$0xff]
        %v1177 = vld [vmem:[#allocation11 + $0x2b8] sm:$0xff]
        %v1178 = vld [vmem:[#allocation11 + $0x2c0] sm:$0xff]
        %v1179 = vld [vmem:[#allocation11 + $0x2c8] sm:$0xff]
        %v1180 = vld [vmem:[#allocation11 + $0x2d0] sm:$0xff]
        %v1181 = vld [vmem:[#allocation11 + $0x2d8] sm:$0xff]
        %v1182 = vld [vmem:[#allocation11 + $0x2e0] sm:$0xff]
        %v1183 = vld [vmem:[#allocation11 + $0x2e8] sm:$0xff]
        %v1184 = vld [vmem:[#allocation11 + $0x2f0] sm:$0xff]
        %v1185 = vld [vmem:[#allocation11 + $0x2f8] sm:$0xff]
        %v1186 = vld [vmem:[#allocation11 + $0x300] sm:$0xff]
        %v1187 = vld [vmem:[#allocation11 + $0x308] sm:$0xff]
        %v1188 = vld [vmem:[#allocation11 + $0x310] sm:$0xff]
        %v1189 = vld [vmem:[#allocation11 + $0x318] sm:$0xff]
        %v1190 = vld [vmem:[#allocation11 + $0x320] sm:$0xff]
        %v1191 = vld [vmem:[#allocation11 + $0x328] sm:$0xff]
        %v1192 = vld [vmem:[#allocation11 + $0x330] sm:$0xff]
        %v1193 = vld [vmem:[#allocation11 + $0x338] sm:$0xff]
        %v1194 = vld [vmem:[#allocation11 + $0x340] sm:$0xff]
        %v1195 = vld [vmem:[#allocation11 + $0x348] sm:$0xff]
        %v1196 = vld [vmem:[#allocation11 + $0x350] sm:$0xff]
        %v1197 = vld [vmem:[#allocation11 + $0x358] sm:$0xff]
        %v1198 = vld [vmem:[#allocation11 + $0x360] sm:$0xff]
        %v1199 = vld [vmem:[#allocation11 + $0x368] sm:$0xff]
        %v1200 = vld [vmem:[#allocation11 + $0x370] sm:$0xff]
        %v1201 = vld [vmem:[#allocation11 + $0x378] sm:$0xff]
        %v1202 = vld [vmem:[#allocation11 + $0x380] sm:$0xff]
        %v1203 = vld [vmem:[#allocation11 + $0x388] sm:$0xff]
        %v1204 = vld [vmem:[#allocation11 + $0x390] sm:$0xff]
        %v1205 = vld [vmem:[#allocation11 + $0x398] sm:$0xff]
        %v1206 = vld [vmem:[#allocation11 + $0x3a0] sm:$0xff]
        %v1207 = vld [vmem:[#allocation11 + $0x3a8] sm:$0xff]
        %v1208 = vld [vmem:[#allocation11 + $0x3b0] sm:$0xff]
        %v1209 = vld [vmem:[#allocation11 + $0x3b8] sm:$0xff]
        %v1210 = vld [vmem:[#allocation11 + $0x3c0] sm:$0xff]
        %v1211 = vld [vmem:[#allocation11 + $0x3c8] sm:$0xff]
        %v1212 = vld [vmem:[#allocation11 + $0x3d0] sm:$0xff]
        %v1213 = vld [vmem:[#allocation11 + $0x3d8] sm:$0xff]
        %v1214 = vld [vmem:[#allocation11 + $0x3e0] sm:$0xff]
        %v1215 = vld [vmem:[#allocation11 + $0x3e8] sm:$0xff]
        %v1216 = vld [vmem:[#allocation11 + $0x3f0] sm:$0xff]
        %v1217 = vld [vmem:[#allocation11 + $0x3f8] sm:$0xff]
        %v1218 = vld [vmem:[#allocation11 + $0x400] sm:$0xff]
        %v1219 = vld [vmem:[#allocation11 + $0x408] sm:$0xff]
        %v1220 = vld [vmem:[#allocation11 + $0x410] sm:$0xff]
        %v1221 = vld [vmem:[#allocation11 + $0x418] sm:$0xff]
        %v1222 = vld [vmem:[#allocation11 + $0x420] sm:$0xff]
        %v1223 = vld [vmem:[#allocation11 + $0x428] sm:$0xff]
        %v1224 = vld [vmem:[#allocation11 + $0x430] sm:$0xff]
        %v1225 = vld [vmem:[#allocation11 + $0x438] sm:$0xff]
        %v1226 = vld [vmem:[#allocation11 + $0x440] sm:$0xff]
        %v1227 = vld [vmem:[#allocation11 + $0x448] sm:$0xff]
        %v1228 = vld [vmem:[#allocation11 + $0x450] sm:$0xff]
        %v1229 = vld [vmem:[#allocation11 + $0x458] sm:$0xff]
        %v1230 = vld [vmem:[#allocation11 + $0x460] sm:$0xff]
        %v1231 = vld [vmem:[#allocation11 + $0x468] sm:$0xff]
        %v1232 = vld [vmem:[#allocation11 + $0x470] sm:$0xff]
        %v1233 = vld [vmem:[#allocation11 + $0x478] sm:$0xff]
        %v1234 = vld [vmem:[#allocation11 + $0x480] sm:$0xff]
        %v1235 = vld [vmem:[#allocation11 + $0x488] sm:$0xff]
        %v1236 = vld [vmem:[#allocation11 + $0x490] sm:$0xff]
        %v1237 = vld [vmem:[#allocation11 + $0x498] sm:$0xff]
        %v1238 = vld [vmem:[#allocation11 + $0x4a0] sm:$0xff]
        %v1239 = vld [vmem:[#allocation11 + $0x4a8] sm:$0xff]
        %v1240 = vld [vmem:[#allocation11 + $0x4b0] sm:$0xff]
        %v1241 = vld [vmem:[#allocation11 + $0x4b8] sm:$0xff]
        %v1242 = vld [vmem:[#allocation11 + $0x4c0] sm:$0xff]
        %v1243 = vld [vmem:[#allocation11 + $0x4c8] sm:$0xff]
        %v1244 = vld [vmem:[#allocation11 + $0x4d0] sm:$0xff]
        %v1245 = vld [vmem:[#allocation11 + $0x4d8] sm:$0xff]
        %v1246 = vld [vmem:[#allocation11 + $0x4e0] sm:$0xff]
        %v1247 = vld [vmem:[#allocation11 + $0x4e8] sm:$0xff]
        %v1248 = vld [vmem:[#allocation11 + $0x4f0] sm:$0xff]
        %v1249 = vld [vmem:[#allocation11 + $0x4f8] sm:$0xff]
        %v1250 = vld [vmem:[#allocation11 + $0x500] sm:$0xff]
        %v1251 = vld [vmem:[#allocation11 + $0x508] sm:$0xff]
        %v1252 = vld [vmem:[#allocation11 + $0x510] sm:$0xff]
        %v1253 = vld [vmem:[#allocation11 + $0x518] sm:$0xff]
        %v1254 = vld [vmem:[#allocation11 + $0x520] sm:$0xff]
        %v1255 = vld [vmem:[#allocation11 + $0x528] sm:$0xff]
        %v1256 = vld [vmem:[#allocation11 + $0x530] sm:$0xff]
        %v1257 = vld [vmem:[#allocation11 + $0x538] sm:$0xff]
        %v1258 = vld [vmem:[#allocation11 + $0x540] sm:$0xff]
        %v1259 = vld [vmem:[#allocation11 + $0x548] sm:$0xff]
        %v1260 = vld [vmem:[#allocation11 + $0x550] sm:$0xff]
        %v1261 = vld [vmem:[#allocation11 + $0x558] sm:$0xff]
        %v1262 = vld [vmem:[#allocation11 + $0x560] sm:$0xff]
        %v1263 = vld [vmem:[#allocation11 + $0x568] sm:$0xff]
        %v1264 = vld [vmem:[#allocation11 + $0x570] sm:$0xff]
        %v1265 = vld [vmem:[#allocation11 + $0x578] sm:$0xff]
        %v1266 = vld [vmem:[#allocation11 + $0x580] sm:$0xff]
        %v1267 = vld [vmem:[#allocation11 + $0x588] sm:$0xff]
        %v1268 = vld [vmem:[#allocation11 + $0x590] sm:$0xff]
        %v1269 = vld [vmem:[#allocation11 + $0x598] sm:$0xff]
        %v1270 = vld [vmem:[#allocation11 + $0x5a0] sm:$0xff]
        %v1271 = vld [vmem:[#allocation11 + $0x5a8] sm:$0xff]
        %v1272 = vld [vmem:[#allocation11 + $0x5b0] sm:$0xff]
        %v1273 = vld [vmem:[#allocation11 + $0x5b8] sm:$0xff]
        %v1274 = vld [vmem:[#allocation11 + $0x5c0] sm:$0xff]
        %v1275 = vld [vmem:[#allocation11 + $0x5c8] sm:$0xff]
        %v1276 = vld [vmem:[#allocation11 + $0x5d0] sm:$0xff]
        %v1277 = vld [vmem:[#allocation11 + $0x5d8] sm:$0xff]
        %v1278 = vld [vmem:[#allocation11 + $0x5e0] sm:$0xff]
        %v1279 = vld [vmem:[#allocation11 + $0x5e8] sm:$0xff]
        %v1280 = vld [vmem:[#allocation11 + $0x5f0] sm:$0xff]
        %v1281 = vld [vmem:[#allocation11 + $0x5f8] sm:$0xff]
        %v1282 = vld [vmem:[#allocation11 + $0x600] sm:$0xff]
        %v1283 = vld [vmem:[#allocation11 + $0x608] sm:$0xff]
        %v1284 = vld [vmem:[#allocation11 + $0x610] sm:$0xff]
        %v1285 = vld [vmem:[#allocation11 + $0x618] sm:$0xff]
        %v1286 = vld [vmem:[#allocation11 + $0x620] sm:$0xff]
        %v1287 = vld [vmem:[#allocation11 + $0x628] sm:$0xff]
        %v1288 = vld [vmem:[#allocation11 + $0x630] sm:$0xff]
        %v1289 = vld [vmem:[#allocation11 + $0x638] sm:$0xff]
        %v1290 = vld [vmem:[#allocation11 + $0x640] sm:$0xff]
        %v1291 = vld [vmem:[#allocation11 + $0x648] sm:$0xff]
        %v1292 = vld [vmem:[#allocation11 + $0x650] sm:$0xff]
        %v1293 = vld [vmem:[#allocation11 + $0x658] sm:$0xff]
        %v1294 = vld [vmem:[#allocation11 + $0x660] sm:$0xff]
        %v1295 = vld [vmem:[#allocation11 + $0x668] sm:$0xff]
        %v1296 = vld [vmem:[#allocation11 + $0x670] sm:$0xff]
        %v1297 = vld [vmem:[#allocation11 + $0x678] sm:$0xff]
        %v1298 = vld [vmem:[#allocation11 + $0x680] sm:$0xff]
        %v1299 = vld [vmem:[#allocation11 + $0x688] sm:$0xff]
        %v1300 = vld [vmem:[#allocation11 + $0x690] sm:$0xff]
        %v1301 = vld [vmem:[#allocation11 + $0x698] sm:$0xff]
        %v1302 = vld [vmem:[#allocation11 + $0x6a0] sm:$0xff]
        %v1303 = vld [vmem:[#allocation11 + $0x6a8] sm:$0xff]
        %v1304 = vld [vmem:[#allocation11 + $0x6b0] sm:$0xff]
        %v1305 = vld [vmem:[#allocation11 + $0x6b8] sm:$0xff]
        %v1306 = vld [vmem:[#allocation11 + $0x6c0] sm:$0xff]
        %v1307 = vld [vmem:[#allocation11 + $0x6c8] sm:$0xff]
        %v1308 = vld [vmem:[#allocation11 + $0x6d0] sm:$0xff]
        %v1309 = vld [vmem:[#allocation11 + $0x6d8] sm:$0xff]
        %v1310 = vld [vmem:[#allocation11 + $0x6e0] sm:$0xff]
        %v1311 = vld [vmem:[#allocation11 + $0x6e8] sm:$0xff]
        %v1312 = vld [vmem:[#allocation11 + $0x6f0] sm:$0xff]
        %v1313 = vld [vmem:[#allocation11 + $0x6f8] sm:$0xff]
        %v1314 = vld [vmem:[#allocation11 + $0x700] sm:$0xff]
        %v1315 = vld [vmem:[#allocation11 + $0x708] sm:$0xff]
        %v1316 = vld [vmem:[#allocation11 + $0x710] sm:$0xff]
        %v1317 = vld [vmem:[#allocation11 + $0x718] sm:$0xff]
        %v1318 = vld [vmem:[#allocation11 + $0x720] sm:$0xff]
        %v1319 = vld [vmem:[#allocation11 + $0x728] sm:$0xff]
        %v1320 = vld [vmem:[#allocation11 + $0x730] sm:$0xff]
        %v1321 = vld [vmem:[#allocation11 + $0x738] sm:$0xff]
        %v1322 = vld [vmem:[#allocation11 + $0x740] sm:$0xff]
        %v1323 = vld [vmem:[#allocation11 + $0x748] sm:$0xff]
        %v1324 = vld [vmem:[#allocation11 + $0x750] sm:$0xff]
        %v1325 = vld [vmem:[#allocation11 + $0x758] sm:$0xff]
        %v1326 = vld [vmem:[#allocation11 + $0x760] sm:$0xff]
        %v1327 = vld [vmem:[#allocation11 + $0x768] sm:$0xff]
        %v1328 = vld [vmem:[#allocation11 + $0x770] sm:$0xff]
        %v1329 = vld [vmem:[#allocation11 + $0x778] sm:$0xff]
        %v1330 = vld [vmem:[#allocation11 + $0x780] sm:$0xff]
        %v1331 = vld [vmem:[#allocation11 + $0x788] sm:$0xff]
        %v1332 = vld [vmem:[#allocation11 + $0x790] sm:$0xff]
        %v1333 = vld [vmem:[#allocation11 + $0x798] sm:$0xff]
        %v1334 = vld [vmem:[#allocation11 + $0x7a0] sm:$0xff]
        %v1335 = vld [vmem:[#allocation11 + $0x7a8] sm:$0xff]
        %v1336 = vld [vmem:[#allocation11 + $0x7b0] sm:$0xff]
        %v1337 = vld [vmem:[#allocation11 + $0x7b8] sm:$0xff]
        %v1338 = vld [vmem:[#allocation11 + $0x7c0] sm:$0xff]
        %v1339 = vld [vmem:[#allocation11 + $0x7c8] sm:$0xff]
        %v1340 = vld [vmem:[#allocation11 + $0x7d0] sm:$0xff]
        %v1341 = vld [vmem:[#allocation11 + $0x7d8] sm:$0xff]
        %v1342 = vld [vmem:[#allocation11 + $0x7e0] sm:$0xff]
        %v1343 = vld [vmem:[#allocation11 + $0x7e8] sm:$0xff]
        %v1344 = vld [vmem:[#allocation11 + $0x7f0] sm:$0xff]
        %v1345 = vld [vmem:[#allocation11 + $0x7f8] sm:$0xff]
        %v1346 = vld [vmem:[#allocation13] sm:$0xff]
        %v1348 = vlaneseq
        %v1349 = vshrl.u32 %v1348, 7
        %v1350 = vsub.s32 0, %v1349
        %v1351 = vrot.slane %v1346, %v1350
        %v1352 = vlaneseq
        %v1353 = vshrl.u32 %v1352, 7
        %v1354 = vsub.s32 1, %v1353
        %v1355 = vrot.slane %v1346, %v1354
        %v1356 = vlaneseq
        %v1357 = vshrl.u32 %v1356, 7
        %v1358 = vsub.s32 2, %v1357
        %v1359 = vrot.slane %v1346, %v1358
        %v1360 = vlaneseq
        %v1361 = vshrl.u32 %v1360, 7
        %v1362 = vsub.s32 3, %v1361
        %v1363 = vrot.slane %v1346, %v1362
        %v1364 = vlaneseq
        %v1365 = vshrl.u32 %v1364, 7
        %v1366 = vsub.s32 4, %v1365
        %v1367 = vrot.slane %v1346, %v1366
        %v1368 = vlaneseq
        %v1369 = vshrl.u32 %v1368, 7
        %v1370 = vsub.s32 5, %v1369
        %v1371 = vrot.slane %v1346, %v1370
        %v1372 = vlaneseq
        %v1373 = vshrl.u32 %v1372, 7
        %v1374 = vsub.s32 6, %v1373
        %v1375 = vrot.slane %v1346, %v1374
        %v1376 = vlaneseq
        %v1377 = vshrl.u32 %v1376, 7
        %v1378 = vsub.s32 7, %v1377
        %v1379 = vrot.slane %v1346, %v1378
        %v1644 = vunpack.c.l.b16 %v1090
        %v1645 = vunpack.c.h.b16 %v1090
        %v1646 = vunpack.c.l.b16 %v1091
        %v1647 = vunpack.c.h.b16 %v1091
        %v1648 = vunpack.c.l.b16 %v1092
        %v1649 = vunpack.c.h.b16 %v1092
        %v1650 = vunpack.c.l.b16 %v1093
        %v1651 = vunpack.c.h.b16 %v1093
        %v1652 = vunpack.c.l.b16 %v1094
        %v1653 = vunpack.c.h.b16 %v1094
        %v1654 = vunpack.c.l.b16 %v1095
        %v1655 = vunpack.c.h.b16 %v1095
        %v1656 = vunpack.c.l.b16 %v1096
        %v1657 = vunpack.c.h.b16 %v1096
        %v1658 = vunpack.c.l.b16 %v1097
        %v1659 = vunpack.c.h.b16 %v1097
        %v1660 = vunpack.c.l.b16 %v1098
        %v1661 = vunpack.c.h.b16 %v1098
        %v1662 = vunpack.c.l.b16 %v1099
        %v1663 = vunpack.c.h.b16 %v1099
        %v1664 = vunpack.c.l.b16 %v1100
        %v1665 = vunpack.c.h.b16 %v1100
        %v1666 = vunpack.c.l.b16 %v1101
        %v1667 = vunpack.c.h.b16 %v1101
        %v1668 = vunpack.c.l.b16 %v1102
        %v1669 = vunpack.c.h.b16 %v1102
        %v1670 = vunpack.c.l.b16 %v1103
        %v1671 = vunpack.c.h.b16 %v1103
        %v1672 = vunpack.c.l.b16 %v1104
        %v1673 = vunpack.c.h.b16 %v1104
        %v1674 = vunpack.c.l.b16 %v1105
        %v1675 = vunpack.c.h.b16 %v1105
        %v1676 = vunpack.c.l.b16 %v1106
        %v1677 = vunpack.c.h.b16 %v1106
        %v1678 = vunpack.c.l.b16 %v1107
        %v1679 = vunpack.c.h.b16 %v1107
        %v1680 = vunpack.c.l.b16 %v1108
        %v1681 = vunpack.c.h.b16 %v1108
        %v1682 = vunpack.c.l.b16 %v1109
        %v1683 = vunpack.c.h.b16 %v1109
        %v1684 = vunpack.c.l.b16 %v1110
        %v1685 = vunpack.c.h.b16 %v1110
        %v1686 = vunpack.c.l.b16 %v1111
        %v1687 = vunpack.c.h.b16 %v1111
        %v1688 = vunpack.c.l.b16 %v1112
        %v1689 = vunpack.c.h.b16 %v1112
        %v1690 = vunpack.c.l.b16 %v1113
        %v1691 = vunpack.c.h.b16 %v1113
        %v1692 = vunpack.c.l.b16 %v1114
        %v1693 = vunpack.c.h.b16 %v1114
        %v1694 = vunpack.c.l.b16 %v1115
        %v1695 = vunpack.c.h.b16 %v1115
        %v1696 = vunpack.c.l.b16 %v1116
        %v1697 = vunpack.c.h.b16 %v1116
        %v1698 = vunpack.c.l.b16 %v1117
        %v1699 = vunpack.c.h.b16 %v1117
        %v1700 = vunpack.c.l.b16 %v1118
        %v1701 = vunpack.c.h.b16 %v1118
        %v1702 = vunpack.c.l.b16 %v1119
        %v1703 = vunpack.c.h.b16 %v1119
        %v1704 = vunpack.c.l.b16 %v1120
        %v1705 = vunpack.c.h.b16 %v1120
        %v1706 = vunpack.c.l.b16 %v1121
        %v1707 = vunpack.c.h.b16 %v1121
        %v1708 = vunpack.c.l.b16 %v1122
        %v1709 = vunpack.c.h.b16 %v1122
        %v1710 = vunpack.c.l.b16 %v1123
        %v1711 = vunpack.c.h.b16 %v1123
        %v1712 = vunpack.c.l.b16 %v1124
        %v1713 = vunpack.c.h.b16 %v1124
        %v1714 = vunpack.c.l.b16 %v1125
        %v1715 = vunpack.c.h.b16 %v1125
        %v1716 = vunpack.c.l.b16 %v1126
        %v1717 = vunpack.c.h.b16 %v1126
        %v1718 = vunpack.c.l.b16 %v1127
        %v1719 = vunpack.c.h.b16 %v1127
        %v1720 = vunpack.c.l.b16 %v1128
        %v1721 = vunpack.c.h.b16 %v1128
        %v1722 = vunpack.c.l.b16 %v1129
        %v1723 = vunpack.c.h.b16 %v1129
        %v1724 = vunpack.c.l.b16 %v1130
        %v1725 = vunpack.c.h.b16 %v1130
        %v1726 = vunpack.c.l.b16 %v1131
        %v1727 = vunpack.c.h.b16 %v1131
        %v1728 = vunpack.c.l.b16 %v1132
        %v1729 = vunpack.c.h.b16 %v1132
        %v1730 = vunpack.c.l.b16 %v1133
        %v1731 = vunpack.c.h.b16 %v1133
        %v1732 = vunpack.c.l.b16 %v1134
        %v1733 = vunpack.c.h.b16 %v1134
        %v1734 = vunpack.c.l.b16 %v1135
        %v1735 = vunpack.c.h.b16 %v1135
        %v1736 = vunpack.c.l.b16 %v1136
        %v1737 = vunpack.c.h.b16 %v1136
        %v1738 = vunpack.c.l.b16 %v1137
        %v1739 = vunpack.c.h.b16 %v1137
        %v1740 = vunpack.c.l.b16 %v1138
        %v1741 = vunpack.c.h.b16 %v1138
        %v1742 = vunpack.c.l.b16 %v1139
        %v1743 = vunpack.c.h.b16 %v1139
        %v1744 = vunpack.c.l.b16 %v1140
        %v1745 = vunpack.c.h.b16 %v1140
        %v1746 = vunpack.c.l.b16 %v1141
        %v1747 = vunpack.c.h.b16 %v1141
        %v1748 = vunpack.c.l.b16 %v1142
        %v1749 = vunpack.c.h.b16 %v1142
        %v1750 = vunpack.c.l.b16 %v1143
        %v1751 = vunpack.c.h.b16 %v1143
        %v1752 = vunpack.c.l.b16 %v1144
        %v1753 = vunpack.c.h.b16 %v1144
        %v1754 = vunpack.c.l.b16 %v1145
        %v1755 = vunpack.c.h.b16 %v1145
        %v1756 = vunpack.c.l.b16 %v1146
        %v1757 = vunpack.c.h.b16 %v1146
        %v1758 = vunpack.c.l.b16 %v1147
        %v1759 = vunpack.c.h.b16 %v1147
        %v1760 = vunpack.c.l.b16 %v1148
        %v1761 = vunpack.c.h.b16 %v1148
        %v1762 = vunpack.c.l.b16 %v1149
        %v1763 = vunpack.c.h.b16 %v1149
        %v1764 = vunpack.c.l.b16 %v1150
        %v1765 = vunpack.c.h.b16 %v1150
        %v1766 = vunpack.c.l.b16 %v1151
        %v1767 = vunpack.c.h.b16 %v1151
        %v1768 = vunpack.c.l.b16 %v1152
        %v1769 = vunpack.c.h.b16 %v1152
        %v1770 = vunpack.c.l.b16 %v1153
        %v1771 = vunpack.c.h.b16 %v1153
        %v1772 = vunpack.c.l.b16 %v1154
        %v1773 = vunpack.c.h.b16 %v1154
        %v1774 = vunpack.c.l.b16 %v1155
        %v1775 = vunpack.c.h.b16 %v1155
        %v1776 = vunpack.c.l.b16 %v1156
        %v1777 = vunpack.c.h.b16 %v1156
        %v1778 = vunpack.c.l.b16 %v1157
        %v1779 = vunpack.c.h.b16 %v1157
        %v1780 = vunpack.c.l.b16 %v1158
        %v1781 = vunpack.c.h.b16 %v1158
        %v1782 = vunpack.c.l.b16 %v1159
        %v1783 = vunpack.c.h.b16 %v1159
        %v1784 = vunpack.c.l.b16 %v1160
        %v1785 = vunpack.c.h.b16 %v1160
        %v1786 = vunpack.c.l.b16 %v1161
        %v1787 = vunpack.c.h.b16 %v1161
        %v1788 = vunpack.c.l.b16 %v1162
        %v1789 = vunpack.c.h.b16 %v1162
        %v1790 = vunpack.c.l.b16 %v1163
        %v1791 = vunpack.c.h.b16 %v1163
        %v1792 = vunpack.c.l.b16 %v1164
        %v1793 = vunpack.c.h.b16 %v1164
        %v1794 = vunpack.c.l.b16 %v1165
        %v1795 = vunpack.c.h.b16 %v1165
        %v1796 = vunpack.c.l.b16 %v1166
        %v1797 = vunpack.c.h.b16 %v1166
        %v1798 = vunpack.c.l.b16 %v1167
        %v1799 = vunpack.c.h.b16 %v1167
        %v1800 = vunpack.c.l.b16 %v1168
        %v1801 = vunpack.c.h.b16 %v1168
        %v1802 = vunpack.c.l.b16 %v1169
        %v1803 = vunpack.c.h.b16 %v1169
        %v1804 = vunpack.c.l.b16 %v1170
        %v1805 = vunpack.c.h.b16 %v1170
        %v1806 = vunpack.c.l.b16 %v1171
        %v1807 = vunpack.c.h.b16 %v1171
        %v1808 = vunpack.c.l.b16 %v1172
        %v1809 = vunpack.c.h.b16 %v1172
        %v1810 = vunpack.c.l.b16 %v1173
        %v1811 = vunpack.c.h.b16 %v1173
        %v1812 = vunpack.c.l.b16 %v1174
        %v1813 = vunpack.c.h.b16 %v1174
        %v1814 = vunpack.c.l.b16 %v1175
        %v1815 = vunpack.c.h.b16 %v1175
        %v1816 = vunpack.c.l.b16 %v1176
        %v1817 = vunpack.c.h.b16 %v1176
        %v1818 = vunpack.c.l.b16 %v1177
        %v1819 = vunpack.c.h.b16 %v1177
        %v1820 = vunpack.c.l.b16 %v1178
        %v1821 = vunpack.c.h.b16 %v1178
        %v1822 = vunpack.c.l.b16 %v1179
        %v1823 = vunpack.c.h.b16 %v1179
        %v1824 = vunpack.c.l.b16 %v1180
        %v1825 = vunpack.c.h.b16 %v1180
        %v1826 = vunpack.c.l.b16 %v1181
        %v1827 = vunpack.c.h.b16 %v1181
        %v1828 = vunpack.c.l.b16 %v1182
        %v1829 = vunpack.c.h.b16 %v1182
        %v1830 = vunpack.c.l.b16 %v1183
        %v1831 = vunpack.c.h.b16 %v1183
        %v1832 = vunpack.c.l.b16 %v1184
        %v1833 = vunpack.c.h.b16 %v1184
        %v1834 = vunpack.c.l.b16 %v1185
        %v1835 = vunpack.c.h.b16 %v1185
        %v1836 = vunpack.c.l.b16 %v1186
        %v1837 = vunpack.c.h.b16 %v1186
        %v1838 = vunpack.c.l.b16 %v1187
        %v1839 = vunpack.c.h.b16 %v1187
        %v1840 = vunpack.c.l.b16 %v1188
        %v1841 = vunpack.c.h.b16 %v1188
        %v1842 = vunpack.c.l.b16 %v1189
        %v1843 = vunpack.c.h.b16 %v1189
        %v1844 = vunpack.c.l.b16 %v1190
        %v1845 = vunpack.c.h.b16 %v1190
        %v1846 = vunpack.c.l.b16 %v1191
        %v1847 = vunpack.c.h.b16 %v1191
        %v1848 = vunpack.c.l.b16 %v1192
        %v1849 = vunpack.c.h.b16 %v1192
        %v1850 = vunpack.c.l.b16 %v1193
        %v1851 = vunpack.c.h.b16 %v1193
        %v1852 = vunpack.c.l.b16 %v1194
        %v1853 = vunpack.c.h.b16 %v1194
        %v1854 = vunpack.c.l.b16 %v1195
        %v1855 = vunpack.c.h.b16 %v1195
        %v1856 = vunpack.c.l.b16 %v1196
        %v1857 = vunpack.c.h.b16 %v1196
        %v1858 = vunpack.c.l.b16 %v1197
        %v1859 = vunpack.c.h.b16 %v1197
        %v1860 = vunpack.c.l.b16 %v1198
        %v1861 = vunpack.c.h.b16 %v1198
        %v1862 = vunpack.c.l.b16 %v1199
        %v1863 = vunpack.c.h.b16 %v1199
        %v1864 = vunpack.c.l.b16 %v1200
        %v1865 = vunpack.c.h.b16 %v1200
        %v1866 = vunpack.c.l.b16 %v1201
        %v1867 = vunpack.c.h.b16 %v1201
        %v1868 = vunpack.c.l.b16 %v1202
        %v1869 = vunpack.c.h.b16 %v1202
        %v1870 = vunpack.c.l.b16 %v1203
        %v1871 = vunpack.c.h.b16 %v1203
        %v1872 = vunpack.c.l.b16 %v1204
        %v1873 = vunpack.c.h.b16 %v1204
        %v1874 = vunpack.c.l.b16 %v1205
        %v1875 = vunpack.c.h.b16 %v1205
        %v1876 = vunpack.c.l.b16 %v1206
        %v1877 = vunpack.c.h.b16 %v1206
        %v1878 = vunpack.c.l.b16 %v1207
        %v1879 = vunpack.c.h.b16 %v1207
        %v1880 = vunpack.c.l.b16 %v1208
        %v1881 = vunpack.c.h.b16 %v1208
        %v1882 = vunpack.c.l.b16 %v1209
        %v1883 = vunpack.c.h.b16 %v1209
        %v1884 = vunpack.c.l.b16 %v1210
        %v1885 = vunpack.c.h.b16 %v1210
        %v1886 = vunpack.c.l.b16 %v1211
        %v1887 = vunpack.c.h.b16 %v1211
        %v1888 = vunpack.c.l.b16 %v1212
        %v1889 = vunpack.c.h.b16 %v1212
        %v1890 = vunpack.c.l.b16 %v1213
        %v1891 = vunpack.c.h.b16 %v1213
        %v1892 = vunpack.c.l.b16 %v1214
        %v1893 = vunpack.c.h.b16 %v1214
        %v1894 = vunpack.c.l.b16 %v1215
        %v1895 = vunpack.c.h.b16 %v1215
        %v1896 = vunpack.c.l.b16 %v1216
        %v1897 = vunpack.c.h.b16 %v1216
        %v1898 = vunpack.c.l.b16 %v1217
        %v1899 = vunpack.c.h.b16 %v1217
        %v1900 = vunpack.c.l.b16 %v1218
        %v1901 = vunpack.c.h.b16 %v1218
        %v1902 = vunpack.c.l.b16 %v1219
        %v1903 = vunpack.c.h.b16 %v1219
        %v1904 = vunpack.c.l.b16 %v1220
        %v1905 = vunpack.c.h.b16 %v1220
        %v1906 = vunpack.c.l.b16 %v1221
        %v1907 = vunpack.c.h.b16 %v1221
        %v1908 = vunpack.c.l.b16 %v1222
        %v1909 = vunpack.c.h.b16 %v1222
        %v1910 = vunpack.c.l.b16 %v1223
        %v1911 = vunpack.c.h.b16 %v1223
        %v1912 = vunpack.c.l.b16 %v1224
        %v1913 = vunpack.c.h.b16 %v1224
        %v1914 = vunpack.c.l.b16 %v1225
        %v1915 = vunpack.c.h.b16 %v1225
        %v1916 = vunpack.c.l.b16 %v1226
        %v1917 = vunpack.c.h.b16 %v1226
        %v1918 = vunpack.c.l.b16 %v1227
        %v1919 = vunpack.c.h.b16 %v1227
        %v1920 = vunpack.c.l.b16 %v1228
        %v1921 = vunpack.c.h.b16 %v1228
        %v1922 = vunpack.c.l.b16 %v1229
        %v1923 = vunpack.c.h.b16 %v1229
        %v1924 = vunpack.c.l.b16 %v1230
        %v1925 = vunpack.c.h.b16 %v1230
        %v1926 = vunpack.c.l.b16 %v1231
        %v1927 = vunpack.c.h.b16 %v1231
        %v1928 = vunpack.c.l.b16 %v1232
        %v1929 = vunpack.c.h.b16 %v1232
        %v1930 = vunpack.c.l.b16 %v1233
        %v1931 = vunpack.c.h.b16 %v1233
        %v1932 = vunpack.c.l.b16 %v1234
        %v1933 = vunpack.c.h.b16 %v1234
        %v1934 = vunpack.c.l.b16 %v1235
        %v1935 = vunpack.c.h.b16 %v1235
        %v1936 = vunpack.c.l.b16 %v1236
        %v1937 = vunpack.c.h.b16 %v1236
        %v1938 = vunpack.c.l.b16 %v1237
        %v1939 = vunpack.c.h.b16 %v1237
        %v1940 = vunpack.c.l.b16 %v1238
        %v1941 = vunpack.c.h.b16 %v1238
        %v1942 = vunpack.c.l.b16 %v1239
        %v1943 = vunpack.c.h.b16 %v1239
        %v1944 = vunpack.c.l.b16 %v1240
        %v1945 = vunpack.c.h.b16 %v1240
        %v1946 = vunpack.c.l.b16 %v1241
        %v1947 = vunpack.c.h.b16 %v1241
        %v1948 = vunpack.c.l.b16 %v1242
        %v1949 = vunpack.c.h.b16 %v1242
        %v1950 = vunpack.c.l.b16 %v1243
        %v1951 = vunpack.c.h.b16 %v1243
        %v1952 = vunpack.c.l.b16 %v1244
        %v1953 = vunpack.c.h.b16 %v1244
        %v1954 = vunpack.c.l.b16 %v1245
        %v1955 = vunpack.c.h.b16 %v1245
        %v1956 = vunpack.c.l.b16 %v1246
        %v1957 = vunpack.c.h.b16 %v1246
        %v1958 = vunpack.c.l.b16 %v1247
        %v1959 = vunpack.c.h.b16 %v1247
        %v1960 = vunpack.c.l.b16 %v1248
        %v1961 = vunpack.c.h.b16 %v1248
        %v1962 = vunpack.c.l.b16 %v1249
        %v1963 = vunpack.c.h.b16 %v1249
        %v1964 = vunpack.c.l.b16 %v1250
        %v1965 = vunpack.c.h.b16 %v1250
        %v1966 = vunpack.c.l.b16 %v1251
        %v1967 = vunpack.c.h.b16 %v1251
        %v1968 = vunpack.c.l.b16 %v1252
        %v1969 = vunpack.c.h.b16 %v1252
        %v1970 = vunpack.c.l.b16 %v1253
        %v1971 = vunpack.c.h.b16 %v1253
        %v1972 = vunpack.c.l.b16 %v1254
        %v1973 = vunpack.c.h.b16 %v1254
        %v1974 = vunpack.c.l.b16 %v1255
        %v1975 = vunpack.c.h.b16 %v1255
        %v1976 = vunpack.c.l.b16 %v1256
        %v1977 = vunpack.c.h.b16 %v1256
        %v1978 = vunpack.c.l.b16 %v1257
        %v1979 = vunpack.c.h.b16 %v1257
        %v1980 = vunpack.c.l.b16 %v1258
        %v1981 = vunpack.c.h.b16 %v1258
        %v1982 = vunpack.c.l.b16 %v1259
        %v1983 = vunpack.c.h.b16 %v1259
        %v1984 = vunpack.c.l.b16 %v1260
        %v1985 = vunpack.c.h.b16 %v1260
        %v1986 = vunpack.c.l.b16 %v1261
        %v1987 = vunpack.c.h.b16 %v1261
        %v1988 = vunpack.c.l.b16 %v1262
        %v1989 = vunpack.c.h.b16 %v1262
        %v1990 = vunpack.c.l.b16 %v1263
        %v1991 = vunpack.c.h.b16 %v1263
        %v1992 = vunpack.c.l.b16 %v1264
        %v1993 = vunpack.c.h.b16 %v1264
        %v1994 = vunpack.c.l.b16 %v1265
        %v1995 = vunpack.c.h.b16 %v1265
        %v1996 = vunpack.c.l.b16 %v1266
        %v1997 = vunpack.c.h.b16 %v1266
        %v1998 = vunpack.c.l.b16 %v1267
        %v1999 = vunpack.c.h.b16 %v1267
        %v2000 = vunpack.c.l.b16 %v1268
        %v2001 = vunpack.c.h.b16 %v1268
        %v2002 = vunpack.c.l.b16 %v1269
        %v2003 = vunpack.c.h.b16 %v1269
        %v2004 = vunpack.c.l.b16 %v1270
        %v2005 = vunpack.c.h.b16 %v1270
        %v2006 = vunpack.c.l.b16 %v1271
        %v2007 = vunpack.c.h.b16 %v1271
        %v2008 = vunpack.c.l.b16 %v1272
        %v2009 = vunpack.c.h.b16 %v1272
        %v2010 = vunpack.c.l.b16 %v1273
        %v2011 = vunpack.c.h.b16 %v1273
        %v2012 = vunpack.c.l.b16 %v1274
        %v2013 = vunpack.c.h.b16 %v1274
        %v2014 = vunpack.c.l.b16 %v1275
        %v2015 = vunpack.c.h.b16 %v1275
        %v2016 = vunpack.c.l.b16 %v1276
        %v2017 = vunpack.c.h.b16 %v1276
        %v2018 = vunpack.c.l.b16 %v1277
        %v2019 = vunpack.c.h.b16 %v1277
        %v2020 = vunpack.c.l.b16 %v1278
        %v2021 = vunpack.c.h.b16 %v1278
        %v2022 = vunpack.c.l.b16 %v1279
        %v2023 = vunpack.c.h.b16 %v1279
        %v2024 = vunpack.c.l.b16 %v1280
        %v2025 = vunpack.c.h.b16 %v1280
        %v2026 = vunpack.c.l.b16 %v1281
        %v2027 = vunpack.c.h.b16 %v1281
        %v2028 = vunpack.c.l.b16 %v1282
        %v2029 = vunpack.c.h.b16 %v1282
        %v2030 = vunpack.c.l.b16 %v1283
        %v2031 = vunpack.c.h.b16 %v1283
        %v2032 = vunpack.c.l.b16 %v1284
        %v2033 = vunpack.c.h.b16 %v1284
        %v2034 = vunpack.c.l.b16 %v1285
        %v2035 = vunpack.c.h.b16 %v1285
        %v2036 = vunpack.c.l.b16 %v1286
        %v2037 = vunpack.c.h.b16 %v1286
        %v2038 = vunpack.c.l.b16 %v1287
        %v2039 = vunpack.c.h.b16 %v1287
        %v2040 = vunpack.c.l.b16 %v1288
        %v2041 = vunpack.c.h.b16 %v1288
        %v2042 = vunpack.c.l.b16 %v1289
        %v2043 = vunpack.c.h.b16 %v1289
        %v2044 = vunpack.c.l.b16 %v1290
        %v2045 = vunpack.c.h.b16 %v1290
        %v2046 = vunpack.c.l.b16 %v1291
        %v2047 = vunpack.c.h.b16 %v1291
        %v2048 = vunpack.c.l.b16 %v1292
        %v2049 = vunpack.c.h.b16 %v1292
        %v2050 = vunpack.c.l.b16 %v1293
        %v2051 = vunpack.c.h.b16 %v1293
        %v2052 = vunpack.c.l.b16 %v1294
        %v2053 = vunpack.c.h.b16 %v1294
        %v2054 = vunpack.c.l.b16 %v1295
        %v2055 = vunpack.c.h.b16 %v1295
        %v2056 = vunpack.c.l.b16 %v1296
        %v2057 = vunpack.c.h.b16 %v1296
        %v2058 = vunpack.c.l.b16 %v1297
        %v2059 = vunpack.c.h.b16 %v1297
        %v2060 = vunpack.c.l.b16 %v1298
        %v2061 = vunpack.c.h.b16 %v1298
        %v2062 = vunpack.c.l.b16 %v1299
        %v2063 = vunpack.c.h.b16 %v1299
        %v2064 = vunpack.c.l.b16 %v1300
        %v2065 = vunpack.c.h.b16 %v1300
        %v2066 = vunpack.c.l.b16 %v1301
        %v2067 = vunpack.c.h.b16 %v1301
        %v2068 = vunpack.c.l.b16 %v1302
        %v2069 = vunpack.c.h.b16 %v1302
        %v2070 = vunpack.c.l.b16 %v1303
        %v2071 = vunpack.c.h.b16 %v1303
        %v2072 = vunpack.c.l.b16 %v1304
        %v2073 = vunpack.c.h.b16 %v1304
        %v2074 = vunpack.c.l.b16 %v1305
        %v2075 = vunpack.c.h.b16 %v1305
        %v2076 = vunpack.c.l.b16 %v1306
        %v2077 = vunpack.c.h.b16 %v1306
        %v2078 = vunpack.c.l.b16 %v1307
        %v2079 = vunpack.c.h.b16 %v1307
        %v2080 = vunpack.c.l.b16 %v1308
        %v2081 = vunpack.c.h.b16 %v1308
        %v2082 = vunpack.c.l.b16 %v1309
        %v2083 = vunpack.c.h.b16 %v1309
        %v2084 = vunpack.c.l.b16 %v1310
        %v2085 = vunpack.c.h.b16 %v1310
        %v2086 = vunpack.c.l.b16 %v1311
        %v2087 = vunpack.c.h.b16 %v1311
        %v2088 = vunpack.c.l.b16 %v1312
        %v2089 = vunpack.c.h.b16 %v1312
        %v2090 = vunpack.c.l.b16 %v1313
        %v2091 = vunpack.c.h.b16 %v1313
        %v2092 = vunpack.c.l.b16 %v1314
        %v2093 = vunpack.c.h.b16 %v1314
        %v2094 = vunpack.c.l.b16 %v1315
        %v2095 = vunpack.c.h.b16 %v1315
        %v2096 = vunpack.c.l.b16 %v1316
        %v2097 = vunpack.c.h.b16 %v1316
        %v2098 = vunpack.c.l.b16 %v1317
        %v2099 = vunpack.c.h.b16 %v1317
        %v2100 = vunpack.c.l.b16 %v1318
        %v2101 = vunpack.c.h.b16 %v1318
        %v2102 = vunpack.c.l.b16 %v1319
        %v2103 = vunpack.c.h.b16 %v1319
        %v2104 = vunpack.c.l.b16 %v1320
        %v2105 = vunpack.c.h.b16 %v1320
        %v2106 = vunpack.c.l.b16 %v1321
        %v2107 = vunpack.c.h.b16 %v1321
        %v2108 = vunpack.c.l.b16 %v1322
        %v2109 = vunpack.c.h.b16 %v1322
        %v2110 = vunpack.c.l.b16 %v1323
        %v2111 = vunpack.c.h.b16 %v1323
        %v2112 = vunpack.c.l.b16 %v1324
        %v2113 = vunpack.c.h.b16 %v1324
        %v2114 = vunpack.c.l.b16 %v1325
        %v2115 = vunpack.c.h.b16 %v1325
        %v2116 = vunpack.c.l.b16 %v1326
        %v2117 = vunpack.c.h.b16 %v1326
        %v2118 = vunpack.c.l.b16 %v1327
        %v2119 = vunpack.c.h.b16 %v1327
        %v2120 = vunpack.c.l.b16 %v1328
        %v2121 = vunpack.c.h.b16 %v1328
        %v2122 = vunpack.c.l.b16 %v1329
        %v2123 = vunpack.c.h.b16 %v1329
        %v2124 = vunpack.c.l.b16 %v1330
        %v2125 = vunpack.c.h.b16 %v1330
        %v2126 = vunpack.c.l.b16 %v1331
        %v2127 = vunpack.c.h.b16 %v1331
        %v2128 = vunpack.c.l.b16 %v1332
        %v2129 = vunpack.c.h.b16 %v1332
        %v2130 = vunpack.c.l.b16 %v1333
        %v2131 = vunpack.c.h.b16 %v1333
        %v2132 = vunpack.c.l.b16 %v1334
        %v2133 = vunpack.c.h.b16 %v1334
        %v2134 = vunpack.c.l.b16 %v1335
        %v2135 = vunpack.c.h.b16 %v1335
        %v2136 = vunpack.c.l.b16 %v1336
        %v2137 = vunpack.c.h.b16 %v1336
        %v2138 = vunpack.c.l.b16 %v1337
        %v2139 = vunpack.c.h.b16 %v1337
        %v2140 = vunpack.c.l.b16 %v1338
        %v2141 = vunpack.c.h.b16 %v1338
        %v2142 = vunpack.c.l.b16 %v1339
        %v2143 = vunpack.c.h.b16 %v1339
        %v2144 = vunpack.c.l.b16 %v1340
        %v2145 = vunpack.c.h.b16 %v1340
        %v2146 = vunpack.c.l.b16 %v1341
        %v2147 = vunpack.c.h.b16 %v1341
        %v2148 = vunpack.c.l.b16 %v1342
        %v2149 = vunpack.c.h.b16 %v1342
        %v2150 = vunpack.c.l.b16 %v1343
        %v2151 = vunpack.c.h.b16 %v1343
        %v2152 = vunpack.c.l.b16 %v1344
        %v2153 = vunpack.c.h.b16 %v1344
        %v2154 = vunpack.c.l.b16 %v1345
        %v2155 = vunpack.c.h.b16 %v1345
        %v2156 = vpack.c.b16 %v1652, %v1644
        %v2157 = vpack.c.b16 %v1653, %v1645
        %v2158 = vpack.c.b16 %v1654, %v1646
        %v2159 = vpack.c.b16 %v1655, %v1647
        %v2160 = vpack.c.b16 %v1656, %v1648
        %v2161 = vpack.c.b16 %v1657, %v1649
        %v2162 = vpack.c.b16 %v1658, %v1650
        %v2163 = vpack.c.b16 %v1659, %v1651
        %v2164 = vpack.c.b16 %v1668, %v1660
        %v2165 = vpack.c.b16 %v1669, %v1661
        %v2166 = vpack.c.b16 %v1670, %v1662
        %v2167 = vpack.c.b16 %v1671, %v1663
        %v2168 = vpack.c.b16 %v1672, %v1664
        %v2169 = vpack.c.b16 %v1673, %v1665
        %v2170 = vpack.c.b16 %v1674, %v1666
        %v2171 = vpack.c.b16 %v1675, %v1667
        %v2172 = vpack.c.b16 %v1684, %v1676
        %v2173 = vpack.c.b16 %v1685, %v1677
        %v2174 = vpack.c.b16 %v1686, %v1678
        %v2175 = vpack.c.b16 %v1687, %v1679
        %v2176 = vpack.c.b16 %v1688, %v1680
        %v2177 = vpack.c.b16 %v1689, %v1681
        %v2178 = vpack.c.b16 %v1690, %v1682
        %v2179 = vpack.c.b16 %v1691, %v1683
        %v2180 = vpack.c.b16 %v1700, %v1692
        %v2181 = vpack.c.b16 %v1701, %v1693
        %v2182 = vpack.c.b16 %v1702, %v1694
        %v2183 = vpack.c.b16 %v1703, %v1695
        %v2184 = vpack.c.b16 %v1704, %v1696
        %v2185 = vpack.c.b16 %v1705, %v1697
        %v2186 = vpack.c.b16 %v1706, %v1698
        %v2187 = vpack.c.b16 %v1707, %v1699
        %v2188 = vpack.c.b16 %v1716, %v1708
        %v2189 = vpack.c.b16 %v1717, %v1709
        %v2190 = vpack.c.b16 %v1718, %v1710
        %v2191 = vpack.c.b16 %v1719, %v1711
        %v2192 = vpack.c.b16 %v1720, %v1712
        %v2193 = vpack.c.b16 %v1721, %v1713
        %v2194 = vpack.c.b16 %v1722, %v1714
        %v2195 = vpack.c.b16 %v1723, %v1715
        %v2196 = vpack.c.b16 %v1732, %v1724
        %v2197 = vpack.c.b16 %v1733, %v1725
        %v2198 = vpack.c.b16 %v1734, %v1726
        %v2199 = vpack.c.b16 %v1735, %v1727
        %v2200 = vpack.c.b16 %v1736, %v1728
        %v2201 = vpack.c.b16 %v1737, %v1729
        %v2202 = vpack.c.b16 %v1738, %v1730
        %v2203 = vpack.c.b16 %v1739, %v1731
        %v2204 = vpack.c.b16 %v1748, %v1740
        %v2205 = vpack.c.b16 %v1749, %v1741
        %v2206 = vpack.c.b16 %v1750, %v1742
        %v2207 = vpack.c.b16 %v1751, %v1743
        %v2208 = vpack.c.b16 %v1752, %v1744
        %v2209 = vpack.c.b16 %v1753, %v1745
        %v2210 = vpack.c.b16 %v1754, %v1746
        %v2211 = vpack.c.b16 %v1755, %v1747
        %v2212 = vpack.c.b16 %v1764, %v1756
        %v2213 = vpack.c.b16 %v1765, %v1757
        %v2214 = vpack.c.b16 %v1766, %v1758
        %v2215 = vpack.c.b16 %v1767, %v1759
        %v2216 = vpack.c.b16 %v1768, %v1760
        %v2217 = vpack.c.b16 %v1769, %v1761
        %v2218 = vpack.c.b16 %v1770, %v1762
        %v2219 = vpack.c.b16 %v1771, %v1763
        %v2220 = vpack.c.b16 %v1780, %v1772
        %v2221 = vpack.c.b16 %v1781, %v1773
        %v2222 = vpack.c.b16 %v1782, %v1774
        %v2223 = vpack.c.b16 %v1783, %v1775
        %v2224 = vpack.c.b16 %v1784, %v1776
        %v2225 = vpack.c.b16 %v1785, %v1777
        %v2226 = vpack.c.b16 %v1786, %v1778
        %v2227 = vpack.c.b16 %v1787, %v1779
        %v2228 = vpack.c.b16 %v1796, %v1788
        %v2229 = vpack.c.b16 %v1797, %v1789
        %v2230 = vpack.c.b16 %v1798, %v1790
        %v2231 = vpack.c.b16 %v1799, %v1791
        %v2232 = vpack.c.b16 %v1800, %v1792
        %v2233 = vpack.c.b16 %v1801, %v1793
        %v2234 = vpack.c.b16 %v1802, %v1794
        %v2235 = vpack.c.b16 %v1803, %v1795
        %v2236 = vpack.c.b16 %v1812, %v1804
        %v2237 = vpack.c.b16 %v1813, %v1805
        %v2238 = vpack.c.b16 %v1814, %v1806
        %v2239 = vpack.c.b16 %v1815, %v1807
        %v2240 = vpack.c.b16 %v1816, %v1808
        %v2241 = vpack.c.b16 %v1817, %v1809
        %v2242 = vpack.c.b16 %v1818, %v1810
        %v2243 = vpack.c.b16 %v1819, %v1811
        %v2244 = vpack.c.b16 %v1828, %v1820
        %v2245 = vpack.c.b16 %v1829, %v1821
        %v2246 = vpack.c.b16 %v1830, %v1822
        %v2247 = vpack.c.b16 %v1831, %v1823
        %v2248 = vpack.c.b16 %v1832, %v1824
        %v2249 = vpack.c.b16 %v1833, %v1825
        %v2250 = vpack.c.b16 %v1834, %v1826
        %v2251 = vpack.c.b16 %v1835, %v1827
        %v2252 = vpack.c.b16 %v1844, %v1836
        %v2253 = vpack.c.b16 %v1845, %v1837
        %v2254 = vpack.c.b16 %v1846, %v1838
        %v2255 = vpack.c.b16 %v1847, %v1839
        %v2256 = vpack.c.b16 %v1848, %v1840
        %v2257 = vpack.c.b16 %v1849, %v1841
        %v2258 = vpack.c.b16 %v1850, %v1842
        %v2259 = vpack.c.b16 %v1851, %v1843
        %v2260 = vpack.c.b16 %v1860, %v1852
        %v2261 = vpack.c.b16 %v1861, %v1853
        %v2262 = vpack.c.b16 %v1862, %v1854
        %v2263 = vpack.c.b16 %v1863, %v1855
        %v2264 = vpack.c.b16 %v1864, %v1856
        %v2265 = vpack.c.b16 %v1865, %v1857
        %v2266 = vpack.c.b16 %v1866, %v1858
        %v2267 = vpack.c.b16 %v1867, %v1859
        %v2268 = vpack.c.b16 %v1876, %v1868
        %v2269 = vpack.c.b16 %v1877, %v1869
        %v2270 = vpack.c.b16 %v1878, %v1870
        %v2271 = vpack.c.b16 %v1879, %v1871
        %v2272 = vpack.c.b16 %v1880, %v1872
        %v2273 = vpack.c.b16 %v1881, %v1873
        %v2274 = vpack.c.b16 %v1882, %v1874
        %v2275 = vpack.c.b16 %v1883, %v1875
        %v2276 = vpack.c.b16 %v1892, %v1884
        %v2277 = vpack.c.b16 %v1893, %v1885
        %v2278 = vpack.c.b16 %v1894, %v1886
        %v2279 = vpack.c.b16 %v1895, %v1887
        %v2280 = vpack.c.b16 %v1896, %v1888
        %v2281 = vpack.c.b16 %v1897, %v1889
        %v2282 = vpack.c.b16 %v1898, %v1890
        %v2283 = vpack.c.b16 %v1899, %v1891
        %v2284 = vpack.c.b16 %v1908, %v1900
        %v2285 = vpack.c.b16 %v1909, %v1901
        %v2286 = vpack.c.b16 %v1910, %v1902
        %v2287 = vpack.c.b16 %v1911, %v1903
        %v2288 = vpack.c.b16 %v1912, %v1904
        %v2289 = vpack.c.b16 %v1913, %v1905
        %v2290 = vpack.c.b16 %v1914, %v1906
        %v2291 = vpack.c.b16 %v1915, %v1907
        %v2292 = vpack.c.b16 %v1924, %v1916
        %v2293 = vpack.c.b16 %v1925, %v1917
        %v2294 = vpack.c.b16 %v1926, %v1918
        %v2295 = vpack.c.b16 %v1927, %v1919
        %v2296 = vpack.c.b16 %v1928, %v1920
        %v2297 = vpack.c.b16 %v1929, %v1921
        %v2298 = vpack.c.b16 %v1930, %v1922
        %v2299 = vpack.c.b16 %v1931, %v1923
        %v2300 = vpack.c.b16 %v1940, %v1932
        %v2301 = vpack.c.b16 %v1941, %v1933
        %v2302 = vpack.c.b16 %v1942, %v1934
        %v2303 = vpack.c.b16 %v1943, %v1935
        %v2304 = vpack.c.b16 %v1944, %v1936
        %v2305 = vpack.c.b16 %v1945, %v1937
        %v2306 = vpack.c.b16 %v1946, %v1938
        %v2307 = vpack.c.b16 %v1947, %v1939
        %v2308 = vpack.c.b16 %v1956, %v1948
        %v2309 = vpack.c.b16 %v1957, %v1949
        %v2310 = vpack.c.b16 %v1958, %v1950
        %v2311 = vpack.c.b16 %v1959, %v1951
        %v2312 = vpack.c.b16 %v1960, %v1952
        %v2313 = vpack.c.b16 %v1961, %v1953
        %v2314 = vpack.c.b16 %v1962, %v1954
        %v2315 = vpack.c.b16 %v1963, %v1955
        %v2316 = vpack.c.b16 %v1972, %v1964
        %v2317 = vpack.c.b16 %v1973, %v1965
        %v2318 = vpack.c.b16 %v1974, %v1966
        %v2319 = vpack.c.b16 %v1975, %v1967
        %v2320 = vpack.c.b16 %v1976, %v1968
        %v2321 = vpack.c.b16 %v1977, %v1969
        %v2322 = vpack.c.b16 %v1978, %v1970
        %v2323 = vpack.c.b16 %v1979, %v1971
        %v2324 = vpack.c.b16 %v1988, %v1980
        %v2325 = vpack.c.b16 %v1989, %v1981
        %v2326 = vpack.c.b16 %v1990, %v1982
        %v2327 = vpack.c.b16 %v1991, %v1983
        %v2328 = vpack.c.b16 %v1992, %v1984
        %v2329 = vpack.c.b16 %v1993, %v1985
        %v2330 = vpack.c.b16 %v1994, %v1986
        %v2331 = vpack.c.b16 %v1995, %v1987
        %v2332 = vpack.c.b16 %v2004, %v1996
        %v2333 = vpack.c.b16 %v2005, %v1997
        %v2334 = vpack.c.b16 %v2006, %v1998
        %v2335 = vpack.c.b16 %v2007, %v1999
        %v2336 = vpack.c.b16 %v2008, %v2000
        %v2337 = vpack.c.b16 %v2009, %v2001
        %v2338 = vpack.c.b16 %v2010, %v2002
        %v2339 = vpack.c.b16 %v2011, %v2003
        %v2340 = vpack.c.b16 %v2020, %v2012
        %v2341 = vpack.c.b16 %v2021, %v2013
        %v2342 = vpack.c.b16 %v2022, %v2014
        %v2343 = vpack.c.b16 %v2023, %v2015
        %v2344 = vpack.c.b16 %v2024, %v2016
        %v2345 = vpack.c.b16 %v2025, %v2017
        %v2346 = vpack.c.b16 %v2026, %v2018
        %v2347 = vpack.c.b16 %v2027, %v2019
        %v2348 = vpack.c.b16 %v2036, %v2028
        %v2349 = vpack.c.b16 %v2037, %v2029
        %v2350 = vpack.c.b16 %v2038, %v2030
        %v2351 = vpack.c.b16 %v2039, %v2031
        %v2352 = vpack.c.b16 %v2040, %v2032
        %v2353 = vpack.c.b16 %v2041, %v2033
        %v2354 = vpack.c.b16 %v2042, %v2034
        %v2355 = vpack.c.b16 %v2043, %v2035
        %v2356 = vpack.c.b16 %v2052, %v2044
        %v2357 = vpack.c.b16 %v2053, %v2045
        %v2358 = vpack.c.b16 %v2054, %v2046
        %v2359 = vpack.c.b16 %v2055, %v2047
        %v2360 = vpack.c.b16 %v2056, %v2048
        %v2361 = vpack.c.b16 %v2057, %v2049
        %v2362 = vpack.c.b16 %v2058, %v2050
        %v2363 = vpack.c.b16 %v2059, %v2051
        %v2364 = vpack.c.b16 %v2068, %v2060
        %v2365 = vpack.c.b16 %v2069, %v2061
        %v2366 = vpack.c.b16 %v2070, %v2062
        %v2367 = vpack.c.b16 %v2071, %v2063
        %v2368 = vpack.c.b16 %v2072, %v2064
        %v2369 = vpack.c.b16 %v2073, %v2065
        %v2370 = vpack.c.b16 %v2074, %v2066
        %v2371 = vpack.c.b16 %v2075, %v2067
        %v2372 = vpack.c.b16 %v2084, %v2076
        %v2373 = vpack.c.b16 %v2085, %v2077
        %v2374 = vpack.c.b16 %v2086, %v2078
        %v2375 = vpack.c.b16 %v2087, %v2079
        %v2376 = vpack.c.b16 %v2088, %v2080
        %v2377 = vpack.c.b16 %v2089, %v2081
        %v2378 = vpack.c.b16 %v2090, %v2082
        %v2379 = vpack.c.b16 %v2091, %v2083
        %v2380 = vpack.c.b16 %v2100, %v2092
        %v2381 = vpack.c.b16 %v2101, %v2093
        %v2382 = vpack.c.b16 %v2102, %v2094
        %v2383 = vpack.c.b16 %v2103, %v2095
        %v2384 = vpack.c.b16 %v2104, %v2096
        %v2385 = vpack.c.b16 %v2105, %v2097
        %v2386 = vpack.c.b16 %v2106, %v2098
        %v2387 = vpack.c.b16 %v2107, %v2099
        %v2388 = vpack.c.b16 %v2116, %v2108
        %v2389 = vpack.c.b16 %v2117, %v2109
        %v2390 = vpack.c.b16 %v2118, %v2110
        %v2391 = vpack.c.b16 %v2119, %v2111
        %v2392 = vpack.c.b16 %v2120, %v2112
        %v2393 = vpack.c.b16 %v2121, %v2113
        %v2394 = vpack.c.b16 %v2122, %v2114
        %v2395 = vpack.c.b16 %v2123, %v2115
        %v2396 = vpack.c.b16 %v2132, %v2124
        %v2397 = vpack.c.b16 %v2133, %v2125
        %v2398 = vpack.c.b16 %v2134, %v2126
        %v2399 = vpack.c.b16 %v2135, %v2127
        %v2400 = vpack.c.b16 %v2136, %v2128
        %v2401 = vpack.c.b16 %v2137, %v2129
        %v2402 = vpack.c.b16 %v2138, %v2130
        %v2403 = vpack.c.b16 %v2139, %v2131
        %v2404 = vpack.c.b16 %v2148, %v2140
        %v2405 = vpack.c.b16 %v2149, %v2141
        %v2406 = vpack.c.b16 %v2150, %v2142
        %v2407 = vpack.c.b16 %v2151, %v2143
        %v2408 = vpack.c.b16 %v2152, %v2144
        %v2409 = vpack.c.b16 %v2153, %v2145
        %v2410 = vpack.c.b16 %v2154, %v2146
        %v2411 = vpack.c.b16 %v2155, %v2147
        %2668 = vmatprep.subr.bf16.mxu0 %v2157
        %2669 = vmatpush1.bf16.msra.mxu0 %v2156
        %2670 = vmatprep.subr.bf16.mxu0 %v2165
        %2671 = vmatpush1.bf16.msra.mxu0 %v2164
        %2672 = vmatprep.subr.bf16.mxu0 %v2173
        %2673 = vmatpush1.bf16.msra.mxu0 %v2172
        %2674 = vmatprep.subr.bf16.mxu0 %v2181
        %2675 = vmatpush1.bf16.msra.mxu0 %v2180
        %2676 = vmatprep.subr.bf16.mxu0 %v2189
        %2677 = vmatpush1.bf16.msra.mxu0 %v2188
        %2678 = vmatprep.subr.bf16.mxu0 %v2197
        %2679 = vmatpush1.bf16.msra.mxu0 %v2196
        %2680 = vmatprep.subr.bf16.mxu0 %v2205
        %2681 = vmatpush1.bf16.msra.mxu0 %v2204
        %2682 = vmatprep.subr.bf16.mxu0 %v2213
        %2683 = vmatpush1.bf16.msra.mxu0 %v2212
        %2684 = vmatprep.subr.bf16.mxu0 %v2221
        %2685 = vmatpush1.bf16.msra.mxu0 %v2220
        %2686 = vmatprep.subr.bf16.mxu0 %v2229
        %2687 = vmatpush1.bf16.msra.mxu0 %v2228
        %2688 = vmatprep.subr.bf16.mxu0 %v2237
        %2689 = vmatpush1.bf16.msra.mxu0 %v2236
        %2690 = vmatprep.subr.bf16.mxu0 %v2245
        %2691 = vmatpush1.bf16.msra.mxu0 %v2244
        %2692 = vmatprep.subr.bf16.mxu0 %v2253
        %2693 = vmatpush1.bf16.msra.mxu0 %v2252
        %2694 = vmatprep.subr.bf16.mxu0 %v2261
        %2695 = vmatpush1.bf16.msra.mxu0 %v2260
        %2696 = vmatprep.subr.bf16.mxu0 %v2269
        %2697 = vmatpush1.bf16.msra.mxu0 %v2268
        %2698 = vmatprep.subr.bf16.mxu0 %v2277
        %2699 = vmatpush1.bf16.msra.mxu0 %v2276
        %2700 = vmatprep.mubr.bf16.mxu0 %v1087
        %2701 = vmatmul.mubr.bf16.gmra.mrb[0].mxu0 %v1086
        %v2702 = vpop.f32.mrb[0].mxu0
        %v2703 = vadd.f32 %v1351, %v2702
        %v2704 = vpop.f32.mrb[0].mxu0
        %v2705 = vadd.f32 %v1355, %v2704
        %v2706 = vpop.f32.mrb[0].mxu0
        %v2707 = vpop.f32.mrb[0].mxu0
        %2708 = vdwg.mxu0
        %2709 = vmatprep.subr.bf16.mxu0 %v2285
        %2710 = vmatpush1.bf16.msra.mxu0 %v2284
        %2711 = vmatprep.subr.bf16.mxu0 %v2293
        %2712 = vmatpush1.bf16.msra.mxu0 %v2292
        %2713 = vmatprep.subr.bf16.mxu0 %v2301
        %2714 = vmatpush1.bf16.msra.mxu0 %v2300
        %2715 = vmatprep.subr.bf16.mxu0 %v2309
        %2716 = vmatpush1.bf16.msra.mxu0 %v2308
        %2717 = vmatprep.subr.bf16.mxu0 %v2317
        %2718 = vmatpush1.bf16.msra.mxu0 %v2316
        %2719 = vmatprep.subr.bf16.mxu0 %v2325
        %2720 = vmatpush1.bf16.msra.mxu0 %v2324
        %2721 = vmatprep.subr.bf16.mxu0 %v2333
        %2722 = vmatpush1.bf16.msra.mxu0 %v2332
        %2723 = vmatprep.subr.bf16.mxu0 %v2341
        %2724 = vmatpush1.bf16.msra.mxu0 %v2340
        %2725 = vmatprep.subr.bf16.mxu0 %v2349
        %2726 = vmatpush1.bf16.msra.mxu0 %v2348
        %2727 = vmatprep.subr.bf16.mxu0 %v2357
        %2728 = vmatpush1.bf16.msra.mxu0 %v2356
        %2729 = vmatprep.subr.bf16.mxu0 %v2365
        %2730 = vmatpush1.bf16.msra.mxu0 %v2364
        %2731 = vmatprep.subr.bf16.mxu0 %v2373
        %2732 = vmatpush1.bf16.msra.mxu0 %v2372
        %2733 = vmatprep.subr.bf16.mxu0 %v2381
        %2734 = vmatpush1.bf16.msra.mxu0 %v2380
        %2735 = vmatprep.subr.bf16.mxu0 %v2389
        %2736 = vmatpush1.bf16.msra.mxu0 %v2388
        %2737 = vmatprep.subr.bf16.mxu0 %v2397
        %2738 = vmatpush1.bf16.msra.mxu0 %v2396
        %2739 = vmatprep.subr.bf16.mxu0 %v2405
        %2740 = vmatpush1.bf16.msra.mxu0 %v2404
        %2741 = vmatprep.mubr.bf16.mxu0 %v1089
        %2742 = vmatmul.mubr.bf16.gmra.mrb[0].mxu0 %v1088
        %v2743 = vpop.f32.mrb[0].mxu0
        %v2744 = vadd.f32 %v2703, %v2743
        %v2745 = vpop.f32.mrb[0].mxu0
        %v2746 = vadd.f32 %v2705, %v2745
        %v2747 = vpop.f32.mrb[0].mxu0
        %v2748 = vpop.f32.mrb[0].mxu0
        %2749 = vdwg.mxu0
        %2750 = vmatprep.subr.bf16.mxu0 %v2159
        %2751 = vmatpush1.bf16.msra.mxu0 %v2158
        %2752 = vmatprep.subr.bf16.mxu0 %v2167
        %2753 = vmatpush1.bf16.msra.mxu0 %v2166
        %2754 = vmatprep.subr.bf16.mxu0 %v2175
        %2755 = vmatpush1.bf16.msra.mxu0 %v2174
        %2756 = vmatprep.subr.bf16.mxu0 %v2183
        %2757 = vmatpush1.bf16.msra.mxu0 %v2182
        %2758 = vmatprep.subr.bf16.mxu0 %v2191
        %2759 = vmatpush1.bf16.msra.mxu0 %v2190
        %2760 = vmatprep.subr.bf16.mxu0 %v2199
        %2761 = vmatpush1.bf16.msra.mxu0 %v2198
        %2762 = vmatprep.subr.bf16.mxu0 %v2207
        %2763 = vmatpush1.bf16.msra.mxu0 %v2206
        %2764 = vmatprep.subr.bf16.mxu0 %v2215
        %2765 = vmatpush1.bf16.msra.mxu0 %v2214
        %2766 = vmatprep.subr.bf16.mxu0 %v2223
        %2767 = vmatpush1.bf16.msra.mxu0 %v2222
        %2768 = vmatprep.subr.bf16.mxu0 %v2231
        %2769 = vmatpush1.bf16.msra.mxu0 %v2230
        %2770 = vmatprep.subr.bf16.mxu0 %v2239
        %2771 = vmatpush1.bf16.msra.mxu0 %v2238
        %2772 = vmatprep.subr.bf16.mxu0 %v2247
        %2773 = vmatpush1.bf16.msra.mxu0 %v2246
        %2774 = vmatprep.subr.bf16.mxu0 %v2255
        %2775 = vmatpush1.bf16.msra.mxu0 %v2254
        %2776 = vmatprep.subr.bf16.mxu0 %v2263
        %2777 = vmatpush1.bf16.msra.mxu0 %v2262
        %2778 = vmatprep.subr.bf16.mxu0 %v2271
        %2779 = vmatpush1.bf16.msra.mxu0 %v2270
        %2780 = vmatprep.subr.bf16.mxu0 %v2279
        %2781 = vmatpush1.bf16.msra.mxu0 %v2278
        %2782 = vmatprep.mubr.bf16.mxu0 %v1087
        %2783 = vmatmul.mubr.bf16.gmra.mrb[0].mxu0 %v1086
        %v2784 = vpop.f32.mrb[0].mxu0
        %v2785 = vadd.f32 %v1359, %v2784
        %v2786 = vpop.f32.mrb[0].mxu0
        %v2787 = vadd.f32 %v1363, %v2786
        %v2788 = vpop.f32.mrb[0].mxu0
        %v2789 = vpop.f32.mrb[0].mxu0
        %2790 = vdwg.mxu0
        %2791 = vmatprep.subr.bf16.mxu0 %v2287
        %2792 = vmatpush1.bf16.msra.mxu0 %v2286
        %2793 = vmatprep.subr.bf16.mxu0 %v2295
        %2794 = vmatpush1.bf16.msra.mxu0 %v2294
        %2795 = vmatprep.subr.bf16.mxu0 %v2303
        %2796 = vmatpush1.bf16.msra.mxu0 %v2302
        %2797 = vmatprep.subr.bf16.mxu0 %v2311
        %2798 = vmatpush1.bf16.msra.mxu0 %v2310
        %2799 = vmatprep.subr.bf16.mxu0 %v2319
        %2800 = vmatpush1.bf16.msra.mxu0 %v2318
        %2801 = vmatprep.subr.bf16.mxu0 %v2327
        %2802 = vmatpush1.bf16.msra.mxu0 %v2326
        %2803 = vmatprep.subr.bf16.mxu0 %v2335
        %2804 = vmatpush1.bf16.msra.mxu0 %v2334
        %2805 = vmatprep.subr.bf16.mxu0 %v2343
        %2806 = vmatpush1.bf16.msra.mxu0 %v2342
        %2807 = vmatprep.subr.bf16.mxu0 %v2351
        %2808 = vmatpush1.bf16.msra.mxu0 %v2350
        %2809 = vmatprep.subr.bf16.mxu0 %v2359
        %2810 = vmatpush1.bf16.msra.mxu0 %v2358
        %2811 = vmatprep.subr.bf16.mxu0 %v2367
        %2812 = vmatpush1.bf16.msra.mxu0 %v2366
        %2813 = vmatprep.subr.bf16.mxu0 %v2375
        %2814 = vmatpush1.bf16.msra.mxu0 %v2374
        %2815 = vmatprep.subr.bf16.mxu0 %v2383
        %2816 = vmatpush1.bf16.msra.mxu0 %v2382
        %2817 = vmatprep.subr.bf16.mxu0 %v2391
        %2818 = vmatpush1.bf16.msra.mxu0 %v2390
        %2819 = vmatprep.subr.bf16.mxu0 %v2399
        %2820 = vmatpush1.bf16.msra.mxu0 %v2398
        %2821 = vmatprep.subr.bf16.mxu0 %v2407
        %2822 = vmatpush1.bf16.msra.mxu0 %v2406
        %2823 = vmatprep.mubr.bf16.mxu0 %v1089
        %2824 = vmatmul.mubr.bf16.gmra.mrb[0].mxu0 %v1088
        %v2825 = vpop.f32.mrb[0].mxu0
        %v2826 = vadd.f32 %v2785, %v2825
        %v2827 = vpop.f32.mrb[0].mxu0
        %v2828 = vadd.f32 %v2787, %v2827
        %v2829 = vpop.f32.mrb[0].mxu0
        %v2830 = vpop.f32.mrb[0].mxu0
        %2831 = vdwg.mxu0
        %2832 = vmatprep.subr.bf16.mxu0 %v2161
        %2833 = vmatpush1.bf16.msra.mxu0 %v2160
        %2834 = vmatprep.subr.bf16.mxu0 %v2169
        %2835 = vmatpush1.bf16.msra.mxu0 %v2168
        %2836 = vmatprep.subr.bf16.mxu0 %v2177
        %2837 = vmatpush1.bf16.msra.mxu0 %v2176
        %2838 = vmatprep.subr.bf16.mxu0 %v2185
        %2839 = vmatpush1.bf16.msra.mxu0 %v2184
        %2840 = vmatprep.subr.bf16.mxu0 %v2193
        %2841 = vmatpush1.bf16.msra.mxu0 %v2192
        %2842 = vmatprep.subr.bf16.mxu0 %v2201
        %2843 = vmatpush1.bf16.msra.mxu0 %v2200
        %2844 = vmatprep.subr.bf16.mxu0 %v2209
        %2845 = vmatpush1.bf16.msra.mxu0 %v2208
        %2846 = vmatprep.subr.bf16.mxu0 %v2217
        %2847 = vmatpush1.bf16.msra.mxu0 %v2216
        %2848 = vmatprep.subr.bf16.mxu0 %v2225
        %2849 = vmatpush1.bf16.msra.mxu0 %v2224
        %2850 = vmatprep.subr.bf16.mxu0 %v2233
        %2851 = vmatpush1.bf16.msra.mxu0 %v2232
        %2852 = vmatprep.subr.bf16.mxu0 %v2241
        %2853 = vmatpush1.bf16.msra.mxu0 %v2240
        %2854 = vmatprep.subr.bf16.mxu0 %v2249
        %2855 = vmatpush1.bf16.msra.mxu0 %v2248
        %2856 = vmatprep.subr.bf16.mxu0 %v2257
        %2857 = vmatpush1.bf16.msra.mxu0 %v2256
        %2858 = vmatprep.subr.bf16.mxu0 %v2265
        %2859 = vmatpush1.bf16.msra.mxu0 %v2264
        %2860 = vmatprep.subr.bf16.mxu0 %v2273
        %2861 = vmatpush1.bf16.msra.mxu0 %v2272
        %2862 = vmatprep.subr.bf16.mxu0 %v2281
        %2863 = vmatpush1.bf16.msra.mxu0 %v2280
        %2864 = vmatprep.mubr.bf16.mxu0 %v1087
        %2865 = vmatmul.mubr.bf16.gmra.mrb[0].mxu0 %v1086
        %v2866 = vpop.f32.mrb[0].mxu0
        %v2867 = vadd.f32 %v1367, %v2866
        %v2868 = vpop.f32.mrb[0].mxu0
        %v2869 = vadd.f32 %v1371, %v2868
        %v2870 = vpop.f32.mrb[0].mxu0
        %v2871 = vpop.f32.mrb[0].mxu0
        %2872 = vdwg.mxu0
        %2873 = vmatprep.subr.bf16.mxu0 %v2289
        %2874 = vmatpush1.bf16.msra.mxu0 %v2288
        %2875 = vmatprep.subr.bf16.mxu0 %v2297
        %2876 = vmatpush1.bf16.msra.mxu0 %v2296
        %2877 = vmatprep.subr.bf16.mxu0 %v2305
        %2878 = vmatpush1.bf16.msra.mxu0 %v2304
        %2879 = vmatprep.subr.bf16.mxu0 %v2313
        %2880 = vmatpush1.bf16.msra.mxu0 %v2312
        %2881 = vmatprep.subr.bf16.mxu0 %v2321
        %2882 = vmatpush1.bf16.msra.mxu0 %v2320
        %2883 = vmatprep.subr.bf16.mxu0 %v2329
        %2884 = vmatpush1.bf16.msra.mxu0 %v2328
        %2885 = vmatprep.subr.bf16.mxu0 %v2337
        %2886 = vmatpush1.bf16.msra.mxu0 %v2336
        %2887 = vmatprep.subr.bf16.mxu0 %v2345
        %2888 = vmatpush1.bf16.msra.mxu0 %v2344
        %2889 = vmatprep.subr.bf16.mxu0 %v2353
        %2890 = vmatpush1.bf16.msra.mxu0 %v2352
        %2891 = vmatprep.subr.bf16.mxu0 %v2361
        %2892 = vmatpush1.bf16.msra.mxu0 %v2360
        %2893 = vmatprep.subr.bf16.mxu0 %v2369
        %2894 = vmatpush1.bf16.msra.mxu0 %v2368
        %2895 = vmatprep.subr.bf16.mxu0 %v2377
        %2896 = vmatpush1.bf16.msra.mxu0 %v2376
        %2897 = vmatprep.subr.bf16.mxu0 %v2385
        %2898 = vmatpush1.bf16.msra.mxu0 %v2384
        %2899 = vmatprep.subr.bf16.mxu0 %v2393
        %2900 = vmatpush1.bf16.msra.mxu0 %v2392
        %2901 = vmatprep.subr.bf16.mxu0 %v2401
        %2902 = vmatpush1.bf16.msra.mxu0 %v2400
        %2903 = vmatprep.subr.bf16.mxu0 %v2409
        %2904 = vmatpush1.bf16.msra.mxu0 %v2408
        %2905 = vmatprep.mubr.bf16.mxu0 %v1089
        %2906 = vmatmul.mubr.bf16.gmra.mrb[0].mxu0 %v1088
        %v2907 = vpop.f32.mrb[0].mxu0
        %v2908 = vadd.f32 %v2867, %v2907
        %v2909 = vpop.f32.mrb[0].mxu0
        %v2910 = vadd.f32 %v2869, %v2909
        %v2911 = vpop.f32.mrb[0].mxu0
        %v2912 = vpop.f32.mrb[0].mxu0
        %2913 = vdwg.mxu0
        %2914 = vmatprep.subr.bf16.mxu0 %v2163
        %2915 = vmatpush1.bf16.msra.mxu0 %v2162
        %2916 = vmatprep.subr.bf16.mxu0 %v2171
        %2917 = vmatpush1.bf16.msra.mxu0 %v2170
        %2918 = vmatprep.subr.bf16.mxu0 %v2179
        %2919 = vmatpush1.bf16.msra.mxu0 %v2178
        %2920 = vmatprep.subr.bf16.mxu0 %v2187
        %2921 = vmatpush1.bf16.msra.mxu0 %v2186
        %2922 = vmatprep.subr.bf16.mxu0 %v2195
        %2923 = vmatpush1.bf16.msra.mxu0 %v2194
        %2924 = vmatprep.subr.bf16.mxu0 %v2203
        %2925 = vmatpush1.bf16.msra.mxu0 %v2202
        %2926 = vmatprep.subr.bf16.mxu0 %v2211
        %2927 = vmatpush1.bf16.msra.mxu0 %v2210
        %2928 = vmatprep.subr.bf16.mxu0 %v2219
        %2929 = vmatpush1.bf16.msra.mxu0 %v2218
        %2930 = vmatprep.subr.bf16.mxu0 %v2227
        %2931 = vmatpush1.bf16.msra.mxu0 %v2226
        %2932 = vmatprep.subr.bf16.mxu0 %v2235
        %2933 = vmatpush1.bf16.msra.mxu0 %v2234
        %2934 = vmatprep.subr.bf16.mxu0 %v2243
        %2935 = vmatpush1.bf16.msra.mxu0 %v2242
        %2936 = vmatprep.subr.bf16.mxu0 %v2251
        %2937 = vmatpush1.bf16.msra.mxu0 %v2250
        %2938 = vmatprep.subr.bf16.mxu0 %v2259
        %2939 = vmatpush1.bf16.msra.mxu0 %v2258
        %2940 = vmatprep.subr.bf16.mxu0 %v2267
        %2941 = vmatpush1.bf16.msra.mxu0 %v2266
        %2942 = vmatprep.subr.bf16.mxu0 %v2275
        %2943 = vmatpush1.bf16.msra.mxu0 %v2274
        %2944 = vmatprep.subr.bf16.mxu0 %v2283
        %2945 = vmatpush1.bf16.msra.mxu0 %v2282
        %2946 = vmatprep.mubr.bf16.mxu0 %v1087
        %2947 = vmatmul.mubr.bf16.gmra.mrb[0].mxu0 %v1086
        %v2948 = vpop.f32.mrb[0].mxu0
        %v2949 = vadd.f32 %v1375, %v2948
        %v2950 = vpop.f32.mrb[0].mxu0
        %v2951 = vadd.f32 %v1379, %v2950
        %v2952 = vpop.f32.mrb[0].mxu0
        %v2953 = vpop.f32.mrb[0].mxu0
        %2954 = vdwg.mxu0
        %2955 = vmatprep.subr.bf16.mxu0 %v2291
        %2956 = vmatpush1.bf16.msra.mxu0 %v2290
        %2957 = vmatprep.subr.bf16.mxu0 %v2299
        %2958 = vmatpush1.bf16.msra.mxu0 %v2298
        %2959 = vmatprep.subr.bf16.mxu0 %v2307
        %2960 = vmatpush1.bf16.msra.mxu0 %v2306
        %2961 = vmatprep.subr.bf16.mxu0 %v2315
        %2962 = vmatpush1.bf16.msra.mxu0 %v2314
        %2963 = vmatprep.subr.bf16.mxu0 %v2323
        %2964 = vmatpush1.bf16.msra.mxu0 %v2322
        %2965 = vmatprep.subr.bf16.mxu0 %v2331
        %2966 = vmatpush1.bf16.msra.mxu0 %v2330
        %2967 = vmatprep.subr.bf16.mxu0 %v2339
        %2968 = vmatpush1.bf16.msra.mxu0 %v2338
        %2969 = vmatprep.subr.bf16.mxu0 %v2347
        %2970 = vmatpush1.bf16.msra.mxu0 %v2346
        %2971 = vmatprep.subr.bf16.mxu0 %v2355
        %2972 = vmatpush1.bf16.msra.mxu0 %v2354
        %2973 = vmatprep.subr.bf16.mxu0 %v2363
        %2974 = vmatpush1.bf16.msra.mxu0 %v2362
        %2975 = vmatprep.subr.bf16.mxu0 %v2371
        %2976 = vmatpush1.bf16.msra.mxu0 %v2370
        %2977 = vmatprep.subr.bf16.mxu0 %v2379
        %2978 = vmatpush1.bf16.msra.mxu0 %v2378
        %2979 = vmatprep.subr.bf16.mxu0 %v2387
        %2980 = vmatpush1.bf16.msra.mxu0 %v2386
        %2981 = vmatprep.subr.bf16.mxu0 %v2395
        %2982 = vmatpush1.bf16.msra.mxu0 %v2394
        %2983 = vmatprep.subr.bf16.mxu0 %v2403
        %2984 = vmatpush1.bf16.msra.mxu0 %v2402
        %2985 = vmatprep.subr.bf16.mxu0 %v2411
        %2986 = vmatpush1.bf16.msra.mxu0 %v2410
        %2987 = vmatprep.mubr.bf16.mxu0 %v1089
        %2988 = vmatmul.mubr.bf16.gmra.mrb[0].mxu0 %v1088
        %v2989 = vpop.f32.mrb[0].mxu0
        %v2990 = vadd.f32 %v2949, %v2989
        %v2991 = vpop.f32.mrb[0].mxu0
        %v2992 = vadd.f32 %v2951, %v2991
        %v2993 = vpop.f32.mrb[0].mxu0
        %v2994 = vpop.f32.mrb[0].mxu0
        %2995 = vdwg.mxu0
        %v2996 = vmax.f32 %v2744, 0.0
        %v2997 = vmax.f32 %v2746, 0.0
        %v2998 = vmax.f32 %v2826, 0.0
        %v2999 = vmax.f32 %v2828, 0.0
        %v3000 = vmax.f32 %v2908, 0.0
        %v3001 = vmax.f32 %v2910, 0.0
        %v3002 = vmax.f32 %v2990, 0.0
        %v3003 = vmax.f32 %v2992, 0.0
        %v3004 = vpack.c.bf16 %v2996, %v2996
        %v3005 = vpack.c.bf16 %v2997, %v2997
        %v3006 = vpack.c.bf16 %v2998, %v2998
        %v3007 = vpack.c.bf16 %v2999, %v2999
        %v3008 = vpack.c.bf16 %v3000, %v3000
        %v3009 = vpack.c.bf16 %v3001, %v3001
        %v3010 = vpack.c.bf16 %v3002, %v3002
        %v3011 = vpack.c.bf16 %v3003, %v3003
        %v3012 = vld [vmem:[%s431] sm:$0xff]
        %v3013 = vld [vmem:[%s431 + $0x8] sm:$0xff]
        %v3014 = vld [vmem:[%s431 + $0x10] sm:$0xff]
        %v3015 = vld [vmem:[%s431 + $0x18] sm:$0xff]
        %v3016 = vld [vmem:[%s431 + $0x20] sm:$0xff]
        %v3017 = vld [vmem:[%s431 + $0x28] sm:$0xff]
        %v3018 = vld [vmem:[%s431 + $0x30] sm:$0xff]
        %v3019 = vld [vmem:[%s431 + $0x38] sm:$0xff]
        %v3020 = vld [vmem:[%s431 + $0x40] sm:$0xff]
        %v3021 = vld [vmem:[%s431 + $0x48] sm:$0xff]
        %v3022 = vld [vmem:[%s431 + $0x50] sm:$0xff]
        %v3023 = vld [vmem:[%s431 + $0x58] sm:$0xff]
        %v3024 = vld [vmem:[%s431 + $0x60] sm:$0xff]
        %v3025 = vld [vmem:[%s431 + $0x68] sm:$0xff]
        %v3026 = vld [vmem:[%s431 + $0x70] sm:$0xff]
        %v3027 = vld [vmem:[%s431 + $0x78] sm:$0xff]
        %v3028 = vld [vmem:[%s431 + $0x80] sm:$0xff]
        %v3029 = vld [vmem:[%s431 + $0x88] sm:$0xff]
        %v3030 = vld [vmem:[%s431 + $0x90] sm:$0xff]
        %v3031 = vld [vmem:[%s431 + $0x98] sm:$0xff]
        %v3032 = vld [vmem:[%s431 + $0xa0] sm:$0xff]
        %v3033 = vld [vmem:[%s431 + $0xa8] sm:$0xff]
        %v3034 = vld [vmem:[%s431 + $0xb0] sm:$0xff]
        %v3035 = vld [vmem:[%s431 + $0xb8] sm:$0xff]
        %v3036 = vld [vmem:[%s431 + $0xc0] sm:$0xff]
        %v3037 = vld [vmem:[%s431 + $0xc8] sm:$0xff]
        %v3038 = vld [vmem:[%s431 + $0xd0] sm:$0xff]
        %v3039 = vld [vmem:[%s431 + $0xd8] sm:$0xff]
        %v3040 = vld [vmem:[%s431 + $0xe0] sm:$0xff]
        %v3041 = vld [vmem:[%s431 + $0xe8] sm:$0xff]
        %v3042 = vld [vmem:[%s431 + $0xf0] sm:$0xff]
        %v3043 = vld [vmem:[%s431 + $0xf8] sm:$0xff]
        %v3044 = vld [vmem:[%s431 + $0x100] sm:$0xff]
        %v3045 = vld [vmem:[%s431 + $0x108] sm:$0xff]
        %v3046 = vld [vmem:[%s431 + $0x110] sm:$0xff]
        %v3047 = vld [vmem:[%s431 + $0x118] sm:$0xff]
        %v3048 = vld [vmem:[%s431 + $0x120] sm:$0xff]
        %v3049 = vld [vmem:[%s431 + $0x128] sm:$0xff]
        %v3050 = vld [vmem:[%s431 + $0x130] sm:$0xff]
        %v3051 = vld [vmem:[%s431 + $0x138] sm:$0xff]
        %v3052 = vld [vmem:[%s431 + $0x140] sm:$0xff]
        %v3053 = vld [vmem:[%s431 + $0x148] sm:$0xff]
        %v3054 = vld [vmem:[%s431 + $0x150] sm:$0xff]
        %v3055 = vld [vmem:[%s431 + $0x158] sm:$0xff]
        %v3056 = vld [vmem:[%s431 + $0x160] sm:$0xff]
        %v3057 = vld [vmem:[%s431 + $0x168] sm:$0xff]
        %v3058 = vld [vmem:[%s431 + $0x170] sm:$0xff]
        %v3059 = vld [vmem:[%s431 + $0x178] sm:$0xff]
        %v3060 = vld [vmem:[%s431 + $0x180] sm:$0xff]
        %v3061 = vld [vmem:[%s431 + $0x188] sm:$0xff]
        %v3062 = vld [vmem:[%s431 + $0x190] sm:$0xff]
        %v3063 = vld [vmem:[%s431 + $0x198] sm:$0xff]
        %v3064 = vld [vmem:[%s431 + $0x1a0] sm:$0xff]
        %v3065 = vld [vmem:[%s431 + $0x1a8] sm:$0xff]
        %v3066 = vld [vmem:[%s431 + $0x1b0] sm:$0xff]
        %v3067 = vld [vmem:[%s431 + $0x1b8] sm:$0xff]
        %v3068 = vld [vmem:[%s431 + $0x1c0] sm:$0xff]
        %v3069 = vld [vmem:[%s431 + $0x1c8] sm:$0xff]
        %v3070 = vld [vmem:[%s431 + $0x1d0] sm:$0xff]
        %v3071 = vld [vmem:[%s431 + $0x1d8] sm:$0xff]
        %v3072 = vld [vmem:[%s431 + $0x1e0] sm:$0xff]
        %v3073 = vld [vmem:[%s431 + $0x1e8] sm:$0xff]
        %v3074 = vld [vmem:[%s431 + $0x1f0] sm:$0xff]
        %v3075 = vld [vmem:[%s431 + $0x1f8] sm:$0xff]
        %v3076 = vld [vmem:[%s431 + $0x200] sm:$0xff]
        %v3077 = vld [vmem:[%s431 + $0x208] sm:$0xff]
        %v3078 = vld [vmem:[%s431 + $0x210] sm:$0xff]
        %v3079 = vld [vmem:[%s431 + $0x218] sm:$0xff]
        %v3080 = vld [vmem:[%s431 + $0x220] sm:$0xff]
        %v3081 = vld [vmem:[%s431 + $0x228] sm:$0xff]
        %v3082 = vld [vmem:[%s431 + $0x230] sm:$0xff]
        %v3083 = vld [vmem:[%s431 + $0x238] sm:$0xff]
        %v3084 = vld [vmem:[%s431 + $0x240] sm:$0xff]
        %v3085 = vld [vmem:[%s431 + $0x248] sm:$0xff]
        %v3086 = vld [vmem:[%s431 + $0x250] sm:$0xff]
        %v3087 = vld [vmem:[%s431 + $0x258] sm:$0xff]
        %v3088 = vld [vmem:[%s431 + $0x260] sm:$0xff]
        %v3089 = vld [vmem:[%s431 + $0x268] sm:$0xff]
        %v3090 = vld [vmem:[%s431 + $0x270] sm:$0xff]
        %v3091 = vld [vmem:[%s431 + $0x278] sm:$0xff]
        %v3092 = vld [vmem:[%s431 + $0x280] sm:$0xff]
        %v3093 = vld [vmem:[%s431 + $0x288] sm:$0xff]
        %v3094 = vld [vmem:[%s431 + $0x290] sm:$0xff]
        %v3095 = vld [vmem:[%s431 + $0x298] sm:$0xff]
        %v3096 = vld [vmem:[%s431 + $0x2a0] sm:$0xff]
        %v3097 = vld [vmem:[%s431 + $0x2a8] sm:$0xff]
        %v3098 = vld [vmem:[%s431 + $0x2b0] sm:$0xff]
        %v3099 = vld [vmem:[%s431 + $0x2b8] sm:$0xff]
        %v3100 = vld [vmem:[%s431 + $0x2c0] sm:$0xff]
        %v3101 = vld [vmem:[%s431 + $0x2c8] sm:$0xff]
        %v3102 = vld [vmem:[%s431 + $0x2d0] sm:$0xff]
        %v3103 = vld [vmem:[%s431 + $0x2d8] sm:$0xff]
        %v3104 = vld [vmem:[%s431 + $0x2e0] sm:$0xff]
        %v3105 = vld [vmem:[%s431 + $0x2e8] sm:$0xff]
        %v3106 = vld [vmem:[%s431 + $0x2f0] sm:$0xff]
        %v3107 = vld [vmem:[%s431 + $0x2f8] sm:$0xff]
        %v3108 = vld [vmem:[%s431 + $0x300] sm:$0xff]
        %v3109 = vld [vmem:[%s431 + $0x308] sm:$0xff]
        %v3110 = vld [vmem:[%s431 + $0x310] sm:$0xff]
        %v3111 = vld [vmem:[%s431 + $0x318] sm:$0xff]
        %v3112 = vld [vmem:[%s431 + $0x320] sm:$0xff]
        %v3113 = vld [vmem:[%s431 + $0x328] sm:$0xff]
        %v3114 = vld [vmem:[%s431 + $0x330] sm:$0xff]
        %v3115 = vld [vmem:[%s431 + $0x338] sm:$0xff]
        %v3116 = vld [vmem:[%s431 + $0x340] sm:$0xff]
        %v3117 = vld [vmem:[%s431 + $0x348] sm:$0xff]
        %v3118 = vld [vmem:[%s431 + $0x350] sm:$0xff]
        %v3119 = vld [vmem:[%s431 + $0x358] sm:$0xff]
        %v3120 = vld [vmem:[%s431 + $0x360] sm:$0xff]
        %v3121 = vld [vmem:[%s431 + $0x368] sm:$0xff]
        %v3122 = vld [vmem:[%s431 + $0x370] sm:$0xff]
        %v3123 = vld [vmem:[%s431 + $0x378] sm:$0xff]
        %v3124 = vld [vmem:[%s431 + $0x380] sm:$0xff]
        %v3125 = vld [vmem:[%s431 + $0x388] sm:$0xff]
        %v3126 = vld [vmem:[%s431 + $0x390] sm:$0xff]
        %v3127 = vld [vmem:[%s431 + $0x398] sm:$0xff]
        %v3128 = vld [vmem:[%s431 + $0x3a0] sm:$0xff]
        %v3129 = vld [vmem:[%s431 + $0x3a8] sm:$0xff]
        %v3130 = vld [vmem:[%s431 + $0x3b0] sm:$0xff]
        %v3131 = vld [vmem:[%s431 + $0x3b8] sm:$0xff]
        %v3132 = vld [vmem:[%s431 + $0x3c0] sm:$0xff]
        %v3133 = vld [vmem:[%s431 + $0x3c8] sm:$0xff]
        %v3134 = vld [vmem:[%s431 + $0x3d0] sm:$0xff]
        %v3135 = vld [vmem:[%s431 + $0x3d8] sm:$0xff]
        %v3136 = vld [vmem:[%s431 + $0x3e0] sm:$0xff]
        %v3137 = vld [vmem:[%s431 + $0x3e8] sm:$0xff]
        %v3138 = vld [vmem:[%s431 + $0x3f0] sm:$0xff]
        %v3139 = vld [vmem:[%s431 + $0x3f8] sm:$0xff]
        %v3140 = vld [vmem:[%s431 + $0x400] sm:$0xff]
        %v3141 = vld [vmem:[%s431 + $0x408] sm:$0xff]
        %v3142 = vld [vmem:[%s431 + $0x410] sm:$0xff]
        %v3143 = vld [vmem:[%s431 + $0x418] sm:$0xff]
        %v3144 = vld [vmem:[%s431 + $0x420] sm:$0xff]
        %v3145 = vld [vmem:[%s431 + $0x428] sm:$0xff]
        %v3146 = vld [vmem:[%s431 + $0x430] sm:$0xff]
        %v3147 = vld [vmem:[%s431 + $0x438] sm:$0xff]
        %v3148 = vld [vmem:[%s431 + $0x440] sm:$0xff]
        %v3149 = vld [vmem:[%s431 + $0x448] sm:$0xff]
        %v3150 = vld [vmem:[%s431 + $0x450] sm:$0xff]
        %v3151 = vld [vmem:[%s431 + $0x458] sm:$0xff]
        %v3152 = vld [vmem:[%s431 + $0x460] sm:$0xff]
        %v3153 = vld [vmem:[%s431 + $0x468] sm:$0xff]
        %v3154 = vld [vmem:[%s431 + $0x470] sm:$0xff]
        %v3155 = vld [vmem:[%s431 + $0x478] sm:$0xff]
        %v3156 = vld [vmem:[%s431 + $0x480] sm:$0xff]
        %v3157 = vld [vmem:[%s431 + $0x488] sm:$0xff]
        %v3158 = vld [vmem:[%s431 + $0x490] sm:$0xff]
        %v3159 = vld [vmem:[%s431 + $0x498] sm:$0xff]
        %v3160 = vld [vmem:[%s431 + $0x4a0] sm:$0xff]
        %v3161 = vld [vmem:[%s431 + $0x4a8] sm:$0xff]
        %v3162 = vld [vmem:[%s431 + $0x4b0] sm:$0xff]
        %v3163 = vld [vmem:[%s431 + $0x4b8] sm:$0xff]
        %v3164 = vld [vmem:[%s431 + $0x4c0] sm:$0xff]
        %v3165 = vld [vmem:[%s431 + $0x4c8] sm:$0xff]
        %v3166 = vld [vmem:[%s431 + $0x4d0] sm:$0xff]
        %v3167 = vld [vmem:[%s431 + $0x4d8] sm:$0xff]
        %v3168 = vld [vmem:[%s431 + $0x4e0] sm:$0xff]
        %v3169 = vld [vmem:[%s431 + $0x4e8] sm:$0xff]
        %v3170 = vld [vmem:[%s431 + $0x4f0] sm:$0xff]
        %v3171 = vld [vmem:[%s431 + $0x4f8] sm:$0xff]
        %v3172 = vld [vmem:[%s431 + $0x500] sm:$0xff]
        %v3173 = vld [vmem:[%s431 + $0x508] sm:$0xff]
        %v3174 = vld [vmem:[%s431 + $0x510] sm:$0xff]
        %v3175 = vld [vmem:[%s431 + $0x518] sm:$0xff]
        %v3176 = vld [vmem:[%s431 + $0x520] sm:$0xff]
        %v3177 = vld [vmem:[%s431 + $0x528] sm:$0xff]
        %v3178 = vld [vmem:[%s431 + $0x530] sm:$0xff]
        %v3179 = vld [vmem:[%s431 + $0x538] sm:$0xff]
        %v3180 = vld [vmem:[%s431 + $0x540] sm:$0xff]
        %v3181 = vld [vmem:[%s431 + $0x548] sm:$0xff]
        %v3182 = vld [vmem:[%s431 + $0x550] sm:$0xff]
        %v3183 = vld [vmem:[%s431 + $0x558] sm:$0xff]
        %v3184 = vld [vmem:[%s431 + $0x560] sm:$0xff]
        %v3185 = vld [vmem:[%s431 + $0x568] sm:$0xff]
        %v3186 = vld [vmem:[%s431 + $0x570] sm:$0xff]
        %v3187 = vld [vmem:[%s431 + $0x578] sm:$0xff]
        %v3188 = vld [vmem:[%s431 + $0x580] sm:$0xff]
        %v3189 = vld [vmem:[%s431 + $0x588] sm:$0xff]
        %v3190 = vld [vmem:[%s431 + $0x590] sm:$0xff]
        %v3191 = vld [vmem:[%s431 + $0x598] sm:$0xff]
        %v3192 = vld [vmem:[%s431 + $0x5a0] sm:$0xff]
        %v3193 = vld [vmem:[%s431 + $0x5a8] sm:$0xff]
        %v3194 = vld [vmem:[%s431 + $0x5b0] sm:$0xff]
        %v3195 = vld [vmem:[%s431 + $0x5b8] sm:$0xff]
        %v3196 = vld [vmem:[%s431 + $0x5c0] sm:$0xff]
        %v3197 = vld [vmem:[%s431 + $0x5c8] sm:$0xff]
        %v3198 = vld [vmem:[%s431 + $0x5d0] sm:$0xff]
        %v3199 = vld [vmem:[%s431 + $0x5d8] sm:$0xff]
        %v3200 = vld [vmem:[%s431 + $0x5e0] sm:$0xff]
        %v3201 = vld [vmem:[%s431 + $0x5e8] sm:$0xff]
        %v3202 = vld [vmem:[%s431 + $0x5f0] sm:$0xff]
        %v3203 = vld [vmem:[%s431 + $0x5f8] sm:$0xff]
        %v3204 = vld [vmem:[%s431 + $0x600] sm:$0xff]
        %v3205 = vld [vmem:[%s431 + $0x608] sm:$0xff]
        %v3206 = vld [vmem:[%s431 + $0x610] sm:$0xff]
        %v3207 = vld [vmem:[%s431 + $0x618] sm:$0xff]
        %v3208 = vld [vmem:[%s431 + $0x620] sm:$0xff]
        %v3209 = vld [vmem:[%s431 + $0x628] sm:$0xff]
        %v3210 = vld [vmem:[%s431 + $0x630] sm:$0xff]
        %v3211 = vld [vmem:[%s431 + $0x638] sm:$0xff]
        %v3212 = vld [vmem:[%s431 + $0x640] sm:$0xff]
        %v3213 = vld [vmem:[%s431 + $0x648] sm:$0xff]
        %v3214 = vld [vmem:[%s431 + $0x650] sm:$0xff]
        %v3215 = vld [vmem:[%s431 + $0x658] sm:$0xff]
        %v3216 = vld [vmem:[%s431 + $0x660] sm:$0xff]
        %v3217 = vld [vmem:[%s431 + $0x668] sm:$0xff]
        %v3218 = vld [vmem:[%s431 + $0x670] sm:$0xff]
        %v3219 = vld [vmem:[%s431 + $0x678] sm:$0xff]
        %v3220 = vld [vmem:[%s431 + $0x680] sm:$0xff]
        %v3221 = vld [vmem:[%s431 + $0x688] sm:$0xff]
        %v3222 = vld [vmem:[%s431 + $0x690] sm:$0xff]
        %v3223 = vld [vmem:[%s431 + $0x698] sm:$0xff]
        %v3224 = vld [vmem:[%s431 + $0x6a0] sm:$0xff]
        %v3225 = vld [vmem:[%s431 + $0x6a8] sm:$0xff]
        %v3226 = vld [vmem:[%s431 + $0x6b0] sm:$0xff]
        %v3227 = vld [vmem:[%s431 + $0x6b8] sm:$0xff]
        %v3228 = vld [vmem:[%s431 + $0x6c0] sm:$0xff]
        %v3229 = vld [vmem:[%s431 + $0x6c8] sm:$0xff]
        %v3230 = vld [vmem:[%s431 + $0x6d0] sm:$0xff]
        %v3231 = vld [vmem:[%s431 + $0x6d8] sm:$0xff]
        %v3232 = vld [vmem:[%s431 + $0x6e0] sm:$0xff]
        %v3233 = vld [vmem:[%s431 + $0x6e8] sm:$0xff]
        %v3234 = vld [vmem:[%s431 + $0x6f0] sm:$0xff]
        %v3235 = vld [vmem:[%s431 + $0x6f8] sm:$0xff]
        %v3236 = vld [vmem:[%s431 + $0x700] sm:$0xff]
        %v3237 = vld [vmem:[%s431 + $0x708] sm:$0xff]
        %v3238 = vld [vmem:[%s431 + $0x710] sm:$0xff]
        %v3239 = vld [vmem:[%s431 + $0x718] sm:$0xff]
        %v3240 = vld [vmem:[%s431 + $0x720] sm:$0xff]
        %v3241 = vld [vmem:[%s431 + $0x728] sm:$0xff]
        %v3242 = vld [vmem:[%s431 + $0x730] sm:$0xff]
        %v3243 = vld [vmem:[%s431 + $0x738] sm:$0xff]
        %v3244 = vld [vmem:[%s431 + $0x740] sm:$0xff]
        %v3245 = vld [vmem:[%s431 + $0x748] sm:$0xff]
        %v3246 = vld [vmem:[%s431 + $0x750] sm:$0xff]
        %v3247 = vld [vmem:[%s431 + $0x758] sm:$0xff]
        %v3248 = vld [vmem:[%s431 + $0x760] sm:$0xff]
        %v3249 = vld [vmem:[%s431 + $0x768] sm:$0xff]
        %v3250 = vld [vmem:[%s431 + $0x770] sm:$0xff]
        %v3251 = vld [vmem:[%s431 + $0x778] sm:$0xff]
        %v3252 = vld [vmem:[%s431 + $0x780] sm:$0xff]
        %v3253 = vld [vmem:[%s431 + $0x788] sm:$0xff]
        %v3254 = vld [vmem:[%s431 + $0x790] sm:$0xff]
        %v3255 = vld [vmem:[%s431 + $0x798] sm:$0xff]
        %v3256 = vld [vmem:[%s431 + $0x7a0] sm:$0xff]
        %v3257 = vld [vmem:[%s431 + $0x7a8] sm:$0xff]
        %v3258 = vld [vmem:[%s431 + $0x7b0] sm:$0xff]
        %v3259 = vld [vmem:[%s431 + $0x7b8] sm:$0xff]
        %v3260 = vld [vmem:[%s431 + $0x7c0] sm:$0xff]
        %v3261 = vld [vmem:[%s431 + $0x7c8] sm:$0xff]
        %v3262 = vld [vmem:[%s431 + $0x7d0] sm:$0xff]
        %v3263 = vld [vmem:[%s431 + $0x7d8] sm:$0xff]
        %v3264 = vld [vmem:[%s431 + $0x7e0] sm:$0xff]
        %v3265 = vld [vmem:[%s431 + $0x7e8] sm:$0xff]
        %v3266 = vld [vmem:[%s431 + $0x7f0] sm:$0xff]
        %v3267 = vld [vmem:[%s431 + $0x7f8] sm:$0xff]
        %v3268 = vld [vmem:[%s431 + $0x800] sm:$0xff]
        %v3269 = vld [vmem:[%s431 + $0x808] sm:$0xff]
        %v3270 = vld [vmem:[%s431 + $0x810] sm:$0xff]
        %v3271 = vld [vmem:[%s431 + $0x818] sm:$0xff]
        %v3272 = vld [vmem:[%s431 + $0x820] sm:$0xff]
        %v3273 = vld [vmem:[%s431 + $0x828] sm:$0xff]
        %v3274 = vld [vmem:[%s431 + $0x830] sm:$0xff]
        %v3275 = vld [vmem:[%s431 + $0x838] sm:$0xff]
        %v3276 = vld [vmem:[%s431 + $0x840] sm:$0xff]
        %v3277 = vld [vmem:[%s431 + $0x848] sm:$0xff]
        %v3278 = vld [vmem:[%s431 + $0x850] sm:$0xff]
        %v3279 = vld [vmem:[%s431 + $0x858] sm:$0xff]
        %v3280 = vld [vmem:[%s431 + $0x860] sm:$0xff]
        %v3281 = vld [vmem:[%s431 + $0x868] sm:$0xff]
        %v3282 = vld [vmem:[%s431 + $0x870] sm:$0xff]
        %v3283 = vld [vmem:[%s431 + $0x878] sm:$0xff]
        %v3284 = vld [vmem:[%s431 + $0x880] sm:$0xff]
        %v3285 = vld [vmem:[%s431 + $0x888] sm:$0xff]
        %v3286 = vld [vmem:[%s431 + $0x890] sm:$0xff]
        %v3287 = vld [vmem:[%s431 + $0x898] sm:$0xff]
        %v3288 = vld [vmem:[%s431 + $0x8a0] sm:$0xff]
        %v3289 = vld [vmem:[%s431 + $0x8a8] sm:$0xff]
        %v3290 = vld [vmem:[%s431 + $0x8b0] sm:$0xff]
        %v3291 = vld [vmem:[%s431 + $0x8b8] sm:$0xff]
        %v3292 = vld [vmem:[%s431 + $0x8c0] sm:$0xff]
        %v3293 = vld [vmem:[%s431 + $0x8c8] sm:$0xff]
        %v3294 = vld [vmem:[%s431 + $0x8d0] sm:$0xff]
        %v3295 = vld [vmem:[%s431 + $0x8d8] sm:$0xff]
        %v3296 = vld [vmem:[%s431 + $0x8e0] sm:$0xff]
        %v3297 = vld [vmem:[%s431 + $0x8e8] sm:$0xff]
        %v3298 = vld [vmem:[%s431 + $0x8f0] sm:$0xff]
        %v3299 = vld [vmem:[%s431 + $0x8f8] sm:$0xff]
        %v3300 = vld [vmem:[%s431 + $0x900] sm:$0xff]
        %v3301 = vld [vmem:[%s431 + $0x908] sm:$0xff]
        %v3302 = vld [vmem:[%s431 + $0x910] sm:$0xff]
        %v3303 = vld [vmem:[%s431 + $0x918] sm:$0xff]
        %v3304 = vld [vmem:[%s431 + $0x920] sm:$0xff]
        %v3305 = vld [vmem:[%s431 + $0x928] sm:$0xff]
        %v3306 = vld [vmem:[%s431 + $0x930] sm:$0xff]
        %v3307 = vld [vmem:[%s431 + $0x938] sm:$0xff]
        %v3308 = vld [vmem:[%s431 + $0x940] sm:$0xff]
        %v3309 = vld [vmem:[%s431 + $0x948] sm:$0xff]
        %v3310 = vld [vmem:[%s431 + $0x950] sm:$0xff]
        %v3311 = vld [vmem:[%s431 + $0x958] sm:$0xff]
        %v3312 = vld [vmem:[%s431 + $0x960] sm:$0xff]
        %v3313 = vld [vmem:[%s431 + $0x968] sm:$0xff]
        %v3314 = vld [vmem:[%s431 + $0x970] sm:$0xff]
        %v3315 = vld [vmem:[%s431 + $0x978] sm:$0xff]
        %v3316 = vld [vmem:[%s431 + $0x980] sm:$0xff]
        %v3317 = vld [vmem:[%s431 + $0x988] sm:$0xff]
        %v3318 = vld [vmem:[%s431 + $0x990] sm:$0xff]
        %v3319 = vld [vmem:[%s431 + $0x998] sm:$0xff]
        %v3320 = vld [vmem:[%s431 + $0x9a0] sm:$0xff]
        %v3321 = vld [vmem:[%s431 + $0x9a8] sm:$0xff]
        %v3322 = vld [vmem:[%s431 + $0x9b0] sm:$0xff]
        %v3323 = vld [vmem:[%s431 + $0x9b8] sm:$0xff]
        %v3324 = vld [vmem:[%s431 + $0x9c0] sm:$0xff]
        %v3325 = vld [vmem:[%s431 + $0x9c8] sm:$0xff]
        %v3326 = vld [vmem:[%s431 + $0x9d0] sm:$0xff]
        %v3327 = vld [vmem:[%s431 + $0x9d8] sm:$0xff]
        %v3328 = vld [vmem:[%s431 + $0x9e0] sm:$0xff]
        %v3329 = vld [vmem:[%s431 + $0x9e8] sm:$0xff]
        %v3330 = vld [vmem:[%s431 + $0x9f0] sm:$0xff]
        %v3331 = vld [vmem:[%s431 + $0x9f8] sm:$0xff]
        %v3332 = vld [vmem:[%s431 + $0xa00] sm:$0xff]
        %v3333 = vld [vmem:[%s431 + $0xa08] sm:$0xff]
        %v3334 = vld [vmem:[%s431 + $0xa10] sm:$0xff]
        %v3335 = vld [vmem:[%s431 + $0xa18] sm:$0xff]
        %v3336 = vld [vmem:[%s431 + $0xa20] sm:$0xff]
        %v3337 = vld [vmem:[%s431 + $0xa28] sm:$0xff]
        %v3338 = vld [vmem:[%s431 + $0xa30] sm:$0xff]
        %v3339 = vld [vmem:[%s431 + $0xa38] sm:$0xff]
        %v3340 = vld [vmem:[%s431 + $0xa40] sm:$0xff]
        %v3341 = vld [vmem:[%s431 + $0xa48] sm:$0xff]
        %v3342 = vld [vmem:[%s431 + $0xa50] sm:$0xff]
        %v3343 = vld [vmem:[%s431 + $0xa58] sm:$0xff]
        %v3344 = vld [vmem:[%s431 + $0xa60] sm:$0xff]
        %v3345 = vld [vmem:[%s431 + $0xa68] sm:$0xff]
        %v3346 = vld [vmem:[%s431 + $0xa70] sm:$0xff]
        %v3347 = vld [vmem:[%s431 + $0xa78] sm:$0xff]
        %v3348 = vld [vmem:[%s431 + $0xa80] sm:$0xff]
        %v3349 = vld [vmem:[%s431 + $0xa88] sm:$0xff]
        %v3350 = vld [vmem:[%s431 + $0xa90] sm:$0xff]
        %v3351 = vld [vmem:[%s431 + $0xa98] sm:$0xff]
        %v3352 = vld [vmem:[%s431 + $0xaa0] sm:$0xff]
        %v3353 = vld [vmem:[%s431 + $0xaa8] sm:$0xff]
        %v3354 = vld [vmem:[%s431 + $0xab0] sm:$0xff]
        %v3355 = vld [vmem:[%s431 + $0xab8] sm:$0xff]
        %v3356 = vld [vmem:[%s431 + $0xac0] sm:$0xff]
        %v3357 = vld [vmem:[%s431 + $0xac8] sm:$0xff]
        %v3358 = vld [vmem:[%s431 + $0xad0] sm:$0xff]
        %v3359 = vld [vmem:[%s431 + $0xad8] sm:$0xff]
        %v3360 = vld [vmem:[%s431 + $0xae0] sm:$0xff]
        %v3361 = vld [vmem:[%s431 + $0xae8] sm:$0xff]
        %v3362 = vld [vmem:[%s431 + $0xaf0] sm:$0xff]
        %v3363 = vld [vmem:[%s431 + $0xaf8] sm:$0xff]
        %v3364 = vld [vmem:[%s431 + $0xb00] sm:$0xff]
        %v3365 = vld [vmem:[%s431 + $0xb08] sm:$0xff]
        %v3366 = vld [vmem:[%s431 + $0xb10] sm:$0xff]
        %v3367 = vld [vmem:[%s431 + $0xb18] sm:$0xff]
        %v3368 = vld [vmem:[%s431 + $0xb20] sm:$0xff]
        %v3369 = vld [vmem:[%s431 + $0xb28] sm:$0xff]
        %v3370 = vld [vmem:[%s431 + $0xb30] sm:$0xff]
        %v3371 = vld [vmem:[%s431 + $0xb38] sm:$0xff]
        %v3372 = vld [vmem:[%s431 + $0xb40] sm:$0xff]
        %v3373 = vld [vmem:[%s431 + $0xb48] sm:$0xff]
        %v3374 = vld [vmem:[%s431 + $0xb50] sm:$0xff]
        %v3375 = vld [vmem:[%s431 + $0xb58] sm:$0xff]
        %v3376 = vld [vmem:[%s431 + $0xb60] sm:$0xff]
        %v3377 = vld [vmem:[%s431 + $0xb68] sm:$0xff]
        %v3378 = vld [vmem:[%s431 + $0xb70] sm:$0xff]
        %v3379 = vld [vmem:[%s431 + $0xb78] sm:$0xff]
        %v3380 = vld [vmem:[%s431 + $0xb80] sm:$0xff]
        %v3381 = vld [vmem:[%s431 + $0xb88] sm:$0xff]
        %v3382 = vld [vmem:[%s431 + $0xb90] sm:$0xff]
        %v3383 = vld [vmem:[%s431 + $0xb98] sm:$0xff]
        %v3384 = vld [vmem:[%s431 + $0xba0] sm:$0xff]
        %v3385 = vld [vmem:[%s431 + $0xba8] sm:$0xff]
        %v3386 = vld [vmem:[%s431 + $0xbb0] sm:$0xff]
        %v3387 = vld [vmem:[%s431 + $0xbb8] sm:$0xff]
        %v3388 = vld [vmem:[%s431 + $0xbc0] sm:$0xff]
        %v3389 = vld [vmem:[%s431 + $0xbc8] sm:$0xff]
        %v3390 = vld [vmem:[%s431 + $0xbd0] sm:$0xff]
        %v3391 = vld [vmem:[%s431 + $0xbd8] sm:$0xff]
        %v3392 = vld [vmem:[%s431 + $0xbe0] sm:$0xff]
        %v3393 = vld [vmem:[%s431 + $0xbe8] sm:$0xff]
        %v3394 = vld [vmem:[%s431 + $0xbf0] sm:$0xff]
        %v3395 = vld [vmem:[%s431 + $0xbf8] sm:$0xff]
        %v3396 = vld [vmem:[%s431 + $0xc00] sm:$0xff]
        %v3397 = vld [vmem:[%s431 + $0xc08] sm:$0xff]
        %v3398 = vld [vmem:[%s431 + $0xc10] sm:$0xff]
        %v3399 = vld [vmem:[%s431 + $0xc18] sm:$0xff]
        %v3400 = vld [vmem:[%s431 + $0xc20] sm:$0xff]
        %v3401 = vld [vmem:[%s431 + $0xc28] sm:$0xff]
        %v3402 = vld [vmem:[%s431 + $0xc30] sm:$0xff]
        %v3403 = vld [vmem:[%s431 + $0xc38] sm:$0xff]
        %v3404 = vld [vmem:[%s431 + $0xc40] sm:$0xff]
        %v3405 = vld [vmem:[%s431 + $0xc48] sm:$0xff]
        %v3406 = vld [vmem:[%s431 + $0xc50] sm:$0xff]
        %v3407 = vld [vmem:[%s431 + $0xc58] sm:$0xff]
        %v3408 = vld [vmem:[%s431 + $0xc60] sm:$0xff]
        %v3409 = vld [vmem:[%s431 + $0xc68] sm:$0xff]
        %v3410 = vld [vmem:[%s431 + $0xc70] sm:$0xff]
        %v3411 = vld [vmem:[%s431 + $0xc78] sm:$0xff]
        %v3412 = vld [vmem:[%s431 + $0xc80] sm:$0xff]
        %v3413 = vld [vmem:[%s431 + $0xc88] sm:$0xff]
        %v3414 = vld [vmem:[%s431 + $0xc90] sm:$0xff]
        %v3415 = vld [vmem:[%s431 + $0xc98] sm:$0xff]
        %v3416 = vld [vmem:[%s431 + $0xca0] sm:$0xff]
        %v3417 = vld [vmem:[%s431 + $0xca8] sm:$0xff]
        %v3418 = vld [vmem:[%s431 + $0xcb0] sm:$0xff]
        %v3419 = vld [vmem:[%s431 + $0xcb8] sm:$0xff]
        %v3420 = vld [vmem:[%s431 + $0xcc0] sm:$0xff]
        %v3421 = vld [vmem:[%s431 + $0xcc8] sm:$0xff]
        %v3422 = vld [vmem:[%s431 + $0xcd0] sm:$0xff]
        %v3423 = vld [vmem:[%s431 + $0xcd8] sm:$0xff]
        %v3424 = vld [vmem:[%s431 + $0xce0] sm:$0xff]
        %v3425 = vld [vmem:[%s431 + $0xce8] sm:$0xff]
        %v3426 = vld [vmem:[%s431 + $0xcf0] sm:$0xff]
        %v3427 = vld [vmem:[%s431 + $0xcf8] sm:$0xff]
        %v3428 = vld [vmem:[%s431 + $0xd00] sm:$0xff]
        %v3429 = vld [vmem:[%s431 + $0xd08] sm:$0xff]
        %v3430 = vld [vmem:[%s431 + $0xd10] sm:$0xff]
        %v3431 = vld [vmem:[%s431 + $0xd18] sm:$0xff]
        %v3432 = vld [vmem:[%s431 + $0xd20] sm:$0xff]
        %v3433 = vld [vmem:[%s431 + $0xd28] sm:$0xff]
        %v3434 = vld [vmem:[%s431 + $0xd30] sm:$0xff]
        %v3435 = vld [vmem:[%s431 + $0xd38] sm:$0xff]
        %v3436 = vld [vmem:[%s431 + $0xd40] sm:$0xff]
        %v3437 = vld [vmem:[%s431 + $0xd48] sm:$0xff]
        %v3438 = vld [vmem:[%s431 + $0xd50] sm:$0xff]
        %v3439 = vld [vmem:[%s431 + $0xd58] sm:$0xff]
        %v3440 = vld [vmem:[%s431 + $0xd60] sm:$0xff]
        %v3441 = vld [vmem:[%s431 + $0xd68] sm:$0xff]
        %v3442 = vld [vmem:[%s431 + $0xd70] sm:$0xff]
        %v3443 = vld [vmem:[%s431 + $0xd78] sm:$0xff]
        %v3444 = vld [vmem:[%s431 + $0xd80] sm:$0xff]
        %v3445 = vld [vmem:[%s431 + $0xd88] sm:$0xff]
        %v3446 = vld [vmem:[%s431 + $0xd90] sm:$0xff]
        %v3447 = vld [vmem:[%s431 + $0xd98] sm:$0xff]
        %v3448 = vld [vmem:[%s431 + $0xda0] sm:$0xff]
        %v3449 = vld [vmem:[%s431 + $0xda8] sm:$0xff]
        %v3450 = vld [vmem:[%s431 + $0xdb0] sm:$0xff]
        %v3451 = vld [vmem:[%s431 + $0xdb8] sm:$0xff]
        %v3452 = vld [vmem:[%s431 + $0xdc0] sm:$0xff]
        %v3453 = vld [vmem:[%s431 + $0xdc8] sm:$0xff]
        %v3454 = vld [vmem:[%s431 + $0xdd0] sm:$0xff]
        %v3455 = vld [vmem:[%s431 + $0xdd8] sm:$0xff]
        %v3456 = vld [vmem:[%s431 + $0xde0] sm:$0xff]
        %v3457 = vld [vmem:[%s431 + $0xde8] sm:$0xff]
        %v3458 = vld [vmem:[%s431 + $0xdf0] sm:$0xff]
        %v3459 = vld [vmem:[%s431 + $0xdf8] sm:$0xff]
        %v3460 = vld [vmem:[%s431 + $0xe00] sm:$0xff]
        %v3461 = vld [vmem:[%s431 + $0xe08] sm:$0xff]
        %v3462 = vld [vmem:[%s431 + $0xe10] sm:$0xff]
        %v3463 = vld [vmem:[%s431 + $0xe18] sm:$0xff]
        %v3464 = vld [vmem:[%s431 + $0xe20] sm:$0xff]
        %v3465 = vld [vmem:[%s431 + $0xe28] sm:$0xff]
        %v3466 = vld [vmem:[%s431 + $0xe30] sm:$0xff]
        %v3467 = vld [vmem:[%s431 + $0xe38] sm:$0xff]
        %v3468 = vld [vmem:[%s431 + $0xe40] sm:$0xff]
        %v3469 = vld [vmem:[%s431 + $0xe48] sm:$0xff]
        %v3470 = vld [vmem:[%s431 + $0xe50] sm:$0xff]
        %v3471 = vld [vmem:[%s431 + $0xe58] sm:$0xff]
        %v3472 = vld [vmem:[%s431 + $0xe60] sm:$0xff]
        %v3473 = vld [vmem:[%s431 + $0xe68] sm:$0xff]
        %v3474 = vld [vmem:[%s431 + $0xe70] sm:$0xff]
        %v3475 = vld [vmem:[%s431 + $0xe78] sm:$0xff]
        %v3476 = vld [vmem:[%s431 + $0xe80] sm:$0xff]
        %v3477 = vld [vmem:[%s431 + $0xe88] sm:$0xff]
        %v3478 = vld [vmem:[%s431 + $0xe90] sm:$0xff]
        %v3479 = vld [vmem:[%s431 + $0xe98] sm:$0xff]
        %v3480 = vld [vmem:[%s431 + $0xea0] sm:$0xff]
        %v3481 = vld [vmem:[%s431 + $0xea8] sm:$0xff]
        %v3482 = vld [vmem:[%s431 + $0xeb0] sm:$0xff]
        %v3483 = vld [vmem:[%s431 + $0xeb8] sm:$0xff]
        %v3484 = vld [vmem:[%s431 + $0xec0] sm:$0xff]
        %v3485 = vld [vmem:[%s431 + $0xec8] sm:$0xff]
        %v3486 = vld [vmem:[%s431 + $0xed0] sm:$0xff]
        %v3487 = vld [vmem:[%s431 + $0xed8] sm:$0xff]
        %v3488 = vld [vmem:[%s431 + $0xee0] sm:$0xff]
        %v3489 = vld [vmem:[%s431 + $0xee8] sm:$0xff]
        %v3490 = vld [vmem:[%s431 + $0xef0] sm:$0xff]
        %v3491 = vld [vmem:[%s431 + $0xef8] sm:$0xff]
        %v3492 = vld [vmem:[%s431 + $0xf00] sm:$0xff]
        %v3493 = vld [vmem:[%s431 + $0xf08] sm:$0xff]
        %v3494 = vld [vmem:[%s431 + $0xf10] sm:$0xff]
        %v3495 = vld [vmem:[%s431 + $0xf18] sm:$0xff]
        %v3496 = vld [vmem:[%s431 + $0xf20] sm:$0xff]
        %v3497 = vld [vmem:[%s431 + $0xf28] sm:$0xff]
        %v3498 = vld [vmem:[%s431 + $0xf30] sm:$0xff]
        %v3499 = vld [vmem:[%s431 + $0xf38] sm:$0xff]
        %v3500 = vld [vmem:[%s431 + $0xf40] sm:$0xff]
        %v3501 = vld [vmem:[%s431 + $0xf48] sm:$0xff]
        %v3502 = vld [vmem:[%s431 + $0xf50] sm:$0xff]
        %v3503 = vld [vmem:[%s431 + $0xf58] sm:$0xff]
        %v3504 = vld [vmem:[%s431 + $0xf60] sm:$0xff]
        %v3505 = vld [vmem:[%s431 + $0xf68] sm:$0xff]
        %v3506 = vld [vmem:[%s431 + $0xf70] sm:$0xff]
        %v3507 = vld [vmem:[%s431 + $0xf78] sm:$0xff]
        %v3508 = vld [vmem:[%s431 + $0xf80] sm:$0xff]
        %v3509 = vld [vmem:[%s431 + $0xf88] sm:$0xff]
        %v3510 = vld [vmem:[%s431 + $0xf90] sm:$0xff]
        %v3511 = vld [vmem:[%s431 + $0xf98] sm:$0xff]
        %v3512 = vld [vmem:[%s431 + $0xfa0] sm:$0xff]
        %v3513 = vld [vmem:[%s431 + $0xfa8] sm:$0xff]
        %v3514 = vld [vmem:[%s431 + $0xfb0] sm:$0xff]
        %v3515 = vld [vmem:[%s431 + $0xfb8] sm:$0xff]
        %v3516 = vld [vmem:[%s431 + $0xfc0] sm:$0xff]
        %v3517 = vld [vmem:[%s431 + $0xfc8] sm:$0xff]
        %v3518 = vld [vmem:[%s431 + $0xfd0] sm:$0xff]
        %v3519 = vld [vmem:[%s431 + $0xfd8] sm:$0xff]
        %v3520 = vld [vmem:[%s431 + $0xfe0] sm:$0xff]
        %v3521 = vld [vmem:[%s431 + $0xfe8] sm:$0xff]
        %v3522 = vld [vmem:[%s431 + $0xff0] sm:$0xff]
        %v3523 = vld [vmem:[%s431 + $0xff8] sm:$0xff]
        %v3524 = vld [vmem:[%s431 + $0x1000] sm:$0xff]
        %v3525 = vld [vmem:[%s431 + $0x1008] sm:$0xff]
        %v3526 = vld [vmem:[%s431 + $0x1010] sm:$0xff]
        %v3527 = vld [vmem:[%s431 + $0x1018] sm:$0xff]
        %v3528 = vld [vmem:[%s431 + $0x1020] sm:$0xff]
        %v3529 = vld [vmem:[%s431 + $0x1028] sm:$0xff]
        %v3530 = vld [vmem:[%s431 + $0x1030] sm:$0xff]
        %v3531 = vld [vmem:[%s431 + $0x1038] sm:$0xff]
        %v3532 = vld [vmem:[%s431 + $0x1040] sm:$0xff]
        %v3533 = vld [vmem:[%s431 + $0x1048] sm:$0xff]
        %v3534 = vld [vmem:[%s431 + $0x1050] sm:$0xff]
        %v3535 = vld [vmem:[%s431 + $0x1058] sm:$0xff]
        %v3536 = vld [vmem:[%s431 + $0x1060] sm:$0xff]
        %v3537 = vld [vmem:[%s431 + $0x1068] sm:$0xff]
        %v3538 = vld [vmem:[%s431 + $0x1070] sm:$0xff]
        %v3539 = vld [vmem:[%s431 + $0x1078] sm:$0xff]
        %v3540 = vld [vmem:[%s431 + $0x1080] sm:$0xff]
        %v3541 = vld [vmem:[%s431 + $0x1088] sm:$0xff]
        %v3542 = vld [vmem:[%s431 + $0x1090] sm:$0xff]
        %v3543 = vld [vmem:[%s431 + $0x1098] sm:$0xff]
        %v3544 = vld [vmem:[%s431 + $0x10a0] sm:$0xff]
        %v3545 = vld [vmem:[%s431 + $0x10a8] sm:$0xff]
        %v3546 = vld [vmem:[%s431 + $0x10b0] sm:$0xff]
        %v3547 = vld [vmem:[%s431 + $0x10b8] sm:$0xff]
        %v3548 = vld [vmem:[%s431 + $0x10c0] sm:$0xff]
        %v3549 = vld [vmem:[%s431 + $0x10c8] sm:$0xff]
        %v3550 = vld [vmem:[%s431 + $0x10d0] sm:$0xff]
        %v3551 = vld [vmem:[%s431 + $0x10d8] sm:$0xff]
        %v3552 = vld [vmem:[%s431 + $0x10e0] sm:$0xff]
        %v3553 = vld [vmem:[%s431 + $0x10e8] sm:$0xff]
        %v3554 = vld [vmem:[%s431 + $0x10f0] sm:$0xff]
        %v3555 = vld [vmem:[%s431 + $0x10f8] sm:$0xff]
        %v3556 = vld [vmem:[%s431 + $0x1100] sm:$0xff]
        %v3557 = vld [vmem:[%s431 + $0x1108] sm:$0xff]
        %v3558 = vld [vmem:[%s431 + $0x1110] sm:$0xff]
        %v3559 = vld [vmem:[%s431 + $0x1118] sm:$0xff]
        %v3560 = vld [vmem:[%s431 + $0x1120] sm:$0xff]
        %v3561 = vld [vmem:[%s431 + $0x1128] sm:$0xff]
        %v3562 = vld [vmem:[%s431 + $0x1130] sm:$0xff]
        %v3563 = vld [vmem:[%s431 + $0x1138] sm:$0xff]
        %v3564 = vld [vmem:[%s431 + $0x1140] sm:$0xff]
        %v3565 = vld [vmem:[%s431 + $0x1148] sm:$0xff]
        %v3566 = vld [vmem:[%s431 + $0x1150] sm:$0xff]
        %v3567 = vld [vmem:[%s431 + $0x1158] sm:$0xff]
        %v3568 = vld [vmem:[%s431 + $0x1160] sm:$0xff]
        %v3569 = vld [vmem:[%s431 + $0x1168] sm:$0xff]
        %v3570 = vld [vmem:[%s431 + $0x1170] sm:$0xff]
        %v3571 = vld [vmem:[%s431 + $0x1178] sm:$0xff]
        %v3572 = vld [vmem:[%s431 + $0x1180] sm:$0xff]
        %v3573 = vld [vmem:[%s431 + $0x1188] sm:$0xff]
        %v3574 = vld [vmem:[%s431 + $0x1190] sm:$0xff]
        %v3575 = vld [vmem:[%s431 + $0x1198] sm:$0xff]
        %v3576 = vld [vmem:[%s431 + $0x11a0] sm:$0xff]
        %v3577 = vld [vmem:[%s431 + $0x11a8] sm:$0xff]
        %v3578 = vld [vmem:[%s431 + $0x11b0] sm:$0xff]
        %v3579 = vld [vmem:[%s431 + $0x11b8] sm:$0xff]
        %v3580 = vld [vmem:[%s431 + $0x11c0] sm:$0xff]
        %v3581 = vld [vmem:[%s431 + $0x11c8] sm:$0xff]
        %v3582 = vld [vmem:[%s431 + $0x11d0] sm:$0xff]
        %v3583 = vld [vmem:[%s431 + $0x11d8] sm:$0xff]
        %v3584 = vld [vmem:[%s431 + $0x11e0] sm:$0xff]
        %v3585 = vld [vmem:[%s431 + $0x11e8] sm:$0xff]
        %v3586 = vld [vmem:[%s431 + $0x11f0] sm:$0xff]
        %v3587 = vld [vmem:[%s431 + $0x11f8] sm:$0xff]
        %v3588 = vld [vmem:[%s431 + $0x1200] sm:$0xff]
        %v3589 = vld [vmem:[%s431 + $0x1208] sm:$0xff]
        %v3590 = vld [vmem:[%s431 + $0x1210] sm:$0xff]
        %v3591 = vld [vmem:[%s431 + $0x1218] sm:$0xff]
        %v3592 = vld [vmem:[%s431 + $0x1220] sm:$0xff]
        %v3593 = vld [vmem:[%s431 + $0x1228] sm:$0xff]
        %v3594 = vld [vmem:[%s431 + $0x1230] sm:$0xff]
        %v3595 = vld [vmem:[%s431 + $0x1238] sm:$0xff]
        %v3596 = vld [vmem:[%s431 + $0x1240] sm:$0xff]
        %v3597 = vld [vmem:[%s431 + $0x1248] sm:$0xff]
        %v3598 = vld [vmem:[%s431 + $0x1250] sm:$0xff]
        %v3599 = vld [vmem:[%s431 + $0x1258] sm:$0xff]
        %v3600 = vld [vmem:[%s431 + $0x1260] sm:$0xff]
        %v3601 = vld [vmem:[%s431 + $0x1268] sm:$0xff]
        %v3602 = vld [vmem:[%s431 + $0x1270] sm:$0xff]
        %v3603 = vld [vmem:[%s431 + $0x1278] sm:$0xff]
        %v3604 = vld [vmem:[%s431 + $0x1280] sm:$0xff]
        %v3605 = vld [vmem:[%s431 + $0x1288] sm:$0xff]
        %v3606 = vld [vmem:[%s431 + $0x1290] sm:$0xff]
        %v3607 = vld [vmem:[%s431 + $0x1298] sm:$0xff]
        %v3608 = vld [vmem:[%s431 + $0x12a0] sm:$0xff]
        %v3609 = vld [vmem:[%s431 + $0x12a8] sm:$0xff]
        %v3610 = vld [vmem:[%s431 + $0x12b0] sm:$0xff]
        %v3611 = vld [vmem:[%s431 + $0x12b8] sm:$0xff]
        %v3612 = vld [vmem:[%s431 + $0x12c0] sm:$0xff]
        %v3613 = vld [vmem:[%s431 + $0x12c8] sm:$0xff]
        %v3614 = vld [vmem:[%s431 + $0x12d0] sm:$0xff]
        %v3615 = vld [vmem:[%s431 + $0x12d8] sm:$0xff]
        %v3616 = vld [vmem:[%s431 + $0x12e0] sm:$0xff]
        %v3617 = vld [vmem:[%s431 + $0x12e8] sm:$0xff]
        %v3618 = vld [vmem:[%s431 + $0x12f0] sm:$0xff]
        %v3619 = vld [vmem:[%s431 + $0x12f8] sm:$0xff]
        %v3620 = vld [vmem:[%s431 + $0x1300] sm:$0xff]
        %v3621 = vld [vmem:[%s431 + $0x1308] sm:$0xff]
        %v3622 = vld [vmem:[%s431 + $0x1310] sm:$0xff]
        %v3623 = vld [vmem:[%s431 + $0x1318] sm:$0xff]
        %v3624 = vld [vmem:[%s431 + $0x1320] sm:$0xff]
        %v3625 = vld [vmem:[%s431 + $0x1328] sm:$0xff]
        %v3626 = vld [vmem:[%s431 + $0x1330] sm:$0xff]
        %v3627 = vld [vmem:[%s431 + $0x1338] sm:$0xff]
        %v3628 = vld [vmem:[%s431 + $0x1340] sm:$0xff]
        %v3629 = vld [vmem:[%s431 + $0x1348] sm:$0xff]
        %v3630 = vld [vmem:[%s431 + $0x1350] sm:$0xff]
        %v3631 = vld [vmem:[%s431 + $0x1358] sm:$0xff]
        %v3632 = vld [vmem:[%s431 + $0x1360] sm:$0xff]
        %v3633 = vld [vmem:[%s431 + $0x1368] sm:$0xff]
        %v3634 = vld [vmem:[%s431 + $0x1370] sm:$0xff]
        %v3635 = vld [vmem:[%s431 + $0x1378] sm:$0xff]
        %v3636 = vld [vmem:[%s431 + $0x1380] sm:$0xff]
        %v3637 = vld [vmem:[%s431 + $0x1388] sm:$0xff]
        %v3638 = vld [vmem:[%s431 + $0x1390] sm:$0xff]
        %v3639 = vld [vmem:[%s431 + $0x1398] sm:$0xff]
        %v3640 = vld [vmem:[%s431 + $0x13a0] sm:$0xff]
        %v3641 = vld [vmem:[%s431 + $0x13a8] sm:$0xff]
        %v3642 = vld [vmem:[%s431 + $0x13b0] sm:$0xff]
        %v3643 = vld [vmem:[%s431 + $0x13b8] sm:$0xff]
        %v3644 = vld [vmem:[%s431 + $0x13c0] sm:$0xff]
        %v3645 = vld [vmem:[%s431 + $0x13c8] sm:$0xff]
        %v3646 = vld [vmem:[%s431 + $0x13d0] sm:$0xff]
        %v3647 = vld [vmem:[%s431 + $0x13d8] sm:$0xff]
        %v3648 = vld [vmem:[%s431 + $0x13e0] sm:$0xff]
        %v3649 = vld [vmem:[%s431 + $0x13e8] sm:$0xff]
        %v3650 = vld [vmem:[%s431 + $0x13f0] sm:$0xff]
        %v3651 = vld [vmem:[%s431 + $0x13f8] sm:$0xff]
        %v3652 = vld [vmem:[%s431 + $0x1400] sm:$0xff]
        %v3653 = vld [vmem:[%s431 + $0x1408] sm:$0xff]
        %v3654 = vld [vmem:[%s431 + $0x1410] sm:$0xff]
        %v3655 = vld [vmem:[%s431 + $0x1418] sm:$0xff]
        %v3656 = vld [vmem:[%s431 + $0x1420] sm:$0xff]
        %v3657 = vld [vmem:[%s431 + $0x1428] sm:$0xff]
        %v3658 = vld [vmem:[%s431 + $0x1430] sm:$0xff]
        %v3659 = vld [vmem:[%s431 + $0x1438] sm:$0xff]
        %v3660 = vld [vmem:[%s431 + $0x1440] sm:$0xff]
        %v3661 = vld [vmem:[%s431 + $0x1448] sm:$0xff]
        %v3662 = vld [vmem:[%s431 + $0x1450] sm:$0xff]
        %v3663 = vld [vmem:[%s431 + $0x1458] sm:$0xff]
        %v3664 = vld [vmem:[%s431 + $0x1460] sm:$0xff]
        %v3665 = vld [vmem:[%s431 + $0x1468] sm:$0xff]
        %v3666 = vld [vmem:[%s431 + $0x1470] sm:$0xff]
        %v3667 = vld [vmem:[%s431 + $0x1478] sm:$0xff]
        %v3668 = vld [vmem:[%s431 + $0x1480] sm:$0xff]
        %v3669 = vld [vmem:[%s431 + $0x1488] sm:$0xff]
        %v3670 = vld [vmem:[%s431 + $0x1490] sm:$0xff]
        %v3671 = vld [vmem:[%s431 + $0x1498] sm:$0xff]
        %v3672 = vld [vmem:[%s431 + $0x14a0] sm:$0xff]
        %v3673 = vld [vmem:[%s431 + $0x14a8] sm:$0xff]
        %v3674 = vld [vmem:[%s431 + $0x14b0] sm:$0xff]
        %v3675 = vld [vmem:[%s431 + $0x14b8] sm:$0xff]
        %v3676 = vld [vmem:[%s431 + $0x14c0] sm:$0xff]
        %v3677 = vld [vmem:[%s431 + $0x14c8] sm:$0xff]
        %v3678 = vld [vmem:[%s431 + $0x14d0] sm:$0xff]
        %v3679 = vld [vmem:[%s431 + $0x14d8] sm:$0xff]
        %v3680 = vld [vmem:[%s431 + $0x14e0] sm:$0xff]
        %v3681 = vld [vmem:[%s431 + $0x14e8] sm:$0xff]
        %v3682 = vld [vmem:[%s431 + $0x14f0] sm:$0xff]
        %v3683 = vld [vmem:[%s431 + $0x14f8] sm:$0xff]
        %v3684 = vld [vmem:[%s431 + $0x1500] sm:$0xff]
        %v3685 = vld [vmem:[%s431 + $0x1508] sm:$0xff]
        %v3686 = vld [vmem:[%s431 + $0x1510] sm:$0xff]
        %v3687 = vld [vmem:[%s431 + $0x1518] sm:$0xff]
        %v3688 = vld [vmem:[%s431 + $0x1520] sm:$0xff]
        %v3689 = vld [vmem:[%s431 + $0x1528] sm:$0xff]
        %v3690 = vld [vmem:[%s431 + $0x1530] sm:$0xff]
        %v3691 = vld [vmem:[%s431 + $0x1538] sm:$0xff]
        %v3692 = vld [vmem:[%s431 + $0x1540] sm:$0xff]
        %v3693 = vld [vmem:[%s431 + $0x1548] sm:$0xff]
        %v3694 = vld [vmem:[%s431 + $0x1550] sm:$0xff]
        %v3695 = vld [vmem:[%s431 + $0x1558] sm:$0xff]
        %v3696 = vld [vmem:[%s431 + $0x1560] sm:$0xff]
        %v3697 = vld [vmem:[%s431 + $0x1568] sm:$0xff]
        %v3698 = vld [vmem:[%s431 + $0x1570] sm:$0xff]
        %v3699 = vld [vmem:[%s431 + $0x1578] sm:$0xff]
        %v3700 = vld [vmem:[%s431 + $0x1580] sm:$0xff]
        %v3701 = vld [vmem:[%s431 + $0x1588] sm:$0xff]
        %v3702 = vld [vmem:[%s431 + $0x1590] sm:$0xff]
        %v3703 = vld [vmem:[%s431 + $0x1598] sm:$0xff]
        %v3704 = vld [vmem:[%s431 + $0x15a0] sm:$0xff]
        %v3705 = vld [vmem:[%s431 + $0x15a8] sm:$0xff]
        %v3706 = vld [vmem:[%s431 + $0x15b0] sm:$0xff]
        %v3707 = vld [vmem:[%s431 + $0x15b8] sm:$0xff]
        %v3708 = vld [vmem:[%s431 + $0x15c0] sm:$0xff]
        %v3709 = vld [vmem:[%s431 + $0x15c8] sm:$0xff]
        %v3710 = vld [vmem:[%s431 + $0x15d0] sm:$0xff]
        %v3711 = vld [vmem:[%s431 + $0x15d8] sm:$0xff]
        %v3712 = vld [vmem:[%s431 + $0x15e0] sm:$0xff]
        %v3713 = vld [vmem:[%s431 + $0x15e8] sm:$0xff]
        %v3714 = vld [vmem:[%s431 + $0x15f0] sm:$0xff]
        %v3715 = vld [vmem:[%s431 + $0x15f8] sm:$0xff]
        %v3716 = vld [vmem:[%s431 + $0x1600] sm:$0xff]
        %v3717 = vld [vmem:[%s431 + $0x1608] sm:$0xff]
        %v3718 = vld [vmem:[%s431 + $0x1610] sm:$0xff]
        %v3719 = vld [vmem:[%s431 + $0x1618] sm:$0xff]
        %v3720 = vld [vmem:[%s431 + $0x1620] sm:$0xff]
        %v3721 = vld [vmem:[%s431 + $0x1628] sm:$0xff]
        %v3722 = vld [vmem:[%s431 + $0x1630] sm:$0xff]
        %v3723 = vld [vmem:[%s431 + $0x1638] sm:$0xff]
        %v3724 = vld [vmem:[%s431 + $0x1640] sm:$0xff]
        %v3725 = vld [vmem:[%s431 + $0x1648] sm:$0xff]
        %v3726 = vld [vmem:[%s431 + $0x1650] sm:$0xff]
        %v3727 = vld [vmem:[%s431 + $0x1658] sm:$0xff]
        %v3728 = vld [vmem:[%s431 + $0x1660] sm:$0xff]
        %v3729 = vld [vmem:[%s431 + $0x1668] sm:$0xff]
        %v3730 = vld [vmem:[%s431 + $0x1670] sm:$0xff]
        %v3731 = vld [vmem:[%s431 + $0x1678] sm:$0xff]
        %v3732 = vld [vmem:[%s431 + $0x1680] sm:$0xff]
        %v3733 = vld [vmem:[%s431 + $0x1688] sm:$0xff]
        %v3734 = vld [vmem:[%s431 + $0x1690] sm:$0xff]
        %v3735 = vld [vmem:[%s431 + $0x1698] sm:$0xff]
        %v3736 = vld [vmem:[%s431 + $0x16a0] sm:$0xff]
        %v3737 = vld [vmem:[%s431 + $0x16a8] sm:$0xff]
        %v3738 = vld [vmem:[%s431 + $0x16b0] sm:$0xff]
        %v3739 = vld [vmem:[%s431 + $0x16b8] sm:$0xff]
        %v3740 = vld [vmem:[%s431 + $0x16c0] sm:$0xff]
        %v3741 = vld [vmem:[%s431 + $0x16c8] sm:$0xff]
        %v3742 = vld [vmem:[%s431 + $0x16d0] sm:$0xff]
        %v3743 = vld [vmem:[%s431 + $0x16d8] sm:$0xff]
        %v3744 = vld [vmem:[%s431 + $0x16e0] sm:$0xff]
        %v3745 = vld [vmem:[%s431 + $0x16e8] sm:$0xff]
        %v3746 = vld [vmem:[%s431 + $0x16f0] sm:$0xff]
        %v3747 = vld [vmem:[%s431 + $0x16f8] sm:$0xff]
        %v3748 = vld [vmem:[%s431 + $0x1700] sm:$0xff]
        %v3749 = vld [vmem:[%s431 + $0x1708] sm:$0xff]
        %v3750 = vld [vmem:[%s431 + $0x1710] sm:$0xff]
        %v3751 = vld [vmem:[%s431 + $0x1718] sm:$0xff]
        %v3752 = vld [vmem:[%s431 + $0x1720] sm:$0xff]
        %v3753 = vld [vmem:[%s431 + $0x1728] sm:$0xff]
        %v3754 = vld [vmem:[%s431 + $0x1730] sm:$0xff]
        %v3755 = vld [vmem:[%s431 + $0x1738] sm:$0xff]
        %v3756 = vld [vmem:[%s431 + $0x1740] sm:$0xff]
        %v3757 = vld [vmem:[%s431 + $0x1748] sm:$0xff]
        %v3758 = vld [vmem:[%s431 + $0x1750] sm:$0xff]
        %v3759 = vld [vmem:[%s431 + $0x1758] sm:$0xff]
        %v3760 = vld [vmem:[%s431 + $0x1760] sm:$0xff]
        %v3761 = vld [vmem:[%s431 + $0x1768] sm:$0xff]
        %v3762 = vld [vmem:[%s431 + $0x1770] sm:$0xff]
        %v3763 = vld [vmem:[%s431 + $0x1778] sm:$0xff]
        %v3764 = vld [vmem:[%s431 + $0x1780] sm:$0xff]
        %v3765 = vld [vmem:[%s431 + $0x1788] sm:$0xff]
        %v3766 = vld [vmem:[%s431 + $0x1790] sm:$0xff]
        %v3767 = vld [vmem:[%s431 + $0x1798] sm:$0xff]
        %v3768 = vld [vmem:[%s431 + $0x17a0] sm:$0xff]
        %v3769 = vld [vmem:[%s431 + $0x17a8] sm:$0xff]
        %v3770 = vld [vmem:[%s431 + $0x17b0] sm:$0xff]
        %v3771 = vld [vmem:[%s431 + $0x17b8] sm:$0xff]
        %v3772 = vld [vmem:[%s431 + $0x17c0] sm:$0xff]
        %v3773 = vld [vmem:[%s431 + $0x17c8] sm:$0xff]
        %v3774 = vld [vmem:[%s431 + $0x17d0] sm:$0xff]
        %v3775 = vld [vmem:[%s431 + $0x17d8] sm:$0xff]
        %v3776 = vld [vmem:[%s431 + $0x17e0] sm:$0xff]
        %v3777 = vld [vmem:[%s431 + $0x17e8] sm:$0xff]
        %v3778 = vld [vmem:[%s431 + $0x17f0] sm:$0xff]
        %v3779 = vld [vmem:[%s431 + $0x17f8] sm:$0xff]
        %v3780 = vld [vmem:[%s440] sm:$0xff]
        %v3781 = vld [vmem:[%s440 + $0x8] sm:$0xf]
        %v3784 = vlaneseq
        %v3785 = vshrl.u32 %v3784, 7
        %v3786 = vsub.s32 0, %v3785
        %v3787 = vrot.slane %v3780, %v3786
        %v3788 = vlaneseq
        %v3789 = vshrl.u32 %v3788, 7
        %v3790 = vsub.s32 1, %v3789
        %v3791 = vrot.slane %v3780, %v3790
        %v3792 = vlaneseq
        %v3793 = vshrl.u32 %v3792, 7
        %v3794 = vsub.s32 2, %v3793
        %v3795 = vrot.slane %v3780, %v3794
        %v3796 = vlaneseq
        %v3797 = vshrl.u32 %v3796, 7
        %v3798 = vsub.s32 3, %v3797
        %v3799 = vrot.slane %v3780, %v3798
        %v3800 = vlaneseq
        %v3801 = vshrl.u32 %v3800, 7
        %v3802 = vsub.s32 4, %v3801
        %v3803 = vrot.slane %v3780, %v3802
        %v3804 = vlaneseq
        %v3805 = vshrl.u32 %v3804, 7
        %v3806 = vsub.s32 5, %v3805
        %v3807 = vrot.slane %v3780, %v3806
        %v3808 = vlaneseq
        %v3809 = vshrl.u32 %v3808, 7
        %v3810 = vsub.s32 6, %v3809
        %v3811 = vrot.slane %v3780, %v3810
        %v3812 = vlaneseq
        %v3813 = vshrl.u32 %v3812, 7
        %v3814 = vsub.s32 7, %v3813
        %v3815 = vrot.slane %v3780, %v3814
        %v3816 = vlaneseq
        %v3817 = vshrl.u32 %v3816, 7
        %v3818 = vsub.s32 0, %v3817
        %v3819 = vrot.slane %v3781, %v3818
        %v3820 = vlaneseq
        %v3821 = vshrl.u32 %v3820, 7
        %v3822 = vsub.s32 1, %v3821
        %v3823 = vrot.slane %v3781, %v3822
        %v3824 = vlaneseq
        %v3825 = vshrl.u32 %v3824, 7
        %v3826 = vsub.s32 2, %v3825
        %v3827 = vrot.slane %v3781, %v3826
        %v3828 = vlaneseq
        %v3829 = vshrl.u32 %v3828, 7
        %v3830 = vsub.s32 3, %v3829
        %v3831 = vrot.slane %v3781, %v3830
        %v4612 = vunpack.c.l.b16 %v3012
        %v4613 = vunpack.c.h.b16 %v3012
        %v4614 = vunpack.c.l.b16 %v3013
        %v4615 = vunpack.c.h.b16 %v3013
        %v4616 = vunpack.c.l.b16 %v3014
        %v4617 = vunpack.c.h.b16 %v3014
        %v4618 = vunpack.c.l.b16 %v3015
        %v4619 = vunpack.c.h.b16 %v3015
        %v4620 = vunpack.c.l.b16 %v3016
        %v4621 = vunpack.c.h.b16 %v3016
        %v4622 = vunpack.c.l.b16 %v3017
        %v4623 = vunpack.c.h.b16 %v3017
        %v4624 = vunpack.c.l.b16 %v3018
        %v4625 = vunpack.c.h.b16 %v3018
        %v4626 = vunpack.c.l.b16 %v3019
        %v4627 = vunpack.c.h.b16 %v3019
        %v4628 = vunpack.c.l.b16 %v3020
        %v4629 = vunpack.c.h.b16 %v3020
        %v4630 = vunpack.c.l.b16 %v3021
        %v4631 = vunpack.c.h.b16 %v3021
        %v4632 = vunpack.c.l.b16 %v3022
        %v4633 = vunpack.c.h.b16 %v3022
        %v4634 = vunpack.c.l.b16 %v3023
        %v4635 = vunpack.c.h.b16 %v3023
        %v4636 = vunpack.c.l.b16 %v3024
        %v4637 = vunpack.c.h.b16 %v3024
        %v4638 = vunpack.c.l.b16 %v3025
        %v4639 = vunpack.c.h.b16 %v3025
        %v4640 = vunpack.c.l.b16 %v3026
        %v4641 = vunpack.c.h.b16 %v3026
        %v4642 = vunpack.c.l.b16 %v3027
        %v4643 = vunpack.c.h.b16 %v3027
        %v4644 = vunpack.c.l.b16 %v3028
        %v4645 = vunpack.c.h.b16 %v3028
        %v4646 = vunpack.c.l.b16 %v3029
        %v4647 = vunpack.c.h.b16 %v3029
        %v4648 = vunpack.c.l.b16 %v3030
        %v4649 = vunpack.c.h.b16 %v3030
        %v4650 = vunpack.c.l.b16 %v3031
        %v4651 = vunpack.c.h.b16 %v3031
        %v4652 = vunpack.c.l.b16 %v3032
        %v4653 = vunpack.c.h.b16 %v3032
        %v4654 = vunpack.c.l.b16 %v3033
        %v4655 = vunpack.c.h.b16 %v3033
        %v4656 = vunpack.c.l.b16 %v3034
        %v4657 = vunpack.c.h.b16 %v3034
        %v4658 = vunpack.c.l.b16 %v3035
        %v4659 = vunpack.c.h.b16 %v3035
        %v4660 = vunpack.c.l.b16 %v3036
        %v4661 = vunpack.c.h.b16 %v3036
        %v4662 = vunpack.c.l.b16 %v3037
        %v4663 = vunpack.c.h.b16 %v3037
        %v4664 = vunpack.c.l.b16 %v3038
        %v4665 = vunpack.c.h.b16 %v3038
        %v4666 = vunpack.c.l.b16 %v3039
        %v4667 = vunpack.c.h.b16 %v3039
        %v4668 = vunpack.c.l.b16 %v3040
        %v4669 = vunpack.c.h.b16 %v3040
        %v4670 = vunpack.c.l.b16 %v3041
        %v4671 = vunpack.c.h.b16 %v3041
        %v4672 = vunpack.c.l.b16 %v3042
        %v4673 = vunpack.c.h.b16 %v3042
        %v4674 = vunpack.c.l.b16 %v3043
        %v4675 = vunpack.c.h.b16 %v3043
        %v4676 = vunpack.c.l.b16 %v3044
        %v4677 = vunpack.c.h.b16 %v3044
        %v4678 = vunpack.c.l.b16 %v3045
        %v4679 = vunpack.c.h.b16 %v3045
        %v4680 = vunpack.c.l.b16 %v3046
        %v4681 = vunpack.c.h.b16 %v3046
        %v4682 = vunpack.c.l.b16 %v3047
        %v4683 = vunpack.c.h.b16 %v3047
        %v4684 = vunpack.c.l.b16 %v3048
        %v4685 = vunpack.c.h.b16 %v3048
        %v4686 = vunpack.c.l.b16 %v3049
        %v4687 = vunpack.c.h.b16 %v3049
        %v4688 = vunpack.c.l.b16 %v3050
        %v4689 = vunpack.c.h.b16 %v3050
        %v4690 = vunpack.c.l.b16 %v3051
        %v4691 = vunpack.c.h.b16 %v3051
        %v4692 = vunpack.c.l.b16 %v3052
        %v4693 = vunpack.c.h.b16 %v3052
        %v4694 = vunpack.c.l.b16 %v3053
        %v4695 = vunpack.c.h.b16 %v3053
        %v4696 = vunpack.c.l.b16 %v3054
        %v4697 = vunpack.c.h.b16 %v3054
        %v4698 = vunpack.c.l.b16 %v3055
        %v4699 = vunpack.c.h.b16 %v3055
        %v4700 = vunpack.c.l.b16 %v3056
        %v4701 = vunpack.c.h.b16 %v3056
        %v4702 = vunpack.c.l.b16 %v3057
        %v4703 = vunpack.c.h.b16 %v3057
        %v4704 = vunpack.c.l.b16 %v3058
        %v4705 = vunpack.c.h.b16 %v3058
        %v4706 = vunpack.c.l.b16 %v3059
        %v4707 = vunpack.c.h.b16 %v3059
        %v4708 = vunpack.c.l.b16 %v3060
        %v4709 = vunpack.c.h.b16 %v3060
        %v4710 = vunpack.c.l.b16 %v3061
        %v4711 = vunpack.c.h.b16 %v3061
        %v4712 = vunpack.c.l.b16 %v3062
        %v4713 = vunpack.c.h.b16 %v3062
        %v4714 = vunpack.c.l.b16 %v3063
        %v4715 = vunpack.c.h.b16 %v3063
        %v4716 = vunpack.c.l.b16 %v3064
        %v4717 = vunpack.c.h.b16 %v3064
        %v4718 = vunpack.c.l.b16 %v3065
        %v4719 = vunpack.c.h.b16 %v3065
        %v4720 = vunpack.c.l.b16 %v3066
        %v4721 = vunpack.c.h.b16 %v3066
        %v4722 = vunpack.c.l.b16 %v3067
        %v4723 = vunpack.c.h.b16 %v3067
        %v4724 = vunpack.c.l.b16 %v3068
        %v4725 = vunpack.c.h.b16 %v3068
        %v4726 = vunpack.c.l.b16 %v3069
        %v4727 = vunpack.c.h.b16 %v3069
        %v4728 = vunpack.c.l.b16 %v3070
        %v4729 = vunpack.c.h.b16 %v3070
        %v4730 = vunpack.c.l.b16 %v3071
        %v4731 = vunpack.c.h.b16 %v3071
        %v4732 = vunpack.c.l.b16 %v3072
        %v4733 = vunpack.c.h.b16 %v3072
        %v4734 = vunpack.c.l.b16 %v3073
        %v4735 = vunpack.c.h.b16 %v3073
        %v4736 = vunpack.c.l.b16 %v3074
        %v4737 = vunpack.c.h.b16 %v3074
        %v4738 = vunpack.c.l.b16 %v3075
        %v4739 = vunpack.c.h.b16 %v3075
        %v4740 = vunpack.c.l.b16 %v3076
        %v4741 = vunpack.c.h.b16 %v3076
        %v4742 = vunpack.c.l.b16 %v3077
        %v4743 = vunpack.c.h.b16 %v3077
        %v4744 = vunpack.c.l.b16 %v3078
        %v4745 = vunpack.c.h.b16 %v3078
        %v4746 = vunpack.c.l.b16 %v3079
        %v4747 = vunpack.c.h.b16 %v3079
        %v4748 = vunpack.c.l.b16 %v3080
        %v4749 = vunpack.c.h.b16 %v3080
        %v4750 = vunpack.c.l.b16 %v3081
        %v4751 = vunpack.c.h.b16 %v3081
        %v4752 = vunpack.c.l.b16 %v3082
        %v4753 = vunpack.c.h.b16 %v3082
        %v4754 = vunpack.c.l.b16 %v3083
        %v4755 = vunpack.c.h.b16 %v3083
        %v4756 = vunpack.c.l.b16 %v3084
        %v4757 = vunpack.c.h.b16 %v3084
        %v4758 = vunpack.c.l.b16 %v3085
        %v4759 = vunpack.c.h.b16 %v3085
        %v4760 = vunpack.c.l.b16 %v3086
        %v4761 = vunpack.c.h.b16 %v3086
        %v4762 = vunpack.c.l.b16 %v3087
        %v4763 = vunpack.c.h.b16 %v3087
        %v4764 = vunpack.c.l.b16 %v3088
        %v4765 = vunpack.c.h.b16 %v3088
        %v4766 = vunpack.c.l.b16 %v3089
        %v4767 = vunpack.c.h.b16 %v3089
        %v4768 = vunpack.c.l.b16 %v3090
        %v4769 = vunpack.c.h.b16 %v3090
        %v4770 = vunpack.c.l.b16 %v3091
        %v4771 = vunpack.c.h.b16 %v3091
        %v4772 = vunpack.c.l.b16 %v3092
        %v4773 = vunpack.c.h.b16 %v3092
        %v4774 = vunpack.c.l.b16 %v3093
        %v4775 = vunpack.c.h.b16 %v3093
        %v4776 = vunpack.c.l.b16 %v3094
        %v4777 = vunpack.c.h.b16 %v3094
        %v4778 = vunpack.c.l.b16 %v3095
        %v4779 = vunpack.c.h.b16 %v3095
        %v4780 = vunpack.c.l.b16 %v3096
        %v4781 = vunpack.c.h.b16 %v3096
        %v4782 = vunpack.c.l.b16 %v3097
        %v4783 = vunpack.c.h.b16 %v3097
        %v4784 = vunpack.c.l.b16 %v3098
        %v4785 = vunpack.c.h.b16 %v3098
        %v4786 = vunpack.c.l.b16 %v3099
        %v4787 = vunpack.c.h.b16 %v3099
        %v4788 = vunpack.c.l.b16 %v3100
        %v4789 = vunpack.c.h.b16 %v3100
        %v4790 = vunpack.c.l.b16 %v3101
        %v4791 = vunpack.c.h.b16 %v3101
        %v4792 = vunpack.c.l.b16 %v3102
        %v4793 = vunpack.c.h.b16 %v3102
        %v4794 = vunpack.c.l.b16 %v3103
        %v4795 = vunpack.c.h.b16 %v3103
        %v4796 = vunpack.c.l.b16 %v3104
        %v4797 = vunpack.c.h.b16 %v3104
        %v4798 = vunpack.c.l.b16 %v3105
        %v4799 = vunpack.c.h.b16 %v3105
        %v4800 = vunpack.c.l.b16 %v3106
        %v4801 = vunpack.c.h.b16 %v3106
        %v4802 = vunpack.c.l.b16 %v3107
        %v4803 = vunpack.c.h.b16 %v3107
        %v4804 = vunpack.c.l.b16 %v3108
        %v4805 = vunpack.c.h.b16 %v3108
        %v4806 = vunpack.c.l.b16 %v3109
        %v4807 = vunpack.c.h.b16 %v3109
        %v4808 = vunpack.c.l.b16 %v3110
        %v4809 = vunpack.c.h.b16 %v3110
        %v4810 = vunpack.c.l.b16 %v3111
        %v4811 = vunpack.c.h.b16 %v3111
        %v4812 = vunpack.c.l.b16 %v3112
        %v4813 = vunpack.c.h.b16 %v3112
        %v4814 = vunpack.c.l.b16 %v3113
        %v4815 = vunpack.c.h.b16 %v3113
        %v4816 = vunpack.c.l.b16 %v3114
        %v4817 = vunpack.c.h.b16 %v3114
        %v4818 = vunpack.c.l.b16 %v3115
        %v4819 = vunpack.c.h.b16 %v3115
        %v4820 = vunpack.c.l.b16 %v3116
        %v4821 = vunpack.c.h.b16 %v3116
        %v4822 = vunpack.c.l.b16 %v3117
        %v4823 = vunpack.c.h.b16 %v3117
        %v4824 = vunpack.c.l.b16 %v3118
        %v4825 = vunpack.c.h.b16 %v3118
        %v4826 = vunpack.c.l.b16 %v3119
        %v4827 = vunpack.c.h.b16 %v3119
        %v4828 = vunpack.c.l.b16 %v3120
        %v4829 = vunpack.c.h.b16 %v3120
        %v4830 = vunpack.c.l.b16 %v3121
        %v4831 = vunpack.c.h.b16 %v3121
        %v4832 = vunpack.c.l.b16 %v3122
        %v4833 = vunpack.c.h.b16 %v3122
        %v4834 = vunpack.c.l.b16 %v3123
        %v4835 = vunpack.c.h.b16 %v3123
        %v4836 = vunpack.c.l.b16 %v3124
        %v4837 = vunpack.c.h.b16 %v3124
        %v4838 = vunpack.c.l.b16 %v3125
        %v4839 = vunpack.c.h.b16 %v3125
        %v4840 = vunpack.c.l.b16 %v3126
        %v4841 = vunpack.c.h.b16 %v3126
        %v4842 = vunpack.c.l.b16 %v3127
        %v4843 = vunpack.c.h.b16 %v3127
        %v4844 = vunpack.c.l.b16 %v3128
        %v4845 = vunpack.c.h.b16 %v3128
        %v4846 = vunpack.c.l.b16 %v3129
        %v4847 = vunpack.c.h.b16 %v3129
        %v4848 = vunpack.c.l.b16 %v3130
        %v4849 = vunpack.c.h.b16 %v3130
        %v4850 = vunpack.c.l.b16 %v3131
        %v4851 = vunpack.c.h.b16 %v3131
        %v4852 = vunpack.c.l.b16 %v3132
        %v4853 = vunpack.c.h.b16 %v3132
        %v4854 = vunpack.c.l.b16 %v3133
        %v4855 = vunpack.c.h.b16 %v3133
        %v4856 = vunpack.c.l.b16 %v3134
        %v4857 = vunpack.c.h.b16 %v3134
        %v4858 = vunpack.c.l.b16 %v3135
        %v4859 = vunpack.c.h.b16 %v3135
        %v4860 = vunpack.c.l.b16 %v3136
        %v4861 = vunpack.c.h.b16 %v3136
        %v4862 = vunpack.c.l.b16 %v3137
        %v4863 = vunpack.c.h.b16 %v3137
        %v4864 = vunpack.c.l.b16 %v3138
        %v4865 = vunpack.c.h.b16 %v3138
        %v4866 = vunpack.c.l.b16 %v3139
        %v4867 = vunpack.c.h.b16 %v3139
        %v4868 = vunpack.c.l.b16 %v3140
        %v4869 = vunpack.c.h.b16 %v3140
        %v4870 = vunpack.c.l.b16 %v3141
        %v4871 = vunpack.c.h.b16 %v3141
        %v4872 = vunpack.c.l.b16 %v3142
        %v4873 = vunpack.c.h.b16 %v3142
        %v4874 = vunpack.c.l.b16 %v3143
        %v4875 = vunpack.c.h.b16 %v3143
        %v4876 = vunpack.c.l.b16 %v3144
        %v4877 = vunpack.c.h.b16 %v3144
        %v4878 = vunpack.c.l.b16 %v3145
        %v4879 = vunpack.c.h.b16 %v3145
        %v4880 = vunpack.c.l.b16 %v3146
        %v4881 = vunpack.c.h.b16 %v3146
        %v4882 = vunpack.c.l.b16 %v3147
        %v4883 = vunpack.c.h.b16 %v3147
        %v4884 = vunpack.c.l.b16 %v3148
        %v4885 = vunpack.c.h.b16 %v3148
        %v4886 = vunpack.c.l.b16 %v3149
        %v4887 = vunpack.c.h.b16 %v3149
        %v4888 = vunpack.c.l.b16 %v3150
        %v4889 = vunpack.c.h.b16 %v3150
        %v4890 = vunpack.c.l.b16 %v3151
        %v4891 = vunpack.c.h.b16 %v3151
        %v4892 = vunpack.c.l.b16 %v3152
        %v4893 = vunpack.c.h.b16 %v3152
        %v4894 = vunpack.c.l.b16 %v3153
        %v4895 = vunpack.c.h.b16 %v3153
        %v4896 = vunpack.c.l.b16 %v3154
        %v4897 = vunpack.c.h.b16 %v3154
        %v4898 = vunpack.c.l.b16 %v3155
        %v4899 = vunpack.c.h.b16 %v3155
        %v4900 = vunpack.c.l.b16 %v3156
        %v4901 = vunpack.c.h.b16 %v3156
        %v4902 = vunpack.c.l.b16 %v3157
        %v4903 = vunpack.c.h.b16 %v3157
        %v4904 = vunpack.c.l.b16 %v3158
        %v4905 = vunpack.c.h.b16 %v3158
        %v4906 = vunpack.c.l.b16 %v3159
        %v4907 = vunpack.c.h.b16 %v3159
        %v4908 = vunpack.c.l.b16 %v3160
        %v4909 = vunpack.c.h.b16 %v3160
        %v4910 = vunpack.c.l.b16 %v3161
        %v4911 = vunpack.c.h.b16 %v3161
        %v4912 = vunpack.c.l.b16 %v3162
        %v4913 = vunpack.c.h.b16 %v3162
        %v4914 = vunpack.c.l.b16 %v3163
        %v4915 = vunpack.c.h.b16 %v3163
        %v4916 = vunpack.c.l.b16 %v3164
        %v4917 = vunpack.c.h.b16 %v3164
        %v4918 = vunpack.c.l.b16 %v3165
        %v4919 = vunpack.c.h.b16 %v3165
        %v4920 = vunpack.c.l.b16 %v3166
        %v4921 = vunpack.c.h.b16 %v3166
        %v4922 = vunpack.c.l.b16 %v3167
        %v4923 = vunpack.c.h.b16 %v3167
        %v4924 = vunpack.c.l.b16 %v3168
        %v4925 = vunpack.c.h.b16 %v3168
        %v4926 = vunpack.c.l.b16 %v3169
        %v4927 = vunpack.c.h.b16 %v3169
        %v4928 = vunpack.c.l.b16 %v3170
        %v4929 = vunpack.c.h.b16 %v3170
        %v4930 = vunpack.c.l.b16 %v3171
        %v4931 = vunpack.c.h.b16 %v3171
        %v4932 = vunpack.c.l.b16 %v3172
        %v4933 = vunpack.c.h.b16 %v3172
        %v4934 = vunpack.c.l.b16 %v3173
        %v4935 = vunpack.c.h.b16 %v3173
        %v4936 = vunpack.c.l.b16 %v3174
        %v4937 = vunpack.c.h.b16 %v3174
        %v4938 = vunpack.c.l.b16 %v3175
        %v4939 = vunpack.c.h.b16 %v3175
        %v4940 = vunpack.c.l.b16 %v3176
        %v4941 = vunpack.c.h.b16 %v3176
        %v4942 = vunpack.c.l.b16 %v3177
        %v4943 = vunpack.c.h.b16 %v3177
        %v4944 = vunpack.c.l.b16 %v3178
        %v4945 = vunpack.c.h.b16 %v3178
        %v4946 = vunpack.c.l.b16 %v3179
        %v4947 = vunpack.c.h.b16 %v3179
        %v4948 = vunpack.c.l.b16 %v3180
        %v4949 = vunpack.c.h.b16 %v3180
        %v4950 = vunpack.c.l.b16 %v3181
        %v4951 = vunpack.c.h.b16 %v3181
        %v4952 = vunpack.c.l.b16 %v3182
        %v4953 = vunpack.c.h.b16 %v3182
        %v4954 = vunpack.c.l.b16 %v3183
        %v4955 = vunpack.c.h.b16 %v3183
        %v4956 = vunpack.c.l.b16 %v3184
        %v4957 = vunpack.c.h.b16 %v3184
        %v4958 = vunpack.c.l.b16 %v3185
        %v4959 = vunpack.c.h.b16 %v3185
        %v4960 = vunpack.c.l.b16 %v3186
        %v4961 = vunpack.c.h.b16 %v3186
        %v4962 = vunpack.c.l.b16 %v3187
        %v4963 = vunpack.c.h.b16 %v3187
        %v4964 = vunpack.c.l.b16 %v3188
        %v4965 = vunpack.c.h.b16 %v3188
        %v4966 = vunpack.c.l.b16 %v3189
        %v4967 = vunpack.c.h.b16 %v3189
        %v4968 = vunpack.c.l.b16 %v3190
        %v4969 = vunpack.c.h.b16 %v3190
        %v4970 = vunpack.c.l.b16 %v3191
        %v4971 = vunpack.c.h.b16 %v3191
        %v4972 = vunpack.c.l.b16 %v3192
        %v4973 = vunpack.c.h.b16 %v3192
        %v4974 = vunpack.c.l.b16 %v3193
        %v4975 = vunpack.c.h.b16 %v3193
        %v4976 = vunpack.c.l.b16 %v3194
        %v4977 = vunpack.c.h.b16 %v3194
        %v4978 = vunpack.c.l.b16 %v3195
        %v4979 = vunpack.c.h.b16 %v3195
        %v4980 = vunpack.c.l.b16 %v3196
        %v4981 = vunpack.c.h.b16 %v3196
        %v4982 = vunpack.c.l.b16 %v3197
        %v4983 = vunpack.c.h.b16 %v3197
        %v4984 = vunpack.c.l.b16 %v3198
        %v4985 = vunpack.c.h.b16 %v3198
        %v4986 = vunpack.c.l.b16 %v3199
        %v4987 = vunpack.c.h.b16 %v3199
        %v4988 = vunpack.c.l.b16 %v3200
        %v4989 = vunpack.c.h.b16 %v3200
        %v4990 = vunpack.c.l.b16 %v3201
        %v4991 = vunpack.c.h.b16 %v3201
        %v4992 = vunpack.c.l.b16 %v3202
        %v4993 = vunpack.c.h.b16 %v3202
        %v4994 = vunpack.c.l.b16 %v3203
        %v4995 = vunpack.c.h.b16 %v3203
        %v4996 = vunpack.c.l.b16 %v3204
        %v4997 = vunpack.c.h.b16 %v3204
        %v4998 = vunpack.c.l.b16 %v3205
        %v4999 = vunpack.c.h.b16 %v3205
        %v5000 = vunpack.c.l.b16 %v3206
        %v5001 = vunpack.c.h.b16 %v3206
        %v5002 = vunpack.c.l.b16 %v3207
        %v5003 = vunpack.c.h.b16 %v3207
        %v5004 = vunpack.c.l.b16 %v3208
        %v5005 = vunpack.c.h.b16 %v3208
        %v5006 = vunpack.c.l.b16 %v3209
        %v5007 = vunpack.c.h.b16 %v3209
        %v5008 = vunpack.c.l.b16 %v3210
        %v5009 = vunpack.c.h.b16 %v3210
        %v5010 = vunpack.c.l.b16 %v3211
        %v5011 = vunpack.c.h.b16 %v3211
        %v5012 = vunpack.c.l.b16 %v3212
        %v5013 = vunpack.c.h.b16 %v3212
        %v5014 = vunpack.c.l.b16 %v3213
        %v5015 = vunpack.c.h.b16 %v3213
        %v5016 = vunpack.c.l.b16 %v3214
        %v5017 = vunpack.c.h.b16 %v3214
        %v5018 = vunpack.c.l.b16 %v3215
        %v5019 = vunpack.c.h.b16 %v3215
        %v5020 = vunpack.c.l.b16 %v3216
        %v5021 = vunpack.c.h.b16 %v3216
        %v5022 = vunpack.c.l.b16 %v3217
        %v5023 = vunpack.c.h.b16 %v3217
        %v5024 = vunpack.c.l.b16 %v3218
        %v5025 = vunpack.c.h.b16 %v3218
        %v5026 = vunpack.c.l.b16 %v3219
        %v5027 = vunpack.c.h.b16 %v3219
        %v5028 = vunpack.c.l.b16 %v3220
        %v5029 = vunpack.c.h.b16 %v3220
        %v5030 = vunpack.c.l.b16 %v3221
        %v5031 = vunpack.c.h.b16 %v3221
        %v5032 = vunpack.c.l.b16 %v3222
        %v5033 = vunpack.c.h.b16 %v3222
        %v5034 = vunpack.c.l.b16 %v3223
        %v5035 = vunpack.c.h.b16 %v3223
        %v5036 = vunpack.c.l.b16 %v3224
        %v5037 = vunpack.c.h.b16 %v3224
        %v5038 = vunpack.c.l.b16 %v3225
        %v5039 = vunpack.c.h.b16 %v3225
        %v5040 = vunpack.c.l.b16 %v3226
        %v5041 = vunpack.c.h.b16 %v3226
        %v5042 = vunpack.c.l.b16 %v3227
        %v5043 = vunpack.c.h.b16 %v3227
        %v5044 = vunpack.c.l.b16 %v3228
        %v5045 = vunpack.c.h.b16 %v3228
        %v5046 = vunpack.c.l.b16 %v3229
        %v5047 = vunpack.c.h.b16 %v3229
        %v5048 = vunpack.c.l.b16 %v3230
        %v5049 = vunpack.c.h.b16 %v3230
        %v5050 = vunpack.c.l.b16 %v3231
        %v5051 = vunpack.c.h.b16 %v3231
        %v5052 = vunpack.c.l.b16 %v3232
        %v5053 = vunpack.c.h.b16 %v3232
        %v5054 = vunpack.c.l.b16 %v3233
        %v5055 = vunpack.c.h.b16 %v3233
        %v5056 = vunpack.c.l.b16 %v3234
        %v5057 = vunpack.c.h.b16 %v3234
        %v5058 = vunpack.c.l.b16 %v3235
        %v5059 = vunpack.c.h.b16 %v3235
        %v5060 = vunpack.c.l.b16 %v3236
        %v5061 = vunpack.c.h.b16 %v3236
        %v5062 = vunpack.c.l.b16 %v3237
        %v5063 = vunpack.c.h.b16 %v3237
        %v5064 = vunpack.c.l.b16 %v3238
        %v5065 = vunpack.c.h.b16 %v3238
        %v5066 = vunpack.c.l.b16 %v3239
        %v5067 = vunpack.c.h.b16 %v3239
        %v5068 = vunpack.c.l.b16 %v3240
        %v5069 = vunpack.c.h.b16 %v3240
        %v5070 = vunpack.c.l.b16 %v3241
        %v5071 = vunpack.c.h.b16 %v3241
        %v5072 = vunpack.c.l.b16 %v3242
        %v5073 = vunpack.c.h.b16 %v3242
        %v5074 = vunpack.c.l.b16 %v3243
        %v5075 = vunpack.c.h.b16 %v3243
        %v5076 = vunpack.c.l.b16 %v3244
        %v5077 = vunpack.c.h.b16 %v3244
        %v5078 = vunpack.c.l.b16 %v3245
        %v5079 = vunpack.c.h.b16 %v3245
        %v5080 = vunpack.c.l.b16 %v3246
        %v5081 = vunpack.c.h.b16 %v3246
        %v5082 = vunpack.c.l.b16 %v3247
        %v5083 = vunpack.c.h.b16 %v3247
        %v5084 = vunpack.c.l.b16 %v3248
        %v5085 = vunpack.c.h.b16 %v3248
        %v5086 = vunpack.c.l.b16 %v3249
        %v5087 = vunpack.c.h.b16 %v3249
        %v5088 = vunpack.c.l.b16 %v3250
        %v5089 = vunpack.c.h.b16 %v3250
        %v5090 = vunpack.c.l.b16 %v3251
        %v5091 = vunpack.c.h.b16 %v3251
        %v5092 = vunpack.c.l.b16 %v3252
        %v5093 = vunpack.c.h.b16 %v3252
        %v5094 = vunpack.c.l.b16 %v3253
        %v5095 = vunpack.c.h.b16 %v3253
        %v5096 = vunpack.c.l.b16 %v3254
        %v5097 = vunpack.c.h.b16 %v3254
        %v5098 = vunpack.c.l.b16 %v3255
        %v5099 = vunpack.c.h.b16 %v3255
        %v5100 = vunpack.c.l.b16 %v3256
        %v5101 = vunpack.c.h.b16 %v3256
        %v5102 = vunpack.c.l.b16 %v3257
        %v5103 = vunpack.c.h.b16 %v3257
        %v5104 = vunpack.c.l.b16 %v3258
        %v5105 = vunpack.c.h.b16 %v3258
        %v5106 = vunpack.c.l.b16 %v3259
        %v5107 = vunpack.c.h.b16 %v3259
        %v5108 = vunpack.c.l.b16 %v3260
        %v5109 = vunpack.c.h.b16 %v3260
        %v5110 = vunpack.c.l.b16 %v3261
        %v5111 = vunpack.c.h.b16 %v3261
        %v5112 = vunpack.c.l.b16 %v3262
        %v5113 = vunpack.c.h.b16 %v3262
        %v5114 = vunpack.c.l.b16 %v3263
        %v5115 = vunpack.c.h.b16 %v3263
        %v5116 = vunpack.c.l.b16 %v3264
        %v5117 = vunpack.c.h.b16 %v3264
        %v5118 = vunpack.c.l.b16 %v3265
        %v5119 = vunpack.c.h.b16 %v3265
        %v5120 = vunpack.c.l.b16 %v3266
        %v5121 = vunpack.c.h.b16 %v3266
        %v5122 = vunpack.c.l.b16 %v3267
        %v5123 = vunpack.c.h.b16 %v3267
        %v5124 = vunpack.c.l.b16 %v3268
        %v5125 = vunpack.c.h.b16 %v3268
        %v5126 = vunpack.c.l.b16 %v3269
        %v5127 = vunpack.c.h.b16 %v3269
        %v5128 = vunpack.c.l.b16 %v3270
        %v5129 = vunpack.c.h.b16 %v3270
        %v5130 = vunpack.c.l.b16 %v3271
        %v5131 = vunpack.c.h.b16 %v3271
        %v5132 = vunpack.c.l.b16 %v3272
        %v5133 = vunpack.c.h.b16 %v3272
        %v5134 = vunpack.c.l.b16 %v3273
        %v5135 = vunpack.c.h.b16 %v3273
        %v5136 = vunpack.c.l.b16 %v3274
        %v5137 = vunpack.c.h.b16 %v3274
        %v5138 = vunpack.c.l.b16 %v3275
        %v5139 = vunpack.c.h.b16 %v3275
        %v5140 = vunpack.c.l.b16 %v3276
        %v5141 = vunpack.c.h.b16 %v3276
        %v5142 = vunpack.c.l.b16 %v3277
        %v5143 = vunpack.c.h.b16 %v3277
        %v5144 = vunpack.c.l.b16 %v3278
        %v5145 = vunpack.c.h.b16 %v3278
        %v5146 = vunpack.c.l.b16 %v3279
        %v5147 = vunpack.c.h.b16 %v3279
        %v5148 = vunpack.c.l.b16 %v3280
        %v5149 = vunpack.c.h.b16 %v3280
        %v5150 = vunpack.c.l.b16 %v3281
        %v5151 = vunpack.c.h.b16 %v3281
        %v5152 = vunpack.c.l.b16 %v3282
        %v5153 = vunpack.c.h.b16 %v3282
        %v5154 = vunpack.c.l.b16 %v3283
        %v5155 = vunpack.c.h.b16 %v3283
        %v5156 = vunpack.c.l.b16 %v3284
        %v5157 = vunpack.c.h.b16 %v3284
        %v5158 = vunpack.c.l.b16 %v3285
        %v5159 = vunpack.c.h.b16 %v3285
        %v5160 = vunpack.c.l.b16 %v3286
        %v5161 = vunpack.c.h.b16 %v3286
        %v5162 = vunpack.c.l.b16 %v3287
        %v5163 = vunpack.c.h.b16 %v3287
        %v5164 = vunpack.c.l.b16 %v3288
        %v5165 = vunpack.c.h.b16 %v3288
        %v5166 = vunpack.c.l.b16 %v3289
        %v5167 = vunpack.c.h.b16 %v3289
        %v5168 = vunpack.c.l.b16 %v3290
        %v5169 = vunpack.c.h.b16 %v3290
        %v5170 = vunpack.c.l.b16 %v3291
        %v5171 = vunpack.c.h.b16 %v3291
        %v5172 = vunpack.c.l.b16 %v3292
        %v5173 = vunpack.c.h.b16 %v3292
        %v5174 = vunpack.c.l.b16 %v3293
        %v5175 = vunpack.c.h.b16 %v3293
        %v5176 = vunpack.c.l.b16 %v3294
        %v5177 = vunpack.c.h.b16 %v3294
        %v5178 = vunpack.c.l.b16 %v3295
        %v5179 = vunpack.c.h.b16 %v3295
        %v5180 = vunpack.c.l.b16 %v3296
        %v5181 = vunpack.c.h.b16 %v3296
        %v5182 = vunpack.c.l.b16 %v3297
        %v5183 = vunpack.c.h.b16 %v3297
        %v5184 = vunpack.c.l.b16 %v3298
        %v5185 = vunpack.c.h.b16 %v3298
        %v5186 = vunpack.c.l.b16 %v3299
        %v5187 = vunpack.c.h.b16 %v3299
        %v5188 = vunpack.c.l.b16 %v3300
        %v5189 = vunpack.c.h.b16 %v3300
        %v5190 = vunpack.c.l.b16 %v3301
        %v5191 = vunpack.c.h.b16 %v3301
        %v5192 = vunpack.c.l.b16 %v3302
        %v5193 = vunpack.c.h.b16 %v3302
        %v5194 = vunpack.c.l.b16 %v3303
        %v5195 = vunpack.c.h.b16 %v3303
        %v5196 = vunpack.c.l.b16 %v3304
        %v5197 = vunpack.c.h.b16 %v3304
        %v5198 = vunpack.c.l.b16 %v3305
        %v5199 = vunpack.c.h.b16 %v3305
        %v5200 = vunpack.c.l.b16 %v3306
        %v5201 = vunpack.c.h.b16 %v3306
        %v5202 = vunpack.c.l.b16 %v3307
        %v5203 = vunpack.c.h.b16 %v3307
        %v5204 = vunpack.c.l.b16 %v3308
        %v5205 = vunpack.c.h.b16 %v3308
        %v5206 = vunpack.c.l.b16 %v3309
        %v5207 = vunpack.c.h.b16 %v3309
        %v5208 = vunpack.c.l.b16 %v3310
        %v5209 = vunpack.c.h.b16 %v3310
        %v5210 = vunpack.c.l.b16 %v3311
        %v5211 = vunpack.c.h.b16 %v3311
        %v5212 = vunpack.c.l.b16 %v3312
        %v5213 = vunpack.c.h.b16 %v3312
        %v5214 = vunpack.c.l.b16 %v3313
        %v5215 = vunpack.c.h.b16 %v3313
        %v5216 = vunpack.c.l.b16 %v3314
        %v5217 = vunpack.c.h.b16 %v3314
        %v5218 = vunpack.c.l.b16 %v3315
        %v5219 = vunpack.c.h.b16 %v3315
        %v5220 = vunpack.c.l.b16 %v3316
        %v5221 = vunpack.c.h.b16 %v3316
        %v5222 = vunpack.c.l.b16 %v3317
        %v5223 = vunpack.c.h.b16 %v3317
        %v5224 = vunpack.c.l.b16 %v3318
        %v5225 = vunpack.c.h.b16 %v3318
        %v5226 = vunpack.c.l.b16 %v3319
        %v5227 = vunpack.c.h.b16 %v3319
        %v5228 = vunpack.c.l.b16 %v3320
        %v5229 = vunpack.c.h.b16 %v3320
        %v5230 = vunpack.c.l.b16 %v3321
        %v5231 = vunpack.c.h.b16 %v3321
        %v5232 = vunpack.c.l.b16 %v3322
        %v5233 = vunpack.c.h.b16 %v3322
        %v5234 = vunpack.c.l.b16 %v3323
        %v5235 = vunpack.c.h.b16 %v3323
        %v5236 = vunpack.c.l.b16 %v3324
        %v5237 = vunpack.c.h.b16 %v3324
        %v5238 = vunpack.c.l.b16 %v3325
        %v5239 = vunpack.c.h.b16 %v3325
        %v5240 = vunpack.c.l.b16 %v3326
        %v5241 = vunpack.c.h.b16 %v3326
        %v5242 = vunpack.c.l.b16 %v3327
        %v5243 = vunpack.c.h.b16 %v3327
        %v5244 = vunpack.c.l.b16 %v3328
        %v5245 = vunpack.c.h.b16 %v3328
        %v5246 = vunpack.c.l.b16 %v3329
        %v5247 = vunpack.c.h.b16 %v3329
        %v5248 = vunpack.c.l.b16 %v3330
        %v5249 = vunpack.c.h.b16 %v3330
        %v5250 = vunpack.c.l.b16 %v3331
        %v5251 = vunpack.c.h.b16 %v3331
        %v5252 = vunpack.c.l.b16 %v3332
        %v5253 = vunpack.c.h.b16 %v3332
        %v5254 = vunpack.c.l.b16 %v3333
        %v5255 = vunpack.c.h.b16 %v3333
        %v5256 = vunpack.c.l.b16 %v3334
        %v5257 = vunpack.c.h.b16 %v3334
        %v5258 = vunpack.c.l.b16 %v3335
        %v5259 = vunpack.c.h.b16 %v3335
        %v5260 = vunpack.c.l.b16 %v3336
        %v5261 = vunpack.c.h.b16 %v3336
        %v5262 = vunpack.c.l.b16 %v3337
        %v5263 = vunpack.c.h.b16 %v3337
        %v5264 = vunpack.c.l.b16 %v3338
        %v5265 = vunpack.c.h.b16 %v3338
        %v5266 = vunpack.c.l.b16 %v3339
        %v5267 = vunpack.c.h.b16 %v3339
        %v5268 = vunpack.c.l.b16 %v3340
        %v5269 = vunpack.c.h.b16 %v3340
        %v5270 = vunpack.c.l.b16 %v3341
        %v5271 = vunpack.c.h.b16 %v3341
        %v5272 = vunpack.c.l.b16 %v3342
        %v5273 = vunpack.c.h.b16 %v3342
        %v5274 = vunpack.c.l.b16 %v3343
        %v5275 = vunpack.c.h.b16 %v3343
        %v5276 = vunpack.c.l.b16 %v3344
        %v5277 = vunpack.c.h.b16 %v3344
        %v5278 = vunpack.c.l.b16 %v3345
        %v5279 = vunpack.c.h.b16 %v3345
        %v5280 = vunpack.c.l.b16 %v3346
        %v5281 = vunpack.c.h.b16 %v3346
        %v5282 = vunpack.c.l.b16 %v3347
        %v5283 = vunpack.c.h.b16 %v3347
        %v5284 = vunpack.c.l.b16 %v3348
        %v5285 = vunpack.c.h.b16 %v3348
        %v5286 = vunpack.c.l.b16 %v3349
        %v5287 = vunpack.c.h.b16 %v3349
        %v5288 = vunpack.c.l.b16 %v3350
        %v5289 = vunpack.c.h.b16 %v3350
        %v5290 = vunpack.c.l.b16 %v3351
        %v5291 = vunpack.c.h.b16 %v3351
        %v5292 = vunpack.c.l.b16 %v3352
        %v5293 = vunpack.c.h.b16 %v3352
        %v5294 = vunpack.c.l.b16 %v3353
        %v5295 = vunpack.c.h.b16 %v3353
        %v5296 = vunpack.c.l.b16 %v3354
        %v5297 = vunpack.c.h.b16 %v3354
        %v5298 = vunpack.c.l.b16 %v3355
        %v5299 = vunpack.c.h.b16 %v3355
        %v5300 = vunpack.c.l.b16 %v3356
        %v5301 = vunpack.c.h.b16 %v3356
        %v5302 = vunpack.c.l.b16 %v3357
        %v5303 = vunpack.c.h.b16 %v3357
        %v5304 = vunpack.c.l.b16 %v3358
        %v5305 = vunpack.c.h.b16 %v3358
        %v5306 = vunpack.c.l.b16 %v3359
        %v5307 = vunpack.c.h.b16 %v3359
        %v5308 = vunpack.c.l.b16 %v3360
        %v5309 = vunpack.c.h.b16 %v3360
        %v5310 = vunpack.c.l.b16 %v3361
        %v5311 = vunpack.c.h.b16 %v3361
        %v5312 = vunpack.c.l.b16 %v3362
        %v5313 = vunpack.c.h.b16 %v3362
        %v5314 = vunpack.c.l.b16 %v3363
        %v5315 = vunpack.c.h.b16 %v3363
        %v5316 = vunpack.c.l.b16 %v3364
        %v5317 = vunpack.c.h.b16 %v3364
        %v5318 = vunpack.c.l.b16 %v3365
        %v5319 = vunpack.c.h.b16 %v3365
        %v5320 = vunpack.c.l.b16 %v3366
        %v5321 = vunpack.c.h.b16 %v3366
        %v5322 = vunpack.c.l.b16 %v3367
        %v5323 = vunpack.c.h.b16 %v3367
        %v5324 = vunpack.c.l.b16 %v3368
        %v5325 = vunpack.c.h.b16 %v3368
        %v5326 = vunpack.c.l.b16 %v3369
        %v5327 = vunpack.c.h.b16 %v3369
        %v5328 = vunpack.c.l.b16 %v3370
        %v5329 = vunpack.c.h.b16 %v3370
        %v5330 = vunpack.c.l.b16 %v3371
        %v5331 = vunpack.c.h.b16 %v3371
        %v5332 = vunpack.c.l.b16 %v3372
        %v5333 = vunpack.c.h.b16 %v3372
        %v5334 = vunpack.c.l.b16 %v3373
        %v5335 = vunpack.c.h.b16 %v3373
        %v5336 = vunpack.c.l.b16 %v3374
        %v5337 = vunpack.c.h.b16 %v3374
        %v5338 = vunpack.c.l.b16 %v3375
        %v5339 = vunpack.c.h.b16 %v3375
        %v5340 = vunpack.c.l.b16 %v3376
        %v5341 = vunpack.c.h.b16 %v3376
        %v5342 = vunpack.c.l.b16 %v3377
        %v5343 = vunpack.c.h.b16 %v3377
        %v5344 = vunpack.c.l.b16 %v3378
        %v5345 = vunpack.c.h.b16 %v3378
        %v5346 = vunpack.c.l.b16 %v3379
        %v5347 = vunpack.c.h.b16 %v3379
        %v5348 = vunpack.c.l.b16 %v3380
        %v5349 = vunpack.c.h.b16 %v3380
        %v5350 = vunpack.c.l.b16 %v3381
        %v5351 = vunpack.c.h.b16 %v3381
        %v5352 = vunpack.c.l.b16 %v3382
        %v5353 = vunpack.c.h.b16 %v3382
        %v5354 = vunpack.c.l.b16 %v3383
        %v5355 = vunpack.c.h.b16 %v3383
        %v5356 = vunpack.c.l.b16 %v3384
        %v5357 = vunpack.c.h.b16 %v3384
        %v5358 = vunpack.c.l.b16 %v3385
        %v5359 = vunpack.c.h.b16 %v3385
        %v5360 = vunpack.c.l.b16 %v3386
        %v5361 = vunpack.c.h.b16 %v3386
        %v5362 = vunpack.c.l.b16 %v3387
        %v5363 = vunpack.c.h.b16 %v3387
        %v5364 = vunpack.c.l.b16 %v3388
        %v5365 = vunpack.c.h.b16 %v3388
        %v5366 = vunpack.c.l.b16 %v3389
        %v5367 = vunpack.c.h.b16 %v3389
        %v5368 = vunpack.c.l.b16 %v3390
        %v5369 = vunpack.c.h.b16 %v3390
        %v5370 = vunpack.c.l.b16 %v3391
        %v5371 = vunpack.c.h.b16 %v3391
        %v5372 = vunpack.c.l.b16 %v3392
        %v5373 = vunpack.c.h.b16 %v3392
        %v5374 = vunpack.c.l.b16 %v3393
        %v5375 = vunpack.c.h.b16 %v3393
        %v5376 = vunpack.c.l.b16 %v3394
        %v5377 = vunpack.c.h.b16 %v3394
        %v5378 = vunpack.c.l.b16 %v3395
        %v5379 = vunpack.c.h.b16 %v3395
        %v5380 = vunpack.c.l.b16 %v3396
        %v5381 = vunpack.c.h.b16 %v3396
        %v5382 = vunpack.c.l.b16 %v3397
        %v5383 = vunpack.c.h.b16 %v3397
        %v5384 = vunpack.c.l.b16 %v3398
        %v5385 = vunpack.c.h.b16 %v3398
        %v5386 = vunpack.c.l.b16 %v3399
        %v5387 = vunpack.c.h.b16 %v3399
        %v5388 = vunpack.c.l.b16 %v3400
        %v5389 = vunpack.c.h.b16 %v3400
        %v5390 = vunpack.c.l.b16 %v3401
        %v5391 = vunpack.c.h.b16 %v3401
        %v5392 = vunpack.c.l.b16 %v3402
        %v5393 = vunpack.c.h.b16 %v3402
        %v5394 = vunpack.c.l.b16 %v3403
        %v5395 = vunpack.c.h.b16 %v3403
        %v5396 = vunpack.c.l.b16 %v3404
        %v5397 = vunpack.c.h.b16 %v3404
        %v5398 = vunpack.c.l.b16 %v3405
        %v5399 = vunpack.c.h.b16 %v3405
        %v5400 = vunpack.c.l.b16 %v3406
        %v5401 = vunpack.c.h.b16 %v3406
        %v5402 = vunpack.c.l.b16 %v3407
        %v5403 = vunpack.c.h.b16 %v3407
        %v5404 = vunpack.c.l.b16 %v3408
        %v5405 = vunpack.c.h.b16 %v3408
        %v5406 = vunpack.c.l.b16 %v3409
        %v5407 = vunpack.c.h.b16 %v3409
        %v5408 = vunpack.c.l.b16 %v3410
        %v5409 = vunpack.c.h.b16 %v3410
        %v5410 = vunpack.c.l.b16 %v3411
        %v5411 = vunpack.c.h.b16 %v3411
        %v5412 = vunpack.c.l.b16 %v3412
        %v5413 = vunpack.c.h.b16 %v3412
        %v5414 = vunpack.c.l.b16 %v3413
        %v5415 = vunpack.c.h.b16 %v3413
        %v5416 = vunpack.c.l.b16 %v3414
        %v5417 = vunpack.c.h.b16 %v3414
        %v5418 = vunpack.c.l.b16 %v3415
        %v5419 = vunpack.c.h.b16 %v3415
        %v5420 = vunpack.c.l.b16 %v3416
        %v5421 = vunpack.c.h.b16 %v3416
        %v5422 = vunpack.c.l.b16 %v3417
        %v5423 = vunpack.c.h.b16 %v3417
        %v5424 = vunpack.c.l.b16 %v3418
        %v5425 = vunpack.c.h.b16 %v3418
        %v5426 = vunpack.c.l.b16 %v3419
        %v5427 = vunpack.c.h.b16 %v3419
        %v5428 = vunpack.c.l.b16 %v3420
        %v5429 = vunpack.c.h.b16 %v3420
        %v5430 = vunpack.c.l.b16 %v3421
        %v5431 = vunpack.c.h.b16 %v3421
        %v5432 = vunpack.c.l.b16 %v3422
        %v5433 = vunpack.c.h.b16 %v3422
        %v5434 = vunpack.c.l.b16 %v3423
        %v5435 = vunpack.c.h.b16 %v3423
        %v5436 = vunpack.c.l.b16 %v3424
        %v5437 = vunpack.c.h.b16 %v3424
        %v5438 = vunpack.c.l.b16 %v3425
        %v5439 = vunpack.c.h.b16 %v3425
        %v5440 = vunpack.c.l.b16 %v3426
        %v5441 = vunpack.c.h.b16 %v3426
        %v5442 = vunpack.c.l.b16 %v3427
        %v5443 = vunpack.c.h.b16 %v3427
        %v5444 = vunpack.c.l.b16 %v3428
        %v5445 = vunpack.c.h.b16 %v3428
        %v5446 = vunpack.c.l.b16 %v3429
        %v5447 = vunpack.c.h.b16 %v3429
        %v5448 = vunpack.c.l.b16 %v3430
        %v5449 = vunpack.c.h.b16 %v3430
        %v5450 = vunpack.c.l.b16 %v3431
        %v5451 = vunpack.c.h.b16 %v3431
        %v5452 = vunpack.c.l.b16 %v3432
        %v5453 = vunpack.c.h.b16 %v3432
        %v5454 = vunpack.c.l.b16 %v3433
        %v5455 = vunpack.c.h.b16 %v3433
        %v5456 = vunpack.c.l.b16 %v3434
        %v5457 = vunpack.c.h.b16 %v3434
        %v5458 = vunpack.c.l.b16 %v3435
        %v5459 = vunpack.c.h.b16 %v3435
        %v5460 = vunpack.c.l.b16 %v3436
        %v5461 = vunpack.c.h.b16 %v3436
        %v5462 = vunpack.c.l.b16 %v3437
        %v5463 = vunpack.c.h.b16 %v3437
        %v5464 = vunpack.c.l.b16 %v3438
        %v5465 = vunpack.c.h.b16 %v3438
        %v5466 = vunpack.c.l.b16 %v3439
        %v5467 = vunpack.c.h.b16 %v3439
        %v5468 = vunpack.c.l.b16 %v3440
        %v5469 = vunpack.c.h.b16 %v3440
        %v5470 = vunpack.c.l.b16 %v3441
        %v5471 = vunpack.c.h.b16 %v3441
        %v5472 = vunpack.c.l.b16 %v3442
        %v5473 = vunpack.c.h.b16 %v3442
        %v5474 = vunpack.c.l.b16 %v3443
        %v5475 = vunpack.c.h.b16 %v3443
        %v5476 = vunpack.c.l.b16 %v3444
        %v5477 = vunpack.c.h.b16 %v3444
        %v5478 = vunpack.c.l.b16 %v3445
        %v5479 = vunpack.c.h.b16 %v3445
        %v5480 = vunpack.c.l.b16 %v3446
        %v5481 = vunpack.c.h.b16 %v3446
        %v5482 = vunpack.c.l.b16 %v3447
        %v5483 = vunpack.c.h.b16 %v3447
        %v5484 = vunpack.c.l.b16 %v3448
        %v5485 = vunpack.c.h.b16 %v3448
        %v5486 = vunpack.c.l.b16 %v3449
        %v5487 = vunpack.c.h.b16 %v3449
        %v5488 = vunpack.c.l.b16 %v3450
        %v5489 = vunpack.c.h.b16 %v3450
        %v5490 = vunpack.c.l.b16 %v3451
        %v5491 = vunpack.c.h.b16 %v3451
        %v5492 = vunpack.c.l.b16 %v3452
        %v5493 = vunpack.c.h.b16 %v3452
        %v5494 = vunpack.c.l.b16 %v3453
        %v5495 = vunpack.c.h.b16 %v3453
        %v5496 = vunpack.c.l.b16 %v3454
        %v5497 = vunpack.c.h.b16 %v3454
        %v5498 = vunpack.c.l.b16 %v3455
        %v5499 = vunpack.c.h.b16 %v3455
        %v5500 = vunpack.c.l.b16 %v3456
        %v5501 = vunpack.c.h.b16 %v3456
        %v5502 = vunpack.c.l.b16 %v3457
        %v5503 = vunpack.c.h.b16 %v3457
        %v5504 = vunpack.c.l.b16 %v3458
        %v5505 = vunpack.c.h.b16 %v3458
        %v5506 = vunpack.c.l.b16 %v3459
        %v5507 = vunpack.c.h.b16 %v3459
        %v5508 = vunpack.c.l.b16 %v3460
        %v5509 = vunpack.c.h.b16 %v3460
        %v5510 = vunpack.c.l.b16 %v3461
        %v5511 = vunpack.c.h.b16 %v3461
        %v5512 = vunpack.c.l.b16 %v3462
        %v5513 = vunpack.c.h.b16 %v3462
        %v5514 = vunpack.c.l.b16 %v3463
        %v5515 = vunpack.c.h.b16 %v3463
        %v5516 = vunpack.c.l.b16 %v3464
        %v5517 = vunpack.c.h.b16 %v3464
        %v5518 = vunpack.c.l.b16 %v3465
        %v5519 = vunpack.c.h.b16 %v3465
        %v5520 = vunpack.c.l.b16 %v3466
        %v5521 = vunpack.c.h.b16 %v3466
        %v5522 = vunpack.c.l.b16 %v3467
        %v5523 = vunpack.c.h.b16 %v3467
        %v5524 = vunpack.c.l.b16 %v3468
        %v5525 = vunpack.c.h.b16 %v3468
        %v5526 = vunpack.c.l.b16 %v3469
        %v5527 = vunpack.c.h.b16 %v3469
        %v5528 = vunpack.c.l.b16 %v3470
        %v5529 = vunpack.c.h.b16 %v3470
        %v5530 = vunpack.c.l.b16 %v3471
        %v5531 = vunpack.c.h.b16 %v3471
        %v5532 = vunpack.c.l.b16 %v3472
        %v5533 = vunpack.c.h.b16 %v3472
        %v5534 = vunpack.c.l.b16 %v3473
        %v5535 = vunpack.c.h.b16 %v3473
        %v5536 = vunpack.c.l.b16 %v3474
        %v5537 = vunpack.c.h.b16 %v3474
        %v5538 = vunpack.c.l.b16 %v3475
        %v5539 = vunpack.c.h.b16 %v3475
        %v5540 = vunpack.c.l.b16 %v3476
        %v5541 = vunpack.c.h.b16 %v3476
        %v5542 = vunpack.c.l.b16 %v3477
        %v5543 = vunpack.c.h.b16 %v3477
        %v5544 = vunpack.c.l.b16 %v3478
        %v5545 = vunpack.c.h.b16 %v3478
        %v5546 = vunpack.c.l.b16 %v3479
        %v5547 = vunpack.c.h.b16 %v3479
        %v5548 = vunpack.c.l.b16 %v3480
        %v5549 = vunpack.c.h.b16 %v3480
        %v5550 = vunpack.c.l.b16 %v3481
        %v5551 = vunpack.c.h.b16 %v3481
        %v5552 = vunpack.c.l.b16 %v3482
        %v5553 = vunpack.c.h.b16 %v3482
        %v5554 = vunpack.c.l.b16 %v3483
        %v5555 = vunpack.c.h.b16 %v3483
        %v5556 = vunpack.c.l.b16 %v3484
        %v5557 = vunpack.c.h.b16 %v3484
        %v5558 = vunpack.c.l.b16 %v3485
        %v5559 = vunpack.c.h.b16 %v3485
        %v5560 = vunpack.c.l.b16 %v3486
        %v5561 = vunpack.c.h.b16 %v3486
        %v5562 = vunpack.c.l.b16 %v3487
        %v5563 = vunpack.c.h.b16 %v3487
        %v5564 = vunpack.c.l.b16 %v3488
        %v5565 = vunpack.c.h.b16 %v3488
        %v5566 = vunpack.c.l.b16 %v3489
        %v5567 = vunpack.c.h.b16 %v3489
        %v5568 = vunpack.c.l.b16 %v3490
        %v5569 = vunpack.c.h.b16 %v3490
        %v5570 = vunpack.c.l.b16 %v3491
        %v5571 = vunpack.c.h.b16 %v3491
        %v5572 = vunpack.c.l.b16 %v3492
        %v5573 = vunpack.c.h.b16 %v3492
        %v5574 = vunpack.c.l.b16 %v3493
        %v5575 = vunpack.c.h.b16 %v3493
        %v5576 = vunpack.c.l.b16 %v3494
        %v5577 = vunpack.c.h.b16 %v3494
        %v5578 = vunpack.c.l.b16 %v3495
        %v5579 = vunpack.c.h.b16 %v3495
        %v5580 = vunpack.c.l.b16 %v3496
        %v5581 = vunpack.c.h.b16 %v3496
        %v5582 = vunpack.c.l.b16 %v3497
        %v5583 = vunpack.c.h.b16 %v3497
        %v5584 = vunpack.c.l.b16 %v3498
        %v5585 = vunpack.c.h.b16 %v3498
        %v5586 = vunpack.c.l.b16 %v3499
        %v5587 = vunpack.c.h.b16 %v3499
        %v5588 = vunpack.c.l.b16 %v3500
        %v5589 = vunpack.c.h.b16 %v3500
        %v5590 = vunpack.c.l.b16 %v3501
        %v5591 = vunpack.c.h.b16 %v3501
        %v5592 = vunpack.c.l.b16 %v3502
        %v5593 = vunpack.c.h.b16 %v3502
        %v5594 = vunpack.c.l.b16 %v3503
        %v5595 = vunpack.c.h.b16 %v3503
        %v5596 = vunpack.c.l.b16 %v3504
        %v5597 = vunpack.c.h.b16 %v3504
        %v5598 = vunpack.c.l.b16 %v3505
        %v5599 = vunpack.c.h.b16 %v3505
        %v5600 = vunpack.c.l.b16 %v3506
        %v5601 = vunpack.c.h.b16 %v3506
        %v5602 = vunpack.c.l.b16 %v3507
        %v5603 = vunpack.c.h.b16 %v3507
        %v5604 = vunpack.c.l.b16 %v3508
        %v5605 = vunpack.c.h.b16 %v3508
        %v5606 = vunpack.c.l.b16 %v3509
        %v5607 = vunpack.c.h.b16 %v3509
        %v5608 = vunpack.c.l.b16 %v3510
        %v5609 = vunpack.c.h.b16 %v3510
        %v5610 = vunpack.c.l.b16 %v3511
        %v5611 = vunpack.c.h.b16 %v3511
        %v5612 = vunpack.c.l.b16 %v3512
        %v5613 = vunpack.c.h.b16 %v3512
        %v5614 = vunpack.c.l.b16 %v3513
        %v5615 = vunpack.c.h.b16 %v3513
        %v5616 = vunpack.c.l.b16 %v3514
        %v5617 = vunpack.c.h.b16 %v3514
        %v5618 = vunpack.c.l.b16 %v3515
        %v5619 = vunpack.c.h.b16 %v3515
        %v5620 = vunpack.c.l.b16 %v3516
        %v5621 = vunpack.c.h.b16 %v3516
        %v5622 = vunpack.c.l.b16 %v3517
        %v5623 = vunpack.c.h.b16 %v3517
        %v5624 = vunpack.c.l.b16 %v3518
        %v5625 = vunpack.c.h.b16 %v3518
        %v5626 = vunpack.c.l.b16 %v3519
        %v5627 = vunpack.c.h.b16 %v3519
        %v5628 = vunpack.c.l.b16 %v3520
        %v5629 = vunpack.c.h.b16 %v3520
        %v5630 = vunpack.c.l.b16 %v3521
        %v5631 = vunpack.c.h.b16 %v3521
        %v5632 = vunpack.c.l.b16 %v3522
        %v5633 = vunpack.c.h.b16 %v3522
        %v5634 = vunpack.c.l.b16 %v3523
        %v5635 = vunpack.c.h.b16 %v3523
        %v5636 = vunpack.c.l.b16 %v3524
        %v5637 = vunpack.c.h.b16 %v3524
        %v5638 = vunpack.c.l.b16 %v3525
        %v5639 = vunpack.c.h.b16 %v3525
        %v5640 = vunpack.c.l.b16 %v3526
        %v5641 = vunpack.c.h.b16 %v3526
        %v5642 = vunpack.c.l.b16 %v3527
        %v5643 = vunpack.c.h.b16 %v3527
        %v5644 = vunpack.c.l.b16 %v3528
        %v5645 = vunpack.c.h.b16 %v3528
        %v5646 = vunpack.c.l.b16 %v3529
        %v5647 = vunpack.c.h.b16 %v3529
        %v5648 = vunpack.c.l.b16 %v3530
        %v5649 = vunpack.c.h.b16 %v3530
        %v5650 = vunpack.c.l.b16 %v3531
        %v5651 = vunpack.c.h.b16 %v3531
        %v5652 = vunpack.c.l.b16 %v3532
        %v5653 = vunpack.c.h.b16 %v3532
        %v5654 = vunpack.c.l.b16 %v3533
        %v5655 = vunpack.c.h.b16 %v3533
        %v5656 = vunpack.c.l.b16 %v3534
        %v5657 = vunpack.c.h.b16 %v3534
        %v5658 = vunpack.c.l.b16 %v3535
        %v5659 = vunpack.c.h.b16 %v3535
        %v5660 = vunpack.c.l.b16 %v3536
        %v5661 = vunpack.c.h.b16 %v3536
        %v5662 = vunpack.c.l.b16 %v3537
        %v5663 = vunpack.c.h.b16 %v3537
        %v5664 = vunpack.c.l.b16 %v3538
        %v5665 = vunpack.c.h.b16 %v3538
        %v5666 = vunpack.c.l.b16 %v3539
        %v5667 = vunpack.c.h.b16 %v3539
        %v5668 = vunpack.c.l.b16 %v3540
        %v5669 = vunpack.c.h.b16 %v3540
        %v5670 = vunpack.c.l.b16 %v3541
        %v5671 = vunpack.c.h.b16 %v3541
        %v5672 = vunpack.c.l.b16 %v3542
        %v5673 = vunpack.c.h.b16 %v3542
        %v5674 = vunpack.c.l.b16 %v3543
        %v5675 = vunpack.c.h.b16 %v3543
        %v5676 = vunpack.c.l.b16 %v3544
        %v5677 = vunpack.c.h.b16 %v3544
        %v5678 = vunpack.c.l.b16 %v3545
        %v5679 = vunpack.c.h.b16 %v3545
        %v5680 = vunpack.c.l.b16 %v3546
        %v5681 = vunpack.c.h.b16 %v3546
        %v5682 = vunpack.c.l.b16 %v3547
        %v5683 = vunpack.c.h.b16 %v3547
        %v5684 = vunpack.c.l.b16 %v3548
        %v5685 = vunpack.c.h.b16 %v3548
        %v5686 = vunpack.c.l.b16 %v3549
        %v5687 = vunpack.c.h.b16 %v3549
        %v5688 = vunpack.c.l.b16 %v3550
        %v5689 = vunpack.c.h.b16 %v3550
        %v5690 = vunpack.c.l.b16 %v3551
        %v5691 = vunpack.c.h.b16 %v3551
        %v5692 = vunpack.c.l.b16 %v3552
        %v5693 = vunpack.c.h.b16 %v3552
        %v5694 = vunpack.c.l.b16 %v3553
        %v5695 = vunpack.c.h.b16 %v3553
        %v5696 = vunpack.c.l.b16 %v3554
        %v5697 = vunpack.c.h.b16 %v3554
        %v5698 = vunpack.c.l.b16 %v3555
        %v5699 = vunpack.c.h.b16 %v3555
        %v5700 = vunpack.c.l.b16 %v3556
        %v5701 = vunpack.c.h.b16 %v3556
        %v5702 = vunpack.c.l.b16 %v3557
        %v5703 = vunpack.c.h.b16 %v3557
        %v5704 = vunpack.c.l.b16 %v3558
        %v5705 = vunpack.c.h.b16 %v3558
        %v5706 = vunpack.c.l.b16 %v3559
        %v5707 = vunpack.c.h.b16 %v3559
        %v5708 = vunpack.c.l.b16 %v3560
        %v5709 = vunpack.c.h.b16 %v3560
        %v5710 = vunpack.c.l.b16 %v3561
        %v5711 = vunpack.c.h.b16 %v3561
        %v5712 = vunpack.c.l.b16 %v3562
        %v5713 = vunpack.c.h.b16 %v3562
        %v5714 = vunpack.c.l.b16 %v3563
        %v5715 = vunpack.c.h.b16 %v3563
        %v5716 = vunpack.c.l.b16 %v3564
        %v5717 = vunpack.c.h.b16 %v3564
        %v5718 = vunpack.c.l.b16 %v3565
        %v5719 = vunpack.c.h.b16 %v3565
        %v5720 = vunpack.c.l.b16 %v3566
        %v5721 = vunpack.c.h.b16 %v3566
        %v5722 = vunpack.c.l.b16 %v3567
        %v5723 = vunpack.c.h.b16 %v3567
        %v5724 = vunpack.c.l.b16 %v3568
        %v5725 = vunpack.c.h.b16 %v3568
        %v5726 = vunpack.c.l.b16 %v3569
        %v5727 = vunpack.c.h.b16 %v3569
        %v5728 = vunpack.c.l.b16 %v3570
        %v5729 = vunpack.c.h.b16 %v3570
        %v5730 = vunpack.c.l.b16 %v3571
        %v5731 = vunpack.c.h.b16 %v3571
        %v5732 = vunpack.c.l.b16 %v3572
        %v5733 = vunpack.c.h.b16 %v3572
        %v5734 = vunpack.c.l.b16 %v3573
        %v5735 = vunpack.c.h.b16 %v3573
        %v5736 = vunpack.c.l.b16 %v3574
        %v5737 = vunpack.c.h.b16 %v3574
        %v5738 = vunpack.c.l.b16 %v3575
        %v5739 = vunpack.c.h.b16 %v3575
        %v5740 = vunpack.c.l.b16 %v3576
        %v5741 = vunpack.c.h.b16 %v3576
        %v5742 = vunpack.c.l.b16 %v3577
        %v5743 = vunpack.c.h.b16 %v3577
        %v5744 = vunpack.c.l.b16 %v3578
        %v5745 = vunpack.c.h.b16 %v3578
        %v5746 = vunpack.c.l.b16 %v3579
        %v5747 = vunpack.c.h.b16 %v3579
        %v5748 = vunpack.c.l.b16 %v3580
        %v5749 = vunpack.c.h.b16 %v3580
        %v5750 = vunpack.c.l.b16 %v3581
        %v5751 = vunpack.c.h.b16 %v3581
        %v5752 = vunpack.c.l.b16 %v3582
        %v5753 = vunpack.c.h.b16 %v3582
        %v5754 = vunpack.c.l.b16 %v3583
        %v5755 = vunpack.c.h.b16 %v3583
        %v5756 = vunpack.c.l.b16 %v3584
        %v5757 = vunpack.c.h.b16 %v3584
        %v5758 = vunpack.c.l.b16 %v3585
        %v5759 = vunpack.c.h.b16 %v3585
        %v5760 = vunpack.c.l.b16 %v3586
        %v5761 = vunpack.c.h.b16 %v3586
        %v5762 = vunpack.c.l.b16 %v3587
        %v5763 = vunpack.c.h.b16 %v3587
        %v5764 = vunpack.c.l.b16 %v3588
        %v5765 = vunpack.c.h.b16 %v3588
        %v5766 = vunpack.c.l.b16 %v3589
        %v5767 = vunpack.c.h.b16 %v3589
        %v5768 = vunpack.c.l.b16 %v3590
        %v5769 = vunpack.c.h.b16 %v3590
        %v5770 = vunpack.c.l.b16 %v3591
        %v5771 = vunpack.c.h.b16 %v3591
        %v5772 = vunpack.c.l.b16 %v3592
        %v5773 = vunpack.c.h.b16 %v3592
        %v5774 = vunpack.c.l.b16 %v3593
        %v5775 = vunpack.c.h.b16 %v3593
        %v5776 = vunpack.c.l.b16 %v3594
        %v5777 = vunpack.c.h.b16 %v3594
        %v5778 = vunpack.c.l.b16 %v3595
        %v5779 = vunpack.c.h.b16 %v3595
        %v5780 = vunpack.c.l.b16 %v3596
        %v5781 = vunpack.c.h.b16 %v3596
        %v5782 = vunpack.c.l.b16 %v3597
        %v5783 = vunpack.c.h.b16 %v3597
        %v5784 = vunpack.c.l.b16 %v3598
        %v5785 = vunpack.c.h.b16 %v3598
        %v5786 = vunpack.c.l.b16 %v3599
        %v5787 = vunpack.c.h.b16 %v3599
        %v5788 = vunpack.c.l.b16 %v3600
        %v5789 = vunpack.c.h.b16 %v3600
        %v5790 = vunpack.c.l.b16 %v3601
        %v5791 = vunpack.c.h.b16 %v3601
        %v5792 = vunpack.c.l.b16 %v3602
        %v5793 = vunpack.c.h.b16 %v3602
        %v5794 = vunpack.c.l.b16 %v3603
        %v5795 = vunpack.c.h.b16 %v3603
        %v5796 = vunpack.c.l.b16 %v3604
        %v5797 = vunpack.c.h.b16 %v3604
        %v5798 = vunpack.c.l.b16 %v3605
        %v5799 = vunpack.c.h.b16 %v3605
        %v5800 = vunpack.c.l.b16 %v3606
        %v5801 = vunpack.c.h.b16 %v3606
        %v5802 = vunpack.c.l.b16 %v3607
        %v5803 = vunpack.c.h.b16 %v3607
        %v5804 = vunpack.c.l.b16 %v3608
        %v5805 = vunpack.c.h.b16 %v3608
        %v5806 = vunpack.c.l.b16 %v3609
        %v5807 = vunpack.c.h.b16 %v3609
        %v5808 = vunpack.c.l.b16 %v3610
        %v5809 = vunpack.c.h.b16 %v3610
        %v5810 = vunpack.c.l.b16 %v3611
        %v5811 = vunpack.c.h.b16 %v3611
        %v5812 = vunpack.c.l.b16 %v3612
        %v5813 = vunpack.c.h.b16 %v3612
        %v5814 = vunpack.c.l.b16 %v3613
        %v5815 = vunpack.c.h.b16 %v3613
        %v5816 = vunpack.c.l.b16 %v3614
        %v5817 = vunpack.c.h.b16 %v3614
        %v5818 = vunpack.c.l.b16 %v3615
        %v5819 = vunpack.c.h.b16 %v3615
        %v5820 = vunpack.c.l.b16 %v3616
        %v5821 = vunpack.c.h.b16 %v3616
        %v5822 = vunpack.c.l.b16 %v3617
        %v5823 = vunpack.c.h.b16 %v3617
        %v5824 = vunpack.c.l.b16 %v3618
        %v5825 = vunpack.c.h.b16 %v3618
        %v5826 = vunpack.c.l.b16 %v3619
        %v5827 = vunpack.c.h.b16 %v3619
        %v5828 = vunpack.c.l.b16 %v3620
        %v5829 = vunpack.c.h.b16 %v3620
        %v5830 = vunpack.c.l.b16 %v3621
        %v5831 = vunpack.c.h.b16 %v3621
        %v5832 = vunpack.c.l.b16 %v3622
        %v5833 = vunpack.c.h.b16 %v3622
        %v5834 = vunpack.c.l.b16 %v3623
        %v5835 = vunpack.c.h.b16 %v3623
        %v5836 = vunpack.c.l.b16 %v3624
        %v5837 = vunpack.c.h.b16 %v3624
        %v5838 = vunpack.c.l.b16 %v3625
        %v5839 = vunpack.c.h.b16 %v3625
        %v5840 = vunpack.c.l.b16 %v3626
        %v5841 = vunpack.c.h.b16 %v3626
        %v5842 = vunpack.c.l.b16 %v3627
        %v5843 = vunpack.c.h.b16 %v3627
        %v5844 = vunpack.c.l.b16 %v3628
        %v5845 = vunpack.c.h.b16 %v3628
        %v5846 = vunpack.c.l.b16 %v3629
        %v5847 = vunpack.c.h.b16 %v3629
        %v5848 = vunpack.c.l.b16 %v3630
        %v5849 = vunpack.c.h.b16 %v3630
        %v5850 = vunpack.c.l.b16 %v3631
        %v5851 = vunpack.c.h.b16 %v3631
        %v5852 = vunpack.c.l.b16 %v3632
        %v5853 = vunpack.c.h.b16 %v3632
        %v5854 = vunpack.c.l.b16 %v3633
        %v5855 = vunpack.c.h.b16 %v3633
        %v5856 = vunpack.c.l.b16 %v3634
        %v5857 = vunpack.c.h.b16 %v3634
        %v5858 = vunpack.c.l.b16 %v3635
        %v5859 = vunpack.c.h.b16 %v3635
        %v5860 = vunpack.c.l.b16 %v3636
        %v5861 = vunpack.c.h.b16 %v3636
        %v5862 = vunpack.c.l.b16 %v3637
        %v5863 = vunpack.c.h.b16 %v3637
        %v5864 = vunpack.c.l.b16 %v3638
        %v5865 = vunpack.c.h.b16 %v3638
        %v5866 = vunpack.c.l.b16 %v3639
        %v5867 = vunpack.c.h.b16 %v3639
        %v5868 = vunpack.c.l.b16 %v3640
        %v5869 = vunpack.c.h.b16 %v3640
        %v5870 = vunpack.c.l.b16 %v3641
        %v5871 = vunpack.c.h.b16 %v3641
        %v5872 = vunpack.c.l.b16 %v3642
        %v5873 = vunpack.c.h.b16 %v3642
        %v5874 = vunpack.c.l.b16 %v3643
        %v5875 = vunpack.c.h.b16 %v3643
        %v5876 = vunpack.c.l.b16 %v3644
        %v5877 = vunpack.c.h.b16 %v3644
        %v5878 = vunpack.c.l.b16 %v3645
        %v5879 = vunpack.c.h.b16 %v3645
        %v5880 = vunpack.c.l.b16 %v3646
        %v5881 = vunpack.c.h.b16 %v3646
        %v5882 = vunpack.c.l.b16 %v3647
        %v5883 = vunpack.c.h.b16 %v3647
        %v5884 = vunpack.c.l.b16 %v3648
        %v5885 = vunpack.c.h.b16 %v3648
        %v5886 = vunpack.c.l.b16 %v3649
        %v5887 = vunpack.c.h.b16 %v3649
        %v5888 = vunpack.c.l.b16 %v3650
        %v5889 = vunpack.c.h.b16 %v3650
        %v5890 = vunpack.c.l.b16 %v3651
        %v5891 = vunpack.c.h.b16 %v3651
        %v5892 = vunpack.c.l.b16 %v3652
        %v5893 = vunpack.c.h.b16 %v3652
        %v5894 = vunpack.c.l.b16 %v3653
        %v5895 = vunpack.c.h.b16 %v3653
        %v5896 = vunpack.c.l.b16 %v3654
        %v5897 = vunpack.c.h.b16 %v3654
        %v5898 = vunpack.c.l.b16 %v3655
        %v5899 = vunpack.c.h.b16 %v3655
        %v5900 = vunpack.c.l.b16 %v3656
        %v5901 = vunpack.c.h.b16 %v3656
        %v5902 = vunpack.c.l.b16 %v3657
        %v5903 = vunpack.c.h.b16 %v3657
        %v5904 = vunpack.c.l.b16 %v3658
        %v5905 = vunpack.c.h.b16 %v3658
        %v5906 = vunpack.c.l.b16 %v3659
        %v5907 = vunpack.c.h.b16 %v3659
        %v5908 = vunpack.c.l.b16 %v3660
        %v5909 = vunpack.c.h.b16 %v3660
        %v5910 = vunpack.c.l.b16 %v3661
        %v5911 = vunpack.c.h.b16 %v3661
        %v5912 = vunpack.c.l.b16 %v3662
        %v5913 = vunpack.c.h.b16 %v3662
        %v5914 = vunpack.c.l.b16 %v3663
        %v5915 = vunpack.c.h.b16 %v3663
        %v5916 = vunpack.c.l.b16 %v3664
        %v5917 = vunpack.c.h.b16 %v3664
        %v5918 = vunpack.c.l.b16 %v3665
        %v5919 = vunpack.c.h.b16 %v3665
        %v5920 = vunpack.c.l.b16 %v3666
        %v5921 = vunpack.c.h.b16 %v3666
        %v5922 = vunpack.c.l.b16 %v3667
        %v5923 = vunpack.c.h.b16 %v3667
        %v5924 = vunpack.c.l.b16 %v3668
        %v5925 = vunpack.c.h.b16 %v3668
        %v5926 = vunpack.c.l.b16 %v3669
        %v5927 = vunpack.c.h.b16 %v3669
        %v5928 = vunpack.c.l.b16 %v3670
        %v5929 = vunpack.c.h.b16 %v3670
        %v5930 = vunpack.c.l.b16 %v3671
        %v5931 = vunpack.c.h.b16 %v3671
        %v5932 = vunpack.c.l.b16 %v3672
        %v5933 = vunpack.c.h.b16 %v3672
        %v5934 = vunpack.c.l.b16 %v3673
        %v5935 = vunpack.c.h.b16 %v3673
        %v5936 = vunpack.c.l.b16 %v3674
        %v5937 = vunpack.c.h.b16 %v3674
        %v5938 = vunpack.c.l.b16 %v3675
        %v5939 = vunpack.c.h.b16 %v3675
        %v5940 = vunpack.c.l.b16 %v3676
        %v5941 = vunpack.c.h.b16 %v3676
        %v5942 = vunpack.c.l.b16 %v3677
        %v5943 = vunpack.c.h.b16 %v3677
        %v5944 = vunpack.c.l.b16 %v3678
        %v5945 = vunpack.c.h.b16 %v3678
        %v5946 = vunpack.c.l.b16 %v3679
        %v5947 = vunpack.c.h.b16 %v3679
        %v5948 = vunpack.c.l.b16 %v3680
        %v5949 = vunpack.c.h.b16 %v3680
        %v5950 = vunpack.c.l.b16 %v3681
        %v5951 = vunpack.c.h.b16 %v3681
        %v5952 = vunpack.c.l.b16 %v3682
        %v5953 = vunpack.c.h.b16 %v3682
        %v5954 = vunpack.c.l.b16 %v3683
        %v5955 = vunpack.c.h.b16 %v3683
        %v5956 = vunpack.c.l.b16 %v3684
        %v5957 = vunpack.c.h.b16 %v3684
        %v5958 = vunpack.c.l.b16 %v3685
        %v5959 = vunpack.c.h.b16 %v3685
        %v5960 = vunpack.c.l.b16 %v3686
        %v5961 = vunpack.c.h.b16 %v3686
        %v5962 = vunpack.c.l.b16 %v3687
        %v5963 = vunpack.c.h.b16 %v3687
        %v5964 = vunpack.c.l.b16 %v3688
        %v5965 = vunpack.c.h.b16 %v3688
        %v5966 = vunpack.c.l.b16 %v3689
        %v5967 = vunpack.c.h.b16 %v3689
        %v5968 = vunpack.c.l.b16 %v3690
        %v5969 = vunpack.c.h.b16 %v3690
        %v5970 = vunpack.c.l.b16 %v3691
        %v5971 = vunpack.c.h.b16 %v3691
        %v5972 = vunpack.c.l.b16 %v3692
        %v5973 = vunpack.c.h.b16 %v3692
        %v5974 = vunpack.c.l.b16 %v3693
        %v5975 = vunpack.c.h.b16 %v3693
        %v5976 = vunpack.c.l.b16 %v3694
        %v5977 = vunpack.c.h.b16 %v3694
        %v5978 = vunpack.c.l.b16 %v3695
        %v5979 = vunpack.c.h.b16 %v3695
        %v5980 = vunpack.c.l.b16 %v3696
        %v5981 = vunpack.c.h.b16 %v3696
        %v5982 = vunpack.c.l.b16 %v3697
        %v5983 = vunpack.c.h.b16 %v3697
        %v5984 = vunpack.c.l.b16 %v3698
        %v5985 = vunpack.c.h.b16 %v3698
        %v5986 = vunpack.c.l.b16 %v3699
        %v5987 = vunpack.c.h.b16 %v3699
        %v5988 = vunpack.c.l.b16 %v3700
        %v5989 = vunpack.c.h.b16 %v3700
        %v5990 = vunpack.c.l.b16 %v3701
        %v5991 = vunpack.c.h.b16 %v3701
        %v5992 = vunpack.c.l.b16 %v3702
        %v5993 = vunpack.c.h.b16 %v3702
        %v5994 = vunpack.c.l.b16 %v3703
        %v5995 = vunpack.c.h.b16 %v3703
        %v5996 = vunpack.c.l.b16 %v3704
        %v5997 = vunpack.c.h.b16 %v3704
        %v5998 = vunpack.c.l.b16 %v3705
        %v5999 = vunpack.c.h.b16 %v3705
        %v6000 = vunpack.c.l.b16 %v3706
        %v6001 = vunpack.c.h.b16 %v3706
        %v6002 = vunpack.c.l.b16 %v3707
        %v6003 = vunpack.c.h.b16 %v3707
        %v6004 = vunpack.c.l.b16 %v3708
        %v6005 = vunpack.c.h.b16 %v3708
        %v6006 = vunpack.c.l.b16 %v3709
        %v6007 = vunpack.c.h.b16 %v3709
        %v6008 = vunpack.c.l.b16 %v3710
        %v6009 = vunpack.c.h.b16 %v3710
        %v6010 = vunpack.c.l.b16 %v3711
        %v6011 = vunpack.c.h.b16 %v3711
        %v6012 = vunpack.c.l.b16 %v3712
        %v6013 = vunpack.c.h.b16 %v3712
        %v6014 = vunpack.c.l.b16 %v3713
        %v6015 = vunpack.c.h.b16 %v3713
        %v6016 = vunpack.c.l.b16 %v3714
        %v6017 = vunpack.c.h.b16 %v3714
        %v6018 = vunpack.c.l.b16 %v3715
        %v6019 = vunpack.c.h.b16 %v3715
        %v6020 = vunpack.c.l.b16 %v3716
        %v6021 = vunpack.c.h.b16 %v3716
        %v6022 = vunpack.c.l.b16 %v3717
        %v6023 = vunpack.c.h.b16 %v3717
        %v6024 = vunpack.c.l.b16 %v3718
        %v6025 = vunpack.c.h.b16 %v3718
        %v6026 = vunpack.c.l.b16 %v3719
        %v6027 = vunpack.c.h.b16 %v3719
        %v6028 = vunpack.c.l.b16 %v3720
        %v6029 = vunpack.c.h.b16 %v3720
        %v6030 = vunpack.c.l.b16 %v3721
        %v6031 = vunpack.c.h.b16 %v3721
        %v6032 = vunpack.c.l.b16 %v3722
        %v6033 = vunpack.c.h.b16 %v3722
        %v6034 = vunpack.c.l.b16 %v3723
        %v6035 = vunpack.c.h.b16 %v3723
        %v6036 = vunpack.c.l.b16 %v3724
        %v6037 = vunpack.c.h.b16 %v3724
        %v6038 = vunpack.c.l.b16 %v3725
        %v6039 = vunpack.c.h.b16 %v3725
        %v6040 = vunpack.c.l.b16 %v3726
        %v6041 = vunpack.c.h.b16 %v3726
        %v6042 = vunpack.c.l.b16 %v3727
        %v6043 = vunpack.c.h.b16 %v3727
        %v6044 = vunpack.c.l.b16 %v3728
        %v6045 = vunpack.c.h.b16 %v3728
        %v6046 = vunpack.c.l.b16 %v3729
        %v6047 = vunpack.c.h.b16 %v3729
        %v6048 = vunpack.c.l.b16 %v3730
        %v6049 = vunpack.c.h.b16 %v3730
        %v6050 = vunpack.c.l.b16 %v3731
        %v6051 = vunpack.c.h.b16 %v3731
        %v6052 = vunpack.c.l.b16 %v3732
        %v6053 = vunpack.c.h.b16 %v3732
        %v6054 = vunpack.c.l.b16 %v3733
        %v6055 = vunpack.c.h.b16 %v3733
        %v6056 = vunpack.c.l.b16 %v3734
        %v6057 = vunpack.c.h.b16 %v3734
        %v6058 = vunpack.c.l.b16 %v3735
        %v6059 = vunpack.c.h.b16 %v3735
        %v6060 = vunpack.c.l.b16 %v3736
        %v6061 = vunpack.c.h.b16 %v3736
        %v6062 = vunpack.c.l.b16 %v3737
        %v6063 = vunpack.c.h.b16 %v3737
        %v6064 = vunpack.c.l.b16 %v3738
        %v6065 = vunpack.c.h.b16 %v3738
        %v6066 = vunpack.c.l.b16 %v3739
        %v6067 = vunpack.c.h.b16 %v3739
        %v6068 = vunpack.c.l.b16 %v3740
        %v6069 = vunpack.c.h.b16 %v3740
        %v6070 = vunpack.c.l.b16 %v3741
        %v6071 = vunpack.c.h.b16 %v3741
        %v6072 = vunpack.c.l.b16 %v3742
        %v6073 = vunpack.c.h.b16 %v3742
        %v6074 = vunpack.c.l.b16 %v3743
        %v6075 = vunpack.c.h.b16 %v3743
        %v6076 = vunpack.c.l.b16 %v3744
        %v6077 = vunpack.c.h.b16 %v3744
        %v6078 = vunpack.c.l.b16 %v3745
        %v6079 = vunpack.c.h.b16 %v3745
        %v6080 = vunpack.c.l.b16 %v3746
        %v6081 = vunpack.c.h.b16 %v3746
        %v6082 = vunpack.c.l.b16 %v3747
        %v6083 = vunpack.c.h.b16 %v3747
        %v6084 = vunpack.c.l.b16 %v3748
        %v6085 = vunpack.c.h.b16 %v3748
        %v6086 = vunpack.c.l.b16 %v3749
        %v6087 = vunpack.c.h.b16 %v3749
        %v6088 = vunpack.c.l.b16 %v3750
        %v6089 = vunpack.c.h.b16 %v3750
        %v6090 = vunpack.c.l.b16 %v3751
        %v6091 = vunpack.c.h.b16 %v3751
        %v6092 = vunpack.c.l.b16 %v3752
        %v6093 = vunpack.c.h.b16 %v3752
        %v6094 = vunpack.c.l.b16 %v3753
        %v6095 = vunpack.c.h.b16 %v3753
        %v6096 = vunpack.c.l.b16 %v3754
        %v6097 = vunpack.c.h.b16 %v3754
        %v6098 = vunpack.c.l.b16 %v3755
        %v6099 = vunpack.c.h.b16 %v3755
        %v6100 = vunpack.c.l.b16 %v3756
        %v6101 = vunpack.c.h.b16 %v3756
        %v6102 = vunpack.c.l.b16 %v3757
        %v6103 = vunpack.c.h.b16 %v3757
        %v6104 = vunpack.c.l.b16 %v3758
        %v6105 = vunpack.c.h.b16 %v3758
        %v6106 = vunpack.c.l.b16 %v3759
        %v6107 = vunpack.c.h.b16 %v3759
        %v6108 = vunpack.c.l.b16 %v3760
        %v6109 = vunpack.c.h.b16 %v3760
        %v6110 = vunpack.c.l.b16 %v3761
        %v6111 = vunpack.c.h.b16 %v3761
        %v6112 = vunpack.c.l.b16 %v3762
        %v6113 = vunpack.c.h.b16 %v3762
        %v6114 = vunpack.c.l.b16 %v3763
        %v6115 = vunpack.c.h.b16 %v3763
        %v6116 = vunpack.c.l.b16 %v3764
        %v6117 = vunpack.c.h.b16 %v3764
        %v6118 = vunpack.c.l.b16 %v3765
        %v6119 = vunpack.c.h.b16 %v3765
        %v6120 = vunpack.c.l.b16 %v3766
        %v6121 = vunpack.c.h.b16 %v3766
        %v6122 = vunpack.c.l.b16 %v3767
        %v6123 = vunpack.c.h.b16 %v3767
        %v6124 = vunpack.c.l.b16 %v3768
        %v6125 = vunpack.c.h.b16 %v3768
        %v6126 = vunpack.c.l.b16 %v3769
        %v6127 = vunpack.c.h.b16 %v3769
        %v6128 = vunpack.c.l.b16 %v3770
        %v6129 = vunpack.c.h.b16 %v3770
        %v6130 = vunpack.c.l.b16 %v3771
        %v6131 = vunpack.c.h.b16 %v3771
        %v6132 = vunpack.c.l.b16 %v3772
        %v6133 = vunpack.c.h.b16 %v3772
        %v6134 = vunpack.c.l.b16 %v3773
        %v6135 = vunpack.c.h.b16 %v3773
        %v6136 = vunpack.c.l.b16 %v3774
        %v6137 = vunpack.c.h.b16 %v3774
        %v6138 = vunpack.c.l.b16 %v3775
        %v6139 = vunpack.c.h.b16 %v3775
        %v6140 = vunpack.c.l.b16 %v3776
        %v6141 = vunpack.c.h.b16 %v3776
        %v6142 = vunpack.c.l.b16 %v3777
        %v6143 = vunpack.c.h.b16 %v3777
        %v6144 = vunpack.c.l.b16 %v3778
        %v6145 = vunpack.c.h.b16 %v3778
        %v6146 = vunpack.c.l.b16 %v3779
        %v6147 = vunpack.c.h.b16 %v3779
        %v6148 = vpack.c.b16 %v4624, %v4612
        %v6149 = vpack.c.b16 %v4625, %v4613
        %v6150 = vpack.c.b16 %v4626, %v4614
        %v6151 = vpack.c.b16 %v4627, %v4615
        %v6152 = vpack.c.b16 %v4628, %v4616
        %v6153 = vpack.c.b16 %v4629, %v4617
        %v6154 = vpack.c.b16 %v4630, %v4618
        %v6155 = vpack.c.b16 %v4631, %v4619
        %v6156 = vpack.c.b16 %v4632, %v4620
        %v6157 = vpack.c.b16 %v4633, %v4621
        %v6158 = vpack.c.b16 %v4634, %v4622
        %v6159 = vpack.c.b16 %v4635, %v4623
        %v6160 = vpack.c.b16 %v4648, %v4636
        %v6161 = vpack.c.b16 %v4649, %v4637
        %v6162 = vpack.c.b16 %v4650, %v4638
        %v6163 = vpack.c.b16 %v4651, %v4639
        %v6164 = vpack.c.b16 %v4652, %v4640
        %v6165 = vpack.c.b16 %v4653, %v4641
        %v6166 = vpack.c.b16 %v4654, %v4642
        %v6167 = vpack.c.b16 %v4655, %v4643
        %v6168 = vpack.c.b16 %v4656, %v4644
        %v6169 = vpack.c.b16 %v4657, %v4645
        %v6170 = vpack.c.b16 %v4658, %v4646
        %v6171 = vpack.c.b16 %v4659, %v4647
        %v6172 = vpack.c.b16 %v4672, %v4660
        %v6173 = vpack.c.b16 %v4673, %v4661
        %v6174 = vpack.c.b16 %v4674, %v4662
        %v6175 = vpack.c.b16 %v4675, %v4663
        %v6176 = vpack.c.b16 %v4676, %v4664
        %v6177 = vpack.c.b16 %v4677, %v4665
        %v6178 = vpack.c.b16 %v4678, %v4666
        %v6179 = vpack.c.b16 %v4679, %v4667
        %v6180 = vpack.c.b16 %v4680, %v4668
        %v6181 = vpack.c.b16 %v4681, %v4669
        %v6182 = vpack.c.b16 %v4682, %v4670
        %v6183 = vpack.c.b16 %v4683, %v4671
        %v6184 = vpack.c.b16 %v4696, %v4684
        %v6185 = vpack.c.b16 %v4697, %v4685
        %v6186 = vpack.c.b16 %v4698, %v4686
        %v6187 = vpack.c.b16 %v4699, %v4687
        %v6188 = vpack.c.b16 %v4700, %v4688
        %v6189 = vpack.c.b16 %v4701, %v4689
        %v6190 = vpack.c.b16 %v4702, %v4690
        %v6191 = vpack.c.b16 %v4703, %v4691
        %v6192 = vpack.c.b16 %v4704, %v4692
        %v6193 = vpack.c.b16 %v4705, %v4693
        %v6194 = vpack.c.b16 %v4706, %v4694
        %v6195 = vpack.c.b16 %v4707, %v4695
        %v6196 = vpack.c.b16 %v4720, %v4708
        %v6197 = vpack.c.b16 %v4721, %v4709
        %v6198 = vpack.c.b16 %v4722, %v4710
        %v6199 = vpack.c.b16 %v4723, %v4711
        %v6200 = vpack.c.b16 %v4724, %v4712
        %v6201 = vpack.c.b16 %v4725, %v4713
        %v6202 = vpack.c.b16 %v4726, %v4714
        %v6203 = vpack.c.b16 %v4727, %v4715
        %v6204 = vpack.c.b16 %v4728, %v4716
        %v6205 = vpack.c.b16 %v4729, %v4717
        %v6206 = vpack.c.b16 %v4730, %v4718
        %v6207 = vpack.c.b16 %v4731, %v4719
        %v6208 = vpack.c.b16 %v4744, %v4732
        %v6209 = vpack.c.b16 %v4745, %v4733
        %v6210 = vpack.c.b16 %v4746, %v4734
        %v6211 = vpack.c.b16 %v4747, %v4735
        %v6212 = vpack.c.b16 %v4748, %v4736
        %v6213 = vpack.c.b16 %v4749, %v4737
        %v6214 = vpack.c.b16 %v4750, %v4738
        %v6215 = vpack.c.b16 %v4751, %v4739
        %v6216 = vpack.c.b16 %v4752, %v4740
        %v6217 = vpack.c.b16 %v4753, %v4741
        %v6218 = vpack.c.b16 %v4754, %v4742
        %v6219 = vpack.c.b16 %v4755, %v4743
        %v6220 = vpack.c.b16 %v4768, %v4756
        %v6221 = vpack.c.b16 %v4769, %v4757
        %v6222 = vpack.c.b16 %v4770, %v4758
        %v6223 = vpack.c.b16 %v4771, %v4759
        %v6224 = vpack.c.b16 %v4772, %v4760
        %v6225 = vpack.c.b16 %v4773, %v4761
        %v6226 = vpack.c.b16 %v4774, %v4762
        %v6227 = vpack.c.b16 %v4775, %v4763
        %v6228 = vpack.c.b16 %v4776, %v4764
        %v6229 = vpack.c.b16 %v4777, %v4765
        %v6230 = vpack.c.b16 %v4778, %v4766
        %v6231 = vpack.c.b16 %v4779, %v4767
        %v6232 = vpack.c.b16 %v4792, %v4780
        %v6233 = vpack.c.b16 %v4793, %v4781
        %v6234 = vpack.c.b16 %v4794, %v4782
        %v6235 = vpack.c.b16 %v4795, %v4783
        %v6236 = vpack.c.b16 %v4796, %v4784
        %v6237 = vpack.c.b16 %v4797, %v4785
        %v6238 = vpack.c.b16 %v4798, %v4786
        %v6239 = vpack.c.b16 %v4799, %v4787
        %v6240 = vpack.c.b16 %v4800, %v4788
        %v6241 = vpack.c.b16 %v4801, %v4789
        %v6242 = vpack.c.b16 %v4802, %v4790
        %v6243 = vpack.c.b16 %v4803, %v4791
        %v6244 = vpack.c.b16 %v4816, %v4804
        %v6245 = vpack.c.b16 %v4817, %v4805
        %v6246 = vpack.c.b16 %v4818, %v4806
        %v6247 = vpack.c.b16 %v4819, %v4807
        %v6248 = vpack.c.b16 %v4820, %v4808
        %v6249 = vpack.c.b16 %v4821, %v4809
        %v6250 = vpack.c.b16 %v4822, %v4810
        %v6251 = vpack.c.b16 %v4823, %v4811
        %v6252 = vpack.c.b16 %v4824, %v4812
        %v6253 = vpack.c.b16 %v4825, %v4813
        %v6254 = vpack.c.b16 %v4826, %v4814
        %v6255 = vpack.c.b16 %v4827, %v4815
        %v6256 = vpack.c.b16 %v4840, %v4828
        %v6257 = vpack.c.b16 %v4841, %v4829
        %v6258 = vpack.c.b16 %v4842, %v4830
        %v6259 = vpack.c.b16 %v4843, %v4831
        %v6260 = vpack.c.b16 %v4844, %v4832
        %v6261 = vpack.c.b16 %v4845, %v4833
        %v6262 = vpack.c.b16 %v4846, %v4834
        %v6263 = vpack.c.b16 %v4847, %v4835
        %v6264 = vpack.c.b16 %v4848, %v4836
        %v6265 = vpack.c.b16 %v4849, %v4837
        %v6266 = vpack.c.b16 %v4850, %v4838
        %v6267 = vpack.c.b16 %v4851, %v4839
        %v6268 = vpack.c.b16 %v4864, %v4852
        %v6269 = vpack.c.b16 %v4865, %v4853
        %v6270 = vpack.c.b16 %v4866, %v4854
        %v6271 = vpack.c.b16 %v4867, %v4855
        %v6272 = vpack.c.b16 %v4868, %v4856
        %v6273 = vpack.c.b16 %v4869, %v4857
        %v6274 = vpack.c.b16 %v4870, %v4858
        %v6275 = vpack.c.b16 %v4871, %v4859
        %v6276 = vpack.c.b16 %v4872, %v4860
        %v6277 = vpack.c.b16 %v4873, %v4861
        %v6278 = vpack.c.b16 %v4874, %v4862
        %v6279 = vpack.c.b16 %v4875, %v4863
        %v6280 = vpack.c.b16 %v4888, %v4876
        %v6281 = vpack.c.b16 %v4889, %v4877
        %v6282 = vpack.c.b16 %v4890, %v4878
        %v6283 = vpack.c.b16 %v4891, %v4879
        %v6284 = vpack.c.b16 %v4892, %v4880
        %v6285 = vpack.c.b16 %v4893, %v4881
        %v6286 = vpack.c.b16 %v4894, %v4882
        %v6287 = vpack.c.b16 %v4895, %v4883
        %v6288 = vpack.c.b16 %v4896, %v4884
        %v6289 = vpack.c.b16 %v4897, %v4885
        %v6290 = vpack.c.b16 %v4898, %v4886
        %v6291 = vpack.c.b16 %v4899, %v4887
        %v6292 = vpack.c.b16 %v4912, %v4900
        %v6293 = vpack.c.b16 %v4913, %v4901
        %v6294 = vpack.c.b16 %v4914, %v4902
        %v6295 = vpack.c.b16 %v4915, %v4903
        %v6296 = vpack.c.b16 %v4916, %v4904
        %v6297 = vpack.c.b16 %v4917, %v4905
        %v6298 = vpack.c.b16 %v4918, %v4906
        %v6299 = vpack.c.b16 %v4919, %v4907
        %v6300 = vpack.c.b16 %v4920, %v4908
        %v6301 = vpack.c.b16 %v4921, %v4909
        %v6302 = vpack.c.b16 %v4922, %v4910
        %v6303 = vpack.c.b16 %v4923, %v4911
        %v6304 = vpack.c.b16 %v4936, %v4924
        %v6305 = vpack.c.b16 %v4937, %v4925
        %v6306 = vpack.c.b16 %v4938, %v4926
        %v6307 = vpack.c.b16 %v4939, %v4927
        %v6308 = vpack.c.b16 %v4940, %v4928
        %v6309 = vpack.c.b16 %v4941, %v4929
        %v6310 = vpack.c.b16 %v4942, %v4930
        %v6311 = vpack.c.b16 %v4943, %v4931
        %v6312 = vpack.c.b16 %v4944, %v4932
        %v6313 = vpack.c.b16 %v4945, %v4933
        %v6314 = vpack.c.b16 %v4946, %v4934
        %v6315 = vpack.c.b16 %v4947, %v4935
        %v6316 = vpack.c.b16 %v4960, %v4948
        %v6317 = vpack.c.b16 %v4961, %v4949
        %v6318 = vpack.c.b16 %v4962, %v4950
        %v6319 = vpack.c.b16 %v4963, %v4951
        %v6320 = vpack.c.b16 %v4964, %v4952
        %v6321 = vpack.c.b16 %v4965, %v4953
        %v6322 = vpack.c.b16 %v4966, %v4954
        %v6323 = vpack.c.b16 %v4967, %v4955
        %v6324 = vpack.c.b16 %v4968, %v4956
        %v6325 = vpack.c.b16 %v4969, %v4957
        %v6326 = vpack.c.b16 %v4970, %v4958
        %v6327 = vpack.c.b16 %v4971, %v4959
        %v6328 = vpack.c.b16 %v4984, %v4972
        %v6329 = vpack.c.b16 %v4985, %v4973
        %v6330 = vpack.c.b16 %v4986, %v4974
        %v6331 = vpack.c.b16 %v4987, %v4975
        %v6332 = vpack.c.b16 %v4988, %v4976
        %v6333 = vpack.c.b16 %v4989, %v4977
        %v6334 = vpack.c.b16 %v4990, %v4978
        %v6335 = vpack.c.b16 %v4991, %v4979
        %v6336 = vpack.c.b16 %v4992, %v4980
        %v6337 = vpack.c.b16 %v4993, %v4981
        %v6338 = vpack.c.b16 %v4994, %v4982
        %v6339 = vpack.c.b16 %v4995, %v4983
        %v6340 = vpack.c.b16 %v5008, %v4996
        %v6341 = vpack.c.b16 %v5009, %v4997
        %v6342 = vpack.c.b16 %v5010, %v4998
        %v6343 = vpack.c.b16 %v5011, %v4999
        %v6344 = vpack.c.b16 %v5012, %v5000
        %v6345 = vpack.c.b16 %v5013, %v5001
        %v6346 = vpack.c.b16 %v5014, %v5002
        %v6347 = vpack.c.b16 %v5015, %v5003
        %v6348 = vpack.c.b16 %v5016, %v5004
        %v6349 = vpack.c.b16 %v5017, %v5005
        %v6350 = vpack.c.b16 %v5018, %v5006
        %v6351 = vpack.c.b16 %v5019, %v5007
        %v6352 = vpack.c.b16 %v5032, %v5020
        %v6353 = vpack.c.b16 %v5033, %v5021
        %v6354 = vpack.c.b16 %v5034, %v5022
        %v6355 = vpack.c.b16 %v5035, %v5023
        %v6356 = vpack.c.b16 %v5036, %v5024
        %v6357 = vpack.c.b16 %v5037, %v5025
        %v6358 = vpack.c.b16 %v5038, %v5026
        %v6359 = vpack.c.b16 %v5039, %v5027
        %v6360 = vpack.c.b16 %v5040, %v5028
        %v6361 = vpack.c.b16 %v5041, %v5029
        %v6362 = vpack.c.b16 %v5042, %v5030
        %v6363 = vpack.c.b16 %v5043, %v5031
        %v6364 = vpack.c.b16 %v5056, %v5044
        %v6365 = vpack.c.b16 %v5057, %v5045
        %v6366 = vpack.c.b16 %v5058, %v5046
        %v6367 = vpack.c.b16 %v5059, %v5047
        %v6368 = vpack.c.b16 %v5060, %v5048
        %v6369 = vpack.c.b16 %v5061, %v5049
        %v6370 = vpack.c.b16 %v5062, %v5050
        %v6371 = vpack.c.b16 %v5063, %v5051
        %v6372 = vpack.c.b16 %v5064, %v5052
        %v6373 = vpack.c.b16 %v5065, %v5053
        %v6374 = vpack.c.b16 %v5066, %v5054
        %v6375 = vpack.c.b16 %v5067, %v5055
        %v6376 = vpack.c.b16 %v5080, %v5068
        %v6377 = vpack.c.b16 %v5081, %v5069
        %v6378 = vpack.c.b16 %v5082, %v5070
        %v6379 = vpack.c.b16 %v5083, %v5071
        %v6380 = vpack.c.b16 %v5084, %v5072
        %v6381 = vpack.c.b16 %v5085, %v5073
        %v6382 = vpack.c.b16 %v5086, %v5074
        %v6383 = vpack.c.b16 %v5087, %v5075
        %v6384 = vpack.c.b16 %v5088, %v5076
        %v6385 = vpack.c.b16 %v5089, %v5077
        %v6386 = vpack.c.b16 %v5090, %v5078
        %v6387 = vpack.c.b16 %v5091, %v5079
        %v6388 = vpack.c.b16 %v5104, %v5092
        %v6389 = vpack.c.b16 %v5105, %v5093
        %v6390 = vpack.c.b16 %v5106, %v5094
        %v6391 = vpack.c.b16 %v5107, %v5095
        %v6392 = vpack.c.b16 %v5108, %v5096
        %v6393 = vpack.c.b16 %v5109, %v5097
        %v6394 = vpack.c.b16 %v5110, %v5098
        %v6395 = vpack.c.b16 %v5111, %v5099
        %v6396 = vpack.c.b16 %v5112, %v5100
        %v6397 = vpack.c.b16 %v5113, %v5101
        %v6398 = vpack.c.b16 %v5114, %v5102
        %v6399 = vpack.c.b16 %v5115, %v5103
        %v6400 = vpack.c.b16 %v5128, %v5116
        %v6401 = vpack.c.b16 %v5129, %v5117
        %v6402 = vpack.c.b16 %v5130, %v5118
        %v6403 = vpack.c.b16 %v5131, %v5119
        %v6404 = vpack.c.b16 %v5132, %v5120
        %v6405 = vpack.c.b16 %v5133, %v5121
        %v6406 = vpack.c.b16 %v5134, %v5122
        %v6407 = vpack.c.b16 %v5135, %v5123
        %v6408 = vpack.c.b16 %v5136, %v5124
        %v6409 = vpack.c.b16 %v5137, %v5125
        %v6410 = vpack.c.b16 %v5138, %v5126
        %v6411 = vpack.c.b16 %v5139, %v5127
        %v6412 = vpack.c.b16 %v5152, %v5140
        %v6413 = vpack.c.b16 %v5153, %v5141
        %v6414 = vpack.c.b16 %v5154, %v5142
        %v6415 = vpack.c.b16 %v5155, %v5143
        %v6416 = vpack.c.b16 %v5156, %v5144
        %v6417 = vpack.c.b16 %v5157, %v5145
        %v6418 = vpack.c.b16 %v5158, %v5146
        %v6419 = vpack.c.b16 %v5159, %v5147
        %v6420 = vpack.c.b16 %v5160, %v5148
        %v6421 = vpack.c.b16 %v5161, %v5149
        %v6422 = vpack.c.b16 %v5162, %v5150
        %v6423 = vpack.c.b16 %v5163, %v5151
        %v6424 = vpack.c.b16 %v5176, %v5164
        %v6425 = vpack.c.b16 %v5177, %v5165
        %v6426 = vpack.c.b16 %v5178, %v5166
        %v6427 = vpack.c.b16 %v5179, %v5167
        %v6428 = vpack.c.b16 %v5180, %v5168
        %v6429 = vpack.c.b16 %v5181, %v5169
        %v6430 = vpack.c.b16 %v5182, %v5170
        %v6431 = vpack.c.b16 %v5183, %v5171
        %v6432 = vpack.c.b16 %v5184, %v5172
        %v6433 = vpack.c.b16 %v5185, %v5173
        %v6434 = vpack.c.b16 %v5186, %v5174
        %v6435 = vpack.c.b16 %v5187, %v5175
        %v6436 = vpack.c.b16 %v5200, %v5188
        %v6437 = vpack.c.b16 %v5201, %v5189
        %v6438 = vpack.c.b16 %v5202, %v5190
        %v6439 = vpack.c.b16 %v5203, %v5191
        %v6440 = vpack.c.b16 %v5204, %v5192
        %v6441 = vpack.c.b16 %v5205, %v5193
        %v6442 = vpack.c.b16 %v5206, %v5194
        %v6443 = vpack.c.b16 %v5207, %v5195
        %v6444 = vpack.c.b16 %v5208, %v5196
        %v6445 = vpack.c.b16 %v5209, %v5197
        %v6446 = vpack.c.b16 %v5210, %v5198
        %v6447 = vpack.c.b16 %v5211, %v5199
        %v6448 = vpack.c.b16 %v5224, %v5212
        %v6449 = vpack.c.b16 %v5225, %v5213
        %v6450 = vpack.c.b16 %v5226, %v5214
        %v6451 = vpack.c.b16 %v5227, %v5215
        %v6452 = vpack.c.b16 %v5228, %v5216
        %v6453 = vpack.c.b16 %v5229, %v5217
        %v6454 = vpack.c.b16 %v5230, %v5218
        %v6455 = vpack.c.b16 %v5231, %v5219
        %v6456 = vpack.c.b16 %v5232, %v5220
        %v6457 = vpack.c.b16 %v5233, %v5221
        %v6458 = vpack.c.b16 %v5234, %v5222
        %v6459 = vpack.c.b16 %v5235, %v5223
        %v6460 = vpack.c.b16 %v5248, %v5236
        %v6461 = vpack.c.b16 %v5249, %v5237
        %v6462 = vpack.c.b16 %v5250, %v5238
        %v6463 = vpack.c.b16 %v5251, %v5239
        %v6464 = vpack.c.b16 %v5252, %v5240
        %v6465 = vpack.c.b16 %v5253, %v5241
        %v6466 = vpack.c.b16 %v5254, %v5242
        %v6467 = vpack.c.b16 %v5255, %v5243
        %v6468 = vpack.c.b16 %v5256, %v5244
        %v6469 = vpack.c.b16 %v5257, %v5245
        %v6470 = vpack.c.b16 %v5258, %v5246
        %v6471 = vpack.c.b16 %v5259, %v5247
        %v6472 = vpack.c.b16 %v5272, %v5260
        %v6473 = vpack.c.b16 %v5273, %v5261
        %v6474 = vpack.c.b16 %v5274, %v5262
        %v6475 = vpack.c.b16 %v5275, %v5263
        %v6476 = vpack.c.b16 %v5276, %v5264
        %v6477 = vpack.c.b16 %v5277, %v5265
        %v6478 = vpack.c.b16 %v5278, %v5266
        %v6479 = vpack.c.b16 %v5279, %v5267
        %v6480 = vpack.c.b16 %v5280, %v5268
        %v6481 = vpack.c.b16 %v5281, %v5269
        %v6482 = vpack.c.b16 %v5282, %v5270
        %v6483 = vpack.c.b16 %v5283, %v5271
        %v6484 = vpack.c.b16 %v5296, %v5284
        %v6485 = vpack.c.b16 %v5297, %v5285
        %v6486 = vpack.c.b16 %v5298, %v5286
        %v6487 = vpack.c.b16 %v5299, %v5287
        %v6488 = vpack.c.b16 %v5300, %v5288
        %v6489 = vpack.c.b16 %v5301, %v5289
        %v6490 = vpack.c.b16 %v5302, %v5290
        %v6491 = vpack.c.b16 %v5303, %v5291
        %v6492 = vpack.c.b16 %v5304, %v5292
        %v6493 = vpack.c.b16 %v5305, %v5293
        %v6494 = vpack.c.b16 %v5306, %v5294
        %v6495 = vpack.c.b16 %v5307, %v5295
        %v6496 = vpack.c.b16 %v5320, %v5308
        %v6497 = vpack.c.b16 %v5321, %v5309
        %v6498 = vpack.c.b16 %v5322, %v5310
        %v6499 = vpack.c.b16 %v5323, %v5311
        %v6500 = vpack.c.b16 %v5324, %v5312
        %v6501 = vpack.c.b16 %v5325, %v5313
        %v6502 = vpack.c.b16 %v5326, %v5314
        %v6503 = vpack.c.b16 %v5327, %v5315
        %v6504 = vpack.c.b16 %v5328, %v5316
        %v6505 = vpack.c.b16 %v5329, %v5317
        %v6506 = vpack.c.b16 %v5330, %v5318
        %v6507 = vpack.c.b16 %v5331, %v5319
        %v6508 = vpack.c.b16 %v5344, %v5332
        %v6509 = vpack.c.b16 %v5345, %v5333
        %v6510 = vpack.c.b16 %v5346, %v5334
        %v6511 = vpack.c.b16 %v5347, %v5335
        %v6512 = vpack.c.b16 %v5348, %v5336
        %v6513 = vpack.c.b16 %v5349, %v5337
        %v6514 = vpack.c.b16 %v5350, %v5338
        %v6515 = vpack.c.b16 %v5351, %v5339
        %v6516 = vpack.c.b16 %v5352, %v5340
        %v6517 = vpack.c.b16 %v5353, %v5341
        %v6518 = vpack.c.b16 %v5354, %v5342
        %v6519 = vpack.c.b16 %v5355, %v5343
        %v6520 = vpack.c.b16 %v5368, %v5356
        %v6521 = vpack.c.b16 %v5369, %v5357
        %v6522 = vpack.c.b16 %v5370, %v5358
        %v6523 = vpack.c.b16 %v5371, %v5359
        %v6524 = vpack.c.b16 %v5372, %v5360
        %v6525 = vpack.c.b16 %v5373, %v5361
        %v6526 = vpack.c.b16 %v5374, %v5362
        %v6527 = vpack.c.b16 %v5375, %v5363
        %v6528 = vpack.c.b16 %v5376, %v5364
        %v6529 = vpack.c.b16 %v5377, %v5365
        %v6530 = vpack.c.b16 %v5378, %v5366
        %v6531 = vpack.c.b16 %v5379, %v5367
        %v6532 = vpack.c.b16 %v5392, %v5380
        %v6533 = vpack.c.b16 %v5393, %v5381
        %v6534 = vpack.c.b16 %v5394, %v5382
        %v6535 = vpack.c.b16 %v5395, %v5383
        %v6536 = vpack.c.b16 %v5396, %v5384
        %v6537 = vpack.c.b16 %v5397, %v5385
        %v6538 = vpack.c.b16 %v5398, %v5386
        %v6539 = vpack.c.b16 %v5399, %v5387
        %v6540 = vpack.c.b16 %v5400, %v5388
        %v6541 = vpack.c.b16 %v5401, %v5389
        %v6542 = vpack.c.b16 %v5402, %v5390
        %v6543 = vpack.c.b16 %v5403, %v5391
        %v6544 = vpack.c.b16 %v5416, %v5404
        %v6545 = vpack.c.b16 %v5417, %v5405
        %v6546 = vpack.c.b16 %v5418, %v5406
        %v6547 = vpack.c.b16 %v5419, %v5407
        %v6548 = vpack.c.b16 %v5420, %v5408
        %v6549 = vpack.c.b16 %v5421, %v5409
        %v6550 = vpack.c.b16 %v5422, %v5410
        %v6551 = vpack.c.b16 %v5423, %v5411
        %v6552 = vpack.c.b16 %v5424, %v5412
        %v6553 = vpack.c.b16 %v5425, %v5413
        %v6554 = vpack.c.b16 %v5426, %v5414
        %v6555 = vpack.c.b16 %v5427, %v5415
        %v6556 = vpack.c.b16 %v5440, %v5428
        %v6557 = vpack.c.b16 %v5441, %v5429
        %v6558 = vpack.c.b16 %v5442, %v5430
        %v6559 = vpack.c.b16 %v5443, %v5431
        %v6560 = vpack.c.b16 %v5444, %v5432
        %v6561 = vpack.c.b16 %v5445, %v5433
        %v6562 = vpack.c.b16 %v5446, %v5434
        %v6563 = vpack.c.b16 %v5447, %v5435
        %v6564 = vpack.c.b16 %v5448, %v5436
        %v6565 = vpack.c.b16 %v5449, %v5437
        %v6566 = vpack.c.b16 %v5450, %v5438
        %v6567 = vpack.c.b16 %v5451, %v5439
        %v6568 = vpack.c.b16 %v5464, %v5452
        %v6569 = vpack.c.b16 %v5465, %v5453
        %v6570 = vpack.c.b16 %v5466, %v5454
        %v6571 = vpack.c.b16 %v5467, %v5455
        %v6572 = vpack.c.b16 %v5468, %v5456
        %v6573 = vpack.c.b16 %v5469, %v5457
        %v6574 = vpack.c.b16 %v5470, %v5458
        %v6575 = vpack.c.b16 %v5471, %v5459
        %v6576 = vpack.c.b16 %v5472, %v5460
        %v6577 = vpack.c.b16 %v5473, %v5461
        %v6578 = vpack.c.b16 %v5474, %v5462
        %v6579 = vpack.c.b16 %v5475, %v5463
        %v6580 = vpack.c.b16 %v5488, %v5476
        %v6581 = vpack.c.b16 %v5489, %v5477
        %v6582 = vpack.c.b16 %v5490, %v5478
        %v6583 = vpack.c.b16 %v5491, %v5479
        %v6584 = vpack.c.b16 %v5492, %v5480
        %v6585 = vpack.c.b16 %v5493, %v5481
        %v6586 = vpack.c.b16 %v5494, %v5482
        %v6587 = vpack.c.b16 %v5495, %v5483
        %v6588 = vpack.c.b16 %v5496, %v5484
        %v6589 = vpack.c.b16 %v5497, %v5485
        %v6590 = vpack.c.b16 %v5498, %v5486
        %v6591 = vpack.c.b16 %v5499, %v5487
        %v6592 = vpack.c.b16 %v5512, %v5500
        %v6593 = vpack.c.b16 %v5513, %v5501
        %v6594 = vpack.c.b16 %v5514, %v5502
        %v6595 = vpack.c.b16 %v5515, %v5503
        %v6596 = vpack.c.b16 %v5516, %v5504
        %v6597 = vpack.c.b16 %v5517, %v5505
        %v6598 = vpack.c.b16 %v5518, %v5506
        %v6599 = vpack.c.b16 %v5519, %v5507
        %v6600 = vpack.c.b16 %v5520, %v5508
        %v6601 = vpack.c.b16 %v5521, %v5509
        %v6602 = vpack.c.b16 %v5522, %v5510
        %v6603 = vpack.c.b16 %v5523, %v5511
        %v6604 = vpack.c.b16 %v5536, %v5524
        %v6605 = vpack.c.b16 %v5537, %v5525
        %v6606 = vpack.c.b16 %v5538, %v5526
        %v6607 = vpack.c.b16 %v5539, %v5527
        %v6608 = vpack.c.b16 %v5540, %v5528
        %v6609 = vpack.c.b16 %v5541, %v5529
        %v6610 = vpack.c.b16 %v5542, %v5530
        %v6611 = vpack.c.b16 %v5543, %v5531
        %v6612 = vpack.c.b16 %v5544, %v5532
        %v6613 = vpack.c.b16 %v5545, %v5533
        %v6614 = vpack.c.b16 %v5546, %v5534
        %v6615 = vpack.c.b16 %v5547, %v5535
        %v6616 = vpack.c.b16 %v5560, %v5548
        %v6617 = vpack.c.b16 %v5561, %v5549
        %v6618 = vpack.c.b16 %v5562, %v5550
        %v6619 = vpack.c.b16 %v5563, %v5551
        %v6620 = vpack.c.b16 %v5564, %v5552
        %v6621 = vpack.c.b16 %v5565, %v5553
        %v6622 = vpack.c.b16 %v5566, %v5554
        %v6623 = vpack.c.b16 %v5567, %v5555
        %v6624 = vpack.c.b16 %v5568, %v5556
        %v6625 = vpack.c.b16 %v5569, %v5557
        %v6626 = vpack.c.b16 %v5570, %v5558
        %v6627 = vpack.c.b16 %v5571, %v5559
        %v6628 = vpack.c.b16 %v5584, %v5572
        %v6629 = vpack.c.b16 %v5585, %v5573
        %v6630 = vpack.c.b16 %v5586, %v5574
        %v6631 = vpack.c.b16 %v5587, %v5575
        %v6632 = vpack.c.b16 %v5588, %v5576
        %v6633 = vpack.c.b16 %v5589, %v5577
        %v6634 = vpack.c.b16 %v5590, %v5578
        %v6635 = vpack.c.b16 %v5591, %v5579
        %v6636 = vpack.c.b16 %v5592, %v5580
        %v6637 = vpack.c.b16 %v5593, %v5581
        %v6638 = vpack.c.b16 %v5594, %v5582
        %v6639 = vpack.c.b16 %v5595, %v5583
        %v6640 = vpack.c.b16 %v5608, %v5596
        %v6641 = vpack.c.b16 %v5609, %v5597
        %v6642 = vpack.c.b16 %v5610, %v5598
        %v6643 = vpack.c.b16 %v5611, %v5599
        %v6644 = vpack.c.b16 %v5612, %v5600
        %v6645 = vpack.c.b16 %v5613, %v5601
        %v6646 = vpack.c.b16 %v5614, %v5602
        %v6647 = vpack.c.b16 %v5615, %v5603
        %v6648 = vpack.c.b16 %v5616, %v5604
        %v6649 = vpack.c.b16 %v5617, %v5605
        %v6650 = vpack.c.b16 %v5618, %v5606
        %v6651 = vpack.c.b16 %v5619, %v5607
        %v6652 = vpack.c.b16 %v5632, %v5620
        %v6653 = vpack.c.b16 %v5633, %v5621
        %v6654 = vpack.c.b16 %v5634, %v5622
        %v6655 = vpack.c.b16 %v5635, %v5623
        %v6656 = vpack.c.b16 %v5636, %v5624
        %v6657 = vpack.c.b16 %v5637, %v5625
        %v6658 = vpack.c.b16 %v5638, %v5626
        %v6659 = vpack.c.b16 %v5639, %v5627
        %v6660 = vpack.c.b16 %v5640, %v5628
        %v6661 = vpack.c.b16 %v5641, %v5629
        %v6662 = vpack.c.b16 %v5642, %v5630
        %v6663 = vpack.c.b16 %v5643, %v5631
        %v6664 = vpack.c.b16 %v5656, %v5644
        %v6665 = vpack.c.b16 %v5657, %v5645
        %v6666 = vpack.c.b16 %v5658, %v5646
        %v6667 = vpack.c.b16 %v5659, %v5647
        %v6668 = vpack.c.b16 %v5660, %v5648
        %v6669 = vpack.c.b16 %v5661, %v5649
        %v6670 = vpack.c.b16 %v5662, %v5650
        %v6671 = vpack.c.b16 %v5663, %v5651
        %v6672 = vpack.c.b16 %v5664, %v5652
        %v6673 = vpack.c.b16 %v5665, %v5653
        %v6674 = vpack.c.b16 %v5666, %v5654
        %v6675 = vpack.c.b16 %v5667, %v5655
        %v6676 = vpack.c.b16 %v5680, %v5668
        %v6677 = vpack.c.b16 %v5681, %v5669
        %v6678 = vpack.c.b16 %v5682, %v5670
        %v6679 = vpack.c.b16 %v5683, %v5671
        %v6680 = vpack.c.b16 %v5684, %v5672
        %v6681 = vpack.c.b16 %v5685, %v5673
        %v6682 = vpack.c.b16 %v5686, %v5674
        %v6683 = vpack.c.b16 %v5687, %v5675
        %v6684 = vpack.c.b16 %v5688, %v5676
        %v6685 = vpack.c.b16 %v5689, %v5677
        %v6686 = vpack.c.b16 %v5690, %v5678
        %v6687 = vpack.c.b16 %v5691, %v5679
        %v6688 = vpack.c.b16 %v5704, %v5692
        %v6689 = vpack.c.b16 %v5705, %v5693
        %v6690 = vpack.c.b16 %v5706, %v5694
        %v6691 = vpack.c.b16 %v5707, %v5695
        %v6692 = vpack.c.b16 %v5708, %v5696
        %v6693 = vpack.c.b16 %v5709, %v5697
        %v6694 = vpack.c.b16 %v5710, %v5698
        %v6695 = vpack.c.b16 %v5711, %v5699
        %v6696 = vpack.c.b16 %v5712, %v5700
        %v6697 = vpack.c.b16 %v5713, %v5701
        %v6698 = vpack.c.b16 %v5714, %v5702
        %v6699 = vpack.c.b16 %v5715, %v5703
        %v6700 = vpack.c.b16 %v5728, %v5716
        %v6701 = vpack.c.b16 %v5729, %v5717
        %v6702 = vpack.c.b16 %v5730, %v5718
        %v6703 = vpack.c.b16 %v5731, %v5719
        %v6704 = vpack.c.b16 %v5732, %v5720
        %v6705 = vpack.c.b16 %v5733, %v5721
        %v6706 = vpack.c.b16 %v5734, %v5722
        %v6707 = vpack.c.b16 %v5735, %v5723
        %v6708 = vpack.c.b16 %v5736, %v5724
        %v6709 = vpack.c.b16 %v5737, %v5725
        %v6710 = vpack.c.b16 %v5738, %v5726
        %v6711 = vpack.c.b16 %v5739, %v5727
        %v6712 = vpack.c.b16 %v5752, %v5740
        %v6713 = vpack.c.b16 %v5753, %v5741
        %v6714 = vpack.c.b16 %v5754, %v5742
        %v6715 = vpack.c.b16 %v5755, %v5743
        %v6716 = vpack.c.b16 %v5756, %v5744
        %v6717 = vpack.c.b16 %v5757, %v5745
        %v6718 = vpack.c.b16 %v5758, %v5746
        %v6719 = vpack.c.b16 %v5759, %v5747
        %v6720 = vpack.c.b16 %v5760, %v5748
        %v6721 = vpack.c.b16 %v5761, %v5749
        %v6722 = vpack.c.b16 %v5762, %v5750
        %v6723 = vpack.c.b16 %v5763, %v5751
        %v6724 = vpack.c.b16 %v5776, %v5764
        %v6725 = vpack.c.b16 %v5777, %v5765
        %v6726 = vpack.c.b16 %v5778, %v5766
        %v6727 = vpack.c.b16 %v5779, %v5767
        %v6728 = vpack.c.b16 %v5780, %v5768
        %v6729 = vpack.c.b16 %v5781, %v5769
        %v6730 = vpack.c.b16 %v5782, %v5770
        %v6731 = vpack.c.b16 %v5783, %v5771
        %v6732 = vpack.c.b16 %v5784, %v5772
        %v6733 = vpack.c.b16 %v5785, %v5773
        %v6734 = vpack.c.b16 %v5786, %v5774
        %v6735 = vpack.c.b16 %v5787, %v5775
        %v6736 = vpack.c.b16 %v5800, %v5788
        %v6737 = vpack.c.b16 %v5801, %v5789
        %v6738 = vpack.c.b16 %v5802, %v5790
        %v6739 = vpack.c.b16 %v5803, %v5791
        %v6740 = vpack.c.b16 %v5804, %v5792
        %v6741 = vpack.c.b16 %v5805, %v5793
        %v6742 = vpack.c.b16 %v5806, %v5794
        %v6743 = vpack.c.b16 %v5807, %v5795
        %v6744 = vpack.c.b16 %v5808, %v5796
        %v6745 = vpack.c.b16 %v5809, %v5797
        %v6746 = vpack.c.b16 %v5810, %v5798
        %v6747 = vpack.c.b16 %v5811, %v5799
        %v6748 = vpack.c.b16 %v5824, %v5812
        %v6749 = vpack.c.b16 %v5825, %v5813
        %v6750 = vpack.c.b16 %v5826, %v5814
        %v6751 = vpack.c.b16 %v5827, %v5815
        %v6752 = vpack.c.b16 %v5828, %v5816
        %v6753 = vpack.c.b16 %v5829, %v5817
        %v6754 = vpack.c.b16 %v5830, %v5818
        %v6755 = vpack.c.b16 %v5831, %v5819
        %v6756 = vpack.c.b16 %v5832, %v5820
        %v6757 = vpack.c.b16 %v5833, %v5821
        %v6758 = vpack.c.b16 %v5834, %v5822
        %v6759 = vpack.c.b16 %v5835, %v5823
        %v6760 = vpack.c.b16 %v5848, %v5836
        %v6761 = vpack.c.b16 %v5849, %v5837
        %v6762 = vpack.c.b16 %v5850, %v5838
        %v6763 = vpack.c.b16 %v5851, %v5839
        %v6764 = vpack.c.b16 %v5852, %v5840
        %v6765 = vpack.c.b16 %v5853, %v5841
        %v6766 = vpack.c.b16 %v5854, %v5842
        %v6767 = vpack.c.b16 %v5855, %v5843
        %v6768 = vpack.c.b16 %v5856, %v5844
        %v6769 = vpack.c.b16 %v5857, %v5845
        %v6770 = vpack.c.b16 %v5858, %v5846
        %v6771 = vpack.c.b16 %v5859, %v5847
        %v6772 = vpack.c.b16 %v5872, %v5860
        %v6773 = vpack.c.b16 %v5873, %v5861
        %v6774 = vpack.c.b16 %v5874, %v5862
        %v6775 = vpack.c.b16 %v5875, %v5863
        %v6776 = vpack.c.b16 %v5876, %v5864
        %v6777 = vpack.c.b16 %v5877, %v5865
        %v6778 = vpack.c.b16 %v5878, %v5866
        %v6779 = vpack.c.b16 %v5879, %v5867
        %v6780 = vpack.c.b16 %v5880, %v5868
        %v6781 = vpack.c.b16 %v5881, %v5869
        %v6782 = vpack.c.b16 %v5882, %v5870
        %v6783 = vpack.c.b16 %v5883, %v5871
        %v6784 = vpack.c.b16 %v5896, %v5884
        %v6785 = vpack.c.b16 %v5897, %v5885
        %v6786 = vpack.c.b16 %v5898, %v5886
        %v6787 = vpack.c.b16 %v5899, %v5887
        %v6788 = vpack.c.b16 %v5900, %v5888
        %v6789 = vpack.c.b16 %v5901, %v5889
        %v6790 = vpack.c.b16 %v5902, %v5890
        %v6791 = vpack.c.b16 %v5903, %v5891
        %v6792 = vpack.c.b16 %v5904, %v5892
        %v6793 = vpack.c.b16 %v5905, %v5893
        %v6794 = vpack.c.b16 %v5906, %v5894
        %v6795 = vpack.c.b16 %v5907, %v5895
        %v6796 = vpack.c.b16 %v5920, %v5908
        %v6797 = vpack.c.b16 %v5921, %v5909
        %v6798 = vpack.c.b16 %v5922, %v5910
        %v6799 = vpack.c.b16 %v5923, %v5911
        %v6800 = vpack.c.b16 %v5924, %v5912
        %v6801 = vpack.c.b16 %v5925, %v5913
        %v6802 = vpack.c.b16 %v5926, %v5914
        %v6803 = vpack.c.b16 %v5927, %v5915
        %v6804 = vpack.c.b16 %v5928, %v5916
        %v6805 = vpack.c.b16 %v5929, %v5917
        %v6806 = vpack.c.b16 %v5930, %v5918
        %v6807 = vpack.c.b16 %v5931, %v5919
        %v6808 = vpack.c.b16 %v5944, %v5932
        %v6809 = vpack.c.b16 %v5945, %v5933
        %v6810 = vpack.c.b16 %v5946, %v5934
        %v6811 = vpack.c.b16 %v5947, %v5935
        %v6812 = vpack.c.b16 %v5948, %v5936
        %v6813 = vpack.c.b16 %v5949, %v5937
        %v6814 = vpack.c.b16 %v5950, %v5938
        %v6815 = vpack.c.b16 %v5951, %v5939
        %v6816 = vpack.c.b16 %v5952, %v5940
        %v6817 = vpack.c.b16 %v5953, %v5941
        %v6818 = vpack.c.b16 %v5954, %v5942
        %v6819 = vpack.c.b16 %v5955, %v5943
        %v6820 = vpack.c.b16 %v5968, %v5956
        %v6821 = vpack.c.b16 %v5969, %v5957
        %v6822 = vpack.c.b16 %v5970, %v5958
        %v6823 = vpack.c.b16 %v5971, %v5959
        %v6824 = vpack.c.b16 %v5972, %v5960
        %v6825 = vpack.c.b16 %v5973, %v5961
        %v6826 = vpack.c.b16 %v5974, %v5962
        %v6827 = vpack.c.b16 %v5975, %v5963
        %v6828 = vpack.c.b16 %v5976, %v5964
        %v6829 = vpack.c.b16 %v5977, %v5965
        %v6830 = vpack.c.b16 %v5978, %v5966
        %v6831 = vpack.c.b16 %v5979, %v5967
        %v6832 = vpack.c.b16 %v5992, %v5980
        %v6833 = vpack.c.b16 %v5993, %v5981
        %v6834 = vpack.c.b16 %v5994, %v5982
        %v6835 = vpack.c.b16 %v5995, %v5983
        %v6836 = vpack.c.b16 %v5996, %v5984
        %v6837 = vpack.c.b16 %v5997, %v5985
        %v6838 = vpack.c.b16 %v5998, %v5986
        %v6839 = vpack.c.b16 %v5999, %v5987
        %v6840 = vpack.c.b16 %v6000, %v5988
        %v6841 = vpack.c.b16 %v6001, %v5989
        %v6842 = vpack.c.b16 %v6002, %v5990
        %v6843 = vpack.c.b16 %v6003, %v5991
        %v6844 = vpack.c.b16 %v6016, %v6004
        %v6845 = vpack.c.b16 %v6017, %v6005
        %v6846 = vpack.c.b16 %v6018, %v6006
        %v6847 = vpack.c.b16 %v6019, %v6007
        %v6848 = vpack.c.b16 %v6020, %v6008
        %v6849 = vpack.c.b16 %v6021, %v6009
        %v6850 = vpack.c.b16 %v6022, %v6010
        %v6851 = vpack.c.b16 %v6023, %v6011
        %v6852 = vpack.c.b16 %v6024, %v6012
        %v6853 = vpack.c.b16 %v6025, %v6013
        %v6854 = vpack.c.b16 %v6026, %v6014
        %v6855 = vpack.c.b16 %v6027, %v6015
        %v6856 = vpack.c.b16 %v6040, %v6028
        %v6857 = vpack.c.b16 %v6041, %v6029
        %v6858 = vpack.c.b16 %v6042, %v6030
        %v6859 = vpack.c.b16 %v6043, %v6031
        %v6860 = vpack.c.b16 %v6044, %v6032
        %v6861 = vpack.c.b16 %v6045, %v6033
        %v6862 = vpack.c.b16 %v6046, %v6034
        %v6863 = vpack.c.b16 %v6047, %v6035
        %v6864 = vpack.c.b16 %v6048, %v6036
        %v6865 = vpack.c.b16 %v6049, %v6037
        %v6866 = vpack.c.b16 %v6050, %v6038
        %v6867 = vpack.c.b16 %v6051, %v6039
        %v6868 = vpack.c.b16 %v6064, %v6052
        %v6869 = vpack.c.b16 %v6065, %v6053
        %v6870 = vpack.c.b16 %v6066, %v6054
        %v6871 = vpack.c.b16 %v6067, %v6055
        %v6872 = vpack.c.b16 %v6068, %v6056
        %v6873 = vpack.c.b16 %v6069, %v6057
        %v6874 = vpack.c.b16 %v6070, %v6058
        %v6875 = vpack.c.b16 %v6071, %v6059
        %v6876 = vpack.c.b16 %v6072, %v6060
        %v6877 = vpack.c.b16 %v6073, %v6061
        %v6878 = vpack.c.b16 %v6074, %v6062
        %v6879 = vpack.c.b16 %v6075, %v6063
        %v6880 = vpack.c.b16 %v6088, %v6076
        %v6881 = vpack.c.b16 %v6089, %v6077
        %v6882 = vpack.c.b16 %v6090, %v6078
        %v6883 = vpack.c.b16 %v6091, %v6079
        %v6884 = vpack.c.b16 %v6092, %v6080
        %v6885 = vpack.c.b16 %v6093, %v6081
        %v6886 = vpack.c.b16 %v6094, %v6082
        %v6887 = vpack.c.b16 %v6095, %v6083
        %v6888 = vpack.c.b16 %v6096, %v6084
        %v6889 = vpack.c.b16 %v6097, %v6085
        %v6890 = vpack.c.b16 %v6098, %v6086
        %v6891 = vpack.c.b16 %v6099, %v6087
        %v6892 = vpack.c.b16 %v6112, %v6100
        %v6893 = vpack.c.b16 %v6113, %v6101
        %v6894 = vpack.c.b16 %v6114, %v6102
        %v6895 = vpack.c.b16 %v6115, %v6103
        %v6896 = vpack.c.b16 %v6116, %v6104
        %v6897 = vpack.c.b16 %v6117, %v6105
        %v6898 = vpack.c.b16 %v6118, %v6106
        %v6899 = vpack.c.b16 %v6119, %v6107
        %v6900 = vpack.c.b16 %v6120, %v6108
        %v6901 = vpack.c.b16 %v6121, %v6109
        %v6902 = vpack.c.b16 %v6122, %v6110
        %v6903 = vpack.c.b16 %v6123, %v6111
        %v6904 = vpack.c.b16 %v6136, %v6124
        %v6905 = vpack.c.b16 %v6137, %v6125
        %v6906 = vpack.c.b16 %v6138, %v6126
        %v6907 = vpack.c.b16 %v6139, %v6127
        %v6908 = vpack.c.b16 %v6140, %v6128
        %v6909 = vpack.c.b16 %v6141, %v6129
        %v6910 = vpack.c.b16 %v6142, %v6130
        %v6911 = vpack.c.b16 %v6143, %v6131
        %v6912 = vpack.c.b16 %v6144, %v6132
        %v6913 = vpack.c.b16 %v6145, %v6133
        %v6914 = vpack.c.b16 %v6146, %v6134
        %v6915 = vpack.c.b16 %v6147, %v6135
        %7684 = vmatprep.subr.bf16.mxu0 %v6149
        %7685 = vmatpush1.bf16.msra.mxu0 %v6148
        %7686 = vmatprep.subr.bf16.mxu0 %v6161
        %7687 = vmatpush1.bf16.msra.mxu0 %v6160
        %7688 = vmatprep.subr.bf16.mxu0 %v6173
        %7689 = vmatpush1.bf16.msra.mxu0 %v6172
        %7690 = vmatprep.subr.bf16.mxu0 %v6185
        %7691 = vmatpush1.bf16.msra.mxu0 %v6184
        %7692 = vmatprep.subr.bf16.mxu0 %v6197
        %7693 = vmatpush1.bf16.msra.mxu0 %v6196
        %7694 = vmatprep.subr.bf16.mxu0 %v6209
        %7695 = vmatpush1.bf16.msra.mxu0 %v6208
        %7696 = vmatprep.subr.bf16.mxu0 %v6221
        %7697 = vmatpush1.bf16.msra.mxu0 %v6220
        %7698 = vmatprep.subr.bf16.mxu0 %v6233
        %7699 = vmatpush1.bf16.msra.mxu0 %v6232
        %7700 = vmatprep.subr.bf16.mxu0 %v6245
        %7701 = vmatpush1.bf16.msra.mxu0 %v6244
        %7702 = vmatprep.subr.bf16.mxu0 %v6257
        %7703 = vmatpush1.bf16.msra.mxu0 %v6256
        %7704 = vmatprep.subr.bf16.mxu0 %v6269
        %7705 = vmatpush1.bf16.msra.mxu0 %v6268
        %7706 = vmatprep.subr.bf16.mxu0 %v6281
        %7707 = vmatpush1.bf16.msra.mxu0 %v6280
        %7708 = vmatprep.subr.bf16.mxu0 %v6293
        %7709 = vmatpush1.bf16.msra.mxu0 %v6292
        %7710 = vmatprep.subr.bf16.mxu0 %v6305
        %7711 = vmatpush1.bf16.msra.mxu0 %v6304
        %7712 = vmatprep.subr.bf16.mxu0 %v6317
        %7713 = vmatpush1.bf16.msra.mxu0 %v6316
        %7714 = vmatprep.subr.bf16.mxu0 %v6329
        %7715 = vmatpush1.bf16.msra.mxu0 %v6328
        %7716 = vmatprep.mubr.bf16.mxu0 %v3005
        %7717 = vmatmul.mubr.bf16.gmra.mrb[0].mxu0 %v3004
        %v7718 = vpop.f32.mrb[0].mxu0
        %v7719 = vadd.f32 %v3787, %v7718
        %v7720 = vpop.f32.mrb[0].mxu0
        %v7721 = vadd.f32 %v3791, %v7720
        %v7722 = vpop.f32.mrb[0].mxu0
        %v7723 = vpop.f32.mrb[0].mxu0
        %7724 = vdwg.mxu0
        %7725 = vmatprep.subr.bf16.mxu0 %v6341
        %7726 = vmatpush1.bf16.msra.mxu0 %v6340
        %7727 = vmatprep.subr.bf16.mxu0 %v6353
        %7728 = vmatpush1.bf16.msra.mxu0 %v6352
        %7729 = vmatprep.subr.bf16.mxu0 %v6365
        %7730 = vmatpush1.bf16.msra.mxu0 %v6364
        %7731 = vmatprep.subr.bf16.mxu0 %v6377
        %7732 = vmatpush1.bf16.msra.mxu0 %v6376
        %7733 = vmatprep.subr.bf16.mxu0 %v6389
        %7734 = vmatpush1.bf16.msra.mxu0 %v6388
        %7735 = vmatprep.subr.bf16.mxu0 %v6401
        %7736 = vmatpush1.bf16.msra.mxu0 %v6400
        %7737 = vmatprep.subr.bf16.mxu0 %v6413
        %7738 = vmatpush1.bf16.msra.mxu0 %v6412
        %7739 = vmatprep.subr.bf16.mxu0 %v6425
        %7740 = vmatpush1.bf16.msra.mxu0 %v6424
        %7741 = vmatprep.subr.bf16.mxu0 %v6437
        %7742 = vmatpush1.bf16.msra.mxu0 %v6436
        %7743 = vmatprep.subr.bf16.mxu0 %v6449
        %7744 = vmatpush1.bf16.msra.mxu0 %v6448
        %7745 = vmatprep.subr.bf16.mxu0 %v6461
        %7746 = vmatpush1.bf16.msra.mxu0 %v6460
        %7747 = vmatprep.subr.bf16.mxu0 %v6473
        %7748 = vmatpush1.bf16.msra.mxu0 %v6472
        %7749 = vmatprep.subr.bf16.mxu0 %v6485
        %7750 = vmatpush1.bf16.msra.mxu0 %v6484
        %7751 = vmatprep.subr.bf16.mxu0 %v6497
        %7752 = vmatpush1.bf16.msra.mxu0 %v6496
        %7753 = vmatprep.subr.bf16.mxu0 %v6509
        %7754 = vmatpush1.bf16.msra.mxu0 %v6508
        %7755 = vmatprep.subr.bf16.mxu0 %v6521
        %7756 = vmatpush1.bf16.msra.mxu0 %v6520
        %7757 = vmatprep.mubr.bf16.mxu0 %v3007
        %7758 = vmatmul.mubr.bf16.gmra.mrb[0].mxu0 %v3006
        %v7759 = vpop.f32.mrb[0].mxu0
        %v7760 = vadd.f32 %v7719, %v7759
        %v7761 = vpop.f32.mrb[0].mxu0
        %v7762 = vadd.f32 %v7721, %v7761
        %v7763 = vpop.f32.mrb[0].mxu0
        %v7764 = vpop.f32.mrb[0].mxu0
        %7765 = vdwg.mxu0
        %7766 = vmatprep.subr.bf16.mxu0 %v6533
        %7767 = vmatpush1.bf16.msra.mxu0 %v6532
        %7768 = vmatprep.subr.bf16.mxu0 %v6545
        %7769 = vmatpush1.bf16.msra.mxu0 %v6544
        %7770 = vmatprep.subr.bf16.mxu0 %v6557
        %7771 = vmatpush1.bf16.msra.mxu0 %v6556
        %7772 = vmatprep.subr.bf16.mxu0 %v6569
        %7773 = vmatpush1.bf16.msra.mxu0 %v6568
        %7774 = vmatprep.subr.bf16.mxu0 %v6581
        %7775 = vmatpush1.bf16.msra.mxu0 %v6580
        %7776 = vmatprep.subr.bf16.mxu0 %v6593
        %7777 = vmatpush1.bf16.msra.mxu0 %v6592
        %7778 = vmatprep.subr.bf16.mxu0 %v6605
        %7779 = vmatpush1.bf16.msra.mxu0 %v6604
        %7780 = vmatprep.subr.bf16.mxu0 %v6617
        %7781 = vmatpush1.bf16.msra.mxu0 %v6616
        %7782 = vmatprep.subr.bf16.mxu0 %v6629
        %7783 = vmatpush1.bf16.msra.mxu0 %v6628
        %7784 = vmatprep.subr.bf16.mxu0 %v6641
        %7785 = vmatpush1.bf16.msra.mxu0 %v6640
        %7786 = vmatprep.subr.bf16.mxu0 %v6653
        %7787 = vmatpush1.bf16.msra.mxu0 %v6652
        %7788 = vmatprep.subr.bf16.mxu0 %v6665
        %7789 = vmatpush1.bf16.msra.mxu0 %v6664
        %7790 = vmatprep.subr.bf16.mxu0 %v6677
        %7791 = vmatpush1.bf16.msra.mxu0 %v6676
        %7792 = vmatprep.subr.bf16.mxu0 %v6689
        %7793 = vmatpush1.bf16.msra.mxu0 %v6688
        %7794 = vmatprep.subr.bf16.mxu0 %v6701
        %7795 = vmatpush1.bf16.msra.mxu0 %v6700
        %7796 = vmatprep.subr.bf16.mxu0 %v6713
        %7797 = vmatpush1.bf16.msra.mxu0 %v6712
        %7798 = vmatprep.mubr.bf16.mxu0 %v3009
        %7799 = vmatmul.mubr.bf16.gmra.mrb[0].mxu0 %v3008
        %v7800 = vpop.f32.mrb[0].mxu0
        %v7801 = vadd.f32 %v7760, %v7800
        %v7802 = vpop.f32.mrb[0].mxu0
        %v7803 = vadd.f32 %v7762, %v7802
        %v7804 = vpop.f32.mrb[0].mxu0
        %v7805 = vpop.f32.mrb[0].mxu0
        %7806 = vdwg.mxu0
        %7807 = vmatprep.subr.bf16.mxu0 %v6725
        %7808 = vmatpush1.bf16.msra.mxu0 %v6724
        %7809 = vmatprep.subr.bf16.mxu0 %v6737
        %7810 = vmatpush1.bf16.msra.mxu0 %v6736
        %7811 = vmatprep.subr.bf16.mxu0 %v6749
        %7812 = vmatpush1.bf16.msra.mxu0 %v6748
        %7813 = vmatprep.subr.bf16.mxu0 %v6761
        %7814 = vmatpush1.bf16.msra.mxu0 %v6760
        %7815 = vmatprep.subr.bf16.mxu0 %v6773
        %7816 = vmatpush1.bf16.msra.mxu0 %v6772
        %7817 = vmatprep.subr.bf16.mxu0 %v6785
        %7818 = vmatpush1.bf16.msra.mxu0 %v6784
        %7819 = vmatprep.subr.bf16.mxu0 %v6797
        %7820 = vmatpush1.bf16.msra.mxu0 %v6796
        %7821 = vmatprep.subr.bf16.mxu0 %v6809
        %7822 = vmatpush1.bf16.msra.mxu0 %v6808
        %7823 = vmatprep.subr.bf16.mxu0 %v6821
        %7824 = vmatpush1.bf16.msra.mxu0 %v6820
        %7825 = vmatprep.subr.bf16.mxu0 %v6833
        %7826 = vmatpush1.bf16.msra.mxu0 %v6832
        %7827 = vmatprep.subr.bf16.mxu0 %v6845
        %7828 = vmatpush1.bf16.msra.mxu0 %v6844
        %7829 = vmatprep.subr.bf16.mxu0 %v6857
        %7830 = vmatpush1.bf16.msra.mxu0 %v6856
        %7831 = vmatprep.subr.bf16.mxu0 %v6869
        %7832 = vmatpush1.bf16.msra.mxu0 %v6868
        %7833 = vmatprep.subr.bf16.mxu0 %v6881
        %7834 = vmatpush1.bf16.msra.mxu0 %v6880
        %7835 = vmatprep.subr.bf16.mxu0 %v6893
        %7836 = vmatpush1.bf16.msra.mxu0 %v6892
        %7837 = vmatprep.subr.bf16.mxu0 %v6905
        %7838 = vmatpush1.bf16.msra.mxu0 %v6904
        %7839 = vmatprep.mubr.bf16.mxu0 %v3011
        %7840 = vmatmul.mubr.bf16.gmra.mrb[0].mxu0 %v3010
        %v7841 = vpop.f32.mrb[0].mxu0
        %v7842 = vadd.f32 %v7801, %v7841
        %v7843 = vpop.f32.mrb[0].mxu0
        %v7844 = vadd.f32 %v7803, %v7843
        %v7845 = vpop.f32.mrb[0].mxu0
        %v7846 = vpop.f32.mrb[0].mxu0
        %7847 = vdwg.mxu0
        %7848 = vmatprep.subr.bf16.mxu0 %v6151
        %7849 = vmatpush1.bf16.msra.mxu0 %v6150
        %7850 = vmatprep.subr.bf16.mxu0 %v6163
        %7851 = vmatpush1.bf16.msra.mxu0 %v6162
        %7852 = vmatprep.subr.bf16.mxu0 %v6175
        %7853 = vmatpush1.bf16.msra.mxu0 %v6174
        %7854 = vmatprep.subr.bf16.mxu0 %v6187
        %7855 = vmatpush1.bf16.msra.mxu0 %v6186
        %7856 = vmatprep.subr.bf16.mxu0 %v6199
        %7857 = vmatpush1.bf16.msra.mxu0 %v6198
        %7858 = vmatprep.subr.bf16.mxu0 %v6211
        %7859 = vmatpush1.bf16.msra.mxu0 %v6210
        %7860 = vmatprep.subr.bf16.mxu0 %v6223
        %7861 = vmatpush1.bf16.msra.mxu0 %v6222
        %7862 = vmatprep.subr.bf16.mxu0 %v6235
        %7863 = vmatpush1.bf16.msra.mxu0 %v6234
        %7864 = vmatprep.subr.bf16.mxu0 %v6247
        %7865 = vmatpush1.bf16.msra.mxu0 %v6246
        %7866 = vmatprep.subr.bf16.mxu0 %v6259
        %7867 = vmatpush1.bf16.msra.mxu0 %v6258
        %7868 = vmatprep.subr.bf16.mxu0 %v6271
        %7869 = vmatpush1.bf16.msra.mxu0 %v6270
        %7870 = vmatprep.subr.bf16.mxu0 %v6283
        %7871 = vmatpush1.bf16.msra.mxu0 %v6282
        %7872 = vmatprep.subr.bf16.mxu0 %v6295
        %7873 = vmatpush1.bf16.msra.mxu0 %v6294
        %7874 = vmatprep.subr.bf16.mxu0 %v6307
        %7875 = vmatpush1.bf16.msra.mxu0 %v6306
        %7876 = vmatprep.subr.bf16.mxu0 %v6319
        %7877 = vmatpush1.bf16.msra.mxu0 %v6318
        %7878 = vmatprep.subr.bf16.mxu0 %v6331
        %7879 = vmatpush1.bf16.msra.mxu0 %v6330
        %7880 = vmatprep.mubr.bf16.mxu0 %v3005
        %7881 = vmatmul.mubr.bf16.gmra.mrb[0].mxu0 %v3004
        %v7882 = vpop.f32.mrb[0].mxu0
        %v7883 = vadd.f32 %v3795, %v7882
        %v7884 = vpop.f32.mrb[0].mxu0
        %v7885 = vadd.f32 %v3799, %v7884
        %v7886 = vpop.f32.mrb[0].mxu0
        %v7887 = vpop.f32.mrb[0].mxu0
        %7888 = vdwg.mxu0
        %7889 = vmatprep.subr.bf16.mxu0 %v6343
        %7890 = vmatpush1.bf16.msra.mxu0 %v6342
        %7891 = vmatprep.subr.bf16.mxu0 %v6355
        %7892 = vmatpush1.bf16.msra.mxu0 %v6354
        %7893 = vmatprep.subr.bf16.mxu0 %v6367
        %7894 = vmatpush1.bf16.msra.mxu0 %v6366
        %7895 = vmatprep.subr.bf16.mxu0 %v6379
        %7896 = vmatpush1.bf16.msra.mxu0 %v6378
        %7897 = vmatprep.subr.bf16.mxu0 %v6391
        %7898 = vmatpush1.bf16.msra.mxu0 %v6390
        %7899 = vmatprep.subr.bf16.mxu0 %v6403
        %7900 = vmatpush1.bf16.msra.mxu0 %v6402
        %7901 = vmatprep.subr.bf16.mxu0 %v6415
        %7902 = vmatpush1.bf16.msra.mxu0 %v6414
        %7903 = vmatprep.subr.bf16.mxu0 %v6427
        %7904 = vmatpush1.bf16.msra.mxu0 %v6426
        %7905 = vmatprep.subr.bf16.mxu0 %v6439
        %7906 = vmatpush1.bf16.msra.mxu0 %v6438
        %7907 = vmatprep.subr.bf16.mxu0 %v6451
        %7908 = vmatpush1.bf16.msra.mxu0 %v6450
        %7909 = vmatprep.subr.bf16.mxu0 %v6463
        %7910 = vmatpush1.bf16.msra.mxu0 %v6462
        %7911 = vmatprep.subr.bf16.mxu0 %v6475
        %7912 = vmatpush1.bf16.msra.mxu0 %v6474
        %7913 = vmatprep.subr.bf16.mxu0 %v6487
        %7914 = vmatpush1.bf16.msra.mxu0 %v6486
        %7915 = vmatprep.subr.bf16.mxu0 %v6499
        %7916 = vmatpush1.bf16.msra.mxu0 %v6498
        %7917 = vmatprep.subr.bf16.mxu0 %v6511
        %7918 = vmatpush1.bf16.msra.mxu0 %v6510
        %7919 = vmatprep.subr.bf16.mxu0 %v6523
        %7920 = vmatpush1.bf16.msra.mxu0 %v6522
        %7921 = vmatprep.mubr.bf16.mxu0 %v3007
        %7922 = vmatmul.mubr.bf16.gmra.mrb[0].mxu0 %v3006
        %v7923 = vpop.f32.mrb[0].mxu0
        %v7924 = vadd.f32 %v7883, %v7923
        %v7925 = vpop.f32.mrb[0].mxu0
        %v7926 = vadd.f32 %v7885, %v7925
        %v7927 = vpop.f32.mrb[0].mxu0
        %v7928 = vpop.f32.mrb[0].mxu0
        %7929 = vdwg.mxu0
        %7930 = vmatprep.subr.bf16.mxu0 %v6535
        %7931 = vmatpush1.bf16.msra.mxu0 %v6534
        %7932 = vmatprep.subr.bf16.mxu0 %v6547
        %7933 = vmatpush1.bf16.msra.mxu0 %v6546
        %7934 = vmatprep.subr.bf16.mxu0 %v6559
        %7935 = vmatpush1.bf16.msra.mxu0 %v6558
        %7936 = vmatprep.subr.bf16.mxu0 %v6571
        %7937 = vmatpush1.bf16.msra.mxu0 %v6570
        %7938 = vmatprep.subr.bf16.mxu0 %v6583
        %7939 = vmatpush1.bf16.msra.mxu0 %v6582
        %7940 = vmatprep.subr.bf16.mxu0 %v6595
        %7941 = vmatpush1.bf16.msra.mxu0 %v6594
        %7942 = vmatprep.subr.bf16.mxu0 %v6607
        %7943 = vmatpush1.bf16.msra.mxu0 %v6606
        %7944 = vmatprep.subr.bf16.mxu0 %v6619
        %7945 = vmatpush1.bf16.msra.mxu0 %v6618
        %7946 = vmatprep.subr.bf16.mxu0 %v6631
        %7947 = vmatpush1.bf16.msra.mxu0 %v6630
        %7948 = vmatprep.subr.bf16.mxu0 %v6643
        %7949 = vmatpush1.bf16.msra.mxu0 %v6642
        %7950 = vmatprep.subr.bf16.mxu0 %v6655
        %7951 = vmatpush1.bf16.msra.mxu0 %v6654
        %7952 = vmatprep.subr.bf16.mxu0 %v6667
        %7953 = vmatpush1.bf16.msra.mxu0 %v6666
        %7954 = vmatprep.subr.bf16.mxu0 %v6679
        %7955 = vmatpush1.bf16.msra.mxu0 %v6678
        %7956 = vmatprep.subr.bf16.mxu0 %v6691
        %7957 = vmatpush1.bf16.msra.mxu0 %v6690
        %7958 = vmatprep.subr.bf16.mxu0 %v6703
        %7959 = vmatpush1.bf16.msra.mxu0 %v6702
        %7960 = vmatprep.subr.bf16.mxu0 %v6715
        %7961 = vmatpush1.bf16.msra.mxu0 %v6714
        %7962 = vmatprep.mubr.bf16.mxu0 %v3009
        %7963 = vmatmul.mubr.bf16.gmra.mrb[0].mxu0 %v3008
        %v7964 = vpop.f32.mrb[0].mxu0
        %v7965 = vadd.f32 %v7924, %v7964
        %v7966 = vpop.f32.mrb[0].mxu0
        %v7967 = vadd.f32 %v7926, %v7966
        %v7968 = vpop.f32.mrb[0].mxu0
        %v7969 = vpop.f32.mrb[0].mxu0
        %7970 = vdwg.mxu0
        %7971 = vmatprep.subr.bf16.mxu0 %v6727
        %7972 = vmatpush1.bf16.msra.mxu0 %v6726
        %7973 = vmatprep.subr.bf16.mxu0 %v6739
        %7974 = vmatpush1.bf16.msra.mxu0 %v6738
        %7975 = vmatprep.subr.bf16.mxu0 %v6751
        %7976 = vmatpush1.bf16.msra.mxu0 %v6750
        %7977 = vmatprep.subr.bf16.mxu0 %v6763
        %7978 = vmatpush1.bf16.msra.mxu0 %v6762
        %7979 = vmatprep.subr.bf16.mxu0 %v6775
        %7980 = vmatpush1.bf16.msra.mxu0 %v6774
        %7981 = vmatprep.subr.bf16.mxu0 %v6787
        %7982 = vmatpush1.bf16.msra.mxu0 %v6786
        %7983 = vmatprep.subr.bf16.mxu0 %v6799
        %7984 = vmatpush1.bf16.msra.mxu0 %v6798
        %7985 = vmatprep.subr.bf16.mxu0 %v6811
        %7986 = vmatpush1.bf16.msra.mxu0 %v6810
        %7987 = vmatprep.subr.bf16.mxu0 %v6823
        %7988 = vmatpush1.bf16.msra.mxu0 %v6822
        %7989 = vmatprep.subr.bf16.mxu0 %v6835
        %7990 = vmatpush1.bf16.msra.mxu0 %v6834
        %7991 = vmatprep.subr.bf16.mxu0 %v6847
        %7992 = vmatpush1.bf16.msra.mxu0 %v6846
        %7993 = vmatprep.subr.bf16.mxu0 %v6859
        %7994 = vmatpush1.bf16.msra.mxu0 %v6858
        %7995 = vmatprep.subr.bf16.mxu0 %v6871
        %7996 = vmatpush1.bf16.msra.mxu0 %v6870
        %7997 = vmatprep.subr.bf16.mxu0 %v6883
        %7998 = vmatpush1.bf16.msra.mxu0 %v6882
        %7999 = vmatprep.subr.bf16.mxu0 %v6895
        %8000 = vmatpush1.bf16.msra.mxu0 %v6894
        %8001 = vmatprep.subr.bf16.mxu0 %v6907
        %8002 = vmatpush1.bf16.msra.mxu0 %v6906
        %8003 = vmatprep.mubr.bf16.mxu0 %v3011
        %8004 = vmatmul.mubr.bf16.gmra.mrb[0].mxu0 %v3010
        %v8005 = vpop.f32.mrb[0].mxu0
        %v8006 = vadd.f32 %v7965, %v8005
        %v8007 = vpop.f32.mrb[0].mxu0
        %v8008 = vadd.f32 %v7967, %v8007
        %v8009 = vpop.f32.mrb[0].mxu0
        %v8010 = vpop.f32.mrb[0].mxu0
        %8011 = vdwg.mxu0
        %8012 = vmatprep.subr.bf16.mxu0 %v6153
        %8013 = vmatpush1.bf16.msra.mxu0 %v6152
        %8014 = vmatprep.subr.bf16.mxu0 %v6165
        %8015 = vmatpush1.bf16.msra.mxu0 %v6164
        %8016 = vmatprep.subr.bf16.mxu0 %v6177
        %8017 = vmatpush1.bf16.msra.mxu0 %v6176
        %8018 = vmatprep.subr.bf16.mxu0 %v6189
        %8019 = vmatpush1.bf16.msra.mxu0 %v6188
        %8020 = vmatprep.subr.bf16.mxu0 %v6201
        %8021 = vmatpush1.bf16.msra.mxu0 %v6200
        %8022 = vmatprep.subr.bf16.mxu0 %v6213
        %8023 = vmatpush1.bf16.msra.mxu0 %v6212
        %8024 = vmatprep.subr.bf16.mxu0 %v6225
        %8025 = vmatpush1.bf16.msra.mxu0 %v6224
        %8026 = vmatprep.subr.bf16.mxu0 %v6237
        %8027 = vmatpush1.bf16.msra.mxu0 %v6236
        %8028 = vmatprep.subr.bf16.mxu0 %v6249
        %8029 = vmatpush1.bf16.msra.mxu0 %v6248
        %8030 = vmatprep.subr.bf16.mxu0 %v6261
        %8031 = vmatpush1.bf16.msra.mxu0 %v6260
        %8032 = vmatprep.subr.bf16.mxu0 %v6273
        %8033 = vmatpush1.bf16.msra.mxu0 %v6272
        %8034 = vmatprep.subr.bf16.mxu0 %v6285
        %8035 = vmatpush1.bf16.msra.mxu0 %v6284
        %8036 = vmatprep.subr.bf16.mxu0 %v6297
        %8037 = vmatpush1.bf16.msra.mxu0 %v6296
        %8038 = vmatprep.subr.bf16.mxu0 %v6309
        %8039 = vmatpush1.bf16.msra.mxu0 %v6308
        %8040 = vmatprep.subr.bf16.mxu0 %v6321
        %8041 = vmatpush1.bf16.msra.mxu0 %v6320
        %8042 = vmatprep.subr.bf16.mxu0 %v6333
        %8043 = vmatpush1.bf16.msra.mxu0 %v6332
        %8044 = vmatprep.mubr.bf16.mxu0 %v3005
        %8045 = vmatmul.mubr.bf16.gmra.mrb[0].mxu0 %v3004
        %v8046 = vpop.f32.mrb[0].mxu0
        %v8047 = vadd.f32 %v3803, %v8046
        %v8048 = vpop.f32.mrb[0].mxu0
        %v8049 = vadd.f32 %v3807, %v8048
        %v8050 = vpop.f32.mrb[0].mxu0
        %v8051 = vpop.f32.mrb[0].mxu0
        %8052 = vdwg.mxu0
        %8053 = vmatprep.subr.bf16.mxu0 %v6345
        %8054 = vmatpush1.bf16.msra.mxu0 %v6344
        %8055 = vmatprep.subr.bf16.mxu0 %v6357
        %8056 = vmatpush1.bf16.msra.mxu0 %v6356
        %8057 = vmatprep.subr.bf16.mxu0 %v6369
        %8058 = vmatpush1.bf16.msra.mxu0 %v6368
        %8059 = vmatprep.subr.bf16.mxu0 %v6381
        %8060 = vmatpush1.bf16.msra.mxu0 %v6380
        %8061 = vmatprep.subr.bf16.mxu0 %v6393
        %8062 = vmatpush1.bf16.msra.mxu0 %v6392
        %8063 = vmatprep.subr.bf16.mxu0 %v6405
        %8064 = vmatpush1.bf16.msra.mxu0 %v6404
        %8065 = vmatprep.subr.bf16.mxu0 %v6417
        %8066 = vmatpush1.bf16.msra.mxu0 %v6416
        %8067 = vmatprep.subr.bf16.mxu0 %v6429
        %8068 = vmatpush1.bf16.msra.mxu0 %v6428
        %8069 = vmatprep.subr.bf16.mxu0 %v6441
        %8070 = vmatpush1.bf16.msra.mxu0 %v6440
        %8071 = vmatprep.subr.bf16.mxu0 %v6453
        %8072 = vmatpush1.bf16.msra.mxu0 %v6452
        %8073 = vmatprep.subr.bf16.mxu0 %v6465
        %8074 = vmatpush1.bf16.msra.mxu0 %v6464
        %8075 = vmatprep.subr.bf16.mxu0 %v6477
        %8076 = vmatpush1.bf16.msra.mxu0 %v6476
        %8077 = vmatprep.subr.bf16.mxu0 %v6489
        %8078 = vmatpush1.bf16.msra.mxu0 %v6488
        %8079 = vmatprep.subr.bf16.mxu0 %v6501
        %8080 = vmatpush1.bf16.msra.mxu0 %v6500
        %8081 = vmatprep.subr.bf16.mxu0 %v6513
        %8082 = vmatpush1.bf16.msra.mxu0 %v6512
        %8083 = vmatprep.subr.bf16.mxu0 %v6525
        %8084 = vmatpush1.bf16.msra.mxu0 %v6524
        %8085 = vmatprep.mubr.bf16.mxu0 %v3007
        %8086 = vmatmul.mubr.bf16.gmra.mrb[0].mxu0 %v3006
        %v8087 = vpop.f32.mrb[0].mxu0
        %v8088 = vadd.f32 %v8047, %v8087
        %v8089 = vpop.f32.mrb[0].mxu0
        %v8090 = vadd.f32 %v8049, %v8089
        %v8091 = vpop.f32.mrb[0].mxu0
        %v8092 = vpop.f32.mrb[0].mxu0
        %8093 = vdwg.mxu0
        %8094 = vmatprep.subr.bf16.mxu0 %v6537
        %8095 = vmatpush1.bf16.msra.mxu0 %v6536
        %8096 = vmatprep.subr.bf16.mxu0 %v6549
        %8097 = vmatpush1.bf16.msra.mxu0 %v6548
        %8098 = vmatprep.subr.bf16.mxu0 %v6561
        %8099 = vmatpush1.bf16.msra.mxu0 %v6560
        %8100 = vmatprep.subr.bf16.mxu0 %v6573
        %8101 = vmatpush1.bf16.msra.mxu0 %v6572
        %8102 = vmatprep.subr.bf16.mxu0 %v6585
        %8103 = vmatpush1.bf16.msra.mxu0 %v6584
        %8104 = vmatprep.subr.bf16.mxu0 %v6597
        %8105 = vmatpush1.bf16.msra.mxu0 %v6596
        %8106 = vmatprep.subr.bf16.mxu0 %v6609
        %8107 = vmatpush1.bf16.msra.mxu0 %v6608
        %8108 = vmatprep.subr.bf16.mxu0 %v6621
        %8109 = vmatpush1.bf16.msra.mxu0 %v6620
        %8110 = vmatprep.subr.bf16.mxu0 %v6633
        %8111 = vmatpush1.bf16.msra.mxu0 %v6632
        %8112 = vmatprep.subr.bf16.mxu0 %v6645
        %8113 = vmatpush1.bf16.msra.mxu0 %v6644
        %8114 = vmatprep.subr.bf16.mxu0 %v6657
        %8115 = vmatpush1.bf16.msra.mxu0 %v6656
        %8116 = vmatprep.subr.bf16.mxu0 %v6669
        %8117 = vmatpush1.bf16.msra.mxu0 %v6668
        %8118 = vmatprep.subr.bf16.mxu0 %v6681
        %8119 = vmatpush1.bf16.msra.mxu0 %v6680
        %8120 = vmatprep.subr.bf16.mxu0 %v6693
        %8121 = vmatpush1.bf16.msra.mxu0 %v6692
        %8122 = vmatprep.subr.bf16.mxu0 %v6705
        %8123 = vmatpush1.bf16.msra.mxu0 %v6704
        %8124 = vmatprep.subr.bf16.mxu0 %v6717
        %8125 = vmatpush1.bf16.msra.mxu0 %v6716
        %8126 = vmatprep.mubr.bf16.mxu0 %v3009
        %8127 = vmatmul.mubr.bf16.gmra.mrb[0].mxu0 %v3008
        %v8128 = vpop.f32.mrb[0].mxu0
        %v8129 = vadd.f32 %v8088, %v8128
        %v8130 = vpop.f32.mrb[0].mxu0
        %v8131 = vadd.f32 %v8090, %v8130
        %v8132 = vpop.f32.mrb[0].mxu0
        %v8133 = vpop.f32.mrb[0].mxu0
        %8134 = vdwg.mxu0
        %8135 = vmatprep.subr.bf16.mxu0 %v6729
        %8136 = vmatpush1.bf16.msra.mxu0 %v6728
        %8137 = vmatprep.subr.bf16.mxu0 %v6741
        %8138 = vmatpush1.bf16.msra.mxu0 %v6740
        %8139 = vmatprep.subr.bf16.mxu0 %v6753
        %8140 = vmatpush1.bf16.msra.mxu0 %v6752
        %8141 = vmatprep.subr.bf16.mxu0 %v6765
        %8142 = vmatpush1.bf16.msra.mxu0 %v6764
        %8143 = vmatprep.subr.bf16.mxu0 %v6777
        %8144 = vmatpush1.bf16.msra.mxu0 %v6776
        %8145 = vmatprep.subr.bf16.mxu0 %v6789
        %8146 = vmatpush1.bf16.msra.mxu0 %v6788
        %8147 = vmatprep.subr.bf16.mxu0 %v6801
        %8148 = vmatpush1.bf16.msra.mxu0 %v6800
        %8149 = vmatprep.subr.bf16.mxu0 %v6813
        %8150 = vmatpush1.bf16.msra.mxu0 %v6812
        %8151 = vmatprep.subr.bf16.mxu0 %v6825
        %8152 = vmatpush1.bf16.msra.mxu0 %v6824
        %8153 = vmatprep.subr.bf16.mxu0 %v6837
        %8154 = vmatpush1.bf16.msra.mxu0 %v6836
        %8155 = vmatprep.subr.bf16.mxu0 %v6849
        %8156 = vmatpush1.bf16.msra.mxu0 %v6848
        %8157 = vmatprep.subr.bf16.mxu0 %v6861
        %8158 = vmatpush1.bf16.msra.mxu0 %v6860
        %8159 = vmatprep.subr.bf16.mxu0 %v6873
        %8160 = vmatpush1.bf16.msra.mxu0 %v6872
        %8161 = vmatprep.subr.bf16.mxu0 %v6885
        %8162 = vmatpush1.bf16.msra.mxu0 %v6884
        %8163 = vmatprep.subr.bf16.mxu0 %v6897
        %8164 = vmatpush1.bf16.msra.mxu0 %v6896
        %8165 = vmatprep.subr.bf16.mxu0 %v6909
        %8166 = vmatpush1.bf16.msra.mxu0 %v6908
        %8167 = vmatprep.mubr.bf16.mxu0 %v3011
        %8168 = vmatmul.mubr.bf16.gmra.mrb[0].mxu0 %v3010
        %v8169 = vpop.f32.mrb[0].mxu0
        %v8170 = vadd.f32 %v8129, %v8169
        %v8171 = vpop.f32.mrb[0].mxu0
        %v8172 = vadd.f32 %v8131, %v8171
        %v8173 = vpop.f32.mrb[0].mxu0
        %v8174 = vpop.f32.mrb[0].mxu0
        %8175 = vdwg.mxu0
        %8176 = vmatprep.subr.bf16.mxu0 %v6155
        %8177 = vmatpush1.bf16.msra.mxu0 %v6154
        %8178 = vmatprep.subr.bf16.mxu0 %v6167
        %8179 = vmatpush1.bf16.msra.mxu0 %v6166
        %8180 = vmatprep.subr.bf16.mxu0 %v6179
        %8181 = vmatpush1.bf16.msra.mxu0 %v6178
        %8182 = vmatprep.subr.bf16.mxu0 %v6191
        %8183 = vmatpush1.bf16.msra.mxu0 %v6190
        %8184 = vmatprep.subr.bf16.mxu0 %v6203
        %8185 = vmatpush1.bf16.msra.mxu0 %v6202
        %8186 = vmatprep.subr.bf16.mxu0 %v6215
        %8187 = vmatpush1.bf16.msra.mxu0 %v6214
        %8188 = vmatprep.subr.bf16.mxu0 %v6227
        %8189 = vmatpush1.bf16.msra.mxu0 %v6226
        %8190 = vmatprep.subr.bf16.mxu0 %v6239
        %8191 = vmatpush1.bf16.msra.mxu0 %v6238
        %8192 = vmatprep.subr.bf16.mxu0 %v6251
        %8193 = vmatpush1.bf16.msra.mxu0 %v6250
        %8194 = vmatprep.subr.bf16.mxu0 %v6263
        %8195 = vmatpush1.bf16.msra.mxu0 %v6262
        %8196 = vmatprep.subr.bf16.mxu0 %v6275
        %8197 = vmatpush1.bf16.msra.mxu0 %v6274
        %8198 = vmatprep.subr.bf16.mxu0 %v6287
        %8199 = vmatpush1.bf16.msra.mxu0 %v6286
        %8200 = vmatprep.subr.bf16.mxu0 %v6299
        %8201 = vmatpush1.bf16.msra.mxu0 %v6298
        %8202 = vmatprep.subr.bf16.mxu0 %v6311
        %8203 = vmatpush1.bf16.msra.mxu0 %v6310
        %8204 = vmatprep.subr.bf16.mxu0 %v6323
        %8205 = vmatpush1.bf16.msra.mxu0 %v6322
        %8206 = vmatprep.subr.bf16.mxu0 %v6335
        %8207 = vmatpush1.bf16.msra.mxu0 %v6334
        %8208 = vmatprep.mubr.bf16.mxu0 %v3005
        %8209 = vmatmul.mubr.bf16.gmra.mrb[0].mxu0 %v3004
        %v8210 = vpop.f32.mrb[0].mxu0
        %v8211 = vadd.f32 %v3811, %v8210
        %v8212 = vpop.f32.mrb[0].mxu0
        %v8213 = vadd.f32 %v3815, %v8212
        %v8214 = vpop.f32.mrb[0].mxu0
        %v8215 = vpop.f32.mrb[0].mxu0
        %8216 = vdwg.mxu0
        %8217 = vmatprep.subr.bf16.mxu0 %v6347
        %8218 = vmatpush1.bf16.msra.mxu0 %v6346
        %8219 = vmatprep.subr.bf16.mxu0 %v6359
        %8220 = vmatpush1.bf16.msra.mxu0 %v6358
        %8221 = vmatprep.subr.bf16.mxu0 %v6371
        %8222 = vmatpush1.bf16.msra.mxu0 %v6370
        %8223 = vmatprep.subr.bf16.mxu0 %v6383
        %8224 = vmatpush1.bf16.msra.mxu0 %v6382
        %8225 = vmatprep.subr.bf16.mxu0 %v6395
        %8226 = vmatpush1.bf16.msra.mxu0 %v6394
        %8227 = vmatprep.subr.bf16.mxu0 %v6407
        %8228 = vmatpush1.bf16.msra.mxu0 %v6406
        %8229 = vmatprep.subr.bf16.mxu0 %v6419
        %8230 = vmatpush1.bf16.msra.mxu0 %v6418
        %8231 = vmatprep.subr.bf16.mxu0 %v6431
        %8232 = vmatpush1.bf16.msra.mxu0 %v6430
        %8233 = vmatprep.subr.bf16.mxu0 %v6443
        %8234 = vmatpush1.bf16.msra.mxu0 %v6442
        %8235 = vmatprep.subr.bf16.mxu0 %v6455
        %8236 = vmatpush1.bf16.msra.mxu0 %v6454
        %8237 = vmatprep.subr.bf16.mxu0 %v6467
        %8238 = vmatpush1.bf16.msra.mxu0 %v6466
        %8239 = vmatprep.subr.bf16.mxu0 %v6479
        %8240 = vmatpush1.bf16.msra.mxu0 %v6478
        %8241 = vmatprep.subr.bf16.mxu0 %v6491
        %8242 = vmatpush1.bf16.msra.mxu0 %v6490
        %8243 = vmatprep.subr.bf16.mxu0 %v6503
        %8244 = vmatpush1.bf16.msra.mxu0 %v6502
        %8245 = vmatprep.subr.bf16.mxu0 %v6515
        %8246 = vmatpush1.bf16.msra.mxu0 %v6514
        %8247 = vmatprep.subr.bf16.mxu0 %v6527
        %8248 = vmatpush1.bf16.msra.mxu0 %v6526
        %8249 = vmatprep.mubr.bf16.mxu0 %v3007
        %8250 = vmatmul.mubr.bf16.gmra.mrb[0].mxu0 %v3006
        %v8251 = vpop.f32.mrb[0].mxu0
        %v8252 = vadd.f32 %v8211, %v8251
        %v8253 = vpop.f32.mrb[0].mxu0
        %v8254 = vadd.f32 %v8213, %v8253
        %v8255 = vpop.f32.mrb[0].mxu0
        %v8256 = vpop.f32.mrb[0].mxu0
        %8257 = vdwg.mxu0
        %8258 = vmatprep.subr.bf16.mxu0 %v6539
        %8259 = vmatpush1.bf16.msra.mxu0 %v6538
        %8260 = vmatprep.subr.bf16.mxu0 %v6551
        %8261 = vmatpush1.bf16.msra.mxu0 %v6550
        %8262 = vmatprep.subr.bf16.mxu0 %v6563
        %8263 = vmatpush1.bf16.msra.mxu0 %v6562
        %8264 = vmatprep.subr.bf16.mxu0 %v6575
        %8265 = vmatpush1.bf16.msra.mxu0 %v6574
        %8266 = vmatprep.subr.bf16.mxu0 %v6587
        %8267 = vmatpush1.bf16.msra.mxu0 %v6586
        %8268 = vmatprep.subr.bf16.mxu0 %v6599
        %8269 = vmatpush1.bf16.msra.mxu0 %v6598
        %8270 = vmatprep.subr.bf16.mxu0 %v6611
        %8271 = vmatpush1.bf16.msra.mxu0 %v6610
        %8272 = vmatprep.subr.bf16.mxu0 %v6623
        %8273 = vmatpush1.bf16.msra.mxu0 %v6622
        %8274 = vmatprep.subr.bf16.mxu0 %v6635
        %8275 = vmatpush1.bf16.msra.mxu0 %v6634
        %8276 = vmatprep.subr.bf16.mxu0 %v6647
        %8277 = vmatpush1.bf16.msra.mxu0 %v6646
        %8278 = vmatprep.subr.bf16.mxu0 %v6659
        %8279 = vmatpush1.bf16.msra.mxu0 %v6658
        %8280 = vmatprep.subr.bf16.mxu0 %v6671
        %8281 = vmatpush1.bf16.msra.mxu0 %v6670
        %8282 = vmatprep.subr.bf16.mxu0 %v6683
        %8283 = vmatpush1.bf16.msra.mxu0 %v6682
        %8284 = vmatprep.subr.bf16.mxu0 %v6695
        %8285 = vmatpush1.bf16.msra.mxu0 %v6694
        %8286 = vmatprep.subr.bf16.mxu0 %v6707
        %8287 = vmatpush1.bf16.msra.mxu0 %v6706
        %8288 = vmatprep.subr.bf16.mxu0 %v6719
        %8289 = vmatpush1.bf16.msra.mxu0 %v6718
        %8290 = vmatprep.mubr.bf16.mxu0 %v3009
        %8291 = vmatmul.mubr.bf16.gmra.mrb[0].mxu0 %v3008
        %v8292 = vpop.f32.mrb[0].mxu0
        %v8293 = vadd.f32 %v8252, %v8292
        %v8294 = vpop.f32.mrb[0].mxu0
        %v8295 = vadd.f32 %v8254, %v8294
        %v8296 = vpop.f32.mrb[0].mxu0
        %v8297 = vpop.f32.mrb[0].mxu0
        %8298 = vdwg.mxu0
        %8299 = vmatprep.subr.bf16.mxu0 %v6731
        %8300 = vmatpush1.bf16.msra.mxu0 %v6730
        %8301 = vmatprep.subr.bf16.mxu0 %v6743
        %8302 = vmatpush1.bf16.msra.mxu0 %v6742
        %8303 = vmatprep.subr.bf16.mxu0 %v6755
        %8304 = vmatpush1.bf16.msra.mxu0 %v6754
        %8305 = vmatprep.subr.bf16.mxu0 %v6767
        %8306 = vmatpush1.bf16.msra.mxu0 %v6766
        %8307 = vmatprep.subr.bf16.mxu0 %v6779
        %8308 = vmatpush1.bf16.msra.mxu0 %v6778
        %8309 = vmatprep.subr.bf16.mxu0 %v6791
        %8310 = vmatpush1.bf16.msra.mxu0 %v6790
        %8311 = vmatprep.subr.bf16.mxu0 %v6803
        %8312 = vmatpush1.bf16.msra.mxu0 %v6802
        %8313 = vmatprep.subr.bf16.mxu0 %v6815
        %8314 = vmatpush1.bf16.msra.mxu0 %v6814
        %8315 = vmatprep.subr.bf16.mxu0 %v6827
        %8316 = vmatpush1.bf16.msra.mxu0 %v6826
        %8317 = vmatprep.subr.bf16.mxu0 %v6839
        %8318 = vmatpush1.bf16.msra.mxu0 %v6838
        %8319 = vmatprep.subr.bf16.mxu0 %v6851
        %8320 = vmatpush1.bf16.msra.mxu0 %v6850
        %8321 = vmatprep.subr.bf16.mxu0 %v6863
        %8322 = vmatpush1.bf16.msra.mxu0 %v6862
        %8323 = vmatprep.subr.bf16.mxu0 %v6875
        %8324 = vmatpush1.bf16.msra.mxu0 %v6874
        %8325 = vmatprep.subr.bf16.mxu0 %v6887
        %8326 = vmatpush1.bf16.msra.mxu0 %v6886
        %8327 = vmatprep.subr.bf16.mxu0 %v6899
        %8328 = vmatpush1.bf16.msra.mxu0 %v6898
        %8329 = vmatprep.subr.bf16.mxu0 %v6911
        %8330 = vmatpush1.bf16.msra.mxu0 %v6910
        %8331 = vmatprep.mubr.bf16.mxu0 %v3011
        %8332 = vmatmul.mubr.bf16.gmra.mrb[0].mxu0 %v3010
        %v8333 = vpop.f32.mrb[0].mxu0
        %v8334 = vadd.f32 %v8293, %v8333
        %v8335 = vpop.f32.mrb[0].mxu0
        %v8336 = vadd.f32 %v8295, %v8335
        %v8337 = vpop.f32.mrb[0].mxu0
        %v8338 = vpop.f32.mrb[0].mxu0
        %8339 = vdwg.mxu0
        %8340 = vmatprep.subr.bf16.mxu0 %v6157
        %8341 = vmatpush1.bf16.msra.mxu0 %v6156
        %8342 = vmatprep.subr.bf16.mxu0 %v6169
        %8343 = vmatpush1.bf16.msra.mxu0 %v6168
        %8344 = vmatprep.subr.bf16.mxu0 %v6181
        %8345 = vmatpush1.bf16.msra.mxu0 %v6180
        %8346 = vmatprep.subr.bf16.mxu0 %v6193
        %8347 = vmatpush1.bf16.msra.mxu0 %v6192
        %8348 = vmatprep.subr.bf16.mxu0 %v6205
        %8349 = vmatpush1.bf16.msra.mxu0 %v6204
        %8350 = vmatprep.subr.bf16.mxu0 %v6217
        %8351 = vmatpush1.bf16.msra.mxu0 %v6216
        %8352 = vmatprep.subr.bf16.mxu0 %v6229
        %8353 = vmatpush1.bf16.msra.mxu0 %v6228
        %8354 = vmatprep.subr.bf16.mxu0 %v6241
        %8355 = vmatpush1.bf16.msra.mxu0 %v6240
        %8356 = vmatprep.subr.bf16.mxu0 %v6253
        %8357 = vmatpush1.bf16.msra.mxu0 %v6252
        %8358 = vmatprep.subr.bf16.mxu0 %v6265
        %8359 = vmatpush1.bf16.msra.mxu0 %v6264
        %8360 = vmatprep.subr.bf16.mxu0 %v6277
        %8361 = vmatpush1.bf16.msra.mxu0 %v6276
        %8362 = vmatprep.subr.bf16.mxu0 %v6289
        %8363 = vmatpush1.bf16.msra.mxu0 %v6288
        %8364 = vmatprep.subr.bf16.mxu0 %v6301
        %8365 = vmatpush1.bf16.msra.mxu0 %v6300
        %8366 = vmatprep.subr.bf16.mxu0 %v6313
        %8367 = vmatpush1.bf16.msra.mxu0 %v6312
        %8368 = vmatprep.subr.bf16.mxu0 %v6325
        %8369 = vmatpush1.bf16.msra.mxu0 %v6324
        %8370 = vmatprep.subr.bf16.mxu0 %v6337
        %8371 = vmatpush1.bf16.msra.mxu0 %v6336
        %8372 = vmatprep.mubr.bf16.mxu0 %v3005
        %8373 = vmatmul.mubr.bf16.gmra.mrb[0].mxu0 %v3004
        %v8374 = vpop.f32.mrb[0].mxu0
        %v8375 = vadd.f32 %v3819, %v8374
        %v8376 = vpop.f32.mrb[0].mxu0
        %v8377 = vadd.f32 %v3823, %v8376
        %v8378 = vpop.f32.mrb[0].mxu0
        %v8379 = vpop.f32.mrb[0].mxu0
        %8380 = vdwg.mxu0
        %8381 = vmatprep.subr.bf16.mxu0 %v6349
        %8382 = vmatpush1.bf16.msra.mxu0 %v6348
        %8383 = vmatprep.subr.bf16.mxu0 %v6361
        %8384 = vmatpush1.bf16.msra.mxu0 %v6360
        %8385 = vmatprep.subr.bf16.mxu0 %v6373
        %8386 = vmatpush1.bf16.msra.mxu0 %v6372
        %8387 = vmatprep.subr.bf16.mxu0 %v6385
        %8388 = vmatpush1.bf16.msra.mxu0 %v6384
        %8389 = vmatprep.subr.bf16.mxu0 %v6397
        %8390 = vmatpush1.bf16.msra.mxu0 %v6396
        %8391 = vmatprep.subr.bf16.mxu0 %v6409
        %8392 = vmatpush1.bf16.msra.mxu0 %v6408
        %8393 = vmatprep.subr.bf16.mxu0 %v6421
        %8394 = vmatpush1.bf16.msra.mxu0 %v6420
        %8395 = vmatprep.subr.bf16.mxu0 %v6433
        %8396 = vmatpush1.bf16.msra.mxu0 %v6432
        %8397 = vmatprep.subr.bf16.mxu0 %v6445
        %8398 = vmatpush1.bf16.msra.mxu0 %v6444
        %8399 = vmatprep.subr.bf16.mxu0 %v6457
        %8400 = vmatpush1.bf16.msra.mxu0 %v6456
        %8401 = vmatprep.subr.bf16.mxu0 %v6469
        %8402 = vmatpush1.bf16.msra.mxu0 %v6468
        %8403 = vmatprep.subr.bf16.mxu0 %v6481
        %8404 = vmatpush1.bf16.msra.mxu0 %v6480
        %8405 = vmatprep.subr.bf16.mxu0 %v6493
        %8406 = vmatpush1.bf16.msra.mxu0 %v6492
        %8407 = vmatprep.subr.bf16.mxu0 %v6505
        %8408 = vmatpush1.bf16.msra.mxu0 %v6504
        %8409 = vmatprep.subr.bf16.mxu0 %v6517
        %8410 = vmatpush1.bf16.msra.mxu0 %v6516
        %8411 = vmatprep.subr.bf16.mxu0 %v6529
        %8412 = vmatpush1.bf16.msra.mxu0 %v6528
        %8413 = vmatprep.mubr.bf16.mxu0 %v3007
        %8414 = vmatmul.mubr.bf16.gmra.mrb[0].mxu0 %v3006
        %v8415 = vpop.f32.mrb[0].mxu0
        %v8416 = vadd.f32 %v8375, %v8415
        %v8417 = vpop.f32.mrb[0].mxu0
        %v8418 = vadd.f32 %v8377, %v8417
        %v8419 = vpop.f32.mrb[0].mxu0
        %v8420 = vpop.f32.mrb[0].mxu0
        %8421 = vdwg.mxu0
        %8422 = vmatprep.subr.bf16.mxu0 %v6541
        %8423 = vmatpush1.bf16.msra.mxu0 %v6540
        %8424 = vmatprep.subr.bf16.mxu0 %v6553
        %8425 = vmatpush1.bf16.msra.mxu0 %v6552
        %8426 = vmatprep.subr.bf16.mxu0 %v6565
        %8427 = vmatpush1.bf16.msra.mxu0 %v6564
        %8428 = vmatprep.subr.bf16.mxu0 %v6577
        %8429 = vmatpush1.bf16.msra.mxu0 %v6576
        %8430 = vmatprep.subr.bf16.mxu0 %v6589
        %8431 = vmatpush1.bf16.msra.mxu0 %v6588
        %8432 = vmatprep.subr.bf16.mxu0 %v6601
        %8433 = vmatpush1.bf16.msra.mxu0 %v6600
        %8434 = vmatprep.subr.bf16.mxu0 %v6613
        %8435 = vmatpush1.bf16.msra.mxu0 %v6612
        %8436 = vmatprep.subr.bf16.mxu0 %v6625
        %8437 = vmatpush1.bf16.msra.mxu0 %v6624
        %8438 = vmatprep.subr.bf16.mxu0 %v6637
        %8439 = vmatpush1.bf16.msra.mxu0 %v6636
        %8440 = vmatprep.subr.bf16.mxu0 %v6649
        %8441 = vmatpush1.bf16.msra.mxu0 %v6648
        %8442 = vmatprep.subr.bf16.mxu0 %v6661
        %8443 = vmatpush1.bf16.msra.mxu0 %v6660
        %8444 = vmatprep.subr.bf16.mxu0 %v6673
        %8445 = vmatpush1.bf16.msra.mxu0 %v6672
        %8446 = vmatprep.subr.bf16.mxu0 %v6685
        %8447 = vmatpush1.bf16.msra.mxu0 %v6684
        %8448 = vmatprep.subr.bf16.mxu0 %v6697
        %8449 = vmatpush1.bf16.msra.mxu0 %v6696
        %8450 = vmatprep.subr.bf16.mxu0 %v6709
        %8451 = vmatpush1.bf16.msra.mxu0 %v6708
        %8452 = vmatprep.subr.bf16.mxu0 %v6721
        %8453 = vmatpush1.bf16.msra.mxu0 %v6720
        %8454 = vmatprep.mubr.bf16.mxu0 %v3009
        %8455 = vmatmul.mubr.bf16.gmra.mrb[0].mxu0 %v3008
        %v8456 = vpop.f32.mrb[0].mxu0
        %v8457 = vadd.f32 %v8416, %v8456
        %v8458 = vpop.f32.mrb[0].mxu0
        %v8459 = vadd.f32 %v8418, %v8458
        %v8460 = vpop.f32.mrb[0].mxu0
        %v8461 = vpop.f32.mrb[0].mxu0
        %8462 = vdwg.mxu0
        %8463 = vmatprep.subr.bf16.mxu0 %v6733
        %8464 = vmatpush1.bf16.msra.mxu0 %v6732
        %8465 = vmatprep.subr.bf16.mxu0 %v6745
        %8466 = vmatpush1.bf16.msra.mxu0 %v6744
        %8467 = vmatprep.subr.bf16.mxu0 %v6757
        %8468 = vmatpush1.bf16.msra.mxu0 %v6756
        %8469 = vmatprep.subr.bf16.mxu0 %v6769
        %8470 = vmatpush1.bf16.msra.mxu0 %v6768
        %8471 = vmatprep.subr.bf16.mxu0 %v6781
        %8472 = vmatpush1.bf16.msra.mxu0 %v6780
        %8473 = vmatprep.subr.bf16.mxu0 %v6793
        %8474 = vmatpush1.bf16.msra.mxu0 %v6792
        %8475 = vmatprep.subr.bf16.mxu0 %v6805
        %8476 = vmatpush1.bf16.msra.mxu0 %v6804
        %8477 = vmatprep.subr.bf16.mxu0 %v6817
        %8478 = vmatpush1.bf16.msra.mxu0 %v6816
        %8479 = vmatprep.subr.bf16.mxu0 %v6829
        %8480 = vmatpush1.bf16.msra.mxu0 %v6828
        %8481 = vmatprep.subr.bf16.mxu0 %v6841
        %8482 = vmatpush1.bf16.msra.mxu0 %v6840
        %8483 = vmatprep.subr.bf16.mxu0 %v6853
        %8484 = vmatpush1.bf16.msra.mxu0 %v6852
        %8485 = vmatprep.subr.bf16.mxu0 %v6865
        %8486 = vmatpush1.bf16.msra.mxu0 %v6864
        %8487 = vmatprep.subr.bf16.mxu0 %v6877
        %8488 = vmatpush1.bf16.msra.mxu0 %v6876
        %8489 = vmatprep.subr.bf16.mxu0 %v6889
        %8490 = vmatpush1.bf16.msra.mxu0 %v6888
        %8491 = vmatprep.subr.bf16.mxu0 %v6901
        %8492 = vmatpush1.bf16.msra.mxu0 %v6900
        %8493 = vmatprep.subr.bf16.mxu0 %v6913
        %8494 = vmatpush1.bf16.msra.mxu0 %v6912
        %8495 = vmatprep.mubr.bf16.mxu0 %v3011
        %8496 = vmatmul.mubr.bf16.gmra.mrb[0].mxu0 %v3010
        %v8497 = vpop.f32.mrb[0].mxu0
        %v8498 = vadd.f32 %v8457, %v8497
        %v8499 = vpop.f32.mrb[0].mxu0
        %v8500 = vadd.f32 %v8459, %v8499
        %v8501 = vpop.f32.mrb[0].mxu0
        %v8502 = vpop.f32.mrb[0].mxu0
        %8503 = vdwg.mxu0
        %8504 = vmatprep.subr.bf16.mxu0 %v6159
        %8505 = vmatpush1.bf16.msra.mxu0 %v6158
        %8506 = vmatprep.subr.bf16.mxu0 %v6171
        %8507 = vmatpush1.bf16.msra.mxu0 %v6170
        %8508 = vmatprep.subr.bf16.mxu0 %v6183
        %8509 = vmatpush1.bf16.msra.mxu0 %v6182
        %8510 = vmatprep.subr.bf16.mxu0 %v6195
        %8511 = vmatpush1.bf16.msra.mxu0 %v6194
        %8512 = vmatprep.subr.bf16.mxu0 %v6207
        %8513 = vmatpush1.bf16.msra.mxu0 %v6206
        %8514 = vmatprep.subr.bf16.mxu0 %v6219
        %8515 = vmatpush1.bf16.msra.mxu0 %v6218
        %8516 = vmatprep.subr.bf16.mxu0 %v6231
        %8517 = vmatpush1.bf16.msra.mxu0 %v6230
        %8518 = vmatprep.subr.bf16.mxu0 %v6243
        %8519 = vmatpush1.bf16.msra.mxu0 %v6242
        %8520 = vmatprep.subr.bf16.mxu0 %v6255
        %8521 = vmatpush1.bf16.msra.mxu0 %v6254
        %8522 = vmatprep.subr.bf16.mxu0 %v6267
        %8523 = vmatpush1.bf16.msra.mxu0 %v6266
        %8524 = vmatprep.subr.bf16.mxu0 %v6279
        %8525 = vmatpush1.bf16.msra.mxu0 %v6278
        %8526 = vmatprep.subr.bf16.mxu0 %v6291
        %8527 = vmatpush1.bf16.msra.mxu0 %v6290
        %8528 = vmatprep.subr.bf16.mxu0 %v6303
        %8529 = vmatpush1.bf16.msra.mxu0 %v6302
        %8530 = vmatprep.subr.bf16.mxu0 %v6315
        %8531 = vmatpush1.bf16.msra.mxu0 %v6314
        %8532 = vmatprep.subr.bf16.mxu0 %v6327
        %8533 = vmatpush1.bf16.msra.mxu0 %v6326
        %8534 = vmatprep.subr.bf16.mxu0 %v6339
        %8535 = vmatpush1.bf16.msra.mxu0 %v6338
        %8536 = vmatprep.mubr.bf16.mxu0 %v3005
        %8537 = vmatmul.mubr.bf16.gmra.mrb[0].mxu0 %v3004
        %v8538 = vpop.f32.mrb[0].mxu0
        %v8539 = vadd.f32 %v3827, %v8538
        %v8540 = vpop.f32.mrb[0].mxu0
        %v8541 = vadd.f32 %v3831, %v8540
        %v8542 = vpop.f32.mrb[0].mxu0
        %v8543 = vpop.f32.mrb[0].mxu0
        %8544 = vdwg.mxu0
        %8545 = vmatprep.subr.bf16.mxu0 %v6351
        %8546 = vmatpush1.bf16.msra.mxu0 %v6350
        %8547 = vmatprep.subr.bf16.mxu0 %v6363
        %8548 = vmatpush1.bf16.msra.mxu0 %v6362
        %8549 = vmatprep.subr.bf16.mxu0 %v6375
        %8550 = vmatpush1.bf16.msra.mxu0 %v6374
        %8551 = vmatprep.subr.bf16.mxu0 %v6387
        %8552 = vmatpush1.bf16.msra.mxu0 %v6386
        %8553 = vmatprep.subr.bf16.mxu0 %v6399
        %8554 = vmatpush1.bf16.msra.mxu0 %v6398
        %8555 = vmatprep.subr.bf16.mxu0 %v6411
        %8556 = vmatpush1.bf16.msra.mxu0 %v6410
        %8557 = vmatprep.subr.bf16.mxu0 %v6423
        %8558 = vmatpush1.bf16.msra.mxu0 %v6422
        %8559 = vmatprep.subr.bf16.mxu0 %v6435
        %8560 = vmatpush1.bf16.msra.mxu0 %v6434
        %8561 = vmatprep.subr.bf16.mxu0 %v6447
        %8562 = vmatpush1.bf16.msra.mxu0 %v6446
        %8563 = vmatprep.subr.bf16.mxu0 %v6459
        %8564 = vmatpush1.bf16.msra.mxu0 %v6458
        %8565 = vmatprep.subr.bf16.mxu0 %v6471
        %8566 = vmatpush1.bf16.msra.mxu0 %v6470
        %8567 = vmatprep.subr.bf16.mxu0 %v6483
        %8568 = vmatpush1.bf16.msra.mxu0 %v6482
        %8569 = vmatprep.subr.bf16.mxu0 %v6495
        %8570 = vmatpush1.bf16.msra.mxu0 %v6494
        %8571 = vmatprep.subr.bf16.mxu0 %v6507
        %8572 = vmatpush1.bf16.msra.mxu0 %v6506
        %8573 = vmatprep.subr.bf16.mxu0 %v6519
        %8574 = vmatpush1.bf16.msra.mxu0 %v6518
        %8575 = vmatprep.subr.bf16.mxu0 %v6531
        %8576 = vmatpush1.bf16.msra.mxu0 %v6530
        %8577 = vmatprep.mubr.bf16.mxu0 %v3007
        %8578 = vmatmul.mubr.bf16.gmra.mrb[0].mxu0 %v3006
        %v8579 = vpop.f32.mrb[0].mxu0
        %v8580 = vadd.f32 %v8539, %v8579
        %v8581 = vpop.f32.mrb[0].mxu0
        %v8582 = vadd.f32 %v8541, %v8581
        %v8583 = vpop.f32.mrb[0].mxu0
        %v8584 = vpop.f32.mrb[0].mxu0
        %8585 = vdwg.mxu0
        %8586 = vmatprep.subr.bf16.mxu0 %v6543
        %8587 = vmatpush1.bf16.msra.mxu0 %v6542
        %8588 = vmatprep.subr.bf16.mxu0 %v6555
        %8589 = vmatpush1.bf16.msra.mxu0 %v6554
        %8590 = vmatprep.subr.bf16.mxu0 %v6567
        %8591 = vmatpush1.bf16.msra.mxu0 %v6566
        %8592 = vmatprep.subr.bf16.mxu0 %v6579
        %8593 = vmatpush1.bf16.msra.mxu0 %v6578
        %8594 = vmatprep.subr.bf16.mxu0 %v6591
        %8595 = vmatpush1.bf16.msra.mxu0 %v6590
        %8596 = vmatprep.subr.bf16.mxu0 %v6603
        %8597 = vmatpush1.bf16.msra.mxu0 %v6602
        %8598 = vmatprep.subr.bf16.mxu0 %v6615
        %8599 = vmatpush1.bf16.msra.mxu0 %v6614
        %8600 = vmatprep.subr.bf16.mxu0 %v6627
        %8601 = vmatpush1.bf16.msra.mxu0 %v6626
        %8602 = vmatprep.subr.bf16.mxu0 %v6639
        %8603 = vmatpush1.bf16.msra.mxu0 %v6638
        %8604 = vmatprep.subr.bf16.mxu0 %v6651
        %8605 = vmatpush1.bf16.msra.mxu0 %v6650
        %8606 = vmatprep.subr.bf16.mxu0 %v6663
        %8607 = vmatpush1.bf16.msra.mxu0 %v6662
        %8608 = vmatprep.subr.bf16.mxu0 %v6675
        %8609 = vmatpush1.bf16.msra.mxu0 %v6674
        %8610 = vmatprep.subr.bf16.mxu0 %v6687
        %8611 = vmatpush1.bf16.msra.mxu0 %v6686
        %8612 = vmatprep.subr.bf16.mxu0 %v6699
        %8613 = vmatpush1.bf16.msra.mxu0 %v6698
        %8614 = vmatprep.subr.bf16.mxu0 %v6711
        %8615 = vmatpush1.bf16.msra.mxu0 %v6710
        %8616 = vmatprep.subr.bf16.mxu0 %v6723
        %8617 = vmatpush1.bf16.msra.mxu0 %v6722
        %8618 = vmatprep.mubr.bf16.mxu0 %v3009
        %8619 = vmatmul.mubr.bf16.gmra.mrb[0].mxu0 %v3008
        %v8620 = vpop.f32.mrb[0].mxu0
        %v8621 = vadd.f32 %v8580, %v8620
        %v8622 = vpop.f32.mrb[0].mxu0
        %v8623 = vadd.f32 %v8582, %v8622
        %v8624 = vpop.f32.mrb[0].mxu0
        %v8625 = vpop.f32.mrb[0].mxu0
        %8626 = vdwg.mxu0
        %8627 = vmatprep.subr.bf16.mxu0 %v6735
        %8628 = vmatpush1.bf16.msra.mxu0 %v6734
        %8629 = vmatprep.subr.bf16.mxu0 %v6747
        %8630 = vmatpush1.bf16.msra.mxu0 %v6746
        %8631 = vmatprep.subr.bf16.mxu0 %v6759
        %8632 = vmatpush1.bf16.msra.mxu0 %v6758
        %8633 = vmatprep.subr.bf16.mxu0 %v6771
        %8634 = vmatpush1.bf16.msra.mxu0 %v6770
        %8635 = vmatprep.subr.bf16.mxu0 %v6783
        %8636 = vmatpush1.bf16.msra.mxu0 %v6782
        %8637 = vmatprep.subr.bf16.mxu0 %v6795
        %8638 = vmatpush1.bf16.msra.mxu0 %v6794
        %8639 = vmatprep.subr.bf16.mxu0 %v6807
        %8640 = vmatpush1.bf16.msra.mxu0 %v6806
        %8641 = vmatprep.subr.bf16.mxu0 %v6819
        %8642 = vmatpush1.bf16.msra.mxu0 %v6818
        %8643 = vmatprep.subr.bf16.mxu0 %v6831
        %8644 = vmatpush1.bf16.msra.mxu0 %v6830
        %8645 = vmatprep.subr.bf16.mxu0 %v6843
        %8646 = vmatpush1.bf16.msra.mxu0 %v6842
        %8647 = vmatprep.subr.bf16.mxu0 %v6855
        %8648 = vmatpush1.bf16.msra.mxu0 %v6854
        %8649 = vmatprep.subr.bf16.mxu0 %v6867
        %8650 = vmatpush1.bf16.msra.mxu0 %v6866
        %8651 = vmatprep.subr.bf16.mxu0 %v6879
        %8652 = vmatpush1.bf16.msra.mxu0 %v6878
        %8653 = vmatprep.subr.bf16.mxu0 %v6891
        %8654 = vmatpush1.bf16.msra.mxu0 %v6890
        %8655 = vmatprep.subr.bf16.mxu0 %v6903
        %8656 = vmatpush1.bf16.msra.mxu0 %v6902
        %8657 = vmatprep.subr.bf16.mxu0 %v6915
        %8658 = vmatpush1.bf16.msra.mxu0 %v6914
        %8659 = vmatprep.mubr.bf16.mxu0 %v3011
        %8660 = vmatmul.mubr.bf16.gmra.mrb[0].mxu0 %v3010
        %v8661 = vpop.f32.mrb[0].mxu0
        %v8662 = vadd.f32 %v8621, %v8661
        %v8663 = vpop.f32.mrb[0].mxu0
        %v8664 = vadd.f32 %v8623, %v8663
        %v8665 = vpop.f32.mrb[0].mxu0
        %v8666 = vpop.f32.mrb[0].mxu0
        %8667 = vdwg.mxu0
        %v8668 = vtanh.pop %v7842
        %v8669 = vtanh.pop %v7844
        %v8670 = vtanh.pop %v8006
        %v8671 = vtanh.pop %v8008
        %v8672 = vtanh.pop %v8170
        %v8673 = vtanh.pop %v8172
        %v8674 = vtanh.pop %v8334
        %v8675 = vtanh.pop %v8336
        %v8676 = vtanh.pop %v8498
        %v8677 = vtanh.pop %v8500
        %v8678 = vtanh.pop %v8662
        %v8679 = vtanh.pop %v8664
        %8680 = vst [vmem:[%s479] sm:$0xff] %v8668
        %8681 = vst [vmem:[%s479 + $0x8] sm:$0xff] %v8669
        %8682 = vst [vmem:[%s479 + $0x10] sm:$0xff] %v8670
        %8683 = vst [vmem:[%s479 + $0x18] sm:$0xff] %v8671
        %8684 = vst [vmem:[%s479 + $0x20] sm:$0xff] %v8672
        %8685 = vst [vmem:[%s479 + $0x28] sm:$0xff] %v8673
        %8686 = vst [vmem:[%s479 + $0x30] sm:$0xff] %v8674
        %8687 = vst [vmem:[%s479 + $0x38] sm:$0xff] %v8675
        %8688 = vst [vmem:[%s479 + $0x40] sm:$0xff] %v8676
        %8689 = vst [vmem:[%s479 + $0x48] sm:$0xff] %v8677
        %8690 = vst [vmem:[%s479 + $0x50] sm:$0xff] %v8678
        %8691 = vst [vmem:[%s479 + $0x58] sm:$0xff] %v8679
        %s8692 = sand.u32 %s237, 1
        %s8693 = scalar_lea.sflag [#allocation4], %s8692
        %s8694 = sand.u32 %s237, 1
        %s8695 = smul.addr %s8694, 96
        %s8696 = scalar_lea.vmem [#allocation17], %s8695
        // Predicated region
        $region93: #{tpu_custom_call.1} parent=55 // pred_check
          %p8697 = pneg %p247
        $region94: #{tpu_custom_call.1} parent=55 // pred_check_branch
          %8699 = sbr.rel (%p8697) target = $region96
        $region95: #{tpu_custom_call.1} parent=55 // pred_region
          %s8700 = smul.u32 12, %s30
          %s8702 = ssub.s32 1536, 1536
          %8703 = vsyncadd %s8693, %s8702
          %s8704 = smul.addr %s8700, 128
          %s8705 = scalar_lea.hbm %s9, %s8704
          %s8707 = sshll.u32 %s8696, 4
          %s8708 = int_to_ptr.vmem [resolvable:$true] %s8707
          %8710 = dma.vmem_to_hbm [thread:$0]  %s8708, 1536, %s8705, %s8693
        $region96: #{tpu_custom_call.1} parent=55 // pred_fallthru
          _
      $region56: #{tpu_custom_call.1} parent=5 // pred_fallthru
        _
      %p8711 = scmp.le.s32.totalorder 2, %s25
      // Predicated region
      $region97: #{tpu_custom_call.1} parent=5 // pred_check
        %p8712 = pneg %p8711
      $region98: #{tpu_custom_call.1} parent=5 // pred_check_branch
        %8714 = sbr.rel (%p8712) target = $region100
      $region99: #{tpu_custom_call.1} parent=5 // pred_region
        %s8715 = ssub.s32 %s25, 2
        // Predicated region
        $region101: #{tpu_custom_call.1} parent=99 // pred_check
          %p8716 = pneg %p253
        $region102: #{tpu_custom_call.1} parent=99 // pred_check_branch
          %8718 = sbr.rel (%p8716) target = $region104
        $region103: #{tpu_custom_call.1} parent=99 // pred_region
          %s8719 = sand.u32 %s238, 1
          %s8720 = scalar_lea.sflag [#allocation4], %s8719
          %s8721 = sand.u32 %s238, 1
          %s8722 = smul.addr %s8721, 96
          %s8723 = scalar_lea.vmem [#allocation17], %s8722
          %8724 = dma.done %s8720, 1536
        $region104: #{tpu_custom_call.1} parent=99 // pred_fallthru
          _
      $region100: #{tpu_custom_call.1} parent=5 // pred_fallthru
        _
    $region6: #{tpu_custom_call.1} parent=1 // loop_footer
      %s29 = sadd.s32 1, %s25
    $region7: #{tpu_custom_call.1} parent=1 // loop_footer_branch
      %24 = sbr.rel target = $region3
    $region8: #{tpu_custom_call.1} parent=1 // loop_exit
      _
    %8725 = vsyncpa [#allocation3], 1
    %s8726 = scalar_lea.sflag [#allocation3], 1
    %8727 = vsyncpa %s8726, 1
    %8728 = vsyncpa [#allocation6], 1
    %8729 = vsyncpa [#allocation9], 1
    %8730 = vsyncpa [#allocation12], 1
    %8731 = vsyncpa [#allocation15], 1
    %s8732 = scalar_lea.sflag [#allocation15], 1
    %8733 = vsyncpa %s8732, 1
    %8734 = vsyncpa [#allocation4], 1
    %s8735 = scalar_lea.sflag [#allocation4], 1
    %8736 = vsyncpa %s8735, 1

</llo_original>
